<compile_context>
chip_gen: v7x
topology: tpu7x:2x2x1
jax: 0.10.0
libtpu: 0.0.40
codegen_flags: <defaults>
</compile_context>

<pallas_src>
import numpy as np

import jax
import jax.numpy as jnp
from jax.experimental import pallas as pl
from jax.experimental.pallas import tpu as pltpu

F32 = jnp.float32
BF16 = jnp.bfloat16


def _round_up(v, m):
    return ((v + m - 1) // m) * m


class MSPAFCNMaskHeadPallas:
    """Forward-pass-only port of MSPAFCNMaskHead (inference)."""

    def __init__(self, num_convs=4, roi_feat_size=8, in_channels=8,
                 conv_kernel_size=3, conv_out_channels=16,
                 upsample_method='deconv', upsample_ratio=2,
                 num_classes=8, class_agnostic=False, seed=0):
        assert num_convs == 4, "kernel specialized for num_convs=4 (module default)"
        assert conv_kernel_size == 3 and upsample_method == 'deconv' \
            and upsample_ratio == 2
        assert roi_feat_size % 2 == 0 and conv_out_channels % 2 == 0
        assert in_channels <= conv_out_channels
        self.roi = roi_feat_size
        self.cin = in_channels
        self.c = conv_out_channels
        self.ncls = num_classes
        self.class_agnostic = class_agnostic
        self.out_ch = 1 if class_agnostic else num_classes

        key = jax.random.PRNGKey(seed)

        def nxt(shape, scale=0.1):
            nonlocal key
            key, sub = jax.random.split(key)
            return (scale * jax.random.normal(sub, shape)).astype(F32)

        p = {}
        for i in range(4):                      # shared 3x3 ConvModules
            ci = self.cin if i == 0 else self.c
            p[f'conv{i}_w'] = nxt((3, 3, ci, self.c))          # HWIO
            p[f'conv{i}_b'] = nxt((self.c,), 0.01)
        p['fc4_w'] = nxt((3, 3, self.c, self.c))
        p['fc4_b'] = nxt((self.c,), 0.01)
        p['fc5_w'] = nxt((3, 3, self.c, self.c // 2))
        p['fc5_b'] = nxt((self.c // 2,), 0.01)
        # mask_fc Linear stored as (H*W, C/2, (2R)^2): row order (h, w, c).
        p['fc_w'] = nxt((self.roi * self.roi, self.c // 2, (2 * self.roi) ** 2), 0.05)
        p['fc_b'] = nxt(((2 * self.roi) ** 2,), 0.01)
        p['up_w'] = nxt((self.c, 2, 2, self.c))                # (Cin, i, j, Cout)
        p['up_b'] = nxt((self.c,), 0.01)
        for name in ('logits1', 'logits2', 'logits3'):
            p[name + '_w'] = nxt((self.c, self.out_ch))
            p[name + '_b'] = nxt((self.out_ch,), 0.01)
        self.params = p

        self._pack_weights()

    # --------------------- host-side weight packing (once) -------------------
    def _pack_weights(self):
        p = self.params
        H = W = self.roi
        C = self.c
        Wp = W + 2
        oc = self.out_ch
        ch2 = C // 2

        def expand_conv(w_hwio):
            """(3,3,Cp,Co) HWIO -> banded (3*(W+2)*Cp, W*Co) weight.

            Row (kh*(W+2) + u)*Cp + c, column w*Co + co holds W[kh, u-w, c, co]
            when 0 <= u - w <= 2 (the three kw taps), zero otherwise.  With an
            LHS that is the full zero-bordered padded row (width (W+2)*Cp),
            the conv needs no per-tap window extraction at all.
            """
            _, _, Cp, Co = w_hwio.shape
            out = np.zeros((3 * Wp * Cp, W * Co), np.float32)
            wnp = np.asarray(w_hwio, np.float32)
            for kh in range(3):
                for kw in range(3):
                    for wo in range(W):
                        u = wo + kw
                        r0 = kh * Wp * Cp + u * Cp
                        out[r0:r0 + Cp, wo * Co:(wo + 1) * Co] = wnp[kh, kw]
            return out

        # conv0 input channels zero-padded to C so every conv shares the same
        # padded-buffer layout.
        w0 = np.zeros((3, 3, C, C), np.float32)
        w0[:, :, :self.cin, :] = np.asarray(p['conv0_w'], np.float32)
        conv_cols = [expand_conv(w0)]
        for i in (1, 2, 3):
            conv_cols.append(expand_conv(np.asarray(p[f'conv{i}_w'], np.float32)))
        conv_cols.append(expand_conv(np.asarray(p['fc4_w'], np.float32)))
        conv_cols.append(expand_conv(np.asarray(p['fc5_w'], np.float32)))
        convw = np.concatenate(conv_cols, axis=1)   # (3*(W+2)*C, 5*W*C + W*C/2)

        def blockdiag(w, reps):                     # kron(I_reps, w)
            return np.kron(np.eye(reps, dtype=np.float32),
                           np.asarray(w, np.float32))

        # heads applied to feat (lanes = (w, c)); weights block-diagonal over w
        w_up = blockdiag(np.asarray(p['up_w'], np.float32).reshape(C, 4 * C), W)
        w_l2 = blockdiag(p['logits2_w'], W)                       # (W*C, W*oc)
        P = np.repeat(np.eye(W // 2, dtype=np.float32), 2, axis=0)  # (W, W/2)
        w_pool = 0.25 * np.kron(P, np.asarray(p['logits1_w'], np.float32))
        heada = np.concatenate([w_up, w_l2, w_pool], axis=1)      # (W*C, ...)

        w_l3 = blockdiag(p['logits3_w'], 4 * W)                   # (4*W*C, 4*W*oc)
        w_fc = np.asarray(p['fc_w'], np.float32).reshape(
            H * W * ch2, (2 * H) * (2 * W))
        rmax = max(w_l3.shape[0], w_fc.shape[0])
        if w_l3.shape[0] < rmax:
            w_l3 = np.pad(w_l3, ((0, rmax - w_l3.shape[0]), (0, 0)))
        if w_fc.shape[0] < rmax:
            w_fc = np.pad(w_fc, ((0, rmax - w_fc.shape[0]), (0, 0)))
        headb = np.concatenate([w_l3, w_fc], axis=1)

        def tile(b, reps):
            return np.tile(np.asarray(b, np.float32), reps)

        names = ['b0', 'b1', 'b2', 'b3', 'bf4', 'bf5',
                 'bup', 'bl2', 'bl3', 'bl1', 'bfc']
        parts = [
            tile(p['conv0_b'], W), tile(p['conv1_b'], W), tile(p['conv2_b'], W),
            tile(p['conv3_b'], W), tile(p['fc4_b'], W), tile(p['fc5_b'], W),
            tile(p['up_b'], 4 * W), tile(p['logits2_b'], W),
            tile(p['logits3_b'], 4 * W), tile(p['logits1_b'], W // 2),
            np.asarray(p['fc_b'], np.float32),
        ]
        offs, off = {}, 0
        for nm, prt in zip(names, parts):
            offs[nm] = off
            off += prt.shape[0]
        self.bias_offsets = offs
        self.bias_row = jnp.asarray(np.concatenate(parts)[None, :], dtype=F32)
        self.convw = jnp.asarray(convw).astype(BF16)
        self.heada = jnp.asarray(heada).astype(BF16)
        self.headb = jnp.asarray(headb).astype(BF16)

    # -------------------------- Pallas forward ------------------------------
    def __call__(self, x_nchw):
        H = W = self.roi
        C = self.c
        Wp = W + 2
        oc = self.out_ch
        ch2 = C // 2
        ph, pw = H // 2, W // 2
        n = x_nchw.shape[0]

        # ROI block size: multiple of 16 (bf16 sublane tile), up to 64; keep
        # grid >= 2 when n > 16 so both v7x TensorCores get work.
        if n <= 16:
            blk = 16
        else:
            blk = min(64, _round_up((n + 1) // 2, 16))
        n_pad = _round_up(n, blk)
        nb = n_pad // blk

        LP = Wp * C            # padded lane pitch per row (160)
        NWC = W * C            # 128
        s1w = W * oc           # 64   (per h)
        upw = 4 * W * C        # 512
        l3cols = 4 * W * oc    # 256  (per h)
        s2w = pw * oc          # 32   (per oh)
        g5w = W * ch2          # 64   (per h)
        kfc = H * W * ch2      # 512
        nfc = (2 * H) * (2 * W)  # 256
        bo = self.bias_offsets
        conv_col3 = 3 * NWC    # fused conv3|convfc4 columns
        fc5_col = 5 * NWC

        # --- lane-dense input: rows (block, h, roi), lanes (w, c) ---
        x = jnp.transpose(x_nchw.astype(F32), (0, 2, 3, 1))          # NHWC
        x = jnp.pad(x, ((0, n_pad - n), (0, 0), (0, 0), (0, C - self.cin)))
        x = x.reshape(nb, blk, H, NWC).transpose(0, 2, 1, 3)
        x = x.reshape(nb * H * blk, NWC).astype(BF16)

        def kernel(x_ref, cw_ref, ha_ref, hb_ref, b_ref,
                   s1_ref, s2_ref, m3_ref, fc_ref, pad_ref, flat_ref):
            M = H * blk

            def bias(name, width):
                o = bo[name]
                return b_ref[:, o:o + width]                      # (1, width)

            def conv_mm(col0, width):
                # 3 accumulated MXU matmuls (one per kernel row kh); the kw
                # taps live in the banded weight, so the LHS is just a shifted
                # row-slice of the zero-bordered buffer (always 160 lanes).
                acc = None
                for kh in range(3):
                    lhs = pad_ref[kh:kh + H].reshape(M, LP)
                    rhs = cw_ref[kh * LP:(kh + 1) * LP, col0:col0 + width]
                    y = jnp.dot(lhs, rhs, preferred_element_type=F32)
                    acc = y if acc is None else acc + y
                return acc

            def to_pad(act_bf):                                   # (M, NWC) bf16
                pad_ref[1:H + 1, :, C:C + NWC] = act_bf.reshape(H, blk, NWC)

            # zero halo (+interior) for this step; borders are never written so
            # they stay zero for all 5 convs of the step.
            pad_ref[...] = jnp.zeros(pad_ref.shape, pad_ref.dtype)

            # ---- shared conv tower convs[0..2] (reused by the fc branch) ----
            to_pad(x_ref[...])
            a = jnp.maximum(conv_mm(0 * NWC, NWC) + bias('b0', NWC), 0.0).astype(BF16)
            to_pad(a)
            a = jnp.maximum(conv_mm(1 * NWC, NWC) + bias('b1', NWC), 0.0).astype(BF16)
            to_pad(a)
            a = jnp.maximum(conv_mm(2 * NWC, NWC) + bias('b2', NWC), 0.0).astype(BF16)
            to_pad(a)                                             # a3 in pad

            # ---- conv3 and convfc4 fused (both consume a3) ----
            y34 = conv_mm(conv_col3, 2 * NWC)
            feat = jnp.maximum(y34[:, :NWC] + bias('b3', NWC), 0.0)     # f32
            g4 = jnp.maximum(y34[:, NWC:] + bias('bf4', NWC), 0.0).astype(BF16)
            feat_bf = feat.astype(BF16)

            # ---- fc branch: convfc5 -> flatten -> Linear + ReLU ----
            to_pad(g4)
            g5 = jnp.maximum(conv_mm(fc5_col, g5w) + bias('bf5', g5w),
                             0.0).astype(BF16)                    # (M, W*ch2)
            g5_3d = g5.reshape(H, blk, g5w)
            for h in range(H):                                    # 8 wide stores
                flat_ref[:, h * g5w:(h + 1) * g5w] = g5_3d[h]
            fcv = jnp.dot(flat_ref[...], hb_ref[:kfc, l3cols:l3cols + nfc],
                          preferred_element_type=F32) + bias('bfc', nfc)
            fc_ref[...] = jnp.maximum(fcv, 0.0)

            # ---- heads: deconv|conv_logits2 fused, then conv_logits3 ----
            hh = jnp.dot(feat_bf, ha_ref[:, 0:upw + s1w],
                         preferred_element_type=F32)
            up = jnp.maximum(hh[:, :upw] + bias('bup', upw), 0.0).astype(BF16)
            s1 = hh[:, upw:upw + s1w] + bias('bl2', s1w)
            m3 = jnp.dot(up, hb_ref[:upw, 0:l3cols],
                         preferred_element_type=F32) + bias('bl3', l3cols)

            s1_3d = s1.reshape(H, blk, s1w)
            m3_3d = m3.reshape(H, blk, l3cols)
            for h in range(H):
                s1_ref[:, h * s1w:(h + 1) * s1w] = s1_3d[h]
                m3_ref[:, h * l3cols:(h + 1) * l3cols] = m3_3d[h]

            # ---- avgpool(2x2) + conv_logits1 (pool folded into the weight) ----
            fr = feat.reshape(ph, 2 * blk, NWC)
            hp = (fr[:, :blk, :] + fr[:, blk:, :]).reshape(ph * blk, NWC)
            s2 = jnp.dot(hp.astype(BF16),
                         ha_ref[:, upw + s1w:upw + s1w + s2w],
                         preferred_element_type=F32) + bias('bl1', s2w)
            s2_3d = s2.reshape(ph, blk, s2w)
            for ohh in range(ph):
                s2_ref[:, ohh * s2w:(ohh + 1) * s2w] = s2_3d[ohh]

        weights = [self.convw, self.heada, self.headb, self.bias_row]

        def cspec(a):
            return pl.BlockSpec(a.shape, lambda i, _nd=a.ndim: (0,) * _nd)

        in_specs = [pl.BlockSpec((H * blk, NWC), lambda i: (i, 0))]
        in_specs += [cspec(a) for a in weights]

        out_shape = (
            jax.ShapeDtypeStruct((n_pad, H * s1w), F32),       # s1  (·,512)
            jax.ShapeDtypeStruct((n_pad, ph * s2w), F32),      # s2  (·,128)
            jax.ShapeDtypeStruct((n_pad, H * l3cols), F32),    # m3  (·,2048)
            jax.ShapeDtypeStruct((n_pad, nfc), F32),           # fc  (·,256)
        )
        out_specs = (
            pl.BlockSpec((blk, H * s1w), lambda i: (i, 0)),
            pl.BlockSpec((blk, ph * s2w), lambda i: (i, 0)),
            pl.BlockSpec((blk, H * l3cols), lambda i: (i, 0)),
            pl.BlockSpec((blk, nfc), lambda i: (i, 0)),
        )
        scratch_shapes = [
            pltpu.VMEM((H + 2, blk, LP), BF16),   # zero-bordered activation
            pltpu.VMEM((blk, kfc), BF16),         # flattened fc input
        ]

        s1f, s2f, m3f, fcv = pl.pallas_call(
            kernel,
            out_shape=out_shape,
            grid=(nb,),
            in_specs=in_specs,
            out_specs=out_specs,
            scratch_shapes=scratch_shapes,
            compiler_params=pltpu.CompilerParams(
                dimension_semantics=("parallel",)),
        )(x, *weights)

        # ---- cheap layout glue (pure XLA on small tensors) ----
        s1 = jnp.transpose(s1f[:n].reshape(n, H, W, oc), (0, 3, 1, 2))
        s2 = jnp.transpose(s2f[:n].reshape(n, ph, pw, oc), (0, 3, 1, 2))
        m3 = m3f[:n].reshape(n, H, W, 2, 2, oc)
        m3 = jnp.transpose(m3, (0, 1, 3, 2, 4, 5)).reshape(n, 2 * H, 2 * W, oc)
        m3 = jnp.transpose(m3, (0, 3, 1, 2))                  # (n, oc, 2H, 2W)
        fc_img = fcv[:n].reshape(n, 1, 2 * H, 2 * W)
        s0 = m3 + fc_img        # class broadcast fuses into the add
        return s0, s1, s2

    # --------------------- pure-JAX reference (for checking) -----------------
    def reference(self, x_nchw):
        p = self.params
        n = x_nchw.shape[0]
        H = W = self.roi
        C, out_ch = self.c, self.out_ch

        def conv(a, w, b):                      # ConvModule: 3x3 'same' + ReLU
            y = jax.lax.conv_general_dilated(
                a.astype(BF16), w.astype(BF16), (1, 1), 'SAME',
                dimension_numbers=('NHWC', 'HWIO', 'NHWC'),
                preferred_element_type=F32)
            return jnp.maximum(y + b, 0.0)

        def dense(a2, w, b):
            return jnp.dot(a2.astype(BF16), w.astype(BF16),
                           preferred_element_type=F32) + b

        x = jnp.transpose(x_nchw.astype(F32), (0, 2, 3, 1))
        feat = x
        for i in range(4):
            feat = conv(feat, p[f'conv{i}_w'], p[f'conv{i}_b'])

        s1 = dense(feat.reshape(-1, C), p['logits2_w'], p['logits2_b'])
        s1 = jnp.transpose(s1.reshape(n, H, W, out_ch), (0, 3, 1, 2))

        pooled = jnp.mean(feat.reshape(n, H // 2, 2, W // 2, 2, C), axis=(2, 4))
        s2 = dense(pooled.reshape(-1, C), p['logits1_w'], p['logits1_b'])
        s2 = jnp.transpose(s2.reshape(n, H // 2, W // 2, out_ch), (0, 3, 1, 2))

        up = jnp.einsum('bhwc,cijo->bhwijo', feat.astype(BF16),
                        p['up_w'].astype(BF16), preferred_element_type=F32)
        up = jnp.maximum(up + p['up_b'], 0.0)
        up = jnp.transpose(up, (0, 1, 3, 2, 4, 5)).reshape(n, 2 * H, 2 * W, C)
        m3 = dense(up.reshape(-1, C), p['logits3_w'], p['logits3_b'])
        m3 = jnp.transpose(m3.reshape(n, 2 * H, 2 * W, out_ch), (0, 3, 1, 2))

        g = x
        for i in range(3):
            g = conv(g, p[f'conv{i}_w'], p[f'conv{i}_b'])
        g = conv(g, p['fc4_w'], p['fc4_b'])
        g = conv(g, p['fc5_w'], p['fc5_b'])                     # (n, H, W, C/2)
        fc = jnp.einsum('bpc,pcr->br',
                        g.astype(BF16).reshape(n, H * W, C // 2),
                        p['fc_w'].astype(BF16),
                        preferred_element_type=F32) + p['fc_b']
        fc = jnp.maximum(fc, 0.0).reshape(n, 1, 2 * H, 2 * W)

        s0 = m3 + fc
        return s0, s1, s2


# ---------------------------------- main -------------------------------------

if __name__ == "__main__":
    head = MSPAFCNMaskHeadPallas(
        num_convs=4, roi_feat_size=8, in_channels=8, conv_out_channels=16,
        num_classes=8, class_agnostic=False, seed=0)

    key = jax.random.PRNGKey(0)
    x = jax.random.normal(key, (2, 8, 8, 8), dtype=jnp.float32)   # NCHW ROI feats

    fwd = jax.jit(head.__call__)
    s0, s1, s2 = fwd(x)
    jax.block_until_ready((s0, s1, s2))

    assert s0.shape == (2, 8, 16, 16), s0.shape   # (N, num_classes, 2*roi, 2*roi)
    assert s1.shape == (2, 8, 8, 8), s1.shape     # (N, num_classes, roi, roi)
    assert s2.shape == (2, 8, 4, 4), s2.shape     # (N, num_classes, roi/2, roi/2)

    r0, r1, r2 = jax.jit(head.reference)(x)
    jax.block_until_ready((r0, r1, r2))
    for got, ref in ((s0, r0), (s1, r1), (s2, r2)):
        assert bool(jnp.all(jnp.isfinite(got)))
        err = float(jnp.max(jnp.abs(got - ref)))
        assert err < 2e-2, f"mismatch vs reference: {err}"

    print("KERNEL_OK")
</pallas_src>

<mosaic_0001>
module attributes {stable_mosaic.version = 11 : i64} {
  func.func @kernel(%arg0: i32, %arg1: memref<128x128xbf16, #tpu.memory_space<vmem>>, %arg2: memref<480x704xbf16, #tpu.memory_space<vmem>>, %arg3: memref<128x608xbf16, #tpu.memory_space<vmem>>, %arg4: memref<512x512xbf16, #tpu.memory_space<vmem>>, %arg5: memref<1x1824xf32, #tpu.memory_space<vmem>>, %arg6: memref<16x512xf32, #tpu.memory_space<vmem>>, %arg7: memref<16x128xf32, #tpu.memory_space<vmem>>, %arg8: memref<16x2048xf32, #tpu.memory_space<vmem>>, %arg9: memref<16x256xf32, #tpu.memory_space<vmem>>, %arg10: memref<10x16x160xbf16, #tpu.memory_space<vmem>>, %arg11: memref<16x512xbf16, #tpu.memory_space<vmem>>) attributes {dimension_semantics = [#tpu.dimension_semantics<parallel>], iteration_bounds = array<i64: 1>, scalar_prefetch = 0 : i64, scratch_operands = 2 : i64, tpu.core_type = #tpu.core_type<tc>, window_params = [{transform_indices = @transform_0, window_bounds = array<i64: 128, 128>}, {pipeline_mode = #tpu.pipeline_mode<synchronous>, transform_indices = @transform_1, window_bounds = array<i64: 480, 704>}, {pipeline_mode = #tpu.pipeline_mode<synchronous>, transform_indices = @transform_2, window_bounds = array<i64: 128, 608>}, {pipeline_mode = #tpu.pipeline_mode<synchronous>, transform_indices = @transform_3, window_bounds = array<i64: 512, 512>}, {pipeline_mode = #tpu.pipeline_mode<synchronous>, transform_indices = @transform_4, window_bounds = array<i64: 1, 1824>}, {transform_indices = @transform_5, window_bounds = array<i64: 16, 512>}, {transform_indices = @transform_6, window_bounds = array<i64: 16, 128>}, {transform_indices = @transform_7, window_bounds = array<i64: 16, 2048>}, {transform_indices = @transform_8, window_bounds = array<i64: 16, 256>}]} {
    %cst = arith.constant 0.000000e+00 : bf16
    %0 = vector.broadcast %cst : bf16 to vector<10x16x160xbf16>
    %c0 = arith.constant 0 : index
    %c0_0 = arith.constant 0 : index
    %c0_1 = arith.constant 0 : index
    %1 = vector.load %arg10[%c0, %c0_0, %c0_1] : memref<10x16x160xbf16, #tpu.memory_space<vmem>>, vector<10x16x160xbf16>
    tpu.vector_store %arg10[%c0, %c0_0, %c0_1], %0 {strides = array<i32>} : memref<10x16x160xbf16, #tpu.memory_space<vmem>>, vector<10x16x160xbf16>,
    %c0_2 = arith.constant 0 : index
    %c0_3 = arith.constant 0 : index
    %2 = vector.load %arg1[%c0_2, %c0_3] : memref<128x128xbf16, #tpu.memory_space<vmem>>, vector<128x128xbf16>
    %3 = vector.shape_cast %2 : vector<128x128xbf16> to vector<8x16x128xbf16>
    %c1 = arith.constant 1 : index
    %c0_4 = arith.constant 0 : index
    %c16 = arith.constant 16 : index
    %4 = vector.load %arg10[%c1, %c0_4, %c16] : memref<10x16x160xbf16, #tpu.memory_space<vmem>>, vector<8x16x128xbf16>
    tpu.vector_store %arg10[%c1, %c0_4, %c16], %3 {strides = array<i32>} : memref<10x16x160xbf16, #tpu.memory_space<vmem>>, vector<8x16x128xbf16>,
    %c0_5 = arith.constant 0 : index
    %c0_6 = arith.constant 0 : index
    %c0_7 = arith.constant 0 : index
    %5 = vector.load %arg10[%c0_5, %c0_6, %c0_7] : memref<10x16x160xbf16, #tpu.memory_space<vmem>>, vector<8x16x160xbf16>
    %6 = vector.shape_cast %5 : vector<8x16x160xbf16> to vector<128x160xbf16>
    %c0_8 = arith.constant 0 : index
    %c0_9 = arith.constant 0 : index
    %7 = vector.load %arg2[%c0_8, %c0_9] : memref<480x704xbf16, #tpu.memory_space<vmem>>, vector<160x128xbf16>
    %cst_10 = arith.constant dense<0.000000e+00> : vector<128x128xf32>
    %8 = tpu.matmul %6, %7, %cst_10 {dimension_numbers = #tpu.dot_dimension_numbers<[1], [0], [0], [1], [0, 0, 1, 1], [], []>} : vector<128x160xbf16>, vector<160x128xbf16>, vector<128x128xf32> -> vector<128x128xf32>
    %c1_11 = arith.constant 1 : index
    %c0_12 = arith.constant 0 : index
    %c0_13 = arith.constant 0 : index
    %9 = vector.load %arg10[%c1_11, %c0_12, %c0_13] : memref<10x16x160xbf16, #tpu.memory_space<vmem>>, vector<8x16x160xbf16>
    %10 = vector.shape_cast %9 : vector<8x16x160xbf16> to vector<128x160xbf16>
    %c160 = arith.constant 160 : index
    %c0_14 = arith.constant 0 : index
    %11 = vector.load %arg2[%c160, %c0_14] : memref<480x704xbf16, #tpu.memory_space<vmem>>, vector<160x128xbf16>
    %cst_15 = arith.constant dense<0.000000e+00> : vector<128x128xf32>
    %12 = tpu.matmul %10, %11, %cst_15 {dimension_numbers = #tpu.dot_dimension_numbers<[1], [0], [0], [1], [0, 0, 1, 1], [], []>} : vector<128x160xbf16>, vector<160x128xbf16>, vector<128x128xf32> -> vector<128x128xf32>
    %13 = arith.addf %8, %12 : vector<128x128xf32>
    %c2 = arith.constant 2 : index
    %c0_16 = arith.constant 0 : index
    %c0_17 = arith.constant 0 : index
    %14 = vector.load %arg10[%c2, %c0_16, %c0_17] : memref<10x16x160xbf16, #tpu.memory_space<vmem>>, vector<8x16x160xbf16>
    %15 = vector.shape_cast %14 : vector<8x16x160xbf16> to vector<128x160xbf16>
    %c320 = arith.constant 320 : index
    %c0_18 = arith.constant 0 : index
    %16 = vector.load %arg2[%c320, %c0_18] : memref<480x704xbf16, #tpu.memory_space<vmem>>, vector<160x128xbf16>
    %cst_19 = arith.constant dense<0.000000e+00> : vector<128x128xf32>
    %17 = tpu.matmul %15, %16, %cst_19 {dimension_numbers = #tpu.dot_dimension_numbers<[1], [0], [0], [1], [0, 0, 1, 1], [], []>} : vector<128x160xbf16>, vector<160x128xbf16>, vector<128x128xf32> -> vector<128x128xf32>
    %18 = arith.addf %13, %17 : vector<128x128xf32>
    %c0_20 = arith.constant 0 : index
    %c0_21 = arith.constant 0 : index
    %19 = vector.load %arg5[%c0_20, %c0_21] : memref<1x1824xf32, #tpu.memory_space<vmem>>, vector<1x128xf32>
    %20 = vector.broadcast %19 : vector<1x128xf32> to vector<128x128xf32>
    %21 = arith.addf %18, %20 : vector<128x128xf32>
    %cst_22 = arith.constant 0.000000e+00 : f32
    %22 = vector.broadcast %cst_22 : f32 to vector<128x128xf32>
    %23 = arith.maximumf %21, %22 : vector<128x128xf32>
    %24 = arith.truncf %23 : vector<128x128xf32> to vector<128x128xbf16>
    %25 = vector.shape_cast %24 : vector<128x128xbf16> to vector<8x16x128xbf16>
    %c1_23 = arith.constant 1 : index
    %c0_24 = arith.constant 0 : index
    %c16_25 = arith.constant 16 : index
    %26 = vector.load %arg10[%c1_23, %c0_24, %c16_25] : memref<10x16x160xbf16, #tpu.memory_space<vmem>>, vector<8x16x128xbf16>
    tpu.vector_store %arg10[%c1_23, %c0_24, %c16_25], %25 {strides = array<i32>} : memref<10x16x160xbf16, #tpu.memory_space<vmem>>, vector<8x16x128xbf16>,
    %c0_26 = arith.constant 0 : index
    %c0_27 = arith.constant 0 : index
    %c0_28 = arith.constant 0 : index
    %27 = vector.load %arg10[%c0_26, %c0_27, %c0_28] : memref<10x16x160xbf16, #tpu.memory_space<vmem>>, vector<8x16x160xbf16>
    %28 = vector.shape_cast %27 : vector<8x16x160xbf16> to vector<128x160xbf16>
    %c0_29 = arith.constant 0 : index
    %c128 = arith.constant 128 : index
    %29 = vector.load %arg2[%c0_29, %c128] : memref<480x704xbf16, #tpu.memory_space<vmem>>, vector<160x128xbf16>
    %cst_30 = arith.constant dense<0.000000e+00> : vector<128x128xf32>
    %30 = tpu.matmul %28, %29, %cst_30 {dimension_numbers = #tpu.dot_dimension_numbers<[1], [0], [0], [1], [0, 0, 1, 1], [], []>} : vector<128x160xbf16>, vector<160x128xbf16>, vector<128x128xf32> -> vector<128x128xf32>
    %c1_31 = arith.constant 1 : index
    %c0_32 = arith.constant 0 : index
    %c0_33 = arith.constant 0 : index
    %31 = vector.load %arg10[%c1_31, %c0_32, %c0_33] : memref<10x16x160xbf16, #tpu.memory_space<vmem>>, vector<8x16x160xbf16>
    %32 = vector.shape_cast %31 : vector<8x16x160xbf16> to vector<128x160xbf16>
    %c160_34 = arith.constant 160 : index
    %c128_35 = arith.constant 128 : index
    %33 = vector.load %arg2[%c160_34, %c128_35] : memref<480x704xbf16, #tpu.memory_space<vmem>>, vector<160x128xbf16>
    %cst_36 = arith.constant dense<0.000000e+00> : vector<128x128xf32>
    %34 = tpu.matmul %32, %33, %cst_36 {dimension_numbers = #tpu.dot_dimension_numbers<[1], [0], [0], [1], [0, 0, 1, 1], [], []>} : vector<128x160xbf16>, vector<160x128xbf16>, vector<128x128xf32> -> vector<128x128xf32>
    %35 = arith.addf %30, %34 : vector<128x128xf32>
    %c2_37 = arith.constant 2 : index
    %c0_38 = arith.constant 0 : index
    %c0_39 = arith.constant 0 : index
    %36 = vector.load %arg10[%c2_37, %c0_38, %c0_39] : memref<10x16x160xbf16, #tpu.memory_space<vmem>>, vector<8x16x160xbf16>
    %37 = vector.shape_cast %36 : vector<8x16x160xbf16> to vector<128x160xbf16>
    %c320_40 = arith.constant 320 : index
    %c128_41 = arith.constant 128 : index
    %38 = vector.load %arg2[%c320_40, %c128_41] : memref<480x704xbf16, #tpu.memory_space<vmem>>, vector<160x128xbf16>
    %cst_42 = arith.constant dense<0.000000e+00> : vector<128x128xf32>
    %39 = tpu.matmul %37, %38, %cst_42 {dimension_numbers = #tpu.dot_dimension_numbers<[1], [0], [0], [1], [0, 0, 1, 1], [], []>} : vector<128x160xbf16>, vector<160x128xbf16>, vector<128x128xf32> -> vector<128x128xf32>
    %40 = arith.addf %35, %39 : vector<128x128xf32>
    %c0_43 = arith.constant 0 : index
    %c128_44 = arith.constant 128 : index
    %41 = vector.load %arg5[%c0_43, %c128_44] : memref<1x1824xf32, #tpu.memory_space<vmem>>, vector<1x128xf32>
    %42 = vector.broadcast %41 : vector<1x128xf32> to vector<128x128xf32>
    %43 = arith.addf %40, %42 : vector<128x128xf32>
    %cst_45 = arith.constant 0.000000e+00 : f32
    %44 = vector.broadcast %cst_45 : f32 to vector<128x128xf32>
    %45 = arith.maximumf %43, %44 : vector<128x128xf32>
    %46 = arith.truncf %45 : vector<128x128xf32> to vector<128x128xbf16>
    %47 = vector.shape_cast %46 : vector<128x128xbf16> to vector<8x16x128xbf16>
    %c1_46 = arith.constant 1 : index
    %c0_47 = arith.constant 0 : index
    %c16_48 = arith.constant 16 : index
    %48 = vector.load %arg10[%c1_46, %c0_47, %c16_48] : memref<10x16x160xbf16, #tpu.memory_space<vmem>>, vector<8x16x128xbf16>
    tpu.vector_store %arg10[%c1_46, %c0_47, %c16_48], %47 {strides = array<i32>} : memref<10x16x160xbf16, #tpu.memory_space<vmem>>, vector<8x16x128xbf16>,
    %c0_49 = arith.constant 0 : index
    %c0_50 = arith.constant 0 : index
    %c0_51 = arith.constant 0 : index
    %49 = vector.load %arg10[%c0_49, %c0_50, %c0_51] : memref<10x16x160xbf16, #tpu.memory_space<vmem>>, vector<8x16x160xbf16>
    %50 = vector.shape_cast %49 : vector<8x16x160xbf16> to vector<128x160xbf16>
    %c0_52 = arith.constant 0 : index
    %c256 = arith.constant 256 : index
    %51 = vector.load %arg2[%c0_52, %c256] : memref<480x704xbf16, #tpu.memory_space<vmem>>, vector<160x128xbf16>
    %cst_53 = arith.constant dense<0.000000e+00> : vector<128x128xf32>
    %52 = tpu.matmul %50, %51, %cst_53 {dimension_numbers = #tpu.dot_dimension_numbers<[1], [0], [0], [1], [0, 0, 1, 1], [], []>} : vector<128x160xbf16>, vector<160x128xbf16>, vector<128x128xf32> -> vector<128x128xf32>
    %c1_54 = arith.constant 1 : index
    %c0_55 = arith.constant 0 : index
    %c0_56 = arith.constant 0 : index
    %53 = vector.load %arg10[%c1_54, %c0_55, %c0_56] : memref<10x16x160xbf16, #tpu.memory_space<vmem>>, vector<8x16x160xbf16>
    %54 = vector.shape_cast %53 : vector<8x16x160xbf16> to vector<128x160xbf16>
    %c160_57 = arith.constant 160 : index
    %c256_58 = arith.constant 256 : index
    %55 = vector.load %arg2[%c160_57, %c256_58] : memref<480x704xbf16, #tpu.memory_space<vmem>>, vector<160x128xbf16>
    %cst_59 = arith.constant dense<0.000000e+00> : vector<128x128xf32>
    %56 = tpu.matmul %54, %55, %cst_59 {dimension_numbers = #tpu.dot_dimension_numbers<[1], [0], [0], [1], [0, 0, 1, 1], [], []>} : vector<128x160xbf16>, vector<160x128xbf16>, vector<128x128xf32> -> vector<128x128xf32>
    %57 = arith.addf %52, %56 : vector<128x128xf32>
    %c2_60 = arith.constant 2 : index
    %c0_61 = arith.constant 0 : index
    %c0_62 = arith.constant 0 : index
    %58 = vector.load %arg10[%c2_60, %c0_61, %c0_62] : memref<10x16x160xbf16, #tpu.memory_space<vmem>>, vector<8x16x160xbf16>
    %59 = vector.shape_cast %58 : vector<8x16x160xbf16> to vector<128x160xbf16>
    %c320_63 = arith.constant 320 : index
    %c256_64 = arith.constant 256 : index
    %60 = vector.load %arg2[%c320_63, %c256_64] : memref<480x704xbf16, #tpu.memory_space<vmem>>, vector<160x128xbf16>
    %cst_65 = arith.constant dense<0.000000e+00> : vector<128x128xf32>
    %61 = tpu.matmul %59, %60, %cst_65 {dimension_numbers = #tpu.dot_dimension_numbers<[1], [0], [0], [1], [0, 0, 1, 1], [], []>} : vector<128x160xbf16>, vector<160x128xbf16>, vector<128x128xf32> -> vector<128x128xf32>
    %62 = arith.addf %57, %61 : vector<128x128xf32>
    %c0_66 = arith.constant 0 : index
    %c256_67 = arith.constant 256 : index
    %63 = vector.load %arg5[%c0_66, %c256_67] : memref<1x1824xf32, #tpu.memory_space<vmem>>, vector<1x128xf32>
    %64 = vector.broadcast %63 : vector<1x128xf32> to vector<128x128xf32>
    %65 = arith.addf %62, %64 : vector<128x128xf32>
    %cst_68 = arith.constant 0.000000e+00 : f32
    %66 = vector.broadcast %cst_68 : f32 to vector<128x128xf32>
    %67 = arith.maximumf %65, %66 : vector<128x128xf32>
    %68 = arith.truncf %67 : vector<128x128xf32> to vector<128x128xbf16>
    %69 = vector.shape_cast %68 : vector<128x128xbf16> to vector<8x16x128xbf16>
    %c1_69 = arith.constant 1 : index
    %c0_70 = arith.constant 0 : index
    %c16_71 = arith.constant 16 : index
    %70 = vector.load %arg10[%c1_69, %c0_70, %c16_71] : memref<10x16x160xbf16, #tpu.memory_space<vmem>>, vector<8x16x128xbf16>
    tpu.vector_store %arg10[%c1_69, %c0_70, %c16_71], %69 {strides = array<i32>} : memref<10x16x160xbf16, #tpu.memory_space<vmem>>, vector<8x16x128xbf16>,
    %c0_72 = arith.constant 0 : index
    %c0_73 = arith.constant 0 : index
    %c0_74 = arith.constant 0 : index
    %71 = vector.load %arg10[%c0_72, %c0_73, %c0_74] : memref<10x16x160xbf16, #tpu.memory_space<vmem>>, vector<8x16x160xbf16>
    %72 = vector.shape_cast %71 : vector<8x16x160xbf16> to vector<128x160xbf16>
    %c0_75 = arith.constant 0 : index
    %c384 = arith.constant 384 : index
    %73 = vector.load %arg2[%c0_75, %c384] : memref<480x704xbf16, #tpu.memory_space<vmem>>, vector<160x256xbf16>
    %cst_76 = arith.constant dense<0.000000e+00> : vector<128x256xf32>
    %74 = tpu.matmul %72, %73, %cst_76 {dimension_numbers = #tpu.dot_dimension_numbers<[1], [0], [0], [1], [0, 0, 1, 1], [], []>} : vector<128x160xbf16>, vector<160x256xbf16>, vector<128x256xf32> -> vector<128x256xf32>
    %c1_77 = arith.constant 1 : index
    %c0_78 = arith.constant 0 : index
    %c0_79 = arith.constant 0 : index
    %75 = vector.load %arg10[%c1_77, %c0_78, %c0_79] : memref<10x16x160xbf16, #tpu.memory_space<vmem>>, vector<8x16x160xbf16>
    %76 = vector.shape_cast %75 : vector<8x16x160xbf16> to vector<128x160xbf16>
    %c160_80 = arith.constant 160 : index
    %c384_81 = arith.constant 384 : index
    %77 = vector.load %arg2[%c160_80, %c384_81] : memref<480x704xbf16, #tpu.memory_space<vmem>>, vector<160x256xbf16>
    %cst_82 = arith.constant dense<0.000000e+00> : vector<128x256xf32>
    %78 = tpu.matmul %76, %77, %cst_82 {dimension_numbers = #tpu.dot_dimension_numbers<[1], [0], [0], [1], [0, 0, 1, 1], [], []>} : vector<128x160xbf16>, vector<160x256xbf16>, vector<128x256xf32> -> vector<128x256xf32>
    %79 = arith.addf %74, %78 : vector<128x256xf32>
    %c2_83 = arith.constant 2 : index
    %c0_84 = arith.constant 0 : index
    %c0_85 = arith.constant 0 : index
    %80 = vector.load %arg10[%c2_83, %c0_84, %c0_85] : memref<10x16x160xbf16, #tpu.memory_space<vmem>>, vector<8x16x160xbf16>
    %81 = vector.shape_cast %80 : vector<8x16x160xbf16> to vector<128x160xbf16>
    %c320_86 = arith.constant 320 : index
    %c384_87 = arith.constant 384 : index
    %82 = vector.load %arg2[%c320_86, %c384_87] : memref<480x704xbf16, #tpu.memory_space<vmem>>, vector<160x256xbf16>
    %cst_88 = arith.constant dense<0.000000e+00> : vector<128x256xf32>
    %83 = tpu.matmul %81, %82, %cst_88 {dimension_numbers = #tpu.dot_dimension_numbers<[1], [0], [0], [1], [0, 0, 1, 1], [], []>} : vector<128x160xbf16>, vector<160x256xbf16>, vector<128x256xf32> -> vector<128x256xf32>
    %84 = arith.addf %79, %83 : vector<128x256xf32>
    %85 = vector.extract_strided_slice %84 {offsets = [0, 0], sizes = [128, 128], strides = [1, 1]} : vector<128x256xf32> to vector<128x128xf32>
    %c0_89 = arith.constant 0 : index
    %c384_90 = arith.constant 384 : index
    %86 = vector.load %arg5[%c0_89, %c384_90] : memref<1x1824xf32, #tpu.memory_space<vmem>>, vector<1x128xf32>
    %87 = vector.broadcast %86 : vector<1x128xf32> to vector<128x128xf32>
    %88 = arith.addf %85, %87 : vector<128x128xf32>
    %cst_91 = arith.constant 0.000000e+00 : f32
    %89 = vector.broadcast %cst_91 : f32 to vector<128x128xf32>
    %90 = arith.maximumf %88, %89 : vector<128x128xf32>
    %91 = vector.extract_strided_slice %84 {offsets = [0, 128], sizes = [128, 128], strides = [1, 1]} : vector<128x256xf32> to vector<128x128xf32>
    %c0_92 = arith.constant 0 : index
    %c512 = arith.constant 512 : index
    %92 = vector.load %arg5[%c0_92, %c512] : memref<1x1824xf32, #tpu.memory_space<vmem>>, vector<1x128xf32>
    %93 = vector.broadcast %92 : vector<1x128xf32> to vector<128x128xf32>
    %94 = arith.addf %91, %93 : vector<128x128xf32>
    %cst_93 = arith.constant 0.000000e+00 : f32
    %95 = vector.broadcast %cst_93 : f32 to vector<128x128xf32>
    %96 = arith.maximumf %94, %95 : vector<128x128xf32>
    %97 = arith.truncf %96 : vector<128x128xf32> to vector<128x128xbf16>
    %98 = arith.truncf %90 : vector<128x128xf32> to vector<128x128xbf16>
    %99 = vector.shape_cast %97 : vector<128x128xbf16> to vector<8x16x128xbf16>
    %c1_94 = arith.constant 1 : index
    %c0_95 = arith.constant 0 : index
    %c16_96 = arith.constant 16 : index
    %100 = vector.load %arg10[%c1_94, %c0_95, %c16_96] : memref<10x16x160xbf16, #tpu.memory_space<vmem>>, vector<8x16x128xbf16>
    tpu.vector_store %arg10[%c1_94, %c0_95, %c16_96], %99 {strides = array<i32>} : memref<10x16x160xbf16, #tpu.memory_space<vmem>>, vector<8x16x128xbf16>,
    %c0_97 = arith.constant 0 : index
    %c0_98 = arith.constant 0 : index
    %c0_99 = arith.constant 0 : index
    %101 = vector.load %arg10[%c0_97, %c0_98, %c0_99] : memref<10x16x160xbf16, #tpu.memory_space<vmem>>, vector<8x16x160xbf16>
    %102 = vector.shape_cast %101 : vector<8x16x160xbf16> to vector<128x160xbf16>
    %c0_100 = arith.constant 0 : index
    %c640 = arith.constant 640 : index
    %103 = vector.load %arg2[%c0_100, %c640] : memref<480x704xbf16, #tpu.memory_space<vmem>>, vector<160x64xbf16>
    %cst_101 = arith.constant dense<0.000000e+00> : vector<128x64xf32>
    %104 = tpu.matmul %102, %103, %cst_101 {dimension_numbers = #tpu.dot_dimension_numbers<[1], [0], [0], [1], [0, 0, 1, 1], [], []>} : vector<128x160xbf16>, vector<160x64xbf16>, vector<128x64xf32> -> vector<128x64xf32>
    %c1_102 = arith.constant 1 : index
    %c0_103 = arith.constant 0 : index
    %c0_104 = arith.constant 0 : index
    %105 = vector.load %arg10[%c1_102, %c0_103, %c0_104] : memref<10x16x160xbf16, #tpu.memory_space<vmem>>, vector<8x16x160xbf16>
    %106 = vector.shape_cast %105 : vector<8x16x160xbf16> to vector<128x160xbf16>
    %c160_105 = arith.constant 160 : index
    %c640_106 = arith.constant 640 : index
    %107 = vector.load %arg2[%c160_105, %c640_106] : memref<480x704xbf16, #tpu.memory_space<vmem>>, vector<160x64xbf16>
    %cst_107 = arith.constant dense<0.000000e+00> : vector<128x64xf32>
    %108 = tpu.matmul %106, %107, %cst_107 {dimension_numbers = #tpu.dot_dimension_numbers<[1], [0], [0], [1], [0, 0, 1, 1], [], []>} : vector<128x160xbf16>, vector<160x64xbf16>, vector<128x64xf32> -> vector<128x64xf32>
    %109 = arith.addf %104, %108 : vector<128x64xf32>
    %c2_108 = arith.constant 2 : index
    %c0_109 = arith.constant 0 : index
    %c0_110 = arith.constant 0 : index
    %110 = vector.load %arg10[%c2_108, %c0_109, %c0_110] : memref<10x16x160xbf16, #tpu.memory_space<vmem>>, vector<8x16x160xbf16>
    %111 = vector.shape_cast %110 : vector<8x16x160xbf16> to vector<128x160xbf16>
    %c320_111 = arith.constant 320 : index
    %c640_112 = arith.constant 640 : index
    %112 = vector.load %arg2[%c320_111, %c640_112] : memref<480x704xbf16, #tpu.memory_space<vmem>>, vector<160x64xbf16>
    %cst_113 = arith.constant dense<0.000000e+00> : vector<128x64xf32>
    %113 = tpu.matmul %111, %112, %cst_113 {dimension_numbers = #tpu.dot_dimension_numbers<[1], [0], [0], [1], [0, 0, 1, 1], [], []>} : vector<128x160xbf16>, vector<160x64xbf16>, vector<128x64xf32> -> vector<128x64xf32>
    %114 = arith.addf %109, %113 : vector<128x64xf32>
    %c0_114 = arith.constant 0 : index
    %c640_115 = arith.constant 640 : index
    %115 = vector.load %arg5[%c0_114, %c640_115] : memref<1x1824xf32, #tpu.memory_space<vmem>>, vector<1x64xf32>
    %116 = vector.broadcast %115 : vector<1x64xf32> to vector<128x64xf32>
    %117 = arith.addf %114, %116 : vector<128x64xf32>
    %cst_116 = arith.constant 0.000000e+00 : f32
    %118 = vector.broadcast %cst_116 : f32 to vector<128x64xf32>
    %119 = arith.maximumf %117, %118 : vector<128x64xf32>
    %120 = arith.truncf %119 : vector<128x64xf32> to vector<128x64xbf16>
    %121 = vector.shape_cast %120 : vector<128x64xbf16> to vector<8x16x64xbf16>
    %122 = vector.extract_strided_slice %121 {offsets = [0, 0, 0], sizes = [1, 16, 64], strides = [1, 1, 1]} : vector<8x16x64xbf16> to vector<1x16x64xbf16>
    %123 = vector.shape_cast %122 : vector<1x16x64xbf16> to vector<16x64xbf16>
    %c0_117 = arith.constant 0 : index
    %c0_118 = arith.constant 0 : index
    %124 = vector.load %arg11[%c0_117, %c0_118] : memref<16x512xbf16, #tpu.memory_space<vmem>>, vector<16x64xbf16>
    tpu.vector_store %arg11[%c0_117, %c0_118], %123 {strides = array<i32>} : memref<16x512xbf16, #tpu.memory_space<vmem>>, vector<16x64xbf16>,
    %125 = vector.extract_strided_slice %121 {offsets = [1, 0, 0], sizes = [1, 16, 64], strides = [1, 1, 1]} : vector<8x16x64xbf16> to vector<1x16x64xbf16>
    %126 = vector.shape_cast %125 : vector<1x16x64xbf16> to vector<16x64xbf16>
    %c0_119 = arith.constant 0 : index
    %c64 = arith.constant 64 : index
    %127 = vector.load %arg11[%c0_119, %c64] : memref<16x512xbf16, #tpu.memory_space<vmem>>, vector<16x64xbf16>
    tpu.vector_store %arg11[%c0_119, %c64], %126 {strides = array<i32>} : memref<16x512xbf16, #tpu.memory_space<vmem>>, vector<16x64xbf16>,
    %128 = vector.extract_strided_slice %121 {offsets = [2, 0, 0], sizes = [1, 16, 64], strides = [1, 1, 1]} : vector<8x16x64xbf16> to vector<1x16x64xbf16>
    %129 = vector.shape_cast %128 : vector<1x16x64xbf16> to vector<16x64xbf16>
    %c0_120 = arith.constant 0 : index
    %c128_121 = arith.constant 128 : index
    %130 = vector.load %arg11[%c0_120, %c128_121] : memref<16x512xbf16, #tpu.memory_space<vmem>>, vector<16x64xbf16>
    tpu.vector_store %arg11[%c0_120, %c128_121], %129 {strides = array<i32>} : memref<16x512xbf16, #tpu.memory_space<vmem>>, vector<16x64xbf16>,
    %131 = vector.extract_strided_slice %121 {offsets = [3, 0, 0], sizes = [1, 16, 64], strides = [1, 1, 1]} : vector<8x16x64xbf16> to vector<1x16x64xbf16>
    %132 = vector.shape_cast %131 : vector<1x16x64xbf16> to vector<16x64xbf16>
    %c0_122 = arith.constant 0 : index
    %c192 = arith.constant 192 : index
    %133 = vector.load %arg11[%c0_122, %c192] : memref<16x512xbf16, #tpu.memory_space<vmem>>, vector<16x64xbf16>
    tpu.vector_store %arg11[%c0_122, %c192], %132 {strides = array<i32>} : memref<16x512xbf16, #tpu.memory_space<vmem>>, vector<16x64xbf16>,
    %134 = vector.extract_strided_slice %121 {offsets = [4, 0, 0], sizes = [1, 16, 64], strides = [1, 1, 1]} : vector<8x16x64xbf16> to vector<1x16x64xbf16>
    %135 = vector.shape_cast %134 : vector<1x16x64xbf16> to vector<16x64xbf16>
    %c0_123 = arith.constant 0 : index
    %c256_124 = arith.constant 256 : index
    %136 = vector.load %arg11[%c0_123, %c256_124] : memref<16x512xbf16, #tpu.memory_space<vmem>>, vector<16x64xbf16>
    tpu.vector_store %arg11[%c0_123, %c256_124], %135 {strides = array<i32>} : memref<16x512xbf16, #tpu.memory_space<vmem>>, vector<16x64xbf16>,
    %137 = vector.extract_strided_slice %121 {offsets = [5, 0, 0], sizes = [1, 16, 64], strides = [1, 1, 1]} : vector<8x16x64xbf16> to vector<1x16x64xbf16>
    %138 = vector.shape_cast %137 : vector<1x16x64xbf16> to vector<16x64xbf16>
    %c0_125 = arith.constant 0 : index
    %c320_126 = arith.constant 320 : index
    %139 = vector.load %arg11[%c0_125, %c320_126] : memref<16x512xbf16, #tpu.memory_space<vmem>>, vector<16x64xbf16>
    tpu.vector_store %arg11[%c0_125, %c320_126], %138 {strides = array<i32>} : memref<16x512xbf16, #tpu.memory_space<vmem>>, vector<16x64xbf16>,
    %140 = vector.extract_strided_slice %121 {offsets = [6, 0, 0], sizes = [1, 16, 64], strides = [1, 1, 1]} : vector<8x16x64xbf16> to vector<1x16x64xbf16>
    %141 = vector.shape_cast %140 : vector<1x16x64xbf16> to vector<16x64xbf16>
    %c0_127 = arith.constant 0 : index
    %c384_128 = arith.constant 384 : index
    %142 = vector.load %arg11[%c0_127, %c384_128] : memref<16x512xbf16, #tpu.memory_space<vmem>>, vector<16x64xbf16>
    tpu.vector_store %arg11[%c0_127, %c384_128], %141 {strides = array<i32>} : memref<16x512xbf16, #tpu.memory_space<vmem>>, vector<16x64xbf16>,
    %143 = vector.extract_strided_slice %121 {offsets = [7, 0, 0], sizes = [1, 16, 64], strides = [1, 1, 1]} : vector<8x16x64xbf16> to vector<1x16x64xbf16>
    %144 = vector.shape_cast %143 : vector<1x16x64xbf16> to vector<16x64xbf16>
    %c0_129 = arith.constant 0 : index
    %c448 = arith.constant 448 : index
    %145 = vector.load %arg11[%c0_129, %c448] : memref<16x512xbf16, #tpu.memory_space<vmem>>, vector<16x64xbf16>
    tpu.vector_store %arg11[%c0_129, %c448], %144 {strides = array<i32>} : memref<16x512xbf16, #tpu.memory_space<vmem>>, vector<16x64xbf16>,
    %c0_130 = arith.constant 0 : index
    %c0_131 = arith.constant 0 : index
    %146 = vector.load %arg11[%c0_130, %c0_131] : memref<16x512xbf16, #tpu.memory_space<vmem>>, vector<16x512xbf16>
    %c0_132 = arith.constant 0 : index
    %c256_133 = arith.constant 256 : index
    %147 = vector.load %arg4[%c0_132, %c256_133] : memref<512x512xbf16, #tpu.memory_space<vmem>>, vector<512x256xbf16>
    %cst_134 = arith.constant dense<0.000000e+00> : vector<16x256xf32>
    %148 = tpu.matmul %146, %147, %cst_134 {dimension_numbers = #tpu.dot_dimension_numbers<[1], [0], [0], [1], [0, 0, 1, 1], [], []>} : vector<16x512xbf16>, vector<512x256xbf16>, vector<16x256xf32> -> vector<16x256xf32>
    %c0_135 = arith.constant 0 : index
    %c1568 = arith.constant 1568 : index
    %149 = vector.load %arg5[%c0_135, %c1568] : memref<1x1824xf32, #tpu.memory_space<vmem>>, vector<1x256xf32>
    %150 = vector.broadcast %149 : vector<1x256xf32> to vector<16x256xf32>
    %151 = arith.addf %148, %150 : vector<16x256xf32>
    %cst_136 = arith.constant 0.000000e+00 : f32
    %152 = vector.broadcast %cst_136 : f32 to vector<16x256xf32>
    %153 = arith.maximumf %151, %152 : vector<16x256xf32>
    %c0_137 = arith.constant 0 : index
    %c0_138 = arith.constant 0 : index
    %154 = vector.load %arg9[%c0_137, %c0_138] : memref<16x256xf32, #tpu.memory_space<vmem>>, vector<16x256xf32>
    tpu.vector_store %arg9[%c0_137, %c0_138], %153 {strides = array<i32>} : memref<16x256xf32, #tpu.memory_space<vmem>>, vector<16x256xf32>,
    %c0_139 = arith.constant 0 : index
    %c0_140 = arith.constant 0 : index
    %155 = vector.load %arg3[%c0_139, %c0_140] : memref<128x608xbf16, #tpu.memory_space<vmem>>, vector<128x576xbf16>
    %cst_141 = arith.constant dense<0.000000e+00> : vector<128x576xf32>
    %156 = tpu.matmul %98, %155, %cst_141 {dimension_numbers = #tpu.dot_dimension_numbers<[1], [0], [0], [1], [0, 0, 1, 1], [], []>} : vector<128x128xbf16>, vector<128x576xbf16>, vector<128x576xf32> -> vector<128x576xf32>
    %157 = vector.extract_strided_slice %156 {offsets = [0, 0], sizes = [128, 512], strides = [1, 1]} : vector<128x576xf32> to vector<128x512xf32>
    %c0_142 = arith.constant 0 : index
    %c704 = arith.constant 704 : index
    %158 = vector.load %arg5[%c0_142, %c704] : memref<1x1824xf32, #tpu.memory_space<vmem>>, vector<1x512xf32>
    %159 = vector.broadcast %158 : vector<1x512xf32> to vector<128x512xf32>
    %160 = arith.addf %157, %159 : vector<128x512xf32>
    %cst_143 = arith.constant 0.000000e+00 : f32
    %161 = vector.broadcast %cst_143 : f32 to vector<128x512xf32>
    %162 = arith.maximumf %160, %161 : vector<128x512xf32>
    %163 = arith.truncf %162 : vector<128x512xf32> to vector<128x512xbf16>
    %164 = vector.extract_strided_slice %156 {offsets = [0, 512], sizes = [128, 64], strides = [1, 1]} : vector<128x576xf32> to vector<128x64xf32>
    %c0_144 = arith.constant 0 : index
    %c1216 = arith.constant 1216 : index
    %165 = vector.load %arg5[%c0_144, %c1216] : memref<1x1824xf32, #tpu.memory_space<vmem>>, vector<1x64xf32>
    %166 = vector.broadcast %165 : vector<1x64xf32> to vector<128x64xf32>
    %167 = arith.addf %164, %166 : vector<128x64xf32>
    %c0_145 = arith.constant 0 : index
    %c0_146 = arith.constant 0 : index
    %168 = vector.load %arg4[%c0_145, %c0_146] : memref<512x512xbf16, #tpu.memory_space<vmem>>, vector<512x256xbf16>
    %cst_147 = arith.constant dense<0.000000e+00> : vector<128x256xf32>
    %169 = tpu.matmul %163, %168, %cst_147 {dimension_numbers = #tpu.dot_dimension_numbers<[1], [0], [0], [1], [0, 0, 1, 1], [], []>} : vector<128x512xbf16>, vector<512x256xbf16>, vector<128x256xf32> -> vector<128x256xf32>
    %c0_148 = arith.constant 0 : index
    %c1280 = arith.constant 1280 : index
    %170 = vector.load %arg5[%c0_148, %c1280] : memref<1x1824xf32, #tpu.memory_space<vmem>>, vector<1x256xf32>
    %171 = vector.broadcast %170 : vector<1x256xf32> to vector<128x256xf32>
    %172 = arith.addf %169, %171 : vector<128x256xf32>
    %173 = vector.shape_cast %167 : vector<128x64xf32> to vector<8x16x64xf32>
    %174 = vector.shape_cast %172 : vector<128x256xf32> to vector<8x16x256xf32>
    %175 = vector.extract_strided_slice %173 {offsets = [0, 0, 0], sizes = [1, 16, 64], strides = [1, 1, 1]} : vector<8x16x64xf32> to vector<1x16x64xf32>
    %176 = vector.shape_cast %175 : vector<1x16x64xf32> to vector<16x64xf32>
    %c0_149 = arith.constant 0 : index
    %c0_150 = arith.constant 0 : index
    %177 = vector.load %arg6[%c0_149, %c0_150] : memref<16x512xf32, #tpu.memory_space<vmem>>, vector<16x64xf32>
    tpu.vector_store %arg6[%c0_149, %c0_150], %176 {strides = array<i32>} : memref<16x512xf32, #tpu.memory_space<vmem>>, vector<16x64xf32>,
    %178 = vector.extract_strided_slice %174 {offsets = [0, 0, 0], sizes = [1, 16, 256], strides = [1, 1, 1]} : vector<8x16x256xf32> to vector<1x16x256xf32>
    %179 = vector.shape_cast %178 : vector<1x16x256xf32> to vector<16x256xf32>
    %c0_151 = arith.constant 0 : index
    %c0_152 = arith.constant 0 : index
    %180 = vector.load %arg8[%c0_151, %c0_152] : memref<16x2048xf32, #tpu.memory_space<vmem>>, vector<16x256xf32>
    tpu.vector_store %arg8[%c0_151, %c0_152], %179 {strides = array<i32>} : memref<16x2048xf32, #tpu.memory_space<vmem>>, vector<16x256xf32>,
    %181 = vector.extract_strided_slice %173 {offsets = [1, 0, 0], sizes = [1, 16, 64], strides = [1, 1, 1]} : vector<8x16x64xf32> to vector<1x16x64xf32>
    %182 = vector.shape_cast %181 : vector<1x16x64xf32> to vector<16x64xf32>
    %c0_153 = arith.constant 0 : index
    %c64_154 = arith.constant 64 : index
    %183 = vector.load %arg6[%c0_153, %c64_154] : memref<16x512xf32, #tpu.memory_space<vmem>>, vector<16x64xf32>
    tpu.vector_store %arg6[%c0_153, %c64_154], %182 {strides = array<i32>} : memref<16x512xf32, #tpu.memory_space<vmem>>, vector<16x64xf32>,
    %184 = vector.extract_strided_slice %174 {offsets = [1, 0, 0], sizes = [1, 16, 256], strides = [1, 1, 1]} : vector<8x16x256xf32> to vector<1x16x256xf32>
    %185 = vector.shape_cast %184 : vector<1x16x256xf32> to vector<16x256xf32>
    %c0_155 = arith.constant 0 : index
    %c256_156 = arith.constant 256 : index
    %186 = vector.load %arg8[%c0_155, %c256_156] : memref<16x2048xf32, #tpu.memory_space<vmem>>, vector<16x256xf32>
    tpu.vector_store %arg8[%c0_155, %c256_156], %185 {strides = array<i32>} : memref<16x2048xf32, #tpu.memory_space<vmem>>, vector<16x256xf32>,
    %187 = vector.extract_strided_slice %173 {offsets = [2, 0, 0], sizes = [1, 16, 64], strides = [1, 1, 1]} : vector<8x16x64xf32> to vector<1x16x64xf32>
    %188 = vector.shape_cast %187 : vector<1x16x64xf32> to vector<16x64xf32>
    %c0_157 = arith.constant 0 : index
    %c128_158 = arith.constant 128 : index
    %189 = vector.load %arg6[%c0_157, %c128_158] : memref<16x512xf32, #tpu.memory_space<vmem>>, vector<16x64xf32>
    tpu.vector_store %arg6[%c0_157, %c128_158], %188 {strides = array<i32>} : memref<16x512xf32, #tpu.memory_space<vmem>>, vector<16x64xf32>,
    %190 = vector.extract_strided_slice %174 {offsets = [2, 0, 0], sizes = [1, 16, 256], strides = [1, 1, 1]} : vector<8x16x256xf32> to vector<1x16x256xf32>
    %191 = vector.shape_cast %190 : vector<1x16x256xf32> to vector<16x256xf32>
    %c0_159 = arith.constant 0 : index
    %c512_160 = arith.constant 512 : index
    %192 = vector.load %arg8[%c0_159, %c512_160] : memref<16x2048xf32, #tpu.memory_space<vmem>>, vector<16x256xf32>
    tpu.vector_store %arg8[%c0_159, %c512_160], %191 {strides = array<i32>} : memref<16x2048xf32, #tpu.memory_space<vmem>>, vector<16x256xf32>,
    %193 = vector.extract_strided_slice %173 {offsets = [3, 0, 0], sizes = [1, 16, 64], strides = [1, 1, 1]} : vector<8x16x64xf32> to vector<1x16x64xf32>
    %194 = vector.shape_cast %193 : vector<1x16x64xf32> to vector<16x64xf32>
    %c0_161 = arith.constant 0 : index
    %c192_162 = arith.constant 192 : index
    %195 = vector.load %arg6[%c0_161, %c192_162] : memref<16x512xf32, #tpu.memory_space<vmem>>, vector<16x64xf32>
    tpu.vector_store %arg6[%c0_161, %c192_162], %194 {strides = array<i32>} : memref<16x512xf32, #tpu.memory_space<vmem>>, vector<16x64xf32>,
    %196 = vector.extract_strided_slice %174 {offsets = [3, 0, 0], sizes = [1, 16, 256], strides = [1, 1, 1]} : vector<8x16x256xf32> to vector<1x16x256xf32>
    %197 = vector.shape_cast %196 : vector<1x16x256xf32> to vector<16x256xf32>
    %c0_163 = arith.constant 0 : index
    %c768 = arith.constant 768 : index
    %198 = vector.load %arg8[%c0_163, %c768] : memref<16x2048xf32, #tpu.memory_space<vmem>>, vector<16x256xf32>
    tpu.vector_store %arg8[%c0_163, %c768], %197 {strides = array<i32>} : memref<16x2048xf32, #tpu.memory_space<vmem>>, vector<16x256xf32>,
    %199 = vector.extract_strided_slice %173 {offsets = [4, 0, 0], sizes = [1, 16, 64], strides = [1, 1, 1]} : vector<8x16x64xf32> to vector<1x16x64xf32>
    %200 = vector.shape_cast %199 : vector<1x16x64xf32> to vector<16x64xf32>
    %c0_164 = arith.constant 0 : index
    %c256_165 = arith.constant 256 : index
    %201 = vector.load %arg6[%c0_164, %c256_165] : memref<16x512xf32, #tpu.memory_space<vmem>>, vector<16x64xf32>
    tpu.vector_store %arg6[%c0_164, %c256_165], %200 {strides = array<i32>} : memref<16x512xf32, #tpu.memory_space<vmem>>, vector<16x64xf32>,
    %202 = vector.extract_strided_slice %174 {offsets = [4, 0, 0], sizes = [1, 16, 256], strides = [1, 1, 1]} : vector<8x16x256xf32> to vector<1x16x256xf32>
    %203 = vector.shape_cast %202 : vector<1x16x256xf32> to vector<16x256xf32>
    %c0_166 = arith.constant 0 : index
    %c1024 = arith.constant 1024 : index
    %204 = vector.load %arg8[%c0_166, %c1024] : memref<16x2048xf32, #tpu.memory_space<vmem>>, vector<16x256xf32>
    tpu.vector_store %arg8[%c0_166, %c1024], %203 {strides = array<i32>} : memref<16x2048xf32, #tpu.memory_space<vmem>>, vector<16x256xf32>,
    %205 = vector.extract_strided_slice %173 {offsets = [5, 0, 0], sizes = [1, 16, 64], strides = [1, 1, 1]} : vector<8x16x64xf32> to vector<1x16x64xf32>
    %206 = vector.shape_cast %205 : vector<1x16x64xf32> to vector<16x64xf32>
    %c0_167 = arith.constant 0 : index
    %c320_168 = arith.constant 320 : index
    %207 = vector.load %arg6[%c0_167, %c320_168] : memref<16x512xf32, #tpu.memory_space<vmem>>, vector<16x64xf32>
    tpu.vector_store %arg6[%c0_167, %c320_168], %206 {strides = array<i32>} : memref<16x512xf32, #tpu.memory_space<vmem>>, vector<16x64xf32>,
    %208 = vector.extract_strided_slice %174 {offsets = [5, 0, 0], sizes = [1, 16, 256], strides = [1, 1, 1]} : vector<8x16x256xf32> to vector<1x16x256xf32>
    %209 = vector.shape_cast %208 : vector<1x16x256xf32> to vector<16x256xf32>
    %c0_169 = arith.constant 0 : index
    %c1280_170 = arith.constant 1280 : index
    %210 = vector.load %arg8[%c0_169, %c1280_170] : memref<16x2048xf32, #tpu.memory_space<vmem>>, vector<16x256xf32>
    tpu.vector_store %arg8[%c0_169, %c1280_170], %209 {strides = array<i32>} : memref<16x2048xf32, #tpu.memory_space<vmem>>, vector<16x256xf32>,
    %211 = vector.extract_strided_slice %173 {offsets = [6, 0, 0], sizes = [1, 16, 64], strides = [1, 1, 1]} : vector<8x16x64xf32> to vector<1x16x64xf32>
    %212 = vector.shape_cast %211 : vector<1x16x64xf32> to vector<16x64xf32>
    %c0_171 = arith.constant 0 : index
    %c384_172 = arith.constant 384 : index
    %213 = vector.load %arg6[%c0_171, %c384_172] : memref<16x512xf32, #tpu.memory_space<vmem>>, vector<16x64xf32>
    tpu.vector_store %arg6[%c0_171, %c384_172], %212 {strides = array<i32>} : memref<16x512xf32, #tpu.memory_space<vmem>>, vector<16x64xf32>,
    %214 = vector.extract_strided_slice %174 {offsets = [6, 0, 0], sizes = [1, 16, 256], strides = [1, 1, 1]} : vector<8x16x256xf32> to vector<1x16x256xf32>
    %215 = vector.shape_cast %214 : vector<1x16x256xf32> to vector<16x256xf32>
    %c0_173 = arith.constant 0 : index
    %c1536 = arith.constant 1536 : index
    %216 = vector.load %arg8[%c0_173, %c1536] : memref<16x2048xf32, #tpu.memory_space<vmem>>, vector<16x256xf32>
    tpu.vector_store %arg8[%c0_173, %c1536], %215 {strides = array<i32>} : memref<16x2048xf32, #tpu.memory_space<vmem>>, vector<16x256xf32>,
    %217 = vector.extract_strided_slice %173 {offsets = [7, 0, 0], sizes = [1, 16, 64], strides = [1, 1, 1]} : vector<8x16x64xf32> to vector<1x16x64xf32>
    %218 = vector.shape_cast %217 : vector<1x16x64xf32> to vector<16x64xf32>
    %c0_174 = arith.constant 0 : index
    %c448_175 = arith.constant 448 : index
    %219 = vector.load %arg6[%c0_174, %c448_175] : memref<16x512xf32, #tpu.memory_space<vmem>>, vector<16x64xf32>
    tpu.vector_store %arg6[%c0_174, %c448_175], %218 {strides = array<i32>} : memref<16x512xf32, #tpu.memory_space<vmem>>, vector<16x64xf32>,
    %220 = vector.extract_strided_slice %174 {offsets = [7, 0, 0], sizes = [1, 16, 256], strides = [1, 1, 1]} : vector<8x16x256xf32> to vector<1x16x256xf32>
    %221 = vector.shape_cast %220 : vector<1x16x256xf32> to vector<16x256xf32>
    %c0_176 = arith.constant 0 : index
    %c1792 = arith.constant 1792 : index
    %222 = vector.load %arg8[%c0_176, %c1792] : memref<16x2048xf32, #tpu.memory_space<vmem>>, vector<16x256xf32>
    tpu.vector_store %arg8[%c0_176, %c1792], %221 {strides = array<i32>} : memref<16x2048xf32, #tpu.memory_space<vmem>>, vector<16x256xf32>,
    %223 = vector.shape_cast %90 : vector<128x128xf32> to vector<4x32x128xf32>
    %224 = vector.extract_strided_slice %223 {offsets = [0, 0, 0], sizes = [4, 16, 128], strides = [1, 1, 1]} : vector<4x32x128xf32> to vector<4x16x128xf32>
    %225 = vector.extract_strided_slice %223 {offsets = [0, 16, 0], sizes = [4, 16, 128], strides = [1, 1, 1]} : vector<4x32x128xf32> to vector<4x16x128xf32>
    %226 = arith.addf %224, %225 : vector<4x16x128xf32>
    %227 = vector.shape_cast %226 : vector<4x16x128xf32> to vector<64x128xf32>
    %228 = arith.truncf %227 : vector<64x128xf32> to vector<64x128xbf16>
    %c0_177 = arith.constant 0 : index
    %c576 = arith.constant 576 : index
    %229 = vector.load %arg3[%c0_177, %c576] : memref<128x608xbf16, #tpu.memory_space<vmem>>, vector<128x32xbf16>
    %cst_178 = arith.constant dense<0.000000e+00> : vector<64x32xf32>
    %230 = tpu.matmul %228, %229, %cst_178 {dimension_numbers = #tpu.dot_dimension_numbers<[1], [0], [0], [1], [0, 0, 1, 1], [], []>} : vector<64x128xbf16>, vector<128x32xbf16>, vector<64x32xf32> -> vector<64x32xf32>
    %c0_179 = arith.constant 0 : index
    %c1536_180 = arith.constant 1536 : index
    %231 = vector.load %arg5[%c0_179, %c1536_180] : memref<1x1824xf32, #tpu.memory_space<vmem>>, vector<1x32xf32>
    %232 = vector.broadcast %231 : vector<1x32xf32> to vector<64x32xf32>
    %233 = arith.addf %230, %232 : vector<64x32xf32>
    %234 = vector.shape_cast %233 : vector<64x32xf32> to vector<4x16x32xf32>
    %235 = vector.extract_strided_slice %234 {offsets = [0, 0, 0], sizes = [1, 16, 32], strides = [1, 1, 1]} : vector<4x16x32xf32> to vector<1x16x32xf32>
    %236 = vector.shape_cast %235 : vector<1x16x32xf32> to vector<16x32xf32>
    %c0_181 = arith.constant 0 : index
    %c0_182 = arith.constant 0 : index
    %237 = vector.load %arg7[%c0_181, %c0_182] : memref<16x128xf32, #tpu.memory_space<vmem>>, vector<16x32xf32>
    tpu.vector_store %arg7[%c0_181, %c0_182], %236 {strides = array<i32>} : memref<16x128xf32, #tpu.memory_space<vmem>>, vector<16x32xf32>,
    %238 = vector.extract_strided_slice %234 {offsets = [1, 0, 0], sizes = [1, 16, 32], strides = [1, 1, 1]} : vector<4x16x32xf32> to vector<1x16x32xf32>
    %239 = vector.shape_cast %238 : vector<1x16x32xf32> to vector<16x32xf32>
    %c0_183 = arith.constant 0 : index
    %c32 = arith.constant 32 : index
    %240 = vector.load %arg7[%c0_183, %c32] : memref<16x128xf32, #tpu.memory_space<vmem>>, vector<16x32xf32>
    tpu.vector_store %arg7[%c0_183, %c32], %239 {strides = array<i32>} : memref<16x128xf32, #tpu.memory_space<vmem>>, vector<16x32xf32>,
    %241 = vector.extract_strided_slice %234 {offsets = [2, 0, 0], sizes = [1, 16, 32], strides = [1, 1, 1]} : vector<4x16x32xf32> to vector<1x16x32xf32>
    %242 = vector.shape_cast %241 : vector<1x16x32xf32> to vector<16x32xf32>
    %c0_184 = arith.constant 0 : index
    %c64_185 = arith.constant 64 : index
    %243 = vector.load %arg7[%c0_184, %c64_185] : memref<16x128xf32, #tpu.memory_space<vmem>>, vector<16x32xf32>
    tpu.vector_store %arg7[%c0_184, %c64_185], %242 {strides = array<i32>} : memref<16x128xf32, #tpu.memory_space<vmem>>, vector<16x32xf32>,
    %244 = vector.extract_strided_slice %234 {offsets = [3, 0, 0], sizes = [1, 16, 32], strides = [1, 1, 1]} : vector<4x16x32xf32> to vector<1x16x32xf32>
    %245 = vector.shape_cast %244 : vector<1x16x32xf32> to vector<16x32xf32>
    %c0_186 = arith.constant 0 : index
    %c96 = arith.constant 96 : index
    %246 = vector.load %arg7[%c0_186, %c96] : memref<16x128xf32, #tpu.memory_space<vmem>>, vector<16x32xf32>
    tpu.vector_store %arg7[%c0_186, %c96], %245 {strides = array<i32>} : memref<16x128xf32, #tpu.memory_space<vmem>>, vector<16x32xf32>,
    return
  }
  func.func @transform_0(%arg0: i32) -> (i32, i32) {
    %c0_i32 = arith.constant 0 : i32
    %c0_i32_0 = arith.constant 0 : i32
    return %arg0, %c0_i32 : i32, i32
  }
  func.func @transform_1(%arg0: i32) -> (i32, i32) {
    %c0_i32 = arith.constant 0 : i32
    %c0_i32_0 = arith.constant 0 : i32
    %c0_i32_1 = arith.constant 0 : i32
    return %c0_i32, %c0_i32_0 : i32, i32
  }
  func.func @transform_2(%arg0: i32) -> (i32, i32) {
    %c0_i32 = arith.constant 0 : i32
    %c0_i32_0 = arith.constant 0 : i32
    %c0_i32_1 = arith.constant 0 : i32
    return %c0_i32, %c0_i32_0 : i32, i32
  }
  func.func @transform_3(%arg0: i32) -> (i32, i32) {
    %c0_i32 = arith.constant 0 : i32
    %c0_i32_0 = arith.constant 0 : i32
    %c0_i32_1 = arith.constant 0 : i32
    return %c0_i32, %c0_i32_0 : i32, i32
  }
  func.func @transform_4(%arg0: i32) -> (i32, i32) {
    %c0_i32 = arith.constant 0 : i32
    %c0_i32_0 = arith.constant 0 : i32
    %c0_i32_1 = arith.constant 0 : i32
    return %c0_i32, %c0_i32_0 : i32, i32
  }
  func.func @transform_5(%arg0: i32) -> (i32, i32) {
    %c0_i32 = arith.constant 0 : i32
    %c0_i32_0 = arith.constant 0 : i32
    return %arg0, %c0_i32 : i32, i32
  }
  func.func @transform_6(%arg0: i32) -> (i32, i32) {
    %c0_i32 = arith.constant 0 : i32
    %c0_i32_0 = arith.constant 0 : i32
    return %arg0, %c0_i32 : i32, i32
  }
  func.func @transform_7(%arg0: i32) -> (i32, i32) {
    %c0_i32 = arith.constant 0 : i32
    %c0_i32_0 = arith.constant 0 : i32
    return %arg0, %c0_i32 : i32, i32
  }
  func.func @transform_8(%arg0: i32) -> (i32, i32) {
    %c0_i32 = arith.constant 0 : i32
    %c0_i32_0 = arith.constant 0 : i32
    return %arg0, %c0_i32 : i32, i32
  }
}

</mosaic_0001>

<llo_original>
// kernel: a_call__.1
$region0: #{a_call__.1}
  #allocation0 [shape = 'u32[]', space=smem, size = 0x4, offset = 0x4, fixed_abs, tag = 'smem constant byte address 0x4 - core index']
  #allocation1 [shape = 'u32[144,128]{1,0:T(1,128)}', space=vmem, size = 0x12000, scoped, tag = 'internal scratch']
  #allocation2 [shape = 'bf16[10,16,160]{2,1,0:T(16,128)(2,1)}', space=vmem, size = 0x14000, scoped, tag = 'scratch operand']
  #allocation3 [shape = 'bf16[16,512]{1,0:T(16,128)(2,1)}', space=vmem, size = 0x4000, scoped, tag = 'scratch operand']
  %s0 = inlined_call_operand.vmem [shape: bf16[128,128], index: 0, kind: input, shape index: {}]
  %s1 = inlined_call_operand.vmem [shape: bf16[480,704], index: 1, kind: input, shape index: {}]
  %s2 = inlined_call_operand.vmem [shape: bf16[128,608], index: 2, kind: input, shape index: {}]
  %s3 = inlined_call_operand.vmem [shape: bf16[512,512], index: 3, kind: input, shape index: {}]
  %s4 = inlined_call_operand.vmem [shape: f32[1,1824], index: 4, kind: input, shape index: {}]
  %s5 = inlined_call_operand.vmem [shape: f32[16,512], index: 5, kind: output, shape index: {0}]
  %s6 = inlined_call_operand.vmem [shape: f32[16,128], index: 6, kind: output, shape index: {1}]
  %s7 = inlined_call_operand.vmem [shape: f32[16,2048], index: 7, kind: output, shape index: {2}]
  %s8 = inlined_call_operand.vmem [shape: f32[16,256], index: 8, kind: output, shape index: {3}]
  %9 = xla_tuple %s5, %s6, %s7, %s8
  %s10 = sld [smem:[#allocation0]]
  $region54: #{a_call__.1} parent=0
    _
  %s12 = ssub.s32 1, %s10
  %s13 = scalar_select 0, %s12, %s10
  // Predicated region
  $region2: #{a_call__.1} parent=0 // pred_check
    _
  $region3: #{a_call__.1} parent=0 // pred_check_branch
    %15 = sbr.rel (0) target = $region5
  $region4: #{a_call__.1} parent=0 // pred_region
    _
  $region5: #{a_call__.1} parent=0 // pred_fallthru
    _
  // Predicated region
  $region6: #{a_call__.1} parent=0 // pred_check
    _
  $region7: #{a_call__.1} parent=0 // pred_check_branch
    %17 = sbr.rel (0) target = $region9
  $region8: #{a_call__.1} parent=0 // pred_region
    _
  $region9: #{a_call__.1} parent=0 // pred_fallthru
    _
  // Predicated region
  $region10: #{a_call__.1} parent=0 // pred_check
    _
  $region11: #{a_call__.1} parent=0 // pred_check_branch
    %19 = sbr.rel (0) target = $region13
  $region12: #{a_call__.1} parent=0 // pred_region
    _
  $region13: #{a_call__.1} parent=0 // pred_fallthru
    _
  // Predicated region
  $region14: #{a_call__.1} parent=0 // pred_check
    _
  $region15: #{a_call__.1} parent=0 // pred_check_branch
    %21 = sbr.rel (0) target = $region17
  $region16: #{a_call__.1} parent=0 // pred_region
    _
  $region17: #{a_call__.1} parent=0 // pred_fallthru
    _
  // Predicated region
  $region18: #{a_call__.1} parent=0 // pred_check
    _
  $region19: #{a_call__.1} parent=0 // pred_check_branch
    %23 = sbr.rel (0) target = $region21
  $region20: #{a_call__.1} parent=0 // pred_region
    _
  $region21: #{a_call__.1} parent=0 // pred_fallthru
    _
  %25 = vst [vmem:[#allocation2] sm:$0xff] 0
  %vm26 = vcmask 261120
  %27 = vst.msk [vmem:[#allocation2 + $0x8] sm:$0xff] %vm26, 0
  %28 = vst [vmem:[#allocation2 + $0x10] sm:$0xff] 0
  %29 = vst.msk [vmem:[#allocation2 + $0x18] sm:$0xff] %vm26, 0
  %30 = vst [vmem:[#allocation2 + $0x20] sm:$0xff] 0
  %31 = vst.msk [vmem:[#allocation2 + $0x28] sm:$0xff] %vm26, 0
  %32 = vst [vmem:[#allocation2 + $0x30] sm:$0xff] 0
  %33 = vst.msk [vmem:[#allocation2 + $0x38] sm:$0xff] %vm26, 0
  %34 = vst [vmem:[#allocation2 + $0x40] sm:$0xff] 0
  %35 = vst.msk [vmem:[#allocation2 + $0x48] sm:$0xff] %vm26, 0
  %36 = vst [vmem:[#allocation2 + $0x50] sm:$0xff] 0
  %37 = vst.msk [vmem:[#allocation2 + $0x58] sm:$0xff] %vm26, 0
  %38 = vst [vmem:[#allocation2 + $0x60] sm:$0xff] 0
  %39 = vst.msk [vmem:[#allocation2 + $0x68] sm:$0xff] %vm26, 0
  %40 = vst [vmem:[#allocation2 + $0x70] sm:$0xff] 0
  %41 = vst.msk [vmem:[#allocation2 + $0x78] sm:$0xff] %vm26, 0
  %42 = vst [vmem:[#allocation2 + $0x80] sm:$0xff] 0
  %43 = vst.msk [vmem:[#allocation2 + $0x88] sm:$0xff] %vm26, 0
  %44 = vst [vmem:[#allocation2 + $0x90] sm:$0xff] 0
  %45 = vst.msk [vmem:[#allocation2 + $0x98] sm:$0xff] %vm26, 0
  %v46 = vld [vmem:[%s0] sm:$0xf]
  %v47 = vld [vmem:[%s0 + $0x4] sm:$0xf]
  %v48 = vld [vmem:[%s0 + $0x8] sm:$0xf]
  %v49 = vld [vmem:[%s0 + $0xc] sm:$0xf]
  %v50 = vld [vmem:[%s0 + $0x10] sm:$0xf]
  %v51 = vld [vmem:[%s0 + $0x14] sm:$0xf]
  %v52 = vld [vmem:[%s0 + $0x18] sm:$0xf]
  %v53 = vld [vmem:[%s0 + $0x1c] sm:$0xf]
  %v54 = vld [vmem:[%s0 + $0x20] sm:$0xf]
  %v55 = vld [vmem:[%s0 + $0x24] sm:$0xf]
  %v56 = vld [vmem:[%s0 + $0x28] sm:$0xf]
  %v57 = vld [vmem:[%s0 + $0x2c] sm:$0xf]
  %v58 = vld [vmem:[%s0 + $0x30] sm:$0xf]
  %v59 = vld [vmem:[%s0 + $0x34] sm:$0xf]
  %v60 = vld [vmem:[%s0 + $0x38] sm:$0xf]
  %v61 = vld [vmem:[%s0 + $0x3c] sm:$0xf]
  %v78 = vunpack.c.l.b16 %v46
  %v79 = vunpack.c.l.b16 %v47
  %v80 = vunpack.c.l.b16 %v48
  %v81 = vunpack.c.l.b16 %v49
  %v82 = vunpack.c.l.b16 %v50
  %v83 = vunpack.c.l.b16 %v51
  %v84 = vunpack.c.l.b16 %v52
  %v85 = vunpack.c.l.b16 %v53
  %v86 = vunpack.c.l.b16 %v54
  %v87 = vunpack.c.l.b16 %v55
  %v88 = vunpack.c.l.b16 %v56
  %v89 = vunpack.c.l.b16 %v57
  %v90 = vunpack.c.l.b16 %v58
  %v91 = vunpack.c.l.b16 %v59
  %v92 = vunpack.c.l.b16 %v60
  %v93 = vunpack.c.l.b16 %v61
  %v94 = vpack.c.b16 %v79, %v78
  %v95 = vpack.c.b16 %v81, %v80
  %v96 = vpack.c.b16 %v83, %v82
  %v97 = vpack.c.b16 %v85, %v84
  %v98 = vpack.c.b16 %v87, %v86
  %v99 = vpack.c.b16 %v89, %v88
  %v100 = vpack.c.b16 %v91, %v90
  %v101 = vpack.c.b16 %v93, %v92
  %102 = vrot.lane.b32.xlu0 %v94, 16
  %v103 = vpop.permute.xlu0 %102
  %104 = vrot.lane.b32.xlu0 %v95, 16
  %v105 = vpop.permute.xlu0 %104
  %106 = vrot.lane.b32.xlu0 %v96, 16
  %v107 = vpop.permute.xlu0 %106
  %108 = vrot.lane.b32.xlu0 %v97, 16
  %v109 = vpop.permute.xlu0 %108
  %110 = vrot.lane.b32.xlu0 %v98, 16
  %v111 = vpop.permute.xlu0 %110
  %112 = vrot.lane.b32.xlu0 %v99, 16
  %v113 = vpop.permute.xlu0 %112
  %114 = vrot.lane.b32.xlu0 %v100, 16
  %v115 = vpop.permute.xlu0 %114
  %116 = vrot.lane.b32.xlu0 %v101, 16
  %v117 = vpop.permute.xlu0 %116
  %s126 = scalar_lea.vmem [#allocation2], 16
  %vm127 = vcmask 1047680
  %128 = vst.msk [vmem:[%s126] sm:$0xff] %vm127, %v103
  %vm129 = vcmask 130048
  %130 = vst.msk [vmem:[%s126 + $0x8] sm:$0xff] %vm129, %v103
  %131 = vst.msk [vmem:[%s126 + $0x10] sm:$0xff] %vm127, %v105
  %132 = vst.msk [vmem:[%s126 + $0x18] sm:$0xff] %vm129, %v105
  %133 = vst.msk [vmem:[%s126 + $0x20] sm:$0xff] %vm127, %v107
  %134 = vst.msk [vmem:[%s126 + $0x28] sm:$0xff] %vm129, %v107
  %135 = vst.msk [vmem:[%s126 + $0x30] sm:$0xff] %vm127, %v109
  %136 = vst.msk [vmem:[%s126 + $0x38] sm:$0xff] %vm129, %v109
  %137 = vst.msk [vmem:[%s126 + $0x40] sm:$0xff] %vm127, %v111
  %138 = vst.msk [vmem:[%s126 + $0x48] sm:$0xff] %vm129, %v111
  %139 = vst.msk [vmem:[%s126 + $0x50] sm:$0xff] %vm127, %v113
  %140 = vst.msk [vmem:[%s126 + $0x58] sm:$0xff] %vm129, %v113
  %141 = vst.msk [vmem:[%s126 + $0x60] sm:$0xff] %vm127, %v115
  %142 = vst.msk [vmem:[%s126 + $0x68] sm:$0xff] %vm129, %v115
  %143 = vst.msk [vmem:[%s126 + $0x70] sm:$0xff] %vm127, %v117
  %144 = vst.msk [vmem:[%s126 + $0x78] sm:$0xff] %vm129, %v117
  %v145 = vld [vmem:[#allocation2] sm:$0xff]
  %v146 = vld [vmem:[#allocation2 + $0x8] sm:$0xff]
  %v147 = vld [vmem:[#allocation2 + $0x10] sm:$0xff]
  %v148 = vld [vmem:[#allocation2 + $0x18] sm:$0xff]
  %v149 = vld [vmem:[#allocation2 + $0x20] sm:$0xff]
  %v150 = vld [vmem:[#allocation2 + $0x28] sm:$0xff]
  %v151 = vld [vmem:[#allocation2 + $0x30] sm:$0xff]
  %v152 = vld [vmem:[#allocation2 + $0x38] sm:$0xff]
  %v153 = vld [vmem:[#allocation2 + $0x40] sm:$0xff]
  %v154 = vld [vmem:[#allocation2 + $0x48] sm:$0xff]
  %v155 = vld [vmem:[#allocation2 + $0x50] sm:$0xff]
  %v156 = vld [vmem:[#allocation2 + $0x58] sm:$0xff]
  %v157 = vld [vmem:[#allocation2 + $0x60] sm:$0xff]
  %v158 = vld [vmem:[#allocation2 + $0x68] sm:$0xff]
  %v159 = vld [vmem:[#allocation2 + $0x70] sm:$0xff]
  %v160 = vld [vmem:[#allocation2 + $0x78] sm:$0xff]
  %v161 = vld [vmem:[%s1] sm:$0xf]
  %v162 = vld [vmem:[%s1 + $0x18] sm:$0xf]
  %v163 = vld [vmem:[%s1 + $0x30] sm:$0xf]
  %v164 = vld [vmem:[%s1 + $0x48] sm:$0xf]
  %v165 = vld [vmem:[%s1 + $0x60] sm:$0xf]
  %v166 = vld [vmem:[%s1 + $0x78] sm:$0xf]
  %v167 = vld [vmem:[%s1 + $0x90] sm:$0xf]
  %v168 = vld [vmem:[%s1 + $0xa8] sm:$0xf]
  %v169 = vld [vmem:[%s1 + $0xc0] sm:$0xf]
  %v170 = vld [vmem:[%s1 + $0xd8] sm:$0xf]
  %v171 = vld [vmem:[%s1 + $0xf0] sm:$0xf]
  %v172 = vld [vmem:[%s1 + $0x108] sm:$0xf]
  %v173 = vld [vmem:[%s1 + $0x120] sm:$0xf]
  %v174 = vld [vmem:[%s1 + $0x138] sm:$0xf]
  %v175 = vld [vmem:[%s1 + $0x150] sm:$0xf]
  %v176 = vld [vmem:[%s1 + $0x168] sm:$0xf]
  %v177 = vld [vmem:[%s1 + $0x180] sm:$0xf]
  %v178 = vld [vmem:[%s1 + $0x198] sm:$0xf]
  %v179 = vld [vmem:[%s1 + $0x1b0] sm:$0xf]
  %v180 = vld [vmem:[%s1 + $0x1c8] sm:$0xf]
  %v181 = vld [vmem:[%s126] sm:$0xff]
  %v182 = vld [vmem:[%s126 + $0x8] sm:$0xff]
  %v183 = vld [vmem:[%s126 + $0x10] sm:$0xff]
  %v184 = vld [vmem:[%s126 + $0x18] sm:$0xff]
  %v185 = vld [vmem:[%s126 + $0x20] sm:$0xff]
  %v186 = vld [vmem:[%s126 + $0x28] sm:$0xff]
  %v187 = vld [vmem:[%s126 + $0x30] sm:$0xff]
  %v188 = vld [vmem:[%s126 + $0x38] sm:$0xff]
  %v189 = vld [vmem:[%s126 + $0x40] sm:$0xff]
  %v190 = vld [vmem:[%s126 + $0x48] sm:$0xff]
  %v191 = vld [vmem:[%s126 + $0x50] sm:$0xff]
  %v192 = vld [vmem:[%s126 + $0x58] sm:$0xff]
  %v193 = vld [vmem:[%s126 + $0x60] sm:$0xff]
  %v194 = vld [vmem:[%s126 + $0x68] sm:$0xff]
  %v195 = vld [vmem:[%s126 + $0x70] sm:$0xff]
  %v196 = vld [vmem:[%s126 + $0x78] sm:$0xff]
  %v197 = vld [vmem:[%s1 + $0x1e0] sm:$0xf]
  %v198 = vld [vmem:[%s1 + $0x1f8] sm:$0xf]
  %v199 = vld [vmem:[%s1 + $0x210] sm:$0xf]
  %v200 = vld [vmem:[%s1 + $0x228] sm:$0xf]
  %v201 = vld [vmem:[%s1 + $0x240] sm:$0xf]
  %v202 = vld [vmem:[%s1 + $0x258] sm:$0xf]
  %v203 = vld [vmem:[%s1 + $0x270] sm:$0xf]
  %v204 = vld [vmem:[%s1 + $0x288] sm:$0xf]
  %v205 = vld [vmem:[%s1 + $0x2a0] sm:$0xf]
  %v206 = vld [vmem:[%s1 + $0x2b8] sm:$0xf]
  %v207 = vld [vmem:[%s1 + $0x2d0] sm:$0xf]
  %v208 = vld [vmem:[%s1 + $0x2e8] sm:$0xf]
  %v209 = vld [vmem:[%s1 + $0x300] sm:$0xf]
  %v210 = vld [vmem:[%s1 + $0x318] sm:$0xf]
  %v211 = vld [vmem:[%s1 + $0x330] sm:$0xf]
  %v212 = vld [vmem:[%s1 + $0x348] sm:$0xf]
  %v213 = vld [vmem:[%s1 + $0x360] sm:$0xf]
  %v214 = vld [vmem:[%s1 + $0x378] sm:$0xf]
  %v215 = vld [vmem:[%s1 + $0x390] sm:$0xf]
  %v216 = vld [vmem:[%s1 + $0x3a8] sm:$0xf]
  %v237 = vunpack.c.l.b16 %v197
  %v238 = vunpack.c.l.b16 %v198
  %v239 = vunpack.c.l.b16 %v199
  %v240 = vunpack.c.l.b16 %v200
  %v241 = vunpack.c.l.b16 %v201
  %v242 = vunpack.c.l.b16 %v202
  %v243 = vunpack.c.l.b16 %v203
  %v244 = vunpack.c.l.b16 %v204
  %v245 = vunpack.c.l.b16 %v205
  %v246 = vunpack.c.l.b16 %v206
  %v247 = vunpack.c.l.b16 %v207
  %v248 = vunpack.c.l.b16 %v208
  %v249 = vunpack.c.l.b16 %v209
  %v250 = vunpack.c.l.b16 %v210
  %v251 = vunpack.c.l.b16 %v211
  %v252 = vunpack.c.l.b16 %v212
  %v253 = vunpack.c.l.b16 %v213
  %v254 = vunpack.c.l.b16 %v214
  %v255 = vunpack.c.l.b16 %v215
  %v256 = vunpack.c.l.b16 %v216
  %v257 = vpack.c.b16 %v238, %v237
  %v258 = vpack.c.b16 %v240, %v239
  %v259 = vpack.c.b16 %v242, %v241
  %v260 = vpack.c.b16 %v244, %v243
  %v261 = vpack.c.b16 %v246, %v245
  %v262 = vpack.c.b16 %v248, %v247
  %v263 = vpack.c.b16 %v250, %v249
  %v264 = vpack.c.b16 %v252, %v251
  %v265 = vpack.c.b16 %v254, %v253
  %v266 = vpack.c.b16 %v256, %v255
  %v278 = vsel %vm26, %v182, 0
  %v281 = vsel %vm26, %v184, 0
  %v284 = vsel %vm26, %v186, 0
  %v287 = vsel %vm26, %v188, 0
  %v290 = vsel %vm26, %v190, 0
  %v293 = vsel %vm26, %v192, 0
  %v296 = vsel %vm26, %v194, 0
  %v299 = vsel %vm26, %v196, 0
  %301 = vmatprep.subr.bf16.mxu0 0
  %302 = vmatpush1.bf16.msra.mxu0 %v257
  %303 = vmatprep.subr.bf16.mxu0 0
  %304 = vmatpush1.bf16.msra.mxu0 %v258
  %305 = vmatprep.subr.bf16.mxu0 0
  %306 = vmatpush1.bf16.msra.mxu0 %v259
  %307 = vmatprep.subr.bf16.mxu0 0
  %308 = vmatpush1.bf16.msra.mxu0 %v260
  %309 = vmatprep.subr.bf16.mxu0 0
  %310 = vmatpush1.bf16.msra.mxu0 %v261
  %311 = vmatprep.subr.bf16.mxu0 0
  %312 = vmatpush1.bf16.msra.mxu0 %v262
  %313 = vmatprep.subr.bf16.mxu0 0
  %314 = vmatpush1.bf16.msra.mxu0 %v263
  %315 = vmatprep.subr.bf16.mxu0 0
  %316 = vmatpush1.bf16.msra.mxu0 %v264
  %317 = vmatprep.subr.bf16.mxu0 0
  %318 = vmatpush1.bf16.msra.mxu0 %v265
  %319 = vmatprep.subr.bf16.mxu0 0
  %320 = vmatpush1.bf16.msra.mxu0 %v266
  %321 = vmatprep.subr.bf16.mxu0 0
  %322 = vmatpush1.bf16.msra.mxu0 0
  %323 = vmatprep.subr.bf16.mxu0 0
  %324 = vmatpush1.bf16.msra.mxu0 0
  %325 = vmatprep.subr.bf16.mxu0 0
  %326 = vmatpush1.bf16.msra.mxu0 0
  %327 = vmatprep.subr.bf16.mxu0 0
  %328 = vmatpush1.bf16.msra.mxu0 0
  %329 = vmatprep.subr.bf16.mxu0 0
  %330 = vmatpush1.bf16.msra.mxu0 0
  %331 = vmatprep.subr.bf16.mxu0 0
  %332 = vmatpush1.bf16.msra.mxu0 0
  %333 = vmatprep.mubr.bf16.mxu0 %v278
  %334 = vmatmul.mubr.bf16.gmra.mrb[0].mxu0 %v181
  %v335 = vpop.f32.mrb[0].mxu0
  %v336 = vadd.f32 0.0, %v335
  %v337 = vpop.f32.mrb[0].mxu0
  %v338 = vpop.f32.mrb[0].mxu0
  %v339 = vadd.f32 0.0, %v338
  %v340 = vpop.f32.mrb[0].mxu0
  %341 = vmatprep.mubr.bf16.mxu0 %v281
  %342 = vmatmul.mubr.bf16.gmra.mrb[0].mxu0 %v183
  %v343 = vpop.f32.mrb[0].mxu0
  %v344 = vadd.f32 0.0, %v343
  %v345 = vpop.f32.mrb[0].mxu0
  %v346 = vpop.f32.mrb[0].mxu0
  %v347 = vadd.f32 0.0, %v346
  %v348 = vpop.f32.mrb[0].mxu0
  %349 = vmatprep.mubr.bf16.mxu0 %v284
  %350 = vmatmul.mubr.bf16.gmra.mrb[0].mxu0 %v185
  %v351 = vpop.f32.mrb[0].mxu0
  %v352 = vadd.f32 0.0, %v351
  %v353 = vpop.f32.mrb[0].mxu0
  %v354 = vpop.f32.mrb[0].mxu0
  %v355 = vadd.f32 0.0, %v354
  %v356 = vpop.f32.mrb[0].mxu0
  %357 = vmatprep.mubr.bf16.mxu0 %v287
  %358 = vmatmul.mubr.bf16.gmra.mrb[0].mxu0 %v187
  %v359 = vpop.f32.mrb[0].mxu0
  %v360 = vadd.f32 0.0, %v359
  %v361 = vpop.f32.mrb[0].mxu0
  %v362 = vpop.f32.mrb[0].mxu0
  %v363 = vadd.f32 0.0, %v362
  %v364 = vpop.f32.mrb[0].mxu0
  %365 = vmatprep.mubr.bf16.mxu0 %v290
  %366 = vmatmul.mubr.bf16.gmra.mrb[0].mxu0 %v189
  %v367 = vpop.f32.mrb[0].mxu0
  %v368 = vadd.f32 0.0, %v367
  %v369 = vpop.f32.mrb[0].mxu0
  %v370 = vpop.f32.mrb[0].mxu0
  %v371 = vadd.f32 0.0, %v370
  %v372 = vpop.f32.mrb[0].mxu0
  %373 = vmatprep.mubr.bf16.mxu0 %v293
  %374 = vmatmul.mubr.bf16.gmra.mrb[0].mxu0 %v191
  %v375 = vpop.f32.mrb[0].mxu0
  %v376 = vadd.f32 0.0, %v375
  %v377 = vpop.f32.mrb[0].mxu0
  %v378 = vpop.f32.mrb[0].mxu0
  %v379 = vadd.f32 0.0, %v378
  %v380 = vpop.f32.mrb[0].mxu0
  %381 = vmatprep.mubr.bf16.mxu0 %v296
  %382 = vmatmul.mubr.bf16.gmra.mrb[0].mxu0 %v193
  %v383 = vpop.f32.mrb[0].mxu0
  %v384 = vadd.f32 0.0, %v383
  %v385 = vpop.f32.mrb[0].mxu0
  %v386 = vpop.f32.mrb[0].mxu0
  %v387 = vadd.f32 0.0, %v386
  %v388 = vpop.f32.mrb[0].mxu0
  %389 = vmatprep.mubr.bf16.mxu0 %v299
  %390 = vmatmul.mubr.bf16.gmra.mrb[0].mxu0 %v195
  %v391 = vpop.f32.mrb[0].mxu0
  %v392 = vadd.f32 0.0, %v391
  %v393 = vpop.f32.mrb[0].mxu0
  %v394 = vpop.f32.mrb[0].mxu0
  %v395 = vadd.f32 0.0, %v394
  %v396 = vpop.f32.mrb[0].mxu0
  %397 = vdwg.mxu0
  %v418 = vunpack.c.l.b16 %v161
  %v419 = vunpack.c.l.b16 %v162
  %v420 = vunpack.c.l.b16 %v163
  %v421 = vunpack.c.l.b16 %v164
  %v422 = vunpack.c.l.b16 %v165
  %v423 = vunpack.c.l.b16 %v166
  %v424 = vunpack.c.l.b16 %v167
  %v425 = vunpack.c.l.b16 %v168
  %v426 = vunpack.c.l.b16 %v169
  %v427 = vunpack.c.l.b16 %v170
  %v428 = vunpack.c.l.b16 %v171
  %v429 = vunpack.c.l.b16 %v172
  %v430 = vunpack.c.l.b16 %v173
  %v431 = vunpack.c.l.b16 %v174
  %v432 = vunpack.c.l.b16 %v175
  %v433 = vunpack.c.l.b16 %v176
  %v434 = vunpack.c.l.b16 %v177
  %v435 = vunpack.c.l.b16 %v178
  %v436 = vunpack.c.l.b16 %v179
  %v437 = vunpack.c.l.b16 %v180
  %v438 = vpack.c.b16 %v419, %v418
  %v439 = vpack.c.b16 %v421, %v420
  %v440 = vpack.c.b16 %v423, %v422
  %v441 = vpack.c.b16 %v425, %v424
  %v442 = vpack.c.b16 %v427, %v426
  %v443 = vpack.c.b16 %v429, %v428
  %v444 = vpack.c.b16 %v431, %v430
  %v445 = vpack.c.b16 %v433, %v432
  %v446 = vpack.c.b16 %v435, %v434
  %v447 = vpack.c.b16 %v437, %v436
  %v459 = vsel %vm26, %v146, 0
  %v462 = vsel %vm26, %v148, 0
  %v465 = vsel %vm26, %v150, 0
  %v468 = vsel %vm26, %v152, 0
  %v471 = vsel %vm26, %v154, 0
  %v474 = vsel %vm26, %v156, 0
  %v477 = vsel %vm26, %v158, 0
  %v480 = vsel %vm26, %v160, 0
  %482 = vmatprep.subr.bf16.mxu0 0
  %483 = vmatpush1.bf16.msra.mxu0 %v438
  %484 = vmatprep.subr.bf16.mxu0 0
  %485 = vmatpush1.bf16.msra.mxu0 %v439
  %486 = vmatprep.subr.bf16.mxu0 0
  %487 = vmatpush1.bf16.msra.mxu0 %v440
  %488 = vmatprep.subr.bf16.mxu0 0
  %489 = vmatpush1.bf16.msra.mxu0 %v441
  %490 = vmatprep.subr.bf16.mxu0 0
  %491 = vmatpush1.bf16.msra.mxu0 %v442
  %492 = vmatprep.subr.bf16.mxu0 0
  %493 = vmatpush1.bf16.msra.mxu0 %v443
  %494 = vmatprep.subr.bf16.mxu0 0
  %495 = vmatpush1.bf16.msra.mxu0 %v444
  %496 = vmatprep.subr.bf16.mxu0 0
  %497 = vmatpush1.bf16.msra.mxu0 %v445
  %498 = vmatprep.subr.bf16.mxu0 0
  %499 = vmatpush1.bf16.msra.mxu0 %v446
  %500 = vmatprep.subr.bf16.mxu0 0
  %501 = vmatpush1.bf16.msra.mxu0 %v447
  %502 = vmatprep.subr.bf16.mxu0 0
  %503 = vmatpush1.bf16.msra.mxu0 0
  %504 = vmatprep.subr.bf16.mxu0 0
  %505 = vmatpush1.bf16.msra.mxu0 0
  %506 = vmatprep.subr.bf16.mxu0 0
  %507 = vmatpush1.bf16.msra.mxu0 0
  %508 = vmatprep.subr.bf16.mxu0 0
  %509 = vmatpush1.bf16.msra.mxu0 0
  %510 = vmatprep.subr.bf16.mxu0 0
  %511 = vmatpush1.bf16.msra.mxu0 0
  %512 = vmatprep.subr.bf16.mxu0 0
  %513 = vmatpush1.bf16.msra.mxu0 0
  %514 = vmatprep.mubr.bf16.mxu0 %v459
  %515 = vmatmul.mubr.bf16.gmra.mrb[0].mxu0 %v145
  %v516 = vpop.f32.mrb[0].mxu0
  %v517 = vadd.f32 %v336, %v516
  %v518 = vpop.f32.mrb[0].mxu0
  %v519 = vpop.f32.mrb[0].mxu0
  %v520 = vadd.f32 %v339, %v519
  %v521 = vpop.f32.mrb[0].mxu0
  %522 = vmatprep.mubr.bf16.mxu0 %v462
  %523 = vmatmul.mubr.bf16.gmra.mrb[0].mxu0 %v147
  %v524 = vpop.f32.mrb[0].mxu0
  %v525 = vadd.f32 %v344, %v524
  %v526 = vpop.f32.mrb[0].mxu0
  %v527 = vpop.f32.mrb[0].mxu0
  %v528 = vadd.f32 %v347, %v527
  %v529 = vpop.f32.mrb[0].mxu0
  %530 = vmatprep.mubr.bf16.mxu0 %v465
  %531 = vmatmul.mubr.bf16.gmra.mrb[0].mxu0 %v149
  %v532 = vpop.f32.mrb[0].mxu0
  %v533 = vadd.f32 %v352, %v532
  %v534 = vpop.f32.mrb[0].mxu0
  %v535 = vpop.f32.mrb[0].mxu0
  %v536 = vadd.f32 %v355, %v535
  %v537 = vpop.f32.mrb[0].mxu0
  %538 = vmatprep.mubr.bf16.mxu0 %v468
  %539 = vmatmul.mubr.bf16.gmra.mrb[0].mxu0 %v151
  %v540 = vpop.f32.mrb[0].mxu0
  %v541 = vadd.f32 %v360, %v540
  %v542 = vpop.f32.mrb[0].mxu0
  %v543 = vpop.f32.mrb[0].mxu0
  %v544 = vadd.f32 %v363, %v543
  %v545 = vpop.f32.mrb[0].mxu0
  %546 = vmatprep.mubr.bf16.mxu0 %v471
  %547 = vmatmul.mubr.bf16.gmra.mrb[0].mxu0 %v153
  %v548 = vpop.f32.mrb[0].mxu0
  %v549 = vadd.f32 %v368, %v548
  %v550 = vpop.f32.mrb[0].mxu0
  %v551 = vpop.f32.mrb[0].mxu0
  %v552 = vadd.f32 %v371, %v551
  %v553 = vpop.f32.mrb[0].mxu0
  %554 = vmatprep.mubr.bf16.mxu0 %v474
  %555 = vmatmul.mubr.bf16.gmra.mrb[0].mxu0 %v155
  %v556 = vpop.f32.mrb[0].mxu0
  %v557 = vadd.f32 %v376, %v556
  %v558 = vpop.f32.mrb[0].mxu0
  %v559 = vpop.f32.mrb[0].mxu0
  %v560 = vadd.f32 %v379, %v559
  %v561 = vpop.f32.mrb[0].mxu0
  %562 = vmatprep.mubr.bf16.mxu0 %v477
  %563 = vmatmul.mubr.bf16.gmra.mrb[0].mxu0 %v157
  %v564 = vpop.f32.mrb[0].mxu0
  %v565 = vadd.f32 %v384, %v564
  %v566 = vpop.f32.mrb[0].mxu0
  %v567 = vpop.f32.mrb[0].mxu0
  %v568 = vadd.f32 %v387, %v567
  %v569 = vpop.f32.mrb[0].mxu0
  %570 = vmatprep.mubr.bf16.mxu0 %v480
  %571 = vmatmul.mubr.bf16.gmra.mrb[0].mxu0 %v159
  %v572 = vpop.f32.mrb[0].mxu0
  %v573 = vadd.f32 %v392, %v572
  %v574 = vpop.f32.mrb[0].mxu0
  %v575 = vpop.f32.mrb[0].mxu0
  %v576 = vadd.f32 %v395, %v575
  %v577 = vpop.f32.mrb[0].mxu0
  %578 = vdwg.mxu0
  %s579 = scalar_lea.vmem [#allocation2], 32
  %v580 = vld [vmem:[%s579] sm:$0xff]
  %v581 = vld [vmem:[%s579 + $0x8] sm:$0xff]
  %v582 = vld [vmem:[%s579 + $0x10] sm:$0xff]
  %v583 = vld [vmem:[%s579 + $0x18] sm:$0xff]
  %v584 = vld [vmem:[%s579 + $0x20] sm:$0xff]
  %v585 = vld [vmem:[%s579 + $0x28] sm:$0xff]
  %v586 = vld [vmem:[%s579 + $0x30] sm:$0xff]
  %v587 = vld [vmem:[%s579 + $0x38] sm:$0xff]
  %v588 = vld [vmem:[%s579 + $0x40] sm:$0xff]
  %v589 = vld [vmem:[%s579 + $0x48] sm:$0xff]
  %v590 = vld [vmem:[%s579 + $0x50] sm:$0xff]
  %v591 = vld [vmem:[%s579 + $0x58] sm:$0xff]
  %v592 = vld [vmem:[%s579 + $0x60] sm:$0xff]
  %v593 = vld [vmem:[%s579 + $0x68] sm:$0xff]
  %v594 = vld [vmem:[%s579 + $0x70] sm:$0xff]
  %v595 = vld [vmem:[%s579 + $0x78] sm:$0xff]
  %v596 = vld [vmem:[%s1 + $0x3c0] sm:$0xf]
  %v597 = vld [vmem:[%s1 + $0x3d8] sm:$0xf]
  %v598 = vld [vmem:[%s1 + $0x3f0] sm:$0xf]
  %v599 = vld [vmem:[%s1 + $0x408] sm:$0xf]
  %v600 = vld [vmem:[%s1 + $0x420] sm:$0xf]
  %v601 = vld [vmem:[%s1 + $0x438] sm:$0xf]
  %v602 = vld [vmem:[%s1 + $0x450] sm:$0xf]
  %v603 = vld [vmem:[%s1 + $0x468] sm:$0xf]
  %v604 = vld [vmem:[%s1 + $0x480] sm:$0xf]
  %v605 = vld [vmem:[%s1 + $0x498] sm:$0xf]
  %v606 = vld [vmem:[%s1 + $0x4b0] sm:$0xf]
  %v607 = vld [vmem:[%s1 + $0x4c8] sm:$0xf]
  %v608 = vld [vmem:[%s1 + $0x4e0] sm:$0xf]
  %v609 = vld [vmem:[%s1 + $0x4f8] sm:$0xf]
  %v610 = vld [vmem:[%s1 + $0x510] sm:$0xf]
  %v611 = vld [vmem:[%s1 + $0x528] sm:$0xf]
  %v612 = vld [vmem:[%s1 + $0x540] sm:$0xf]
  %v613 = vld [vmem:[%s1 + $0x558] sm:$0xf]
  %v614 = vld [vmem:[%s1 + $0x570] sm:$0xf]
  %v615 = vld [vmem:[%s1 + $0x588] sm:$0xf]
  %v636 = vunpack.c.l.b16 %v596
  %v637 = vunpack.c.l.b16 %v597
  %v638 = vunpack.c.l.b16 %v598
  %v639 = vunpack.c.l.b16 %v599
  %v640 = vunpack.c.l.b16 %v600
  %v641 = vunpack.c.l.b16 %v601
  %v642 = vunpack.c.l.b16 %v602
  %v643 = vunpack.c.l.b16 %v603
  %v644 = vunpack.c.l.b16 %v604
  %v645 = vunpack.c.l.b16 %v605
  %v646 = vunpack.c.l.b16 %v606
  %v647 = vunpack.c.l.b16 %v607
  %v648 = vunpack.c.l.b16 %v608
  %v649 = vunpack.c.l.b16 %v609
  %v650 = vunpack.c.l.b16 %v610
  %v651 = vunpack.c.l.b16 %v611
  %v652 = vunpack.c.l.b16 %v612
  %v653 = vunpack.c.l.b16 %v613
  %v654 = vunpack.c.l.b16 %v614
  %v655 = vunpack.c.l.b16 %v615
  %v656 = vpack.c.b16 %v637, %v636
  %v657 = vpack.c.b16 %v639, %v638
  %v658 = vpack.c.b16 %v641, %v640
  %v659 = vpack.c.b16 %v643, %v642
  %v660 = vpack.c.b16 %v645, %v644
  %v661 = vpack.c.b16 %v647, %v646
  %v662 = vpack.c.b16 %v649, %v648
  %v663 = vpack.c.b16 %v651, %v650
  %v664 = vpack.c.b16 %v653, %v652
  %v665 = vpack.c.b16 %v655, %v654
  %v677 = vsel %vm26, %v581, 0
  %v680 = vsel %vm26, %v583, 0
  %v683 = vsel %vm26, %v585, 0
  %v686 = vsel %vm26, %v587, 0
  %v689 = vsel %vm26, %v589, 0
  %v692 = vsel %vm26, %v591, 0
  %v695 = vsel %vm26, %v593, 0
  %v698 = vsel %vm26, %v595, 0
  %700 = vmatprep.subr.bf16.mxu0 0
  %701 = vmatpush1.bf16.msra.mxu0 %v656
  %702 = vmatprep.subr.bf16.mxu0 0
  %703 = vmatpush1.bf16.msra.mxu0 %v657
  %704 = vmatprep.subr.bf16.mxu0 0
  %705 = vmatpush1.bf16.msra.mxu0 %v658
  %706 = vmatprep.subr.bf16.mxu0 0
  %707 = vmatpush1.bf16.msra.mxu0 %v659
  %708 = vmatprep.subr.bf16.mxu0 0
  %709 = vmatpush1.bf16.msra.mxu0 %v660
  %710 = vmatprep.subr.bf16.mxu0 0
  %711 = vmatpush1.bf16.msra.mxu0 %v661
  %712 = vmatprep.subr.bf16.mxu0 0
  %713 = vmatpush1.bf16.msra.mxu0 %v662
  %714 = vmatprep.subr.bf16.mxu0 0
  %715 = vmatpush1.bf16.msra.mxu0 %v663
  %716 = vmatprep.subr.bf16.mxu0 0
  %717 = vmatpush1.bf16.msra.mxu0 %v664
  %718 = vmatprep.subr.bf16.mxu0 0
  %719 = vmatpush1.bf16.msra.mxu0 %v665
  %720 = vmatprep.subr.bf16.mxu0 0
  %721 = vmatpush1.bf16.msra.mxu0 0
  %722 = vmatprep.subr.bf16.mxu0 0
  %723 = vmatpush1.bf16.msra.mxu0 0
  %724 = vmatprep.subr.bf16.mxu0 0
  %725 = vmatpush1.bf16.msra.mxu0 0
  %726 = vmatprep.subr.bf16.mxu0 0
  %727 = vmatpush1.bf16.msra.mxu0 0
  %728 = vmatprep.subr.bf16.mxu0 0
  %729 = vmatpush1.bf16.msra.mxu0 0
  %730 = vmatprep.subr.bf16.mxu0 0
  %731 = vmatpush1.bf16.msra.mxu0 0
  %732 = vmatprep.mubr.bf16.mxu0 %v677
  %733 = vmatmul.mubr.bf16.gmra.mrb[0].mxu0 %v580
  %v734 = vpop.f32.mrb[0].mxu0
  %v735 = vadd.f32 0.0, %v734
  %v736 = vpop.f32.mrb[0].mxu0
  %v737 = vpop.f32.mrb[0].mxu0
  %v738 = vadd.f32 0.0, %v737
  %v739 = vpop.f32.mrb[0].mxu0
  %740 = vmatprep.mubr.bf16.mxu0 %v680
  %741 = vmatmul.mubr.bf16.gmra.mrb[0].mxu0 %v582
  %v742 = vpop.f32.mrb[0].mxu0
  %v743 = vadd.f32 0.0, %v742
  %v744 = vpop.f32.mrb[0].mxu0
  %v745 = vpop.f32.mrb[0].mxu0
  %v746 = vadd.f32 0.0, %v745
  %v747 = vpop.f32.mrb[0].mxu0
  %748 = vmatprep.mubr.bf16.mxu0 %v683
  %749 = vmatmul.mubr.bf16.gmra.mrb[0].mxu0 %v584
  %v750 = vpop.f32.mrb[0].mxu0
  %v751 = vadd.f32 0.0, %v750
  %v752 = vpop.f32.mrb[0].mxu0
  %v753 = vpop.f32.mrb[0].mxu0
  %v754 = vadd.f32 0.0, %v753
  %v755 = vpop.f32.mrb[0].mxu0
  %756 = vmatprep.mubr.bf16.mxu0 %v686
  %757 = vmatmul.mubr.bf16.gmra.mrb[0].mxu0 %v586
  %v758 = vpop.f32.mrb[0].mxu0
  %v759 = vadd.f32 0.0, %v758
  %v760 = vpop.f32.mrb[0].mxu0
  %v761 = vpop.f32.mrb[0].mxu0
  %v762 = vadd.f32 0.0, %v761
  %v763 = vpop.f32.mrb[0].mxu0
  %764 = vmatprep.mubr.bf16.mxu0 %v689
  %765 = vmatmul.mubr.bf16.gmra.mrb[0].mxu0 %v588
  %v766 = vpop.f32.mrb[0].mxu0
  %v767 = vadd.f32 0.0, %v766
  %v768 = vpop.f32.mrb[0].mxu0
  %v769 = vpop.f32.mrb[0].mxu0
  %v770 = vadd.f32 0.0, %v769
  %v771 = vpop.f32.mrb[0].mxu0
  %772 = vmatprep.mubr.bf16.mxu0 %v692
  %773 = vmatmul.mubr.bf16.gmra.mrb[0].mxu0 %v590
  %v774 = vpop.f32.mrb[0].mxu0
  %v775 = vadd.f32 0.0, %v774
  %v776 = vpop.f32.mrb[0].mxu0
  %v777 = vpop.f32.mrb[0].mxu0
  %v778 = vadd.f32 0.0, %v777
  %v779 = vpop.f32.mrb[0].mxu0
  %780 = vmatprep.mubr.bf16.mxu0 %v695
  %781 = vmatmul.mubr.bf16.gmra.mrb[0].mxu0 %v592
  %v782 = vpop.f32.mrb[0].mxu0
  %v783 = vadd.f32 0.0, %v782
  %v784 = vpop.f32.mrb[0].mxu0
  %v785 = vpop.f32.mrb[0].mxu0
  %v786 = vadd.f32 0.0, %v785
  %v787 = vpop.f32.mrb[0].mxu0
  %788 = vmatprep.mubr.bf16.mxu0 %v698
  %789 = vmatmul.mubr.bf16.gmra.mrb[0].mxu0 %v594
  %v790 = vpop.f32.mrb[0].mxu0
  %v791 = vadd.f32 0.0, %v790
  %v792 = vpop.f32.mrb[0].mxu0
  %v793 = vpop.f32.mrb[0].mxu0
  %v794 = vadd.f32 0.0, %v793
  %v795 = vpop.f32.mrb[0].mxu0
  %796 = vdwg.mxu0
  %v797 = vadd.f32 %v517, %v735
  %v798 = vadd.f32 %v520, %v738
  %v799 = vadd.f32 %v525, %v743
  %v800 = vadd.f32 %v528, %v746
  %v801 = vadd.f32 %v533, %v751
  %v802 = vadd.f32 %v536, %v754
  %v803 = vadd.f32 %v541, %v759
  %v804 = vadd.f32 %v544, %v762
  %v805 = vadd.f32 %v549, %v767
  %v806 = vadd.f32 %v552, %v770
  %v807 = vadd.f32 %v557, %v775
  %v808 = vadd.f32 %v560, %v778
  %v809 = vadd.f32 %v565, %v783
  %v810 = vadd.f32 %v568, %v786
  %v811 = vadd.f32 %v573, %v791
  %v812 = vadd.f32 %v576, %v794
  %v813 = vld [vmem:[%s4] sm:$0x1]
  %v815 = vlaneseq
  %v816 = vshrl.u32 %v815, 7
  %v817 = vsub.s32 0, %v816
  %v818 = vrot.slane %v813, %v817
  %v820 = vadd.f32 %v797, %v818
  %v821 = vadd.f32 %v798, %v818
  %v822 = vadd.f32 %v799, %v818
  %v823 = vadd.f32 %v800, %v818
  %v824 = vadd.f32 %v801, %v818
  %v825 = vadd.f32 %v802, %v818
  %v826 = vadd.f32 %v803, %v818
  %v827 = vadd.f32 %v804, %v818
  %v828 = vadd.f32 %v805, %v818
  %v829 = vadd.f32 %v806, %v818
  %v830 = vadd.f32 %v807, %v818
  %v831 = vadd.f32 %v808, %v818
  %v832 = vadd.f32 %v809, %v818
  %v833 = vadd.f32 %v810, %v818
  %v834 = vadd.f32 %v811, %v818
  %v835 = vadd.f32 %v812, %v818
  %v836 = vmax.f32 %v820, 0.0
  %v837 = vmax.f32 %v821, 0.0
  %v838 = vmax.f32 %v822, 0.0
  %v839 = vmax.f32 %v823, 0.0
  %v840 = vmax.f32 %v824, 0.0
  %v841 = vmax.f32 %v825, 0.0
  %v842 = vmax.f32 %v826, 0.0
  %v843 = vmax.f32 %v827, 0.0
  %v844 = vmax.f32 %v828, 0.0
  %v845 = vmax.f32 %v829, 0.0
  %v846 = vmax.f32 %v830, 0.0
  %v847 = vmax.f32 %v831, 0.0
  %v848 = vmax.f32 %v832, 0.0
  %v849 = vmax.f32 %v833, 0.0
  %v850 = vmax.f32 %v834, 0.0
  %v851 = vmax.f32 %v835, 0.0
  %v852 = vpack.c.bf16 %v837, %v836
  %v853 = vpack.c.bf16 %v839, %v838
  %v854 = vpack.c.bf16 %v841, %v840
  %v855 = vpack.c.bf16 %v843, %v842
  %v856 = vpack.c.bf16 %v845, %v844
  %v857 = vpack.c.bf16 %v847, %v846
  %v858 = vpack.c.bf16 %v849, %v848
  %v859 = vpack.c.bf16 %v851, %v850
  %868 = vrot.lane.b32.xlu0 %v852, 16
  %v869 = vpop.permute.xlu0 %868
  %870 = vrot.lane.b32.xlu0 %v853, 16
  %v871 = vpop.permute.xlu0 %870
  %872 = vrot.lane.b32.xlu0 %v854, 16
  %v873 = vpop.permute.xlu0 %872
  %874 = vrot.lane.b32.xlu0 %v855, 16
  %v875 = vpop.permute.xlu0 %874
  %876 = vrot.lane.b32.xlu0 %v856, 16
  %v877 = vpop.permute.xlu0 %876
  %878 = vrot.lane.b32.xlu0 %v857, 16
  %v879 = vpop.permute.xlu0 %878
  %880 = vrot.lane.b32.xlu0 %v858, 16
  %v881 = vpop.permute.xlu0 %880
  %882 = vrot.lane.b32.xlu0 %v859, 16
  %v883 = vpop.permute.xlu0 %882
  %892 = vst.msk [vmem:[%s126] sm:$0xff] %vm127, %v869
  %893 = vst.msk [vmem:[%s126 + $0x8] sm:$0xff] %vm129, %v869
  %894 = vst.msk [vmem:[%s126 + $0x10] sm:$0xff] %vm127, %v871
  %895 = vst.msk [vmem:[%s126 + $0x18] sm:$0xff] %vm129, %v871
  %896 = vst.msk [vmem:[%s126 + $0x20] sm:$0xff] %vm127, %v873
  %897 = vst.msk [vmem:[%s126 + $0x28] sm:$0xff] %vm129, %v873
  %898 = vst.msk [vmem:[%s126 + $0x30] sm:$0xff] %vm127, %v875
  %899 = vst.msk [vmem:[%s126 + $0x38] sm:$0xff] %vm129, %v875
  %900 = vst.msk [vmem:[%s126 + $0x40] sm:$0xff] %vm127, %v877
  %901 = vst.msk [vmem:[%s126 + $0x48] sm:$0xff] %vm129, %v877
  %902 = vst.msk [vmem:[%s126 + $0x50] sm:$0xff] %vm127, %v879
  %903 = vst.msk [vmem:[%s126 + $0x58] sm:$0xff] %vm129, %v879
  %904 = vst.msk [vmem:[%s126 + $0x60] sm:$0xff] %vm127, %v881
  %905 = vst.msk [vmem:[%s126 + $0x68] sm:$0xff] %vm129, %v881
  %906 = vst.msk [vmem:[%s126 + $0x70] sm:$0xff] %vm127, %v883
  %907 = vst.msk [vmem:[%s126 + $0x78] sm:$0xff] %vm129, %v883
  %v908 = vld [vmem:[#allocation2] sm:$0xff]
  %v909 = vld [vmem:[#allocation2 + $0x8] sm:$0xff]
  %v910 = vld [vmem:[#allocation2 + $0x10] sm:$0xff]
  %v911 = vld [vmem:[#allocation2 + $0x18] sm:$0xff]
  %v912 = vld [vmem:[#allocation2 + $0x20] sm:$0xff]
  %v913 = vld [vmem:[#allocation2 + $0x28] sm:$0xff]
  %v914 = vld [vmem:[#allocation2 + $0x30] sm:$0xff]
  %v915 = vld [vmem:[#allocation2 + $0x38] sm:$0xff]
  %v916 = vld [vmem:[#allocation2 + $0x40] sm:$0xff]
  %v917 = vld [vmem:[#allocation2 + $0x48] sm:$0xff]
  %v918 = vld [vmem:[#allocation2 + $0x50] sm:$0xff]
  %v919 = vld [vmem:[#allocation2 + $0x58] sm:$0xff]
  %v920 = vld [vmem:[#allocation2 + $0x60] sm:$0xff]
  %v921 = vld [vmem:[#allocation2 + $0x68] sm:$0xff]
  %v922 = vld [vmem:[#allocation2 + $0x70] sm:$0xff]
  %v923 = vld [vmem:[#allocation2 + $0x78] sm:$0xff]
  %v924 = vld [vmem:[%s1 + $0x4] sm:$0xf]
  %v925 = vld [vmem:[%s1 + $0x1c] sm:$0xf]
  %v926 = vld [vmem:[%s1 + $0x34] sm:$0xf]
  %v927 = vld [vmem:[%s1 + $0x4c] sm:$0xf]
  %v928 = vld [vmem:[%s1 + $0x64] sm:$0xf]
  %v929 = vld [vmem:[%s1 + $0x7c] sm:$0xf]
  %v930 = vld [vmem:[%s1 + $0x94] sm:$0xf]
  %v931 = vld [vmem:[%s1 + $0xac] sm:$0xf]
  %v932 = vld [vmem:[%s1 + $0xc4] sm:$0xf]
  %v933 = vld [vmem:[%s1 + $0xdc] sm:$0xf]
  %v934 = vld [vmem:[%s1 + $0xf4] sm:$0xf]
  %v935 = vld [vmem:[%s1 + $0x10c] sm:$0xf]
  %v936 = vld [vmem:[%s1 + $0x124] sm:$0xf]
  %v937 = vld [vmem:[%s1 + $0x13c] sm:$0xf]
  %v938 = vld [vmem:[%s1 + $0x154] sm:$0xf]
  %v939 = vld [vmem:[%s1 + $0x16c] sm:$0xf]
  %v940 = vld [vmem:[%s1 + $0x184] sm:$0xf]
  %v941 = vld [vmem:[%s1 + $0x19c] sm:$0xf]
  %v942 = vld [vmem:[%s1 + $0x1b4] sm:$0xf]
  %v943 = vld [vmem:[%s1 + $0x1cc] sm:$0xf]
  %v944 = vld [vmem:[%s126] sm:$0xff]
  %v945 = vld [vmem:[%s126 + $0x8] sm:$0xff]
  %v946 = vld [vmem:[%s126 + $0x10] sm:$0xff]
  %v947 = vld [vmem:[%s126 + $0x18] sm:$0xff]
  %v948 = vld [vmem:[%s126 + $0x20] sm:$0xff]
  %v949 = vld [vmem:[%s126 + $0x28] sm:$0xff]
  %v950 = vld [vmem:[%s126 + $0x30] sm:$0xff]
  %v951 = vld [vmem:[%s126 + $0x38] sm:$0xff]
  %v952 = vld [vmem:[%s126 + $0x40] sm:$0xff]
  %v953 = vld [vmem:[%s126 + $0x48] sm:$0xff]
  %v954 = vld [vmem:[%s126 + $0x50] sm:$0xff]
  %v955 = vld [vmem:[%s126 + $0x58] sm:$0xff]
  %v956 = vld [vmem:[%s126 + $0x60] sm:$0xff]
  %v957 = vld [vmem:[%s126 + $0x68] sm:$0xff]
  %v958 = vld [vmem:[%s126 + $0x70] sm:$0xff]
  %v959 = vld [vmem:[%s126 + $0x78] sm:$0xff]
  %v960 = vld [vmem:[%s1 + $0x1e4] sm:$0xf]
  %v961 = vld [vmem:[%s1 + $0x1fc] sm:$0xf]
  %v962 = vld [vmem:[%s1 + $0x214] sm:$0xf]
  %v963 = vld [vmem:[%s1 + $0x22c] sm:$0xf]
  %v964 = vld [vmem:[%s1 + $0x244] sm:$0xf]
  %v965 = vld [vmem:[%s1 + $0x25c] sm:$0xf]
  %v966 = vld [vmem:[%s1 + $0x274] sm:$0xf]
  %v967 = vld [vmem:[%s1 + $0x28c] sm:$0xf]
  %v968 = vld [vmem:[%s1 + $0x2a4] sm:$0xf]
  %v969 = vld [vmem:[%s1 + $0x2bc] sm:$0xf]
  %v970 = vld [vmem:[%s1 + $0x2d4] sm:$0xf]
  %v971 = vld [vmem:[%s1 + $0x2ec] sm:$0xf]
  %v972 = vld [vmem:[%s1 + $0x304] sm:$0xf]
  %v973 = vld [vmem:[%s1 + $0x31c] sm:$0xf]
  %v974 = vld [vmem:[%s1 + $0x334] sm:$0xf]
  %v975 = vld [vmem:[%s1 + $0x34c] sm:$0xf]
  %v976 = vld [vmem:[%s1 + $0x364] sm:$0xf]
  %v977 = vld [vmem:[%s1 + $0x37c] sm:$0xf]
  %v978 = vld [vmem:[%s1 + $0x394] sm:$0xf]
  %v979 = vld [vmem:[%s1 + $0x3ac] sm:$0xf]
  %v1000 = vunpack.c.l.b16 %v960
  %v1001 = vunpack.c.l.b16 %v961
  %v1002 = vunpack.c.l.b16 %v962
  %v1003 = vunpack.c.l.b16 %v963
  %v1004 = vunpack.c.l.b16 %v964
  %v1005 = vunpack.c.l.b16 %v965
  %v1006 = vunpack.c.l.b16 %v966
  %v1007 = vunpack.c.l.b16 %v967
  %v1008 = vunpack.c.l.b16 %v968
  %v1009 = vunpack.c.l.b16 %v969
  %v1010 = vunpack.c.l.b16 %v970
  %v1011 = vunpack.c.l.b16 %v971
  %v1012 = vunpack.c.l.b16 %v972
  %v1013 = vunpack.c.l.b16 %v973
  %v1014 = vunpack.c.l.b16 %v974
  %v1015 = vunpack.c.l.b16 %v975
  %v1016 = vunpack.c.l.b16 %v976
  %v1017 = vunpack.c.l.b16 %v977
  %v1018 = vunpack.c.l.b16 %v978
  %v1019 = vunpack.c.l.b16 %v979
  %v1020 = vpack.c.b16 %v1001, %v1000
  %v1021 = vpack.c.b16 %v1003, %v1002
  %v1022 = vpack.c.b16 %v1005, %v1004
  %v1023 = vpack.c.b16 %v1007, %v1006
  %v1024 = vpack.c.b16 %v1009, %v1008
  %v1025 = vpack.c.b16 %v1011, %v1010
  %v1026 = vpack.c.b16 %v1013, %v1012
  %v1027 = vpack.c.b16 %v1015, %v1014
  %v1028 = vpack.c.b16 %v1017, %v1016
  %v1029 = vpack.c.b16 %v1019, %v1018
  %v1041 = vsel %vm26, %v945, 0
  %v1044 = vsel %vm26, %v947, 0
  %v1047 = vsel %vm26, %v949, 0
  %v1050 = vsel %vm26, %v951, 0
  %v1053 = vsel %vm26, %v953, 0
  %v1056 = vsel %vm26, %v955, 0
  %v1059 = vsel %vm26, %v957, 0
  %v1062 = vsel %vm26, %v959, 0
  %1064 = vmatprep.subr.bf16.mxu0 0
  %1065 = vmatpush1.bf16.msra.mxu0 %v1020
  %1066 = vmatprep.subr.bf16.mxu0 0
  %1067 = vmatpush1.bf16.msra.mxu0 %v1021
  %1068 = vmatprep.subr.bf16.mxu0 0
  %1069 = vmatpush1.bf16.msra.mxu0 %v1022
  %1070 = vmatprep.subr.bf16.mxu0 0
  %1071 = vmatpush1.bf16.msra.mxu0 %v1023
  %1072 = vmatprep.subr.bf16.mxu0 0
  %1073 = vmatpush1.bf16.msra.mxu0 %v1024
  %1074 = vmatprep.subr.bf16.mxu0 0
  %1075 = vmatpush1.bf16.msra.mxu0 %v1025
  %1076 = vmatprep.subr.bf16.mxu0 0
  %1077 = vmatpush1.bf16.msra.mxu0 %v1026
  %1078 = vmatprep.subr.bf16.mxu0 0
  %1079 = vmatpush1.bf16.msra.mxu0 %v1027
  %1080 = vmatprep.subr.bf16.mxu0 0
  %1081 = vmatpush1.bf16.msra.mxu0 %v1028
  %1082 = vmatprep.subr.bf16.mxu0 0
  %1083 = vmatpush1.bf16.msra.mxu0 %v1029
  %1084 = vmatprep.subr.bf16.mxu0 0
  %1085 = vmatpush1.bf16.msra.mxu0 0
  %1086 = vmatprep.subr.bf16.mxu0 0
  %1087 = vmatpush1.bf16.msra.mxu0 0
  %1088 = vmatprep.subr.bf16.mxu0 0
  %1089 = vmatpush1.bf16.msra.mxu0 0
  %1090 = vmatprep.subr.bf16.mxu0 0
  %1091 = vmatpush1.bf16.msra.mxu0 0
  %1092 = vmatprep.subr.bf16.mxu0 0
  %1093 = vmatpush1.bf16.msra.mxu0 0
  %1094 = vmatprep.subr.bf16.mxu0 0
  %1095 = vmatpush1.bf16.msra.mxu0 0
  %1096 = vmatprep.mubr.bf16.mxu0 %v1041
  %1097 = vmatmul.mubr.bf16.gmra.mrb[0].mxu0 %v944
  %v1098 = vpop.f32.mrb[0].mxu0
  %v1099 = vadd.f32 0.0, %v1098
  %v1100 = vpop.f32.mrb[0].mxu0
  %v1101 = vpop.f32.mrb[0].mxu0
  %v1102 = vadd.f32 0.0, %v1101
  %v1103 = vpop.f32.mrb[0].mxu0
  %1104 = vmatprep.mubr.bf16.mxu0 %v1044
  %1105 = vmatmul.mubr.bf16.gmra.mrb[0].mxu0 %v946
  %v1106 = vpop.f32.mrb[0].mxu0
  %v1107 = vadd.f32 0.0, %v1106
  %v1108 = vpop.f32.mrb[0].mxu0
  %v1109 = vpop.f32.mrb[0].mxu0
  %v1110 = vadd.f32 0.0, %v1109
  %v1111 = vpop.f32.mrb[0].mxu0
  %1112 = vmatprep.mubr.bf16.mxu0 %v1047
  %1113 = vmatmul.mubr.bf16.gmra.mrb[0].mxu0 %v948
  %v1114 = vpop.f32.mrb[0].mxu0
  %v1115 = vadd.f32 0.0, %v1114
  %v1116 = vpop.f32.mrb[0].mxu0
  %v1117 = vpop.f32.mrb[0].mxu0
  %v1118 = vadd.f32 0.0, %v1117
  %v1119 = vpop.f32.mrb[0].mxu0
  %1120 = vmatprep.mubr.bf16.mxu0 %v1050
  %1121 = vmatmul.mubr.bf16.gmra.mrb[0].mxu0 %v950
  %v1122 = vpop.f32.mrb[0].mxu0
  %v1123 = vadd.f32 0.0, %v1122
  %v1124 = vpop.f32.mrb[0].mxu0
  %v1125 = vpop.f32.mrb[0].mxu0
  %v1126 = vadd.f32 0.0, %v1125
  %v1127 = vpop.f32.mrb[0].mxu0
  %1128 = vmatprep.mubr.bf16.mxu0 %v1053
  %1129 = vmatmul.mubr.bf16.gmra.mrb[0].mxu0 %v952
  %v1130 = vpop.f32.mrb[0].mxu0
  %v1131 = vadd.f32 0.0, %v1130
  %v1132 = vpop.f32.mrb[0].mxu0
  %v1133 = vpop.f32.mrb[0].mxu0
  %v1134 = vadd.f32 0.0, %v1133
  %v1135 = vpop.f32.mrb[0].mxu0
  %1136 = vmatprep.mubr.bf16.mxu0 %v1056
  %1137 = vmatmul.mubr.bf16.gmra.mrb[0].mxu0 %v954
  %v1138 = vpop.f32.mrb[0].mxu0
  %v1139 = vadd.f32 0.0, %v1138
  %v1140 = vpop.f32.mrb[0].mxu0
  %v1141 = vpop.f32.mrb[0].mxu0
  %v1142 = vadd.f32 0.0, %v1141
  %v1143 = vpop.f32.mrb[0].mxu0
  %1144 = vmatprep.mubr.bf16.mxu0 %v1059
  %1145 = vmatmul.mubr.bf16.gmra.mrb[0].mxu0 %v956
  %v1146 = vpop.f32.mrb[0].mxu0
  %v1147 = vadd.f32 0.0, %v1146
  %v1148 = vpop.f32.mrb[0].mxu0
  %v1149 = vpop.f32.mrb[0].mxu0
  %v1150 = vadd.f32 0.0, %v1149
  %v1151 = vpop.f32.mrb[0].mxu0
  %1152 = vmatprep.mubr.bf16.mxu0 %v1062
  %1153 = vmatmul.mubr.bf16.gmra.mrb[0].mxu0 %v958
  %v1154 = vpop.f32.mrb[0].mxu0
  %v1155 = vadd.f32 0.0, %v1154
  %v1156 = vpop.f32.mrb[0].mxu0
  %v1157 = vpop.f32.mrb[0].mxu0
  %v1158 = vadd.f32 0.0, %v1157
  %v1159 = vpop.f32.mrb[0].mxu0
  %1160 = vdwg.mxu0
  %v1181 = vunpack.c.l.b16 %v924
  %v1182 = vunpack.c.l.b16 %v925
  %v1183 = vunpack.c.l.b16 %v926
  %v1184 = vunpack.c.l.b16 %v927
  %v1185 = vunpack.c.l.b16 %v928
  %v1186 = vunpack.c.l.b16 %v929
  %v1187 = vunpack.c.l.b16 %v930
  %v1188 = vunpack.c.l.b16 %v931
  %v1189 = vunpack.c.l.b16 %v932
  %v1190 = vunpack.c.l.b16 %v933
  %v1191 = vunpack.c.l.b16 %v934
  %v1192 = vunpack.c.l.b16 %v935
  %v1193 = vunpack.c.l.b16 %v936
  %v1194 = vunpack.c.l.b16 %v937
  %v1195 = vunpack.c.l.b16 %v938
  %v1196 = vunpack.c.l.b16 %v939
  %v1197 = vunpack.c.l.b16 %v940
  %v1198 = vunpack.c.l.b16 %v941
  %v1199 = vunpack.c.l.b16 %v942
  %v1200 = vunpack.c.l.b16 %v943
  %v1201 = vpack.c.b16 %v1182, %v1181
  %v1202 = vpack.c.b16 %v1184, %v1183
  %v1203 = vpack.c.b16 %v1186, %v1185
  %v1204 = vpack.c.b16 %v1188, %v1187
  %v1205 = vpack.c.b16 %v1190, %v1189
  %v1206 = vpack.c.b16 %v1192, %v1191
  %v1207 = vpack.c.b16 %v1194, %v1193
  %v1208 = vpack.c.b16 %v1196, %v1195
  %v1209 = vpack.c.b16 %v1198, %v1197
  %v1210 = vpack.c.b16 %v1200, %v1199
  %v1222 = vsel %vm26, %v909, 0
  %v1225 = vsel %vm26, %v911, 0
  %v1228 = vsel %vm26, %v913, 0
  %v1231 = vsel %vm26, %v915, 0
  %v1234 = vsel %vm26, %v917, 0
  %v1237 = vsel %vm26, %v919, 0
  %v1240 = vsel %vm26, %v921, 0
  %v1243 = vsel %vm26, %v923, 0
  %1245 = vmatprep.subr.bf16.mxu0 0
  %1246 = vmatpush1.bf16.msra.mxu0 %v1201
  %1247 = vmatprep.subr.bf16.mxu0 0
  %1248 = vmatpush1.bf16.msra.mxu0 %v1202
  %1249 = vmatprep.subr.bf16.mxu0 0
  %1250 = vmatpush1.bf16.msra.mxu0 %v1203
  %1251 = vmatprep.subr.bf16.mxu0 0
  %1252 = vmatpush1.bf16.msra.mxu0 %v1204
  %1253 = vmatprep.subr.bf16.mxu0 0
  %1254 = vmatpush1.bf16.msra.mxu0 %v1205
  %1255 = vmatprep.subr.bf16.mxu0 0
  %1256 = vmatpush1.bf16.msra.mxu0 %v1206
  %1257 = vmatprep.subr.bf16.mxu0 0
  %1258 = vmatpush1.bf16.msra.mxu0 %v1207
  %1259 = vmatprep.subr.bf16.mxu0 0
  %1260 = vmatpush1.bf16.msra.mxu0 %v1208
  %1261 = vmatprep.subr.bf16.mxu0 0
  %1262 = vmatpush1.bf16.msra.mxu0 %v1209
  %1263 = vmatprep.subr.bf16.mxu0 0
  %1264 = vmatpush1.bf16.msra.mxu0 %v1210
  %1265 = vmatprep.subr.bf16.mxu0 0
  %1266 = vmatpush1.bf16.msra.mxu0 0
  %1267 = vmatprep.subr.bf16.mxu0 0
  %1268 = vmatpush1.bf16.msra.mxu0 0
  %1269 = vmatprep.subr.bf16.mxu0 0
  %1270 = vmatpush1.bf16.msra.mxu0 0
  %1271 = vmatprep.subr.bf16.mxu0 0
  %1272 = vmatpush1.bf16.msra.mxu0 0
  %1273 = vmatprep.subr.bf16.mxu0 0
  %1274 = vmatpush1.bf16.msra.mxu0 0
  %1275 = vmatprep.subr.bf16.mxu0 0
  %1276 = vmatpush1.bf16.msra.mxu0 0
  %1277 = vmatprep.mubr.bf16.mxu0 %v1222
  %1278 = vmatmul.mubr.bf16.gmra.mrb[0].mxu0 %v908
  %v1279 = vpop.f32.mrb[0].mxu0
  %v1280 = vadd.f32 %v1099, %v1279
  %v1281 = vpop.f32.mrb[0].mxu0
  %v1282 = vpop.f32.mrb[0].mxu0
  %v1283 = vadd.f32 %v1102, %v1282
  %v1284 = vpop.f32.mrb[0].mxu0
  %1285 = vmatprep.mubr.bf16.mxu0 %v1225
  %1286 = vmatmul.mubr.bf16.gmra.mrb[0].mxu0 %v910
  %v1287 = vpop.f32.mrb[0].mxu0
  %v1288 = vadd.f32 %v1107, %v1287
  %v1289 = vpop.f32.mrb[0].mxu0
  %v1290 = vpop.f32.mrb[0].mxu0
  %v1291 = vadd.f32 %v1110, %v1290
  %v1292 = vpop.f32.mrb[0].mxu0
  %1293 = vmatprep.mubr.bf16.mxu0 %v1228
  %1294 = vmatmul.mubr.bf16.gmra.mrb[0].mxu0 %v912
  %v1295 = vpop.f32.mrb[0].mxu0
  %v1296 = vadd.f32 %v1115, %v1295
  %v1297 = vpop.f32.mrb[0].mxu0
  %v1298 = vpop.f32.mrb[0].mxu0
  %v1299 = vadd.f32 %v1118, %v1298
  %v1300 = vpop.f32.mrb[0].mxu0
  %1301 = vmatprep.mubr.bf16.mxu0 %v1231
  %1302 = vmatmul.mubr.bf16.gmra.mrb[0].mxu0 %v914
  %v1303 = vpop.f32.mrb[0].mxu0
  %v1304 = vadd.f32 %v1123, %v1303
  %v1305 = vpop.f32.mrb[0].mxu0
  %v1306 = vpop.f32.mrb[0].mxu0
  %v1307 = vadd.f32 %v1126, %v1306
  %v1308 = vpop.f32.mrb[0].mxu0
  %1309 = vmatprep.mubr.bf16.mxu0 %v1234
  %1310 = vmatmul.mubr.bf16.gmra.mrb[0].mxu0 %v916
  %v1311 = vpop.f32.mrb[0].mxu0
  %v1312 = vadd.f32 %v1131, %v1311
  %v1313 = vpop.f32.mrb[0].mxu0
  %v1314 = vpop.f32.mrb[0].mxu0
  %v1315 = vadd.f32 %v1134, %v1314
  %v1316 = vpop.f32.mrb[0].mxu0
  %1317 = vmatprep.mubr.bf16.mxu0 %v1237
  %1318 = vmatmul.mubr.bf16.gmra.mrb[0].mxu0 %v918
  %v1319 = vpop.f32.mrb[0].mxu0
  %v1320 = vadd.f32 %v1139, %v1319
  %v1321 = vpop.f32.mrb[0].mxu0
  %v1322 = vpop.f32.mrb[0].mxu0
  %v1323 = vadd.f32 %v1142, %v1322
  %v1324 = vpop.f32.mrb[0].mxu0
  %1325 = vmatprep.mubr.bf16.mxu0 %v1240
  %1326 = vmatmul.mubr.bf16.gmra.mrb[0].mxu0 %v920
  %v1327 = vpop.f32.mrb[0].mxu0
  %v1328 = vadd.f32 %v1147, %v1327
  %v1329 = vpop.f32.mrb[0].mxu0
  %v1330 = vpop.f32.mrb[0].mxu0
  %v1331 = vadd.f32 %v1150, %v1330
  %v1332 = vpop.f32.mrb[0].mxu0
  %1333 = vmatprep.mubr.bf16.mxu0 %v1243
  %1334 = vmatmul.mubr.bf16.gmra.mrb[0].mxu0 %v922
  %v1335 = vpop.f32.mrb[0].mxu0
  %v1336 = vadd.f32 %v1155, %v1335
  %v1337 = vpop.f32.mrb[0].mxu0
  %v1338 = vpop.f32.mrb[0].mxu0
  %v1339 = vadd.f32 %v1158, %v1338
  %v1340 = vpop.f32.mrb[0].mxu0
  %1341 = vdwg.mxu0
  %v1342 = vld [vmem:[%s579] sm:$0xff]
  %v1343 = vld [vmem:[%s579 + $0x8] sm:$0xff]
  %v1344 = vld [vmem:[%s579 + $0x10] sm:$0xff]
  %v1345 = vld [vmem:[%s579 + $0x18] sm:$0xff]
  %v1346 = vld [vmem:[%s579 + $0x20] sm:$0xff]
  %v1347 = vld [vmem:[%s579 + $0x28] sm:$0xff]
  %v1348 = vld [vmem:[%s579 + $0x30] sm:$0xff]
  %v1349 = vld [vmem:[%s579 + $0x38] sm:$0xff]
  %v1350 = vld [vmem:[%s579 + $0x40] sm:$0xff]
  %v1351 = vld [vmem:[%s579 + $0x48] sm:$0xff]
  %v1352 = vld [vmem:[%s579 + $0x50] sm:$0xff]
  %v1353 = vld [vmem:[%s579 + $0x58] sm:$0xff]
  %v1354 = vld [vmem:[%s579 + $0x60] sm:$0xff]
  %v1355 = vld [vmem:[%s579 + $0x68] sm:$0xff]
  %v1356 = vld [vmem:[%s579 + $0x70] sm:$0xff]
  %v1357 = vld [vmem:[%s579 + $0x78] sm:$0xff]
  %v1358 = vld [vmem:[%s1 + $0x3c4] sm:$0xf]
  %v1359 = vld [vmem:[%s1 + $0x3dc] sm:$0xf]
  %v1360 = vld [vmem:[%s1 + $0x3f4] sm:$0xf]
  %v1361 = vld [vmem:[%s1 + $0x40c] sm:$0xf]
  %v1362 = vld [vmem:[%s1 + $0x424] sm:$0xf]
  %v1363 = vld [vmem:[%s1 + $0x43c] sm:$0xf]
  %v1364 = vld [vmem:[%s1 + $0x454] sm:$0xf]
  %v1365 = vld [vmem:[%s1 + $0x46c] sm:$0xf]
  %v1366 = vld [vmem:[%s1 + $0x484] sm:$0xf]
  %v1367 = vld [vmem:[%s1 + $0x49c] sm:$0xf]
  %v1368 = vld [vmem:[%s1 + $0x4b4] sm:$0xf]
  %v1369 = vld [vmem:[%s1 + $0x4cc] sm:$0xf]
  %v1370 = vld [vmem:[%s1 + $0x4e4] sm:$0xf]
  %v1371 = vld [vmem:[%s1 + $0x4fc] sm:$0xf]
  %v1372 = vld [vmem:[%s1 + $0x514] sm:$0xf]
  %v1373 = vld [vmem:[%s1 + $0x52c] sm:$0xf]
  %v1374 = vld [vmem:[%s1 + $0x544] sm:$0xf]
  %v1375 = vld [vmem:[%s1 + $0x55c] sm:$0xf]
  %v1376 = vld [vmem:[%s1 + $0x574] sm:$0xf]
  %v1377 = vld [vmem:[%s1 + $0x58c] sm:$0xf]
  %v1398 = vunpack.c.l.b16 %v1358
  %v1399 = vunpack.c.l.b16 %v1359
  %v1400 = vunpack.c.l.b16 %v1360
  %v1401 = vunpack.c.l.b16 %v1361
  %v1402 = vunpack.c.l.b16 %v1362
  %v1403 = vunpack.c.l.b16 %v1363
  %v1404 = vunpack.c.l.b16 %v1364
  %v1405 = vunpack.c.l.b16 %v1365
  %v1406 = vunpack.c.l.b16 %v1366
  %v1407 = vunpack.c.l.b16 %v1367
  %v1408 = vunpack.c.l.b16 %v1368
  %v1409 = vunpack.c.l.b16 %v1369
  %v1410 = vunpack.c.l.b16 %v1370
  %v1411 = vunpack.c.l.b16 %v1371
  %v1412 = vunpack.c.l.b16 %v1372
  %v1413 = vunpack.c.l.b16 %v1373
  %v1414 = vunpack.c.l.b16 %v1374
  %v1415 = vunpack.c.l.b16 %v1375
  %v1416 = vunpack.c.l.b16 %v1376
  %v1417 = vunpack.c.l.b16 %v1377
  %v1418 = vpack.c.b16 %v1399, %v1398
  %v1419 = vpack.c.b16 %v1401, %v1400
  %v1420 = vpack.c.b16 %v1403, %v1402
  %v1421 = vpack.c.b16 %v1405, %v1404
  %v1422 = vpack.c.b16 %v1407, %v1406
  %v1423 = vpack.c.b16 %v1409, %v1408
  %v1424 = vpack.c.b16 %v1411, %v1410
  %v1425 = vpack.c.b16 %v1413, %v1412
  %v1426 = vpack.c.b16 %v1415, %v1414
  %v1427 = vpack.c.b16 %v1417, %v1416
  %v1439 = vsel %vm26, %v1343, 0
  %v1442 = vsel %vm26, %v1345, 0
  %v1445 = vsel %vm26, %v1347, 0
  %v1448 = vsel %vm26, %v1349, 0
  %v1451 = vsel %vm26, %v1351, 0
  %v1454 = vsel %vm26, %v1353, 0
  %v1457 = vsel %vm26, %v1355, 0
  %v1460 = vsel %vm26, %v1357, 0
  %1462 = vmatprep.subr.bf16.mxu0 0
  %1463 = vmatpush1.bf16.msra.mxu0 %v1418
  %1464 = vmatprep.subr.bf16.mxu0 0
  %1465 = vmatpush1.bf16.msra.mxu0 %v1419
  %1466 = vmatprep.subr.bf16.mxu0 0
  %1467 = vmatpush1.bf16.msra.mxu0 %v1420
  %1468 = vmatprep.subr.bf16.mxu0 0
  %1469 = vmatpush1.bf16.msra.mxu0 %v1421
  %1470 = vmatprep.subr.bf16.mxu0 0
  %1471 = vmatpush1.bf16.msra.mxu0 %v1422
  %1472 = vmatprep.subr.bf16.mxu0 0
  %1473 = vmatpush1.bf16.msra.mxu0 %v1423
  %1474 = vmatprep.subr.bf16.mxu0 0
  %1475 = vmatpush1.bf16.msra.mxu0 %v1424
  %1476 = vmatprep.subr.bf16.mxu0 0
  %1477 = vmatpush1.bf16.msra.mxu0 %v1425
  %1478 = vmatprep.subr.bf16.mxu0 0
  %1479 = vmatpush1.bf16.msra.mxu0 %v1426
  %1480 = vmatprep.subr.bf16.mxu0 0
  %1481 = vmatpush1.bf16.msra.mxu0 %v1427
  %1482 = vmatprep.subr.bf16.mxu0 0
  %1483 = vmatpush1.bf16.msra.mxu0 0
  %1484 = vmatprep.subr.bf16.mxu0 0
  %1485 = vmatpush1.bf16.msra.mxu0 0
  %1486 = vmatprep.subr.bf16.mxu0 0
  %1487 = vmatpush1.bf16.msra.mxu0 0
  %1488 = vmatprep.subr.bf16.mxu0 0
  %1489 = vmatpush1.bf16.msra.mxu0 0
  %1490 = vmatprep.subr.bf16.mxu0 0
  %1491 = vmatpush1.bf16.msra.mxu0 0
  %1492 = vmatprep.subr.bf16.mxu0 0
  %1493 = vmatpush1.bf16.msra.mxu0 0
  %1494 = vmatprep.mubr.bf16.mxu0 %v1439
  %1495 = vmatmul.mubr.bf16.gmra.mrb[0].mxu0 %v1342
  %v1496 = vpop.f32.mrb[0].mxu0
  %v1497 = vadd.f32 0.0, %v1496
  %v1498 = vpop.f32.mrb[0].mxu0
  %v1499 = vpop.f32.mrb[0].mxu0
  %v1500 = vadd.f32 0.0, %v1499
  %v1501 = vpop.f32.mrb[0].mxu0
  %1502 = vmatprep.mubr.bf16.mxu0 %v1442
  %1503 = vmatmul.mubr.bf16.gmra.mrb[0].mxu0 %v1344
  %v1504 = vpop.f32.mrb[0].mxu0
  %v1505 = vadd.f32 0.0, %v1504
  %v1506 = vpop.f32.mrb[0].mxu0
  %v1507 = vpop.f32.mrb[0].mxu0
  %v1508 = vadd.f32 0.0, %v1507
  %v1509 = vpop.f32.mrb[0].mxu0
  %1510 = vmatprep.mubr.bf16.mxu0 %v1445
  %1511 = vmatmul.mubr.bf16.gmra.mrb[0].mxu0 %v1346
  %v1512 = vpop.f32.mrb[0].mxu0
  %v1513 = vadd.f32 0.0, %v1512
  %v1514 = vpop.f32.mrb[0].mxu0
  %v1515 = vpop.f32.mrb[0].mxu0
  %v1516 = vadd.f32 0.0, %v1515
  %v1517 = vpop.f32.mrb[0].mxu0
  %1518 = vmatprep.mubr.bf16.mxu0 %v1448
  %1519 = vmatmul.mubr.bf16.gmra.mrb[0].mxu0 %v1348
  %v1520 = vpop.f32.mrb[0].mxu0
  %v1521 = vadd.f32 0.0, %v1520
  %v1522 = vpop.f32.mrb[0].mxu0
  %v1523 = vpop.f32.mrb[0].mxu0
  %v1524 = vadd.f32 0.0, %v1523
  %v1525 = vpop.f32.mrb[0].mxu0
  %1526 = vmatprep.mubr.bf16.mxu0 %v1451
  %1527 = vmatmul.mubr.bf16.gmra.mrb[0].mxu0 %v1350
  %v1528 = vpop.f32.mrb[0].mxu0
  %v1529 = vadd.f32 0.0, %v1528
  %v1530 = vpop.f32.mrb[0].mxu0
  %v1531 = vpop.f32.mrb[0].mxu0
  %v1532 = vadd.f32 0.0, %v1531
  %v1533 = vpop.f32.mrb[0].mxu0
  %1534 = vmatprep.mubr.bf16.mxu0 %v1454
  %1535 = vmatmul.mubr.bf16.gmra.mrb[0].mxu0 %v1352
  %v1536 = vpop.f32.mrb[0].mxu0
  %v1537 = vadd.f32 0.0, %v1536
  %v1538 = vpop.f32.mrb[0].mxu0
  %v1539 = vpop.f32.mrb[0].mxu0
  %v1540 = vadd.f32 0.0, %v1539
  %v1541 = vpop.f32.mrb[0].mxu0
  %1542 = vmatprep.mubr.bf16.mxu0 %v1457
  %1543 = vmatmul.mubr.bf16.gmra.mrb[0].mxu0 %v1354
  %v1544 = vpop.f32.mrb[0].mxu0
  %v1545 = vadd.f32 0.0, %v1544
  %v1546 = vpop.f32.mrb[0].mxu0
  %v1547 = vpop.f32.mrb[0].mxu0
  %v1548 = vadd.f32 0.0, %v1547
  %v1549 = vpop.f32.mrb[0].mxu0
  %1550 = vmatprep.mubr.bf16.mxu0 %v1460
  %1551 = vmatmul.mubr.bf16.gmra.mrb[0].mxu0 %v1356
  %v1552 = vpop.f32.mrb[0].mxu0
  %v1553 = vadd.f32 0.0, %v1552
  %v1554 = vpop.f32.mrb[0].mxu0
  %v1555 = vpop.f32.mrb[0].mxu0
  %v1556 = vadd.f32 0.0, %v1555
  %v1557 = vpop.f32.mrb[0].mxu0
  %1558 = vdwg.mxu0
  %v1559 = vadd.f32 %v1280, %v1497
  %v1560 = vadd.f32 %v1283, %v1500
  %v1561 = vadd.f32 %v1288, %v1505
  %v1562 = vadd.f32 %v1291, %v1508
  %v1563 = vadd.f32 %v1296, %v1513
  %v1564 = vadd.f32 %v1299, %v1516
  %v1565 = vadd.f32 %v1304, %v1521
  %v1566 = vadd.f32 %v1307, %v1524
  %v1567 = vadd.f32 %v1312, %v1529
  %v1568 = vadd.f32 %v1315, %v1532
  %v1569 = vadd.f32 %v1320, %v1537
  %v1570 = vadd.f32 %v1323, %v1540
  %v1571 = vadd.f32 %v1328, %v1545
  %v1572 = vadd.f32 %v1331, %v1548
  %v1573 = vadd.f32 %v1336, %v1553
  %v1574 = vadd.f32 %v1339, %v1556
  %v1575 = vld [vmem:[%s4 + $0x1] sm:$0x1]
  %v1577 = vlaneseq
  %v1578 = vshrl.u32 %v1577, 7
  %v1579 = vsub.s32 0, %v1578
  %v1580 = vrot.slane %v1575, %v1579
  %v1582 = vadd.f32 %v1559, %v1580
  %v1583 = vadd.f32 %v1560, %v1580
  %v1584 = vadd.f32 %v1561, %v1580
  %v1585 = vadd.f32 %v1562, %v1580
  %v1586 = vadd.f32 %v1563, %v1580
  %v1587 = vadd.f32 %v1564, %v1580
  %v1588 = vadd.f32 %v1565, %v1580
  %v1589 = vadd.f32 %v1566, %v1580
  %v1590 = vadd.f32 %v1567, %v1580
  %v1591 = vadd.f32 %v1568, %v1580
  %v1592 = vadd.f32 %v1569, %v1580
  %v1593 = vadd.f32 %v1570, %v1580
  %v1594 = vadd.f32 %v1571, %v1580
  %v1595 = vadd.f32 %v1572, %v1580
  %v1596 = vadd.f32 %v1573, %v1580
  %v1597 = vadd.f32 %v1574, %v1580
  %v1598 = vmax.f32 %v1582, 0.0
  %v1599 = vmax.f32 %v1583, 0.0
  %v1600 = vmax.f32 %v1584, 0.0
  %v1601 = vmax.f32 %v1585, 0.0
  %v1602 = vmax.f32 %v1586, 0.0
  %v1603 = vmax.f32 %v1587, 0.0
  %v1604 = vmax.f32 %v1588, 0.0
  %v1605 = vmax.f32 %v1589, 0.0
  %v1606 = vmax.f32 %v1590, 0.0
  %v1607 = vmax.f32 %v1591, 0.0
  %v1608 = vmax.f32 %v1592, 0.0
  %v1609 = vmax.f32 %v1593, 0.0
  %v1610 = vmax.f32 %v1594, 0.0
  %v1611 = vmax.f32 %v1595, 0.0
  %v1612 = vmax.f32 %v1596, 0.0
  %v1613 = vmax.f32 %v1597, 0.0
  %v1614 = vpack.c.bf16 %v1599, %v1598
  %v1615 = vpack.c.bf16 %v1601, %v1600
  %v1616 = vpack.c.bf16 %v1603, %v1602
  %v1617 = vpack.c.bf16 %v1605, %v1604
  %v1618 = vpack.c.bf16 %v1607, %v1606
  %v1619 = vpack.c.bf16 %v1609, %v1608
  %v1620 = vpack.c.bf16 %v1611, %v1610
  %v1621 = vpack.c.bf16 %v1613, %v1612
  %1630 = vrot.lane.b32.xlu0 %v1614, 16
  %v1631 = vpop.permute.xlu0 %1630
  %1632 = vrot.lane.b32.xlu0 %v1615, 16
  %v1633 = vpop.permute.xlu0 %1632
  %1634 = vrot.lane.b32.xlu0 %v1616, 16
  %v1635 = vpop.permute.xlu0 %1634
  %1636 = vrot.lane.b32.xlu0 %v1617, 16
  %v1637 = vpop.permute.xlu0 %1636
  %1638 = vrot.lane.b32.xlu0 %v1618, 16
  %v1639 = vpop.permute.xlu0 %1638
  %1640 = vrot.lane.b32.xlu0 %v1619, 16
  %v1641 = vpop.permute.xlu0 %1640
  %1642 = vrot.lane.b32.xlu0 %v1620, 16
  %v1643 = vpop.permute.xlu0 %1642
  %1644 = vrot.lane.b32.xlu0 %v1621, 16
  %v1645 = vpop.permute.xlu0 %1644
  %1654 = vst.msk [vmem:[%s126] sm:$0xff] %vm127, %v1631
  %1655 = vst.msk [vmem:[%s126 + $0x8] sm:$0xff] %vm129, %v1631
  %1656 = vst.msk [vmem:[%s126 + $0x10] sm:$0xff] %vm127, %v1633
  %1657 = vst.msk [vmem:[%s126 + $0x18] sm:$0xff] %vm129, %v1633
  %1658 = vst.msk [vmem:[%s126 + $0x20] sm:$0xff] %vm127, %v1635
  %1659 = vst.msk [vmem:[%s126 + $0x28] sm:$0xff] %vm129, %v1635
  %1660 = vst.msk [vmem:[%s126 + $0x30] sm:$0xff] %vm127, %v1637
  %1661 = vst.msk [vmem:[%s126 + $0x38] sm:$0xff] %vm129, %v1637
  %1662 = vst.msk [vmem:[%s126 + $0x40] sm:$0xff] %vm127, %v1639
  %1663 = vst.msk [vmem:[%s126 + $0x48] sm:$0xff] %vm129, %v1639
  %1664 = vst.msk [vmem:[%s126 + $0x50] sm:$0xff] %vm127, %v1641
  %1665 = vst.msk [vmem:[%s126 + $0x58] sm:$0xff] %vm129, %v1641
  %1666 = vst.msk [vmem:[%s126 + $0x60] sm:$0xff] %vm127, %v1643
  %1667 = vst.msk [vmem:[%s126 + $0x68] sm:$0xff] %vm129, %v1643
  %1668 = vst.msk [vmem:[%s126 + $0x70] sm:$0xff] %vm127, %v1645
  %1669 = vst.msk [vmem:[%s126 + $0x78] sm:$0xff] %vm129, %v1645
  %v1670 = vld [vmem:[#allocation2] sm:$0xff]
  %v1671 = vld [vmem:[#allocation2 + $0x8] sm:$0xff]
  %v1672 = vld [vmem:[#allocation2 + $0x10] sm:$0xff]
  %v1673 = vld [vmem:[#allocation2 + $0x18] sm:$0xff]
  %v1674 = vld [vmem:[#allocation2 + $0x20] sm:$0xff]
  %v1675 = vld [vmem:[#allocation2 + $0x28] sm:$0xff]
  %v1676 = vld [vmem:[#allocation2 + $0x30] sm:$0xff]
  %v1677 = vld [vmem:[#allocation2 + $0x38] sm:$0xff]
  %v1678 = vld [vmem:[#allocation2 + $0x40] sm:$0xff]
  %v1679 = vld [vmem:[#allocation2 + $0x48] sm:$0xff]
  %v1680 = vld [vmem:[#allocation2 + $0x50] sm:$0xff]
  %v1681 = vld [vmem:[#allocation2 + $0x58] sm:$0xff]
  %v1682 = vld [vmem:[#allocation2 + $0x60] sm:$0xff]
  %v1683 = vld [vmem:[#allocation2 + $0x68] sm:$0xff]
  %v1684 = vld [vmem:[#allocation2 + $0x70] sm:$0xff]
  %v1685 = vld [vmem:[#allocation2 + $0x78] sm:$0xff]
  %v1686 = vld [vmem:[%s1 + $0x8] sm:$0xf]
  %v1687 = vld [vmem:[%s1 + $0x20] sm:$0xf]
  %v1688 = vld [vmem:[%s1 + $0x38] sm:$0xf]
  %v1689 = vld [vmem:[%s1 + $0x50] sm:$0xf]
  %v1690 = vld [vmem:[%s1 + $0x68] sm:$0xf]
  %v1691 = vld [vmem:[%s1 + $0x80] sm:$0xf]
  %v1692 = vld [vmem:[%s1 + $0x98] sm:$0xf]
  %v1693 = vld [vmem:[%s1 + $0xb0] sm:$0xf]
  %v1694 = vld [vmem:[%s1 + $0xc8] sm:$0xf]
  %v1695 = vld [vmem:[%s1 + $0xe0] sm:$0xf]
  %v1696 = vld [vmem:[%s1 + $0xf8] sm:$0xf]
  %v1697 = vld [vmem:[%s1 + $0x110] sm:$0xf]
  %v1698 = vld [vmem:[%s1 + $0x128] sm:$0xf]
  %v1699 = vld [vmem:[%s1 + $0x140] sm:$0xf]
  %v1700 = vld [vmem:[%s1 + $0x158] sm:$0xf]
  %v1701 = vld [vmem:[%s1 + $0x170] sm:$0xf]
  %v1702 = vld [vmem:[%s1 + $0x188] sm:$0xf]
  %v1703 = vld [vmem:[%s1 + $0x1a0] sm:$0xf]
  %v1704 = vld [vmem:[%s1 + $0x1b8] sm:$0xf]
  %v1705 = vld [vmem:[%s1 + $0x1d0] sm:$0xf]
  %v1706 = vld [vmem:[%s126] sm:$0xff]
  %v1707 = vld [vmem:[%s126 + $0x8] sm:$0xff]
  %v1708 = vld [vmem:[%s126 + $0x10] sm:$0xff]
  %v1709 = vld [vmem:[%s126 + $0x18] sm:$0xff]
  %v1710 = vld [vmem:[%s126 + $0x20] sm:$0xff]
  %v1711 = vld [vmem:[%s126 + $0x28] sm:$0xff]
  %v1712 = vld [vmem:[%s126 + $0x30] sm:$0xff]
  %v1713 = vld [vmem:[%s126 + $0x38] sm:$0xff]
  %v1714 = vld [vmem:[%s126 + $0x40] sm:$0xff]
  %v1715 = vld [vmem:[%s126 + $0x48] sm:$0xff]
  %v1716 = vld [vmem:[%s126 + $0x50] sm:$0xff]
  %v1717 = vld [vmem:[%s126 + $0x58] sm:$0xff]
  %v1718 = vld [vmem:[%s126 + $0x60] sm:$0xff]
  %v1719 = vld [vmem:[%s126 + $0x68] sm:$0xff]
  %v1720 = vld [vmem:[%s126 + $0x70] sm:$0xff]
  %v1721 = vld [vmem:[%s126 + $0x78] sm:$0xff]
  %v1722 = vld [vmem:[%s1 + $0x1e8] sm:$0xf]
  %v1723 = vld [vmem:[%s1 + $0x200] sm:$0xf]
  %v1724 = vld [vmem:[%s1 + $0x218] sm:$0xf]
  %v1725 = vld [vmem:[%s1 + $0x230] sm:$0xf]
  %v1726 = vld [vmem:[%s1 + $0x248] sm:$0xf]
  %v1727 = vld [vmem:[%s1 + $0x260] sm:$0xf]
  %v1728 = vld [vmem:[%s1 + $0x278] sm:$0xf]
  %v1729 = vld [vmem:[%s1 + $0x290] sm:$0xf]
  %v1730 = vld [vmem:[%s1 + $0x2a8] sm:$0xf]
  %v1731 = vld [vmem:[%s1 + $0x2c0] sm:$0xf]
  %v1732 = vld [vmem:[%s1 + $0x2d8] sm:$0xf]
  %v1733 = vld [vmem:[%s1 + $0x2f0] sm:$0xf]
  %v1734 = vld [vmem:[%s1 + $0x308] sm:$0xf]
  %v1735 = vld [vmem:[%s1 + $0x320] sm:$0xf]
  %v1736 = vld [vmem:[%s1 + $0x338] sm:$0xf]
  %v1737 = vld [vmem:[%s1 + $0x350] sm:$0xf]
  %v1738 = vld [vmem:[%s1 + $0x368] sm:$0xf]
  %v1739 = vld [vmem:[%s1 + $0x380] sm:$0xf]
  %v1740 = vld [vmem:[%s1 + $0x398] sm:$0xf]
  %v1741 = vld [vmem:[%s1 + $0x3b0] sm:$0xf]
  %v1762 = vunpack.c.l.b16 %v1722
  %v1763 = vunpack.c.l.b16 %v1723
  %v1764 = vunpack.c.l.b16 %v1724
  %v1765 = vunpack.c.l.b16 %v1725
  %v1766 = vunpack.c.l.b16 %v1726
  %v1767 = vunpack.c.l.b16 %v1727
  %v1768 = vunpack.c.l.b16 %v1728
  %v1769 = vunpack.c.l.b16 %v1729
  %v1770 = vunpack.c.l.b16 %v1730
  %v1771 = vunpack.c.l.b16 %v1731
  %v1772 = vunpack.c.l.b16 %v1732
  %v1773 = vunpack.c.l.b16 %v1733
  %v1774 = vunpack.c.l.b16 %v1734
  %v1775 = vunpack.c.l.b16 %v1735
  %v1776 = vunpack.c.l.b16 %v1736
  %v1777 = vunpack.c.l.b16 %v1737
  %v1778 = vunpack.c.l.b16 %v1738
  %v1779 = vunpack.c.l.b16 %v1739
  %v1780 = vunpack.c.l.b16 %v1740
  %v1781 = vunpack.c.l.b16 %v1741
  %v1782 = vpack.c.b16 %v1763, %v1762
  %v1783 = vpack.c.b16 %v1765, %v1764
  %v1784 = vpack.c.b16 %v1767, %v1766
  %v1785 = vpack.c.b16 %v1769, %v1768
  %v1786 = vpack.c.b16 %v1771, %v1770
  %v1787 = vpack.c.b16 %v1773, %v1772
  %v1788 = vpack.c.b16 %v1775, %v1774
  %v1789 = vpack.c.b16 %v1777, %v1776
  %v1790 = vpack.c.b16 %v1779, %v1778
  %v1791 = vpack.c.b16 %v1781, %v1780
  %v1803 = vsel %vm26, %v1707, 0
  %v1806 = vsel %vm26, %v1709, 0
  %v1809 = vsel %vm26, %v1711, 0
  %v1812 = vsel %vm26, %v1713, 0
  %v1815 = vsel %vm26, %v1715, 0
  %v1818 = vsel %vm26, %v1717, 0
  %v1821 = vsel %vm26, %v1719, 0
  %v1824 = vsel %vm26, %v1721, 0
  %1826 = vmatprep.subr.bf16.mxu0 0
  %1827 = vmatpush1.bf16.msra.mxu0 %v1782
  %1828 = vmatprep.subr.bf16.mxu0 0
  %1829 = vmatpush1.bf16.msra.mxu0 %v1783
  %1830 = vmatprep.subr.bf16.mxu0 0
  %1831 = vmatpush1.bf16.msra.mxu0 %v1784
  %1832 = vmatprep.subr.bf16.mxu0 0
  %1833 = vmatpush1.bf16.msra.mxu0 %v1785
  %1834 = vmatprep.subr.bf16.mxu0 0
  %1835 = vmatpush1.bf16.msra.mxu0 %v1786
  %1836 = vmatprep.subr.bf16.mxu0 0
  %1837 = vmatpush1.bf16.msra.mxu0 %v1787
  %1838 = vmatprep.subr.bf16.mxu0 0
  %1839 = vmatpush1.bf16.msra.mxu0 %v1788
  %1840 = vmatprep.subr.bf16.mxu0 0
  %1841 = vmatpush1.bf16.msra.mxu0 %v1789
  %1842 = vmatprep.subr.bf16.mxu0 0
  %1843 = vmatpush1.bf16.msra.mxu0 %v1790
  %1844 = vmatprep.subr.bf16.mxu0 0
  %1845 = vmatpush1.bf16.msra.mxu0 %v1791
  %1846 = vmatprep.subr.bf16.mxu0 0
  %1847 = vmatpush1.bf16.msra.mxu0 0
  %1848 = vmatprep.subr.bf16.mxu0 0
  %1849 = vmatpush1.bf16.msra.mxu0 0
  %1850 = vmatprep.subr.bf16.mxu0 0
  %1851 = vmatpush1.bf16.msra.mxu0 0
  %1852 = vmatprep.subr.bf16.mxu0 0
  %1853 = vmatpush1.bf16.msra.mxu0 0
  %1854 = vmatprep.subr.bf16.mxu0 0
  %1855 = vmatpush1.bf16.msra.mxu0 0
  %1856 = vmatprep.subr.bf16.mxu0 0
  %1857 = vmatpush1.bf16.msra.mxu0 0
  %1858 = vmatprep.mubr.bf16.mxu0 %v1803
  %1859 = vmatmul.mubr.bf16.gmra.mrb[0].mxu0 %v1706
  %v1860 = vpop.f32.mrb[0].mxu0
  %v1861 = vadd.f32 0.0, %v1860
  %v1862 = vpop.f32.mrb[0].mxu0
  %v1863 = vpop.f32.mrb[0].mxu0
  %v1864 = vadd.f32 0.0, %v1863
  %v1865 = vpop.f32.mrb[0].mxu0
  %1866 = vmatprep.mubr.bf16.mxu0 %v1806
  %1867 = vmatmul.mubr.bf16.gmra.mrb[0].mxu0 %v1708
  %v1868 = vpop.f32.mrb[0].mxu0
  %v1869 = vadd.f32 0.0, %v1868
  %v1870 = vpop.f32.mrb[0].mxu0
  %v1871 = vpop.f32.mrb[0].mxu0
  %v1872 = vadd.f32 0.0, %v1871
  %v1873 = vpop.f32.mrb[0].mxu0
  %1874 = vmatprep.mubr.bf16.mxu0 %v1809
  %1875 = vmatmul.mubr.bf16.gmra.mrb[0].mxu0 %v1710
  %v1876 = vpop.f32.mrb[0].mxu0
  %v1877 = vadd.f32 0.0, %v1876
  %v1878 = vpop.f32.mrb[0].mxu0
  %v1879 = vpop.f32.mrb[0].mxu0
  %v1880 = vadd.f32 0.0, %v1879
  %v1881 = vpop.f32.mrb[0].mxu0
  %1882 = vmatprep.mubr.bf16.mxu0 %v1812
  %1883 = vmatmul.mubr.bf16.gmra.mrb[0].mxu0 %v1712
  %v1884 = vpop.f32.mrb[0].mxu0
  %v1885 = vadd.f32 0.0, %v1884
  %v1886 = vpop.f32.mrb[0].mxu0
  %v1887 = vpop.f32.mrb[0].mxu0
  %v1888 = vadd.f32 0.0, %v1887
  %v1889 = vpop.f32.mrb[0].mxu0
  %1890 = vmatprep.mubr.bf16.mxu0 %v1815
  %1891 = vmatmul.mubr.bf16.gmra.mrb[0].mxu0 %v1714
  %v1892 = vpop.f32.mrb[0].mxu0
  %v1893 = vadd.f32 0.0, %v1892
  %v1894 = vpop.f32.mrb[0].mxu0
  %v1895 = vpop.f32.mrb[0].mxu0
  %v1896 = vadd.f32 0.0, %v1895
  %v1897 = vpop.f32.mrb[0].mxu0
  %1898 = vmatprep.mubr.bf16.mxu0 %v1818
  %1899 = vmatmul.mubr.bf16.gmra.mrb[0].mxu0 %v1716
  %v1900 = vpop.f32.mrb[0].mxu0
  %v1901 = vadd.f32 0.0, %v1900
  %v1902 = vpop.f32.mrb[0].mxu0
  %v1903 = vpop.f32.mrb[0].mxu0
  %v1904 = vadd.f32 0.0, %v1903
  %v1905 = vpop.f32.mrb[0].mxu0
  %1906 = vmatprep.mubr.bf16.mxu0 %v1821
  %1907 = vmatmul.mubr.bf16.gmra.mrb[0].mxu0 %v1718
  %v1908 = vpop.f32.mrb[0].mxu0
  %v1909 = vadd.f32 0.0, %v1908
  %v1910 = vpop.f32.mrb[0].mxu0
  %v1911 = vpop.f32.mrb[0].mxu0
  %v1912 = vadd.f32 0.0, %v1911
  %v1913 = vpop.f32.mrb[0].mxu0
  %1914 = vmatprep.mubr.bf16.mxu0 %v1824
  %1915 = vmatmul.mubr.bf16.gmra.mrb[0].mxu0 %v1720
  %v1916 = vpop.f32.mrb[0].mxu0
  %v1917 = vadd.f32 0.0, %v1916
  %v1918 = vpop.f32.mrb[0].mxu0
  %v1919 = vpop.f32.mrb[0].mxu0
  %v1920 = vadd.f32 0.0, %v1919
  %v1921 = vpop.f32.mrb[0].mxu0
  %1922 = vdwg.mxu0
  %v1943 = vunpack.c.l.b16 %v1686
  %v1944 = vunpack.c.l.b16 %v1687
  %v1945 = vunpack.c.l.b16 %v1688
  %v1946 = vunpack.c.l.b16 %v1689
  %v1947 = vunpack.c.l.b16 %v1690
  %v1948 = vunpack.c.l.b16 %v1691
  %v1949 = vunpack.c.l.b16 %v1692
  %v1950 = vunpack.c.l.b16 %v1693
  %v1951 = vunpack.c.l.b16 %v1694
  %v1952 = vunpack.c.l.b16 %v1695
  %v1953 = vunpack.c.l.b16 %v1696
  %v1954 = vunpack.c.l.b16 %v1697
  %v1955 = vunpack.c.l.b16 %v1698
  %v1956 = vunpack.c.l.b16 %v1699
  %v1957 = vunpack.c.l.b16 %v1700
  %v1958 = vunpack.c.l.b16 %v1701
  %v1959 = vunpack.c.l.b16 %v1702
  %v1960 = vunpack.c.l.b16 %v1703
  %v1961 = vunpack.c.l.b16 %v1704
  %v1962 = vunpack.c.l.b16 %v1705
  %v1963 = vpack.c.b16 %v1944, %v1943
  %v1964 = vpack.c.b16 %v1946, %v1945
  %v1965 = vpack.c.b16 %v1948, %v1947
  %v1966 = vpack.c.b16 %v1950, %v1949
  %v1967 = vpack.c.b16 %v1952, %v1951
  %v1968 = vpack.c.b16 %v1954, %v1953
  %v1969 = vpack.c.b16 %v1956, %v1955
  %v1970 = vpack.c.b16 %v1958, %v1957
  %v1971 = vpack.c.b16 %v1960, %v1959
  %v1972 = vpack.c.b16 %v1962, %v1961
  %v1984 = vsel %vm26, %v1671, 0
  %v1987 = vsel %vm26, %v1673, 0
  %v1990 = vsel %vm26, %v1675, 0
  %v1993 = vsel %vm26, %v1677, 0
  %v1996 = vsel %vm26, %v1679, 0
  %v1999 = vsel %vm26, %v1681, 0
  %v2002 = vsel %vm26, %v1683, 0
  %v2005 = vsel %vm26, %v1685, 0
  %2007 = vmatprep.subr.bf16.mxu0 0
  %2008 = vmatpush1.bf16.msra.mxu0 %v1963
  %2009 = vmatprep.subr.bf16.mxu0 0
  %2010 = vmatpush1.bf16.msra.mxu0 %v1964
  %2011 = vmatprep.subr.bf16.mxu0 0
  %2012 = vmatpush1.bf16.msra.mxu0 %v1965
  %2013 = vmatprep.subr.bf16.mxu0 0
  %2014 = vmatpush1.bf16.msra.mxu0 %v1966
  %2015 = vmatprep.subr.bf16.mxu0 0
  %2016 = vmatpush1.bf16.msra.mxu0 %v1967
  %2017 = vmatprep.subr.bf16.mxu0 0
  %2018 = vmatpush1.bf16.msra.mxu0 %v1968
  %2019 = vmatprep.subr.bf16.mxu0 0
  %2020 = vmatpush1.bf16.msra.mxu0 %v1969
  %2021 = vmatprep.subr.bf16.mxu0 0
  %2022 = vmatpush1.bf16.msra.mxu0 %v1970
  %2023 = vmatprep.subr.bf16.mxu0 0
  %2024 = vmatpush1.bf16.msra.mxu0 %v1971
  %2025 = vmatprep.subr.bf16.mxu0 0
  %2026 = vmatpush1.bf16.msra.mxu0 %v1972
  %2027 = vmatprep.subr.bf16.mxu0 0
  %2028 = vmatpush1.bf16.msra.mxu0 0
  %2029 = vmatprep.subr.bf16.mxu0 0
  %2030 = vmatpush1.bf16.msra.mxu0 0
  %2031 = vmatprep.subr.bf16.mxu0 0
  %2032 = vmatpush1.bf16.msra.mxu0 0
  %2033 = vmatprep.subr.bf16.mxu0 0
  %2034 = vmatpush1.bf16.msra.mxu0 0
  %2035 = vmatprep.subr.bf16.mxu0 0
  %2036 = vmatpush1.bf16.msra.mxu0 0
  %2037 = vmatprep.subr.bf16.mxu0 0
  %2038 = vmatpush1.bf16.msra.mxu0 0
  %2039 = vmatprep.mubr.bf16.mxu0 %v1984
  %2040 = vmatmul.mubr.bf16.gmra.mrb[0].mxu0 %v1670
  %v2041 = vpop.f32.mrb[0].mxu0
  %v2042 = vadd.f32 %v1861, %v2041
  %v2043 = vpop.f32.mrb[0].mxu0
  %v2044 = vpop.f32.mrb[0].mxu0
  %v2045 = vadd.f32 %v1864, %v2044
  %v2046 = vpop.f32.mrb[0].mxu0
  %2047 = vmatprep.mubr.bf16.mxu0 %v1987
  %2048 = vmatmul.mubr.bf16.gmra.mrb[0].mxu0 %v1672
  %v2049 = vpop.f32.mrb[0].mxu0
  %v2050 = vadd.f32 %v1869, %v2049
  %v2051 = vpop.f32.mrb[0].mxu0
  %v2052 = vpop.f32.mrb[0].mxu0
  %v2053 = vadd.f32 %v1872, %v2052
  %v2054 = vpop.f32.mrb[0].mxu0
  %2055 = vmatprep.mubr.bf16.mxu0 %v1990
  %2056 = vmatmul.mubr.bf16.gmra.mrb[0].mxu0 %v1674
  %v2057 = vpop.f32.mrb[0].mxu0
  %v2058 = vadd.f32 %v1877, %v2057
  %v2059 = vpop.f32.mrb[0].mxu0
  %v2060 = vpop.f32.mrb[0].mxu0
  %v2061 = vadd.f32 %v1880, %v2060
  %v2062 = vpop.f32.mrb[0].mxu0
  %2063 = vmatprep.mubr.bf16.mxu0 %v1993
  %2064 = vmatmul.mubr.bf16.gmra.mrb[0].mxu0 %v1676
  %v2065 = vpop.f32.mrb[0].mxu0
  %v2066 = vadd.f32 %v1885, %v2065
  %v2067 = vpop.f32.mrb[0].mxu0
  %v2068 = vpop.f32.mrb[0].mxu0
  %v2069 = vadd.f32 %v1888, %v2068
  %v2070 = vpop.f32.mrb[0].mxu0
  %2071 = vmatprep.mubr.bf16.mxu0 %v1996
  %2072 = vmatmul.mubr.bf16.gmra.mrb[0].mxu0 %v1678
  %v2073 = vpop.f32.mrb[0].mxu0
  %v2074 = vadd.f32 %v1893, %v2073
  %v2075 = vpop.f32.mrb[0].mxu0
  %v2076 = vpop.f32.mrb[0].mxu0
  %v2077 = vadd.f32 %v1896, %v2076
  %v2078 = vpop.f32.mrb[0].mxu0
  %2079 = vmatprep.mubr.bf16.mxu0 %v1999
  %2080 = vmatmul.mubr.bf16.gmra.mrb[0].mxu0 %v1680
  %v2081 = vpop.f32.mrb[0].mxu0
  %v2082 = vadd.f32 %v1901, %v2081
  %v2083 = vpop.f32.mrb[0].mxu0
  %v2084 = vpop.f32.mrb[0].mxu0
  %v2085 = vadd.f32 %v1904, %v2084
  %v2086 = vpop.f32.mrb[0].mxu0
  %2087 = vmatprep.mubr.bf16.mxu0 %v2002
  %2088 = vmatmul.mubr.bf16.gmra.mrb[0].mxu0 %v1682
  %v2089 = vpop.f32.mrb[0].mxu0
  %v2090 = vadd.f32 %v1909, %v2089
  %v2091 = vpop.f32.mrb[0].mxu0
  %v2092 = vpop.f32.mrb[0].mxu0
  %v2093 = vadd.f32 %v1912, %v2092
  %v2094 = vpop.f32.mrb[0].mxu0
  %2095 = vmatprep.mubr.bf16.mxu0 %v2005
  %2096 = vmatmul.mubr.bf16.gmra.mrb[0].mxu0 %v1684
  %v2097 = vpop.f32.mrb[0].mxu0
  %v2098 = vadd.f32 %v1917, %v2097
  %v2099 = vpop.f32.mrb[0].mxu0
  %v2100 = vpop.f32.mrb[0].mxu0
  %v2101 = vadd.f32 %v1920, %v2100
  %v2102 = vpop.f32.mrb[0].mxu0
  %2103 = vdwg.mxu0
  %v2104 = vld [vmem:[%s579] sm:$0xff]
  %v2105 = vld [vmem:[%s579 + $0x8] sm:$0xff]
  %v2106 = vld [vmem:[%s579 + $0x10] sm:$0xff]
  %v2107 = vld [vmem:[%s579 + $0x18] sm:$0xff]
  %v2108 = vld [vmem:[%s579 + $0x20] sm:$0xff]
  %v2109 = vld [vmem:[%s579 + $0x28] sm:$0xff]
  %v2110 = vld [vmem:[%s579 + $0x30] sm:$0xff]
  %v2111 = vld [vmem:[%s579 + $0x38] sm:$0xff]
  %v2112 = vld [vmem:[%s579 + $0x40] sm:$0xff]
  %v2113 = vld [vmem:[%s579 + $0x48] sm:$0xff]
  %v2114 = vld [vmem:[%s579 + $0x50] sm:$0xff]
  %v2115 = vld [vmem:[%s579 + $0x58] sm:$0xff]
  %v2116 = vld [vmem:[%s579 + $0x60] sm:$0xff]
  %v2117 = vld [vmem:[%s579 + $0x68] sm:$0xff]
  %v2118 = vld [vmem:[%s579 + $0x70] sm:$0xff]
  %v2119 = vld [vmem:[%s579 + $0x78] sm:$0xff]
  %v2120 = vld [vmem:[%s1 + $0x3c8] sm:$0xf]
  %v2121 = vld [vmem:[%s1 + $0x3e0] sm:$0xf]
  %v2122 = vld [vmem:[%s1 + $0x3f8] sm:$0xf]
  %v2123 = vld [vmem:[%s1 + $0x410] sm:$0xf]
  %v2124 = vld [vmem:[%s1 + $0x428] sm:$0xf]
  %v2125 = vld [vmem:[%s1 + $0x440] sm:$0xf]
  %v2126 = vld [vmem:[%s1 + $0x458] sm:$0xf]
  %v2127 = vld [vmem:[%s1 + $0x470] sm:$0xf]
  %v2128 = vld [vmem:[%s1 + $0x488] sm:$0xf]
  %v2129 = vld [vmem:[%s1 + $0x4a0] sm:$0xf]
  %v2130 = vld [vmem:[%s1 + $0x4b8] sm:$0xf]
  %v2131 = vld [vmem:[%s1 + $0x4d0] sm:$0xf]
  %v2132 = vld [vmem:[%s1 + $0x4e8] sm:$0xf]
  %v2133 = vld [vmem:[%s1 + $0x500] sm:$0xf]
  %v2134 = vld [vmem:[%s1 + $0x518] sm:$0xf]
  %v2135 = vld [vmem:[%s1 + $0x530] sm:$0xf]
  %v2136 = vld [vmem:[%s1 + $0x548] sm:$0xf]
  %v2137 = vld [vmem:[%s1 + $0x560] sm:$0xf]
  %v2138 = vld [vmem:[%s1 + $0x578] sm:$0xf]
  %v2139 = vld [vmem:[%s1 + $0x590] sm:$0xf]
  %v2160 = vunpack.c.l.b16 %v2120
  %v2161 = vunpack.c.l.b16 %v2121
  %v2162 = vunpack.c.l.b16 %v2122
  %v2163 = vunpack.c.l.b16 %v2123
  %v2164 = vunpack.c.l.b16 %v2124
  %v2165 = vunpack.c.l.b16 %v2125
  %v2166 = vunpack.c.l.b16 %v2126
  %v2167 = vunpack.c.l.b16 %v2127
  %v2168 = vunpack.c.l.b16 %v2128
  %v2169 = vunpack.c.l.b16 %v2129
  %v2170 = vunpack.c.l.b16 %v2130
  %v2171 = vunpack.c.l.b16 %v2131
  %v2172 = vunpack.c.l.b16 %v2132
  %v2173 = vunpack.c.l.b16 %v2133
  %v2174 = vunpack.c.l.b16 %v2134
  %v2175 = vunpack.c.l.b16 %v2135
  %v2176 = vunpack.c.l.b16 %v2136
  %v2177 = vunpack.c.l.b16 %v2137
  %v2178 = vunpack.c.l.b16 %v2138
  %v2179 = vunpack.c.l.b16 %v2139
  %v2180 = vpack.c.b16 %v2161, %v2160
  %v2181 = vpack.c.b16 %v2163, %v2162
  %v2182 = vpack.c.b16 %v2165, %v2164
  %v2183 = vpack.c.b16 %v2167, %v2166
  %v2184 = vpack.c.b16 %v2169, %v2168
  %v2185 = vpack.c.b16 %v2171, %v2170
  %v2186 = vpack.c.b16 %v2173, %v2172
  %v2187 = vpack.c.b16 %v2175, %v2174
  %v2188 = vpack.c.b16 %v2177, %v2176
  %v2189 = vpack.c.b16 %v2179, %v2178
  %v2201 = vsel %vm26, %v2105, 0
  %v2204 = vsel %vm26, %v2107, 0
  %v2207 = vsel %vm26, %v2109, 0
  %v2210 = vsel %vm26, %v2111, 0
  %v2213 = vsel %vm26, %v2113, 0
  %v2216 = vsel %vm26, %v2115, 0
  %v2219 = vsel %vm26, %v2117, 0
  %v2222 = vsel %vm26, %v2119, 0
  %2224 = vmatprep.subr.bf16.mxu0 0
  %2225 = vmatpush1.bf16.msra.mxu0 %v2180
  %2226 = vmatprep.subr.bf16.mxu0 0
  %2227 = vmatpush1.bf16.msra.mxu0 %v2181
  %2228 = vmatprep.subr.bf16.mxu0 0
  %2229 = vmatpush1.bf16.msra.mxu0 %v2182
  %2230 = vmatprep.subr.bf16.mxu0 0
  %2231 = vmatpush1.bf16.msra.mxu0 %v2183
  %2232 = vmatprep.subr.bf16.mxu0 0
  %2233 = vmatpush1.bf16.msra.mxu0 %v2184
  %2234 = vmatprep.subr.bf16.mxu0 0
  %2235 = vmatpush1.bf16.msra.mxu0 %v2185
  %2236 = vmatprep.subr.bf16.mxu0 0
  %2237 = vmatpush1.bf16.msra.mxu0 %v2186
  %2238 = vmatprep.subr.bf16.mxu0 0
  %2239 = vmatpush1.bf16.msra.mxu0 %v2187
  %2240 = vmatprep.subr.bf16.mxu0 0
  %2241 = vmatpush1.bf16.msra.mxu0 %v2188
  %2242 = vmatprep.subr.bf16.mxu0 0
  %2243 = vmatpush1.bf16.msra.mxu0 %v2189
  %2244 = vmatprep.subr.bf16.mxu0 0
  %2245 = vmatpush1.bf16.msra.mxu0 0
  %2246 = vmatprep.subr.bf16.mxu0 0
  %2247 = vmatpush1.bf16.msra.mxu0 0
  %2248 = vmatprep.subr.bf16.mxu0 0
  %2249 = vmatpush1.bf16.msra.mxu0 0
  %2250 = vmatprep.subr.bf16.mxu0 0
  %2251 = vmatpush1.bf16.msra.mxu0 0
  %2252 = vmatprep.subr.bf16.mxu0 0
  %2253 = vmatpush1.bf16.msra.mxu0 0
  %2254 = vmatprep.subr.bf16.mxu0 0
  %2255 = vmatpush1.bf16.msra.mxu0 0
  %2256 = vmatprep.mubr.bf16.mxu0 %v2201
  %2257 = vmatmul.mubr.bf16.gmra.mrb[0].mxu0 %v2104
  %v2258 = vpop.f32.mrb[0].mxu0
  %v2259 = vadd.f32 0.0, %v2258
  %v2260 = vpop.f32.mrb[0].mxu0
  %v2261 = vpop.f32.mrb[0].mxu0
  %v2262 = vadd.f32 0.0, %v2261
  %v2263 = vpop.f32.mrb[0].mxu0
  %2264 = vmatprep.mubr.bf16.mxu0 %v2204
  %2265 = vmatmul.mubr.bf16.gmra.mrb[0].mxu0 %v2106
  %v2266 = vpop.f32.mrb[0].mxu0
  %v2267 = vadd.f32 0.0, %v2266
  %v2268 = vpop.f32.mrb[0].mxu0
  %v2269 = vpop.f32.mrb[0].mxu0
  %v2270 = vadd.f32 0.0, %v2269
  %v2271 = vpop.f32.mrb[0].mxu0
  %2272 = vmatprep.mubr.bf16.mxu0 %v2207
  %2273 = vmatmul.mubr.bf16.gmra.mrb[0].mxu0 %v2108
  %v2274 = vpop.f32.mrb[0].mxu0
  %v2275 = vadd.f32 0.0, %v2274
  %v2276 = vpop.f32.mrb[0].mxu0
  %v2277 = vpop.f32.mrb[0].mxu0
  %v2278 = vadd.f32 0.0, %v2277
  %v2279 = vpop.f32.mrb[0].mxu0
  %2280 = vmatprep.mubr.bf16.mxu0 %v2210
  %2281 = vmatmul.mubr.bf16.gmra.mrb[0].mxu0 %v2110
  %v2282 = vpop.f32.mrb[0].mxu0
  %v2283 = vadd.f32 0.0, %v2282
  %v2284 = vpop.f32.mrb[0].mxu0
  %v2285 = vpop.f32.mrb[0].mxu0
  %v2286 = vadd.f32 0.0, %v2285
  %v2287 = vpop.f32.mrb[0].mxu0
  %2288 = vmatprep.mubr.bf16.mxu0 %v2213
  %2289 = vmatmul.mubr.bf16.gmra.mrb[0].mxu0 %v2112
  %v2290 = vpop.f32.mrb[0].mxu0
  %v2291 = vadd.f32 0.0, %v2290
  %v2292 = vpop.f32.mrb[0].mxu0
  %v2293 = vpop.f32.mrb[0].mxu0
  %v2294 = vadd.f32 0.0, %v2293
  %v2295 = vpop.f32.mrb[0].mxu0
  %2296 = vmatprep.mubr.bf16.mxu0 %v2216
  %2297 = vmatmul.mubr.bf16.gmra.mrb[0].mxu0 %v2114
  %v2298 = vpop.f32.mrb[0].mxu0
  %v2299 = vadd.f32 0.0, %v2298
  %v2300 = vpop.f32.mrb[0].mxu0
  %v2301 = vpop.f32.mrb[0].mxu0
  %v2302 = vadd.f32 0.0, %v2301
  %v2303 = vpop.f32.mrb[0].mxu0
  %2304 = vmatprep.mubr.bf16.mxu0 %v2219
  %2305 = vmatmul.mubr.bf16.gmra.mrb[0].mxu0 %v2116
  %v2306 = vpop.f32.mrb[0].mxu0
  %v2307 = vadd.f32 0.0, %v2306
  %v2308 = vpop.f32.mrb[0].mxu0
  %v2309 = vpop.f32.mrb[0].mxu0
  %v2310 = vadd.f32 0.0, %v2309
  %v2311 = vpop.f32.mrb[0].mxu0
  %2312 = vmatprep.mubr.bf16.mxu0 %v2222
  %2313 = vmatmul.mubr.bf16.gmra.mrb[0].mxu0 %v2118
  %v2314 = vpop.f32.mrb[0].mxu0
  %v2315 = vadd.f32 0.0, %v2314
  %v2316 = vpop.f32.mrb[0].mxu0
  %v2317 = vpop.f32.mrb[0].mxu0
  %v2318 = vadd.f32 0.0, %v2317
  %v2319 = vpop.f32.mrb[0].mxu0
  %2320 = vdwg.mxu0
  %v2321 = vadd.f32 %v2042, %v2259
  %v2322 = vadd.f32 %v2045, %v2262
  %v2323 = vadd.f32 %v2050, %v2267
  %v2324 = vadd.f32 %v2053, %v2270
  %v2325 = vadd.f32 %v2058, %v2275
  %v2326 = vadd.f32 %v2061, %v2278
  %v2327 = vadd.f32 %v2066, %v2283
  %v2328 = vadd.f32 %v2069, %v2286
  %v2329 = vadd.f32 %v2074, %v2291
  %v2330 = vadd.f32 %v2077, %v2294
  %v2331 = vadd.f32 %v2082, %v2299
  %v2332 = vadd.f32 %v2085, %v2302
  %v2333 = vadd.f32 %v2090, %v2307
  %v2334 = vadd.f32 %v2093, %v2310
  %v2335 = vadd.f32 %v2098, %v2315
  %v2336 = vadd.f32 %v2101, %v2318
  %v2337 = vld [vmem:[%s4 + $0x2] sm:$0x1]
  %v2339 = vlaneseq
  %v2340 = vshrl.u32 %v2339, 7
  %v2341 = vsub.s32 0, %v2340
  %v2342 = vrot.slane %v2337, %v2341
  %v2344 = vadd.f32 %v2321, %v2342
  %v2345 = vadd.f32 %v2322, %v2342
  %v2346 = vadd.f32 %v2323, %v2342
  %v2347 = vadd.f32 %v2324, %v2342
  %v2348 = vadd.f32 %v2325, %v2342
  %v2349 = vadd.f32 %v2326, %v2342
  %v2350 = vadd.f32 %v2327, %v2342
  %v2351 = vadd.f32 %v2328, %v2342
  %v2352 = vadd.f32 %v2329, %v2342
  %v2353 = vadd.f32 %v2330, %v2342
  %v2354 = vadd.f32 %v2331, %v2342
  %v2355 = vadd.f32 %v2332, %v2342
  %v2356 = vadd.f32 %v2333, %v2342
  %v2357 = vadd.f32 %v2334, %v2342
  %v2358 = vadd.f32 %v2335, %v2342
  %v2359 = vadd.f32 %v2336, %v2342
  %v2360 = vmax.f32 %v2344, 0.0
  %v2361 = vmax.f32 %v2345, 0.0
  %v2362 = vmax.f32 %v2346, 0.0
  %v2363 = vmax.f32 %v2347, 0.0
  %v2364 = vmax.f32 %v2348, 0.0
  %v2365 = vmax.f32 %v2349, 0.0
  %v2366 = vmax.f32 %v2350, 0.0
  %v2367 = vmax.f32 %v2351, 0.0
  %v2368 = vmax.f32 %v2352, 0.0
  %v2369 = vmax.f32 %v2353, 0.0
  %v2370 = vmax.f32 %v2354, 0.0
  %v2371 = vmax.f32 %v2355, 0.0
  %v2372 = vmax.f32 %v2356, 0.0
  %v2373 = vmax.f32 %v2357, 0.0
  %v2374 = vmax.f32 %v2358, 0.0
  %v2375 = vmax.f32 %v2359, 0.0
  %v2376 = vpack.c.bf16 %v2361, %v2360
  %v2377 = vpack.c.bf16 %v2363, %v2362
  %v2378 = vpack.c.bf16 %v2365, %v2364
  %v2379 = vpack.c.bf16 %v2367, %v2366
  %v2380 = vpack.c.bf16 %v2369, %v2368
  %v2381 = vpack.c.bf16 %v2371, %v2370
  %v2382 = vpack.c.bf16 %v2373, %v2372
  %v2383 = vpack.c.bf16 %v2375, %v2374
  %2392 = vrot.lane.b32.xlu0 %v2376, 16
  %v2393 = vpop.permute.xlu0 %2392
  %2394 = vrot.lane.b32.xlu0 %v2377, 16
  %v2395 = vpop.permute.xlu0 %2394
  %2396 = vrot.lane.b32.xlu0 %v2378, 16
  %v2397 = vpop.permute.xlu0 %2396
  %2398 = vrot.lane.b32.xlu0 %v2379, 16
  %v2399 = vpop.permute.xlu0 %2398
  %2400 = vrot.lane.b32.xlu0 %v2380, 16
  %v2401 = vpop.permute.xlu0 %2400
  %2402 = vrot.lane.b32.xlu0 %v2381, 16
  %v2403 = vpop.permute.xlu0 %2402
  %2404 = vrot.lane.b32.xlu0 %v2382, 16
  %v2405 = vpop.permute.xlu0 %2404
  %2406 = vrot.lane.b32.xlu0 %v2383, 16
  %v2407 = vpop.permute.xlu0 %2406
  %2416 = vst.msk [vmem:[%s126] sm:$0xff] %vm127, %v2393
  %2417 = vst.msk [vmem:[%s126 + $0x8] sm:$0xff] %vm129, %v2393
  %2418 = vst.msk [vmem:[%s126 + $0x10] sm:$0xff] %vm127, %v2395
  %2419 = vst.msk [vmem:[%s126 + $0x18] sm:$0xff] %vm129, %v2395
  %2420 = vst.msk [vmem:[%s126 + $0x20] sm:$0xff] %vm127, %v2397
  %2421 = vst.msk [vmem:[%s126 + $0x28] sm:$0xff] %vm129, %v2397
  %2422 = vst.msk [vmem:[%s126 + $0x30] sm:$0xff] %vm127, %v2399
  %2423 = vst.msk [vmem:[%s126 + $0x38] sm:$0xff] %vm129, %v2399
  %2424 = vst.msk [vmem:[%s126 + $0x40] sm:$0xff] %vm127, %v2401
  %2425 = vst.msk [vmem:[%s126 + $0x48] sm:$0xff] %vm129, %v2401
  %2426 = vst.msk [vmem:[%s126 + $0x50] sm:$0xff] %vm127, %v2403
  %2427 = vst.msk [vmem:[%s126 + $0x58] sm:$0xff] %vm129, %v2403
  %2428 = vst.msk [vmem:[%s126 + $0x60] sm:$0xff] %vm127, %v2405
  %2429 = vst.msk [vmem:[%s126 + $0x68] sm:$0xff] %vm129, %v2405
  %2430 = vst.msk [vmem:[%s126 + $0x70] sm:$0xff] %vm127, %v2407
  %2431 = vst.msk [vmem:[%s126 + $0x78] sm:$0xff] %vm129, %v2407
  %v2432 = vld [vmem:[#allocation2] sm:$0xff]
  %v2433 = vld [vmem:[#allocation2 + $0x8] sm:$0xff]
  %v2434 = vld [vmem:[#allocation2 + $0x10] sm:$0xff]
  %v2435 = vld [vmem:[#allocation2 + $0x18] sm:$0xff]
  %v2436 = vld [vmem:[#allocation2 + $0x20] sm:$0xff]
  %v2437 = vld [vmem:[#allocation2 + $0x28] sm:$0xff]
  %v2438 = vld [vmem:[#allocation2 + $0x30] sm:$0xff]
  %v2439 = vld [vmem:[#allocation2 + $0x38] sm:$0xff]
  %v2440 = vld [vmem:[#allocation2 + $0x40] sm:$0xff]
  %v2441 = vld [vmem:[#allocation2 + $0x48] sm:$0xff]
  %v2442 = vld [vmem:[#allocation2 + $0x50] sm:$0xff]
  %v2443 = vld [vmem:[#allocation2 + $0x58] sm:$0xff]
  %v2444 = vld [vmem:[#allocation2 + $0x60] sm:$0xff]
  %v2445 = vld [vmem:[#allocation2 + $0x68] sm:$0xff]
  %v2446 = vld [vmem:[#allocation2 + $0x70] sm:$0xff]
  %v2447 = vld [vmem:[#allocation2 + $0x78] sm:$0xff]
  %v2448 = vld [vmem:[%s1 + $0xc] sm:$0xff]
  %v2449 = vld [vmem:[%s1 + $0x24] sm:$0xff]
  %v2450 = vld [vmem:[%s1 + $0x3c] sm:$0xff]
  %v2451 = vld [vmem:[%s1 + $0x54] sm:$0xff]
  %v2452 = vld [vmem:[%s1 + $0x6c] sm:$0xff]
  %v2453 = vld [vmem:[%s1 + $0x84] sm:$0xff]
  %v2454 = vld [vmem:[%s1 + $0x9c] sm:$0xff]
  %v2455 = vld [vmem:[%s1 + $0xb4] sm:$0xff]
  %v2456 = vld [vmem:[%s1 + $0xcc] sm:$0xff]
  %v2457 = vld [vmem:[%s1 + $0xe4] sm:$0xff]
  %v2458 = vld [vmem:[%s1 + $0xfc] sm:$0xff]
  %v2459 = vld [vmem:[%s1 + $0x114] sm:$0xff]
  %v2460 = vld [vmem:[%s1 + $0x12c] sm:$0xff]
  %v2461 = vld [vmem:[%s1 + $0x144] sm:$0xff]
  %v2462 = vld [vmem:[%s1 + $0x15c] sm:$0xff]
  %v2463 = vld [vmem:[%s1 + $0x174] sm:$0xff]
  %v2464 = vld [vmem:[%s1 + $0x18c] sm:$0xff]
  %v2465 = vld [vmem:[%s1 + $0x1a4] sm:$0xff]
  %v2466 = vld [vmem:[%s1 + $0x1bc] sm:$0xff]
  %v2467 = vld [vmem:[%s1 + $0x1d4] sm:$0xff]
  %v2468 = vld [vmem:[%s126] sm:$0xff]
  %v2469 = vld [vmem:[%s126 + $0x8] sm:$0xff]
  %v2470 = vld [vmem:[%s126 + $0x10] sm:$0xff]
  %v2471 = vld [vmem:[%s126 + $0x18] sm:$0xff]
  %v2472 = vld [vmem:[%s126 + $0x20] sm:$0xff]
  %v2473 = vld [vmem:[%s126 + $0x28] sm:$0xff]
  %v2474 = vld [vmem:[%s126 + $0x30] sm:$0xff]
  %v2475 = vld [vmem:[%s126 + $0x38] sm:$0xff]
  %v2476 = vld [vmem:[%s126 + $0x40] sm:$0xff]
  %v2477 = vld [vmem:[%s126 + $0x48] sm:$0xff]
  %v2478 = vld [vmem:[%s126 + $0x50] sm:$0xff]
  %v2479 = vld [vmem:[%s126 + $0x58] sm:$0xff]
  %v2480 = vld [vmem:[%s126 + $0x60] sm:$0xff]
  %v2481 = vld [vmem:[%s126 + $0x68] sm:$0xff]
  %v2482 = vld [vmem:[%s126 + $0x70] sm:$0xff]
  %v2483 = vld [vmem:[%s126 + $0x78] sm:$0xff]
  %v2484 = vld [vmem:[%s1 + $0x1ec] sm:$0xff]
  %v2485 = vld [vmem:[%s1 + $0x204] sm:$0xff]
  %v2486 = vld [vmem:[%s1 + $0x21c] sm:$0xff]
  %v2487 = vld [vmem:[%s1 + $0x234] sm:$0xff]
  %v2488 = vld [vmem:[%s1 + $0x24c] sm:$0xff]
  %v2489 = vld [vmem:[%s1 + $0x264] sm:$0xff]
  %v2490 = vld [vmem:[%s1 + $0x27c] sm:$0xff]
  %v2491 = vld [vmem:[%s1 + $0x294] sm:$0xff]
  %v2492 = vld [vmem:[%s1 + $0x2ac] sm:$0xff]
  %v2493 = vld [vmem:[%s1 + $0x2c4] sm:$0xff]
  %v2494 = vld [vmem:[%s1 + $0x2dc] sm:$0xff]
  %v2495 = vld [vmem:[%s1 + $0x2f4] sm:$0xff]
  %v2496 = vld [vmem:[%s1 + $0x30c] sm:$0xff]
  %v2497 = vld [vmem:[%s1 + $0x324] sm:$0xff]
  %v2498 = vld [vmem:[%s1 + $0x33c] sm:$0xff]
  %v2499 = vld [vmem:[%s1 + $0x354] sm:$0xff]
  %v2500 = vld [vmem:[%s1 + $0x36c] sm:$0xff]
  %v2501 = vld [vmem:[%s1 + $0x384] sm:$0xff]
  %v2502 = vld [vmem:[%s1 + $0x39c] sm:$0xff]
  %v2503 = vld [vmem:[%s1 + $0x3b4] sm:$0xff]
  %v2524 = vunpack.c.l.b16 %v2484
  %v2525 = vunpack.c.h.b16 %v2484
  %v2526 = vunpack.c.l.b16 %v2485
  %v2527 = vunpack.c.h.b16 %v2485
  %v2528 = vunpack.c.l.b16 %v2486
  %v2529 = vunpack.c.h.b16 %v2486
  %v2530 = vunpack.c.l.b16 %v2487
  %v2531 = vunpack.c.h.b16 %v2487
  %v2532 = vunpack.c.l.b16 %v2488
  %v2533 = vunpack.c.h.b16 %v2488
  %v2534 = vunpack.c.l.b16 %v2489
  %v2535 = vunpack.c.h.b16 %v2489
  %v2536 = vunpack.c.l.b16 %v2490
  %v2537 = vunpack.c.h.b16 %v2490
  %v2538 = vunpack.c.l.b16 %v2491
  %v2539 = vunpack.c.h.b16 %v2491
  %v2540 = vunpack.c.l.b16 %v2492
  %v2541 = vunpack.c.h.b16 %v2492
  %v2542 = vunpack.c.l.b16 %v2493
  %v2543 = vunpack.c.h.b16 %v2493
  %v2544 = vunpack.c.l.b16 %v2494
  %v2545 = vunpack.c.h.b16 %v2494
  %v2546 = vunpack.c.l.b16 %v2495
  %v2547 = vunpack.c.h.b16 %v2495
  %v2548 = vunpack.c.l.b16 %v2496
  %v2549 = vunpack.c.h.b16 %v2496
  %v2550 = vunpack.c.l.b16 %v2497
  %v2551 = vunpack.c.h.b16 %v2497
  %v2552 = vunpack.c.l.b16 %v2498
  %v2553 = vunpack.c.h.b16 %v2498
  %v2554 = vunpack.c.l.b16 %v2499
  %v2555 = vunpack.c.h.b16 %v2499
  %v2556 = vunpack.c.l.b16 %v2500
  %v2557 = vunpack.c.h.b16 %v2500
  %v2558 = vunpack.c.l.b16 %v2501
  %v2559 = vunpack.c.h.b16 %v2501
  %v2560 = vunpack.c.l.b16 %v2502
  %v2561 = vunpack.c.h.b16 %v2502
  %v2562 = vunpack.c.l.b16 %v2503
  %v2563 = vunpack.c.h.b16 %v2503
  %v2564 = vpack.c.b16 %v2526, %v2524
  %v2565 = vpack.c.b16 %v2527, %v2525
  %v2566 = vpack.c.b16 %v2530, %v2528
  %v2567 = vpack.c.b16 %v2531, %v2529
  %v2568 = vpack.c.b16 %v2534, %v2532
  %v2569 = vpack.c.b16 %v2535, %v2533
  %v2570 = vpack.c.b16 %v2538, %v2536
  %v2571 = vpack.c.b16 %v2539, %v2537
  %v2572 = vpack.c.b16 %v2542, %v2540
  %v2573 = vpack.c.b16 %v2543, %v2541
  %v2574 = vpack.c.b16 %v2546, %v2544
  %v2575 = vpack.c.b16 %v2547, %v2545
  %v2576 = vpack.c.b16 %v2550, %v2548
  %v2577 = vpack.c.b16 %v2551, %v2549
  %v2578 = vpack.c.b16 %v2554, %v2552
  %v2579 = vpack.c.b16 %v2555, %v2553
  %v2580 = vpack.c.b16 %v2558, %v2556
  %v2581 = vpack.c.b16 %v2559, %v2557
  %v2582 = vpack.c.b16 %v2562, %v2560
  %v2583 = vpack.c.b16 %v2563, %v2561
  %v2605 = vsel %vm26, %v2469, 0
  %v2608 = vsel %vm26, %v2471, 0
  %v2611 = vsel %vm26, %v2473, 0
  %v2614 = vsel %vm26, %v2475, 0
  %v2617 = vsel %vm26, %v2477, 0
  %v2620 = vsel %vm26, %v2479, 0
  %v2623 = vsel %vm26, %v2481, 0
  %v2626 = vsel %vm26, %v2483, 0
  %2628 = vmatprep.subr.bf16.mxu0 %v2565
  %2629 = vmatpush1.bf16.msra.mxu0 %v2564
  %2630 = vmatprep.subr.bf16.mxu0 %v2567
  %2631 = vmatpush1.bf16.msra.mxu0 %v2566
  %2632 = vmatprep.subr.bf16.mxu0 %v2569
  %2633 = vmatpush1.bf16.msra.mxu0 %v2568
  %2634 = vmatprep.subr.bf16.mxu0 %v2571
  %2635 = vmatpush1.bf16.msra.mxu0 %v2570
  %2636 = vmatprep.subr.bf16.mxu0 %v2573
  %2637 = vmatpush1.bf16.msra.mxu0 %v2572
  %2638 = vmatprep.subr.bf16.mxu0 %v2575
  %2639 = vmatpush1.bf16.msra.mxu0 %v2574
  %2640 = vmatprep.subr.bf16.mxu0 %v2577
  %2641 = vmatpush1.bf16.msra.mxu0 %v2576
  %2642 = vmatprep.subr.bf16.mxu0 %v2579
  %2643 = vmatpush1.bf16.msra.mxu0 %v2578
  %2644 = vmatprep.subr.bf16.mxu0 %v2581
  %2645 = vmatpush1.bf16.msra.mxu0 %v2580
  %2646 = vmatprep.subr.bf16.mxu0 %v2583
  %2647 = vmatpush1.bf16.msra.mxu0 %v2582
  %2648 = vmatprep.subr.bf16.mxu0 0
  %2649 = vmatpush1.bf16.msra.mxu0 0
  %2650 = vmatprep.subr.bf16.mxu0 0
  %2651 = vmatpush1.bf16.msra.mxu0 0
  %2652 = vmatprep.subr.bf16.mxu0 0
  %2653 = vmatpush1.bf16.msra.mxu0 0
  %2654 = vmatprep.subr.bf16.mxu0 0
  %2655 = vmatpush1.bf16.msra.mxu0 0
  %2656 = vmatprep.subr.bf16.mxu0 0
  %2657 = vmatpush1.bf16.msra.mxu0 0
  %2658 = vmatprep.subr.bf16.mxu0 0
  %2659 = vmatpush1.bf16.msra.mxu0 0
  %2660 = vmatprep.mubr.bf16.mxu0 %v2605
  %2661 = vmatmul.mubr.bf16.gmra.mrb[0].mxu0 %v2468
  %v2662 = vpop.f32.mrb[0].mxu0
  %v2663 = vadd.f32 0.0, %v2662
  %v2664 = vpop.f32.mrb[0].mxu0
  %v2665 = vadd.f32 0.0, %v2664
  %v2666 = vpop.f32.mrb[0].mxu0
  %v2667 = vadd.f32 0.0, %v2666
  %v2668 = vpop.f32.mrb[0].mxu0
  %v2669 = vadd.f32 0.0, %v2668
  %2670 = vmatprep.mubr.bf16.mxu0 %v2608
  %2671 = vmatmul.mubr.bf16.gmra.mrb[0].mxu0 %v2470
  %v2672 = vpop.f32.mrb[0].mxu0
  %v2673 = vadd.f32 0.0, %v2672
  %v2674 = vpop.f32.mrb[0].mxu0
  %v2675 = vadd.f32 0.0, %v2674
  %v2676 = vpop.f32.mrb[0].mxu0
  %v2677 = vadd.f32 0.0, %v2676
  %v2678 = vpop.f32.mrb[0].mxu0
  %v2679 = vadd.f32 0.0, %v2678
  %2680 = vmatprep.mubr.bf16.mxu0 %v2611
  %2681 = vmatmul.mubr.bf16.gmra.mrb[0].mxu0 %v2472
  %v2682 = vpop.f32.mrb[0].mxu0
  %v2683 = vadd.f32 0.0, %v2682
  %v2684 = vpop.f32.mrb[0].mxu0
  %v2685 = vadd.f32 0.0, %v2684
  %v2686 = vpop.f32.mrb[0].mxu0
  %v2687 = vadd.f32 0.0, %v2686
  %v2688 = vpop.f32.mrb[0].mxu0
  %v2689 = vadd.f32 0.0, %v2688
  %2690 = vmatprep.mubr.bf16.mxu0 %v2614
  %2691 = vmatmul.mubr.bf16.gmra.mrb[0].mxu0 %v2474
  %v2692 = vpop.f32.mrb[0].mxu0
  %v2693 = vadd.f32 0.0, %v2692
  %v2694 = vpop.f32.mrb[0].mxu0
  %v2695 = vadd.f32 0.0, %v2694
  %v2696 = vpop.f32.mrb[0].mxu0
  %v2697 = vadd.f32 0.0, %v2696
  %v2698 = vpop.f32.mrb[0].mxu0
  %v2699 = vadd.f32 0.0, %v2698
  %2700 = vmatprep.mubr.bf16.mxu0 %v2617
  %2701 = vmatmul.mubr.bf16.gmra.mrb[0].mxu0 %v2476
  %v2702 = vpop.f32.mrb[0].mxu0
  %v2703 = vadd.f32 0.0, %v2702
  %v2704 = vpop.f32.mrb[0].mxu0
  %v2705 = vadd.f32 0.0, %v2704
  %v2706 = vpop.f32.mrb[0].mxu0
  %v2707 = vadd.f32 0.0, %v2706
  %v2708 = vpop.f32.mrb[0].mxu0
  %v2709 = vadd.f32 0.0, %v2708
  %2710 = vmatprep.mubr.bf16.mxu0 %v2620
  %2711 = vmatmul.mubr.bf16.gmra.mrb[0].mxu0 %v2478
  %v2712 = vpop.f32.mrb[0].mxu0
  %v2713 = vadd.f32 0.0, %v2712
  %v2714 = vpop.f32.mrb[0].mxu0
  %v2715 = vadd.f32 0.0, %v2714
  %v2716 = vpop.f32.mrb[0].mxu0
  %v2717 = vadd.f32 0.0, %v2716
  %v2718 = vpop.f32.mrb[0].mxu0
  %v2719 = vadd.f32 0.0, %v2718
  %2720 = vmatprep.mubr.bf16.mxu0 %v2623
  %2721 = vmatmul.mubr.bf16.gmra.mrb[0].mxu0 %v2480
  %v2722 = vpop.f32.mrb[0].mxu0
  %v2723 = vadd.f32 0.0, %v2722
  %v2724 = vpop.f32.mrb[0].mxu0
  %v2725 = vadd.f32 0.0, %v2724
  %v2726 = vpop.f32.mrb[0].mxu0
  %v2727 = vadd.f32 0.0, %v2726
  %v2728 = vpop.f32.mrb[0].mxu0
  %v2729 = vadd.f32 0.0, %v2728
  %2730 = vmatprep.mubr.bf16.mxu0 %v2626
  %2731 = vmatmul.mubr.bf16.gmra.mrb[0].mxu0 %v2482
  %v2732 = vpop.f32.mrb[0].mxu0
  %v2733 = vadd.f32 0.0, %v2732
  %v2734 = vpop.f32.mrb[0].mxu0
  %v2735 = vadd.f32 0.0, %v2734
  %v2736 = vpop.f32.mrb[0].mxu0
  %v2737 = vadd.f32 0.0, %v2736
  %v2738 = vpop.f32.mrb[0].mxu0
  %v2739 = vadd.f32 0.0, %v2738
  %2740 = vdwg.mxu0
  %v2761 = vunpack.c.l.b16 %v2448
  %v2762 = vunpack.c.h.b16 %v2448
  %v2763 = vunpack.c.l.b16 %v2449
  %v2764 = vunpack.c.h.b16 %v2449
  %v2765 = vunpack.c.l.b16 %v2450
  %v2766 = vunpack.c.h.b16 %v2450
  %v2767 = vunpack.c.l.b16 %v2451
  %v2768 = vunpack.c.h.b16 %v2451
  %v2769 = vunpack.c.l.b16 %v2452
  %v2770 = vunpack.c.h.b16 %v2452
  %v2771 = vunpack.c.l.b16 %v2453
  %v2772 = vunpack.c.h.b16 %v2453
  %v2773 = vunpack.c.l.b16 %v2454
  %v2774 = vunpack.c.h.b16 %v2454
  %v2775 = vunpack.c.l.b16 %v2455
  %v2776 = vunpack.c.h.b16 %v2455
  %v2777 = vunpack.c.l.b16 %v2456
  %v2778 = vunpack.c.h.b16 %v2456
  %v2779 = vunpack.c.l.b16 %v2457
  %v2780 = vunpack.c.h.b16 %v2457
  %v2781 = vunpack.c.l.b16 %v2458
  %v2782 = vunpack.c.h.b16 %v2458
  %v2783 = vunpack.c.l.b16 %v2459
  %v2784 = vunpack.c.h.b16 %v2459
  %v2785 = vunpack.c.l.b16 %v2460
  %v2786 = vunpack.c.h.b16 %v2460
  %v2787 = vunpack.c.l.b16 %v2461
  %v2788 = vunpack.c.h.b16 %v2461
  %v2789 = vunpack.c.l.b16 %v2462
  %v2790 = vunpack.c.h.b16 %v2462
  %v2791 = vunpack.c.l.b16 %v2463
  %v2792 = vunpack.c.h.b16 %v2463
  %v2793 = vunpack.c.l.b16 %v2464
  %v2794 = vunpack.c.h.b16 %v2464
  %v2795 = vunpack.c.l.b16 %v2465
  %v2796 = vunpack.c.h.b16 %v2465
  %v2797 = vunpack.c.l.b16 %v2466
  %v2798 = vunpack.c.h.b16 %v2466
  %v2799 = vunpack.c.l.b16 %v2467
  %v2800 = vunpack.c.h.b16 %v2467
  %v2801 = vpack.c.b16 %v2763, %v2761
  %v2802 = vpack.c.b16 %v2764, %v2762
  %v2803 = vpack.c.b16 %v2767, %v2765
  %v2804 = vpack.c.b16 %v2768, %v2766
  %v2805 = vpack.c.b16 %v2771, %v2769
  %v2806 = vpack.c.b16 %v2772, %v2770
  %v2807 = vpack.c.b16 %v2775, %v2773
  %v2808 = vpack.c.b16 %v2776, %v2774
  %v2809 = vpack.c.b16 %v2779, %v2777
  %v2810 = vpack.c.b16 %v2780, %v2778
  %v2811 = vpack.c.b16 %v2783, %v2781
  %v2812 = vpack.c.b16 %v2784, %v2782
  %v2813 = vpack.c.b16 %v2787, %v2785
  %v2814 = vpack.c.b16 %v2788, %v2786
  %v2815 = vpack.c.b16 %v2791, %v2789
  %v2816 = vpack.c.b16 %v2792, %v2790
  %v2817 = vpack.c.b16 %v2795, %v2793
  %v2818 = vpack.c.b16 %v2796, %v2794
  %v2819 = vpack.c.b16 %v2799, %v2797
  %v2820 = vpack.c.b16 %v2800, %v2798
  %v2842 = vsel %vm26, %v2433, 0
  %v2845 = vsel %vm26, %v2435, 0
  %v2848 = vsel %vm26, %v2437, 0
  %v2851 = vsel %vm26, %v2439, 0
  %v2854 = vsel %vm26, %v2441, 0
  %v2857 = vsel %vm26, %v2443, 0
  %v2860 = vsel %vm26, %v2445, 0
  %v2863 = vsel %vm26, %v2447, 0
  %2865 = vmatprep.subr.bf16.mxu0 %v2802
  %2866 = vmatpush1.bf16.msra.mxu0 %v2801
  %2867 = vmatprep.subr.bf16.mxu0 %v2804
  %2868 = vmatpush1.bf16.msra.mxu0 %v2803
  %2869 = vmatprep.subr.bf16.mxu0 %v2806
  %2870 = vmatpush1.bf16.msra.mxu0 %v2805
  %2871 = vmatprep.subr.bf16.mxu0 %v2808
  %2872 = vmatpush1.bf16.msra.mxu0 %v2807
  %2873 = vmatprep.subr.bf16.mxu0 %v2810
  %2874 = vmatpush1.bf16.msra.mxu0 %v2809
  %2875 = vmatprep.subr.bf16.mxu0 %v2812
  %2876 = vmatpush1.bf16.msra.mxu0 %v2811
  %2877 = vmatprep.subr.bf16.mxu0 %v2814
  %2878 = vmatpush1.bf16.msra.mxu0 %v2813
  %2879 = vmatprep.subr.bf16.mxu0 %v2816
  %2880 = vmatpush1.bf16.msra.mxu0 %v2815
  %2881 = vmatprep.subr.bf16.mxu0 %v2818
  %2882 = vmatpush1.bf16.msra.mxu0 %v2817
  %2883 = vmatprep.subr.bf16.mxu0 %v2820
  %2884 = vmatpush1.bf16.msra.mxu0 %v2819
  %2885 = vmatprep.subr.bf16.mxu0 0
  %2886 = vmatpush1.bf16.msra.mxu0 0
  %2887 = vmatprep.subr.bf16.mxu0 0
  %2888 = vmatpush1.bf16.msra.mxu0 0
  %2889 = vmatprep.subr.bf16.mxu0 0
  %2890 = vmatpush1.bf16.msra.mxu0 0
  %2891 = vmatprep.subr.bf16.mxu0 0
  %2892 = vmatpush1.bf16.msra.mxu0 0
  %2893 = vmatprep.subr.bf16.mxu0 0
  %2894 = vmatpush1.bf16.msra.mxu0 0
  %2895 = vmatprep.subr.bf16.mxu0 0
  %2896 = vmatpush1.bf16.msra.mxu0 0
  %2897 = vmatprep.mubr.bf16.mxu0 %v2842
  %2898 = vmatmul.mubr.bf16.gmra.mrb[0].mxu0 %v2432
  %v2899 = vpop.f32.mrb[0].mxu0
  %v2900 = vadd.f32 %v2663, %v2899
  %v2901 = vpop.f32.mrb[0].mxu0
  %v2902 = vadd.f32 %v2665, %v2901
  %v2903 = vpop.f32.mrb[0].mxu0
  %v2904 = vadd.f32 %v2667, %v2903
  %v2905 = vpop.f32.mrb[0].mxu0
  %v2906 = vadd.f32 %v2669, %v2905
  %2907 = vmatprep.mubr.bf16.mxu0 %v2845
  %2908 = vmatmul.mubr.bf16.gmra.mrb[0].mxu0 %v2434
  %v2909 = vpop.f32.mrb[0].mxu0
  %v2910 = vadd.f32 %v2673, %v2909
  %v2911 = vpop.f32.mrb[0].mxu0
  %v2912 = vadd.f32 %v2675, %v2911
  %v2913 = vpop.f32.mrb[0].mxu0
  %v2914 = vadd.f32 %v2677, %v2913
  %v2915 = vpop.f32.mrb[0].mxu0
  %v2916 = vadd.f32 %v2679, %v2915
  %2917 = vmatprep.mubr.bf16.mxu0 %v2848
  %2918 = vmatmul.mubr.bf16.gmra.mrb[0].mxu0 %v2436
  %v2919 = vpop.f32.mrb[0].mxu0
  %v2920 = vadd.f32 %v2683, %v2919
  %v2921 = vpop.f32.mrb[0].mxu0
  %v2922 = vadd.f32 %v2685, %v2921
  %v2923 = vpop.f32.mrb[0].mxu0
  %v2924 = vadd.f32 %v2687, %v2923
  %v2925 = vpop.f32.mrb[0].mxu0
  %v2926 = vadd.f32 %v2689, %v2925
  %2927 = vmatprep.mubr.bf16.mxu0 %v2851
  %2928 = vmatmul.mubr.bf16.gmra.mrb[0].mxu0 %v2438
  %v2929 = vpop.f32.mrb[0].mxu0
  %v2930 = vadd.f32 %v2693, %v2929
  %v2931 = vpop.f32.mrb[0].mxu0
  %v2932 = vadd.f32 %v2695, %v2931
  %v2933 = vpop.f32.mrb[0].mxu0
  %v2934 = vadd.f32 %v2697, %v2933
  %v2935 = vpop.f32.mrb[0].mxu0
  %v2936 = vadd.f32 %v2699, %v2935
  %2937 = vmatprep.mubr.bf16.mxu0 %v2854
  %2938 = vmatmul.mubr.bf16.gmra.mrb[0].mxu0 %v2440
  %v2939 = vpop.f32.mrb[0].mxu0
  %v2940 = vadd.f32 %v2703, %v2939
  %v2941 = vpop.f32.mrb[0].mxu0
  %v2942 = vadd.f32 %v2705, %v2941
  %v2943 = vpop.f32.mrb[0].mxu0
  %v2944 = vadd.f32 %v2707, %v2943
  %v2945 = vpop.f32.mrb[0].mxu0
  %v2946 = vadd.f32 %v2709, %v2945
  %2947 = vmatprep.mubr.bf16.mxu0 %v2857
  %2948 = vmatmul.mubr.bf16.gmra.mrb[0].mxu0 %v2442
  %v2949 = vpop.f32.mrb[0].mxu0
  %v2950 = vadd.f32 %v2713, %v2949
  %v2951 = vpop.f32.mrb[0].mxu0
  %v2952 = vadd.f32 %v2715, %v2951
  %v2953 = vpop.f32.mrb[0].mxu0
  %v2954 = vadd.f32 %v2717, %v2953
  %v2955 = vpop.f32.mrb[0].mxu0
  %v2956 = vadd.f32 %v2719, %v2955
  %2957 = vmatprep.mubr.bf16.mxu0 %v2860
  %2958 = vmatmul.mubr.bf16.gmra.mrb[0].mxu0 %v2444
  %v2959 = vpop.f32.mrb[0].mxu0
  %v2960 = vadd.f32 %v2723, %v2959
  %v2961 = vpop.f32.mrb[0].mxu0
  %v2962 = vadd.f32 %v2725, %v2961
  %v2963 = vpop.f32.mrb[0].mxu0
  %v2964 = vadd.f32 %v2727, %v2963
  %v2965 = vpop.f32.mrb[0].mxu0
  %v2966 = vadd.f32 %v2729, %v2965
  %2967 = vmatprep.mubr.bf16.mxu0 %v2863
  %2968 = vmatmul.mubr.bf16.gmra.mrb[0].mxu0 %v2446
  %v2969 = vpop.f32.mrb[0].mxu0
  %v2970 = vadd.f32 %v2733, %v2969
  %v2971 = vpop.f32.mrb[0].mxu0
  %v2972 = vadd.f32 %v2735, %v2971
  %v2973 = vpop.f32.mrb[0].mxu0
  %v2974 = vadd.f32 %v2737, %v2973
  %v2975 = vpop.f32.mrb[0].mxu0
  %v2976 = vadd.f32 %v2739, %v2975
  %2977 = vdwg.mxu0
  %v2978 = vld [vmem:[%s579] sm:$0xff]
  %v2979 = vld [vmem:[%s579 + $0x8] sm:$0xff]
  %v2980 = vld [vmem:[%s579 + $0x10] sm:$0xff]
  %v2981 = vld [vmem:[%s579 + $0x18] sm:$0xff]
  %v2982 = vld [vmem:[%s579 + $0x20] sm:$0xff]
  %v2983 = vld [vmem:[%s579 + $0x28] sm:$0xff]
  %v2984 = vld [vmem:[%s579 + $0x30] sm:$0xff]
  %v2985 = vld [vmem:[%s579 + $0x38] sm:$0xff]
  %v2986 = vld [vmem:[%s579 + $0x40] sm:$0xff]
  %v2987 = vld [vmem:[%s579 + $0x48] sm:$0xff]
  %v2988 = vld [vmem:[%s579 + $0x50] sm:$0xff]
  %v2989 = vld [vmem:[%s579 + $0x58] sm:$0xff]
  %v2990 = vld [vmem:[%s579 + $0x60] sm:$0xff]
  %v2991 = vld [vmem:[%s579 + $0x68] sm:$0xff]
  %v2992 = vld [vmem:[%s579 + $0x70] sm:$0xff]
  %v2993 = vld [vmem:[%s579 + $0x78] sm:$0xff]
  %v2994 = vld [vmem:[%s1 + $0x3cc] sm:$0xff]
  %v2995 = vld [vmem:[%s1 + $0x3e4] sm:$0xff]
  %v2996 = vld [vmem:[%s1 + $0x3fc] sm:$0xff]
  %v2997 = vld [vmem:[%s1 + $0x414] sm:$0xff]
  %v2998 = vld [vmem:[%s1 + $0x42c] sm:$0xff]
  %v2999 = vld [vmem:[%s1 + $0x444] sm:$0xff]
  %v3000 = vld [vmem:[%s1 + $0x45c] sm:$0xff]
  %v3001 = vld [vmem:[%s1 + $0x474] sm:$0xff]
  %v3002 = vld [vmem:[%s1 + $0x48c] sm:$0xff]
  %v3003 = vld [vmem:[%s1 + $0x4a4] sm:$0xff]
  %v3004 = vld [vmem:[%s1 + $0x4bc] sm:$0xff]
  %v3005 = vld [vmem:[%s1 + $0x4d4] sm:$0xff]
  %v3006 = vld [vmem:[%s1 + $0x4ec] sm:$0xff]
  %v3007 = vld [vmem:[%s1 + $0x504] sm:$0xff]
  %v3008 = vld [vmem:[%s1 + $0x51c] sm:$0xff]
  %v3009 = vld [vmem:[%s1 + $0x534] sm:$0xff]
  %v3010 = vld [vmem:[%s1 + $0x54c] sm:$0xff]
  %v3011 = vld [vmem:[%s1 + $0x564] sm:$0xff]
  %v3012 = vld [vmem:[%s1 + $0x57c] sm:$0xff]
  %v3013 = vld [vmem:[%s1 + $0x594] sm:$0xff]
  %v3034 = vunpack.c.l.b16 %v2994
  %v3035 = vunpack.c.h.b16 %v2994
  %v3036 = vunpack.c.l.b16 %v2995
  %v3037 = vunpack.c.h.b16 %v2995
  %v3038 = vunpack.c.l.b16 %v2996
  %v3039 = vunpack.c.h.b16 %v2996
  %v3040 = vunpack.c.l.b16 %v2997
  %v3041 = vunpack.c.h.b16 %v2997
  %v3042 = vunpack.c.l.b16 %v2998
  %v3043 = vunpack.c.h.b16 %v2998
  %v3044 = vunpack.c.l.b16 %v2999
  %v3045 = vunpack.c.h.b16 %v2999
  %v3046 = vunpack.c.l.b16 %v3000
  %v3047 = vunpack.c.h.b16 %v3000
  %v3048 = vunpack.c.l.b16 %v3001
  %v3049 = vunpack.c.h.b16 %v3001
  %v3050 = vunpack.c.l.b16 %v3002
  %v3051 = vunpack.c.h.b16 %v3002
  %v3052 = vunpack.c.l.b16 %v3003
  %v3053 = vunpack.c.h.b16 %v3003
  %v3054 = vunpack.c.l.b16 %v3004
  %v3055 = vunpack.c.h.b16 %v3004
  %v3056 = vunpack.c.l.b16 %v3005
  %v3057 = vunpack.c.h.b16 %v3005
  %v3058 = vunpack.c.l.b16 %v3006
  %v3059 = vunpack.c.h.b16 %v3006
  %v3060 = vunpack.c.l.b16 %v3007
  %v3061 = vunpack.c.h.b16 %v3007
  %v3062 = vunpack.c.l.b16 %v3008
  %v3063 = vunpack.c.h.b16 %v3008
  %v3064 = vunpack.c.l.b16 %v3009
  %v3065 = vunpack.c.h.b16 %v3009
  %v3066 = vunpack.c.l.b16 %v3010
  %v3067 = vunpack.c.h.b16 %v3010
  %v3068 = vunpack.c.l.b16 %v3011
  %v3069 = vunpack.c.h.b16 %v3011
  %v3070 = vunpack.c.l.b16 %v3012
  %v3071 = vunpack.c.h.b16 %v3012
  %v3072 = vunpack.c.l.b16 %v3013
  %v3073 = vunpack.c.h.b16 %v3013
  %v3074 = vpack.c.b16 %v3036, %v3034
  %v3075 = vpack.c.b16 %v3037, %v3035
  %v3076 = vpack.c.b16 %v3040, %v3038
  %v3077 = vpack.c.b16 %v3041, %v3039
  %v3078 = vpack.c.b16 %v3044, %v3042
  %v3079 = vpack.c.b16 %v3045, %v3043
  %v3080 = vpack.c.b16 %v3048, %v3046
  %v3081 = vpack.c.b16 %v3049, %v3047
  %v3082 = vpack.c.b16 %v3052, %v3050
  %v3083 = vpack.c.b16 %v3053, %v3051
  %v3084 = vpack.c.b16 %v3056, %v3054
  %v3085 = vpack.c.b16 %v3057, %v3055
  %v3086 = vpack.c.b16 %v3060, %v3058
  %v3087 = vpack.c.b16 %v3061, %v3059
  %v3088 = vpack.c.b16 %v3064, %v3062
  %v3089 = vpack.c.b16 %v3065, %v3063
  %v3090 = vpack.c.b16 %v3068, %v3066
  %v3091 = vpack.c.b16 %v3069, %v3067
  %v3092 = vpack.c.b16 %v3072, %v3070
  %v3093 = vpack.c.b16 %v3073, %v3071
  %v3115 = vsel %vm26, %v2979, 0
  %v3118 = vsel %vm26, %v2981, 0
  %v3121 = vsel %vm26, %v2983, 0
  %v3124 = vsel %vm26, %v2985, 0
  %v3127 = vsel %vm26, %v2987, 0
  %v3130 = vsel %vm26, %v2989, 0
  %v3133 = vsel %vm26, %v2991, 0
  %v3136 = vsel %vm26, %v2993, 0
  %3138 = vmatprep.subr.bf16.mxu0 %v3075
  %3139 = vmatpush1.bf16.msra.mxu0 %v3074
  %3140 = vmatprep.subr.bf16.mxu0 %v3077
  %3141 = vmatpush1.bf16.msra.mxu0 %v3076
  %3142 = vmatprep.subr.bf16.mxu0 %v3079
  %3143 = vmatpush1.bf16.msra.mxu0 %v3078
  %3144 = vmatprep.subr.bf16.mxu0 %v3081
  %3145 = vmatpush1.bf16.msra.mxu0 %v3080
  %3146 = vmatprep.subr.bf16.mxu0 %v3083
  %3147 = vmatpush1.bf16.msra.mxu0 %v3082
  %3148 = vmatprep.subr.bf16.mxu0 %v3085
  %3149 = vmatpush1.bf16.msra.mxu0 %v3084
  %3150 = vmatprep.subr.bf16.mxu0 %v3087
  %3151 = vmatpush1.bf16.msra.mxu0 %v3086
  %3152 = vmatprep.subr.bf16.mxu0 %v3089
  %3153 = vmatpush1.bf16.msra.mxu0 %v3088
  %3154 = vmatprep.subr.bf16.mxu0 %v3091
  %3155 = vmatpush1.bf16.msra.mxu0 %v3090
  %3156 = vmatprep.subr.bf16.mxu0 %v3093
  %3157 = vmatpush1.bf16.msra.mxu0 %v3092
  %3158 = vmatprep.subr.bf16.mxu0 0
  %3159 = vmatpush1.bf16.msra.mxu0 0
  %3160 = vmatprep.subr.bf16.mxu0 0
  %3161 = vmatpush1.bf16.msra.mxu0 0
  %3162 = vmatprep.subr.bf16.mxu0 0
  %3163 = vmatpush1.bf16.msra.mxu0 0
  %3164 = vmatprep.subr.bf16.mxu0 0
  %3165 = vmatpush1.bf16.msra.mxu0 0
  %3166 = vmatprep.subr.bf16.mxu0 0
  %3167 = vmatpush1.bf16.msra.mxu0 0
  %3168 = vmatprep.subr.bf16.mxu0 0
  %3169 = vmatpush1.bf16.msra.mxu0 0
  %3170 = vmatprep.mubr.bf16.mxu0 %v3115
  %3171 = vmatmul.mubr.bf16.gmra.mrb[0].mxu0 %v2978
  %v3172 = vpop.f32.mrb[0].mxu0
  %v3173 = vadd.f32 0.0, %v3172
  %v3174 = vpop.f32.mrb[0].mxu0
  %v3175 = vadd.f32 0.0, %v3174
  %v3176 = vpop.f32.mrb[0].mxu0
  %v3177 = vadd.f32 0.0, %v3176
  %v3178 = vpop.f32.mrb[0].mxu0
  %v3179 = vadd.f32 0.0, %v3178
  %3180 = vmatprep.mubr.bf16.mxu0 %v3118
  %3181 = vmatmul.mubr.bf16.gmra.mrb[0].mxu0 %v2980
  %v3182 = vpop.f32.mrb[0].mxu0
  %v3183 = vadd.f32 0.0, %v3182
  %v3184 = vpop.f32.mrb[0].mxu0
  %v3185 = vadd.f32 0.0, %v3184
  %v3186 = vpop.f32.mrb[0].mxu0
  %v3187 = vadd.f32 0.0, %v3186
  %v3188 = vpop.f32.mrb[0].mxu0
  %v3189 = vadd.f32 0.0, %v3188
  %3190 = vmatprep.mubr.bf16.mxu0 %v3121
  %3191 = vmatmul.mubr.bf16.gmra.mrb[0].mxu0 %v2982
  %v3192 = vpop.f32.mrb[0].mxu0
  %v3193 = vadd.f32 0.0, %v3192
  %v3194 = vpop.f32.mrb[0].mxu0
  %v3195 = vadd.f32 0.0, %v3194
  %v3196 = vpop.f32.mrb[0].mxu0
  %v3197 = vadd.f32 0.0, %v3196
  %v3198 = vpop.f32.mrb[0].mxu0
  %v3199 = vadd.f32 0.0, %v3198
  %3200 = vmatprep.mubr.bf16.mxu0 %v3124
  %3201 = vmatmul.mubr.bf16.gmra.mrb[0].mxu0 %v2984
  %v3202 = vpop.f32.mrb[0].mxu0
  %v3203 = vadd.f32 0.0, %v3202
  %v3204 = vpop.f32.mrb[0].mxu0
  %v3205 = vadd.f32 0.0, %v3204
  %v3206 = vpop.f32.mrb[0].mxu0
  %v3207 = vadd.f32 0.0, %v3206
  %v3208 = vpop.f32.mrb[0].mxu0
  %v3209 = vadd.f32 0.0, %v3208
  %3210 = vmatprep.mubr.bf16.mxu0 %v3127
  %3211 = vmatmul.mubr.bf16.gmra.mrb[0].mxu0 %v2986
  %v3212 = vpop.f32.mrb[0].mxu0
  %v3213 = vadd.f32 0.0, %v3212
  %v3214 = vpop.f32.mrb[0].mxu0
  %v3215 = vadd.f32 0.0, %v3214
  %v3216 = vpop.f32.mrb[0].mxu0
  %v3217 = vadd.f32 0.0, %v3216
  %v3218 = vpop.f32.mrb[0].mxu0
  %v3219 = vadd.f32 0.0, %v3218
  %3220 = vmatprep.mubr.bf16.mxu0 %v3130
  %3221 = vmatmul.mubr.bf16.gmra.mrb[0].mxu0 %v2988
  %v3222 = vpop.f32.mrb[0].mxu0
  %v3223 = vadd.f32 0.0, %v3222
  %v3224 = vpop.f32.mrb[0].mxu0
  %v3225 = vadd.f32 0.0, %v3224
  %v3226 = vpop.f32.mrb[0].mxu0
  %v3227 = vadd.f32 0.0, %v3226
  %v3228 = vpop.f32.mrb[0].mxu0
  %v3229 = vadd.f32 0.0, %v3228
  %3230 = vmatprep.mubr.bf16.mxu0 %v3133
  %3231 = vmatmul.mubr.bf16.gmra.mrb[0].mxu0 %v2990
  %v3232 = vpop.f32.mrb[0].mxu0
  %v3233 = vadd.f32 0.0, %v3232
  %v3234 = vpop.f32.mrb[0].mxu0
  %v3235 = vadd.f32 0.0, %v3234
  %v3236 = vpop.f32.mrb[0].mxu0
  %v3237 = vadd.f32 0.0, %v3236
  %v3238 = vpop.f32.mrb[0].mxu0
  %v3239 = vadd.f32 0.0, %v3238
  %3240 = vmatprep.mubr.bf16.mxu0 %v3136
  %3241 = vmatmul.mubr.bf16.gmra.mrb[0].mxu0 %v2992
  %v3242 = vpop.f32.mrb[0].mxu0
  %v3243 = vadd.f32 0.0, %v3242
  %v3244 = vpop.f32.mrb[0].mxu0
  %v3245 = vadd.f32 0.0, %v3244
  %v3246 = vpop.f32.mrb[0].mxu0
  %v3247 = vadd.f32 0.0, %v3246
  %v3248 = vpop.f32.mrb[0].mxu0
  %v3249 = vadd.f32 0.0, %v3248
  %3250 = vdwg.mxu0
  %v3251 = vadd.f32 %v2900, %v3173
  %v3252 = vadd.f32 %v2902, %v3175
  %v3253 = vadd.f32 %v2904, %v3177
  %v3254 = vadd.f32 %v2906, %v3179
  %v3255 = vadd.f32 %v2910, %v3183
  %v3256 = vadd.f32 %v2912, %v3185
  %v3257 = vadd.f32 %v2914, %v3187
  %v3258 = vadd.f32 %v2916, %v3189
  %v3259 = vadd.f32 %v2920, %v3193
  %v3260 = vadd.f32 %v2922, %v3195
  %v3261 = vadd.f32 %v2924, %v3197
  %v3262 = vadd.f32 %v2926, %v3199
  %v3263 = vadd.f32 %v2930, %v3203
  %v3264 = vadd.f32 %v2932, %v3205
  %v3265 = vadd.f32 %v2934, %v3207
  %v3266 = vadd.f32 %v2936, %v3209
  %v3267 = vadd.f32 %v2940, %v3213
  %v3268 = vadd.f32 %v2942, %v3215
  %v3269 = vadd.f32 %v2944, %v3217
  %v3270 = vadd.f32 %v2946, %v3219
  %v3271 = vadd.f32 %v2950, %v3223
  %v3272 = vadd.f32 %v2952, %v3225
  %v3273 = vadd.f32 %v2954, %v3227
  %v3274 = vadd.f32 %v2956, %v3229
  %v3275 = vadd.f32 %v2960, %v3233
  %v3276 = vadd.f32 %v2962, %v3235
  %v3277 = vadd.f32 %v2964, %v3237
  %v3278 = vadd.f32 %v2966, %v3239
  %v3279 = vadd.f32 %v2970, %v3243
  %v3280 = vadd.f32 %v2972, %v3245
  %v3281 = vadd.f32 %v2974, %v3247
  %v3282 = vadd.f32 %v2976, %v3249
  %v3283 = vld [vmem:[%s4 + $0x3] sm:$0x1]
  %v3285 = vlaneseq
  %v3286 = vshrl.u32 %v3285, 7
  %v3287 = vsub.s32 0, %v3286
  %v3288 = vrot.slane %v3283, %v3287
  %v3290 = vadd.f32 %v3251, %v3288
  %v3291 = vadd.f32 %v3253, %v3288
  %v3292 = vadd.f32 %v3255, %v3288
  %v3293 = vadd.f32 %v3257, %v3288
  %v3294 = vadd.f32 %v3259, %v3288
  %v3295 = vadd.f32 %v3261, %v3288
  %v3296 = vadd.f32 %v3263, %v3288
  %v3297 = vadd.f32 %v3265, %v3288
  %v3298 = vadd.f32 %v3267, %v3288
  %v3299 = vadd.f32 %v3269, %v3288
  %v3300 = vadd.f32 %v3271, %v3288
  %v3301 = vadd.f32 %v3273, %v3288
  %v3302 = vadd.f32 %v3275, %v3288
  %v3303 = vadd.f32 %v3277, %v3288
  %v3304 = vadd.f32 %v3279, %v3288
  %v3305 = vadd.f32 %v3281, %v3288
  %v3306 = vmax.f32 %v3290, 0.0
  %v3307 = vmax.f32 %v3291, 0.0
  %v3308 = vmax.f32 %v3292, 0.0
  %v3309 = vmax.f32 %v3293, 0.0
  %v3310 = vmax.f32 %v3294, 0.0
  %v3311 = vmax.f32 %v3295, 0.0
  %v3312 = vmax.f32 %v3296, 0.0
  %v3313 = vmax.f32 %v3297, 0.0
  %v3314 = vmax.f32 %v3298, 0.0
  %v3315 = vmax.f32 %v3299, 0.0
  %v3316 = vmax.f32 %v3300, 0.0
  %v3317 = vmax.f32 %v3301, 0.0
  %v3318 = vmax.f32 %v3302, 0.0
  %v3319 = vmax.f32 %v3303, 0.0
  %v3320 = vmax.f32 %v3304, 0.0
  %v3321 = vmax.f32 %v3305, 0.0
  %v3322 = vld [vmem:[%s4 + $0x4] sm:$0x1]
  %v3324 = vlaneseq
  %v3325 = vshrl.u32 %v3324, 7
  %v3326 = vsub.s32 0, %v3325
  %v3327 = vrot.slane %v3322, %v3326
  %v3329 = vadd.f32 %v3252, %v3327
  %v3330 = vadd.f32 %v3254, %v3327
  %v3331 = vadd.f32 %v3256, %v3327
  %v3332 = vadd.f32 %v3258, %v3327
  %v3333 = vadd.f32 %v3260, %v3327
  %v3334 = vadd.f32 %v3262, %v3327
  %v3335 = vadd.f32 %v3264, %v3327
  %v3336 = vadd.f32 %v3266, %v3327
  %v3337 = vadd.f32 %v3268, %v3327
  %v3338 = vadd.f32 %v3270, %v3327
  %v3339 = vadd.f32 %v3272, %v3327
  %v3340 = vadd.f32 %v3274, %v3327
  %v3341 = vadd.f32 %v3276, %v3327
  %v3342 = vadd.f32 %v3278, %v3327
  %v3343 = vadd.f32 %v3280, %v3327
  %v3344 = vadd.f32 %v3282, %v3327
  %v3345 = vmax.f32 %v3329, 0.0
  %v3346 = vmax.f32 %v3330, 0.0
  %v3347 = vmax.f32 %v3331, 0.0
  %v3348 = vmax.f32 %v3332, 0.0
  %v3349 = vmax.f32 %v3333, 0.0
  %v3350 = vmax.f32 %v3334, 0.0
  %v3351 = vmax.f32 %v3335, 0.0
  %v3352 = vmax.f32 %v3336, 0.0
  %v3353 = vmax.f32 %v3337, 0.0
  %v3354 = vmax.f32 %v3338, 0.0
  %v3355 = vmax.f32 %v3339, 0.0
  %v3356 = vmax.f32 %v3340, 0.0
  %v3357 = vmax.f32 %v3341, 0.0
  %v3358 = vmax.f32 %v3342, 0.0
  %v3359 = vmax.f32 %v3343, 0.0
  %v3360 = vmax.f32 %v3344, 0.0
  %v3361 = vpack.c.bf16 %v3346, %v3345
  %v3362 = vpack.c.bf16 %v3348, %v3347
  %v3363 = vpack.c.bf16 %v3350, %v3349
  %v3364 = vpack.c.bf16 %v3352, %v3351
  %v3365 = vpack.c.bf16 %v3354, %v3353
  %v3366 = vpack.c.bf16 %v3356, %v3355
  %v3367 = vpack.c.bf16 %v3358, %v3357
  %v3368 = vpack.c.bf16 %v3360, %v3359
  %v3369 = vpack.c.bf16 %v3307, %v3306
  %v3370 = vpack.c.bf16 %v3309, %v3308
  %v3371 = vpack.c.bf16 %v3311, %v3310
  %v3372 = vpack.c.bf16 %v3313, %v3312
  %v3373 = vpack.c.bf16 %v3315, %v3314
  %v3374 = vpack.c.bf16 %v3317, %v3316
  %v3375 = vpack.c.bf16 %v3319, %v3318
  %v3376 = vpack.c.bf16 %v3321, %v3320
  %3385 = vrot.lane.b32.xlu0 %v3361, 16
  %v3386 = vpop.permute.xlu0 %3385
  %3387 = vrot.lane.b32.xlu0 %v3362, 16
  %v3388 = vpop.permute.xlu0 %3387
  %3389 = vrot.lane.b32.xlu0 %v3363, 16
  %v3390 = vpop.permute.xlu0 %3389
  %3391 = vrot.lane.b32.xlu0 %v3364, 16
  %v3392 = vpop.permute.xlu0 %3391
  %3393 = vrot.lane.b32.xlu0 %v3365, 16
  %v3394 = vpop.permute.xlu0 %3393
  %3395 = vrot.lane.b32.xlu0 %v3366, 16
  %v3396 = vpop.permute.xlu0 %3395
  %3397 = vrot.lane.b32.xlu0 %v3367, 16
  %v3398 = vpop.permute.xlu0 %3397
  %3399 = vrot.lane.b32.xlu0 %v3368, 16
  %v3400 = vpop.permute.xlu0 %3399
  %3409 = vst.msk [vmem:[%s126] sm:$0xff] %vm127, %v3386
  %3410 = vst.msk [vmem:[%s126 + $0x8] sm:$0xff] %vm129, %v3386
  %3411 = vst.msk [vmem:[%s126 + $0x10] sm:$0xff] %vm127, %v3388
  %3412 = vst.msk [vmem:[%s126 + $0x18] sm:$0xff] %vm129, %v3388
  %3413 = vst.msk [vmem:[%s126 + $0x20] sm:$0xff] %vm127, %v3390
  %3414 = vst.msk [vmem:[%s126 + $0x28] sm:$0xff] %vm129, %v3390
  %3415 = vst.msk [vmem:[%s126 + $0x30] sm:$0xff] %vm127, %v3392
  %3416 = vst.msk [vmem:[%s126 + $0x38] sm:$0xff] %vm129, %v3392
  %3417 = vst.msk [vmem:[%s126 + $0x40] sm:$0xff] %vm127, %v3394
  %3418 = vst.msk [vmem:[%s126 + $0x48] sm:$0xff] %vm129, %v3394
  %3419 = vst.msk [vmem:[%s126 + $0x50] sm:$0xff] %vm127, %v3396
  %3420 = vst.msk [vmem:[%s126 + $0x58] sm:$0xff] %vm129, %v3396
  %3421 = vst.msk [vmem:[%s126 + $0x60] sm:$0xff] %vm127, %v3398
  %3422 = vst.msk [vmem:[%s126 + $0x68] sm:$0xff] %vm129, %v3398
  %3423 = vst.msk [vmem:[%s126 + $0x70] sm:$0xff] %vm127, %v3400
  %3424 = vst.msk [vmem:[%s126 + $0x78] sm:$0xff] %vm129, %v3400
  %v3425 = vld [vmem:[#allocation2] sm:$0xff]
  %v3426 = vld [vmem:[#allocation2 + $0x8] sm:$0xff]
  %v3427 = vld [vmem:[#allocation2 + $0x10] sm:$0xff]
  %v3428 = vld [vmem:[#allocation2 + $0x18] sm:$0xff]
  %v3429 = vld [vmem:[#allocation2 + $0x20] sm:$0xff]
  %v3430 = vld [vmem:[#allocation2 + $0x28] sm:$0xff]
  %v3431 = vld [vmem:[#allocation2 + $0x30] sm:$0xff]
  %v3432 = vld [vmem:[#allocation2 + $0x38] sm:$0xff]
  %v3433 = vld [vmem:[#allocation2 + $0x40] sm:$0xff]
  %v3434 = vld [vmem:[#allocation2 + $0x48] sm:$0xff]
  %v3435 = vld [vmem:[#allocation2 + $0x50] sm:$0xff]
  %v3436 = vld [vmem:[#allocation2 + $0x58] sm:$0xff]
  %v3437 = vld [vmem:[#allocation2 + $0x60] sm:$0xff]
  %v3438 = vld [vmem:[#allocation2 + $0x68] sm:$0xff]
  %v3439 = vld [vmem:[#allocation2 + $0x70] sm:$0xff]
  %v3440 = vld [vmem:[#allocation2 + $0x78] sm:$0xff]
  %v3441 = vld [vmem:[%s1 + $0x14] sm:$0xf]
  %v3442 = vld [vmem:[%s1 + $0x2c] sm:$0xf]
  %v3443 = vld [vmem:[%s1 + $0x44] sm:$0xf]
  %v3444 = vld [vmem:[%s1 + $0x5c] sm:$0xf]
  %v3445 = vld [vmem:[%s1 + $0x74] sm:$0xf]
  %v3446 = vld [vmem:[%s1 + $0x8c] sm:$0xf]
  %v3447 = vld [vmem:[%s1 + $0xa4] sm:$0xf]
  %v3448 = vld [vmem:[%s1 + $0xbc] sm:$0xf]
  %v3449 = vld [vmem:[%s1 + $0xd4] sm:$0xf]
  %v3450 = vld [vmem:[%s1 + $0xec] sm:$0xf]
  %v3451 = vld [vmem:[%s1 + $0x104] sm:$0xf]
  %v3452 = vld [vmem:[%s1 + $0x11c] sm:$0xf]
  %v3453 = vld [vmem:[%s1 + $0x134] sm:$0xf]
  %v3454 = vld [vmem:[%s1 + $0x14c] sm:$0xf]
  %v3455 = vld [vmem:[%s1 + $0x164] sm:$0xf]
  %v3456 = vld [vmem:[%s1 + $0x17c] sm:$0xf]
  %v3457 = vld [vmem:[%s1 + $0x194] sm:$0xf]
  %v3458 = vld [vmem:[%s1 + $0x1ac] sm:$0xf]
  %v3459 = vld [vmem:[%s1 + $0x1c4] sm:$0xf]
  %v3460 = vld [vmem:[%s1 + $0x1dc] sm:$0xf]
  %v3461 = vld [vmem:[%s126] sm:$0xff]
  %v3462 = vld [vmem:[%s126 + $0x8] sm:$0xff]
  %v3463 = vld [vmem:[%s126 + $0x10] sm:$0xff]
  %v3464 = vld [vmem:[%s126 + $0x18] sm:$0xff]
  %v3465 = vld [vmem:[%s126 + $0x20] sm:$0xff]
  %v3466 = vld [vmem:[%s126 + $0x28] sm:$0xff]
  %v3467 = vld [vmem:[%s126 + $0x30] sm:$0xff]
  %v3468 = vld [vmem:[%s126 + $0x38] sm:$0xff]
  %v3469 = vld [vmem:[%s126 + $0x40] sm:$0xff]
  %v3470 = vld [vmem:[%s126 + $0x48] sm:$0xff]
  %v3471 = vld [vmem:[%s126 + $0x50] sm:$0xff]
  %v3472 = vld [vmem:[%s126 + $0x58] sm:$0xff]
  %v3473 = vld [vmem:[%s126 + $0x60] sm:$0xff]
  %v3474 = vld [vmem:[%s126 + $0x68] sm:$0xff]
  %v3475 = vld [vmem:[%s126 + $0x70] sm:$0xff]
  %v3476 = vld [vmem:[%s126 + $0x78] sm:$0xff]
  %v3477 = vld [vmem:[%s1 + $0x1f4] sm:$0xf]
  %v3478 = vld [vmem:[%s1 + $0x20c] sm:$0xf]
  %v3479 = vld [vmem:[%s1 + $0x224] sm:$0xf]
  %v3480 = vld [vmem:[%s1 + $0x23c] sm:$0xf]
  %v3481 = vld [vmem:[%s1 + $0x254] sm:$0xf]
  %v3482 = vld [vmem:[%s1 + $0x26c] sm:$0xf]
  %v3483 = vld [vmem:[%s1 + $0x284] sm:$0xf]
  %v3484 = vld [vmem:[%s1 + $0x29c] sm:$0xf]
  %v3485 = vld [vmem:[%s1 + $0x2b4] sm:$0xf]
  %v3486 = vld [vmem:[%s1 + $0x2cc] sm:$0xf]
  %v3487 = vld [vmem:[%s1 + $0x2e4] sm:$0xf]
  %v3488 = vld [vmem:[%s1 + $0x2fc] sm:$0xf]
  %v3489 = vld [vmem:[%s1 + $0x314] sm:$0xf]
  %v3490 = vld [vmem:[%s1 + $0x32c] sm:$0xf]
  %v3491 = vld [vmem:[%s1 + $0x344] sm:$0xf]
  %v3492 = vld [vmem:[%s1 + $0x35c] sm:$0xf]
  %v3493 = vld [vmem:[%s1 + $0x374] sm:$0xf]
  %v3494 = vld [vmem:[%s1 + $0x38c] sm:$0xf]
  %v3495 = vld [vmem:[%s1 + $0x3a4] sm:$0xf]
  %v3496 = vld [vmem:[%s1 + $0x3bc] sm:$0xf]
  %v3517 = vunpack.c.l.b16 %v3477
  %v3518 = vunpack.c.l.b16 %v3478
  %v3519 = vunpack.c.l.b16 %v3479
  %v3520 = vunpack.c.l.b16 %v3480
  %v3521 = vunpack.c.l.b16 %v3481
  %v3522 = vunpack.c.l.b16 %v3482
  %v3523 = vunpack.c.l.b16 %v3483
  %v3524 = vunpack.c.l.b16 %v3484
  %v3525 = vunpack.c.l.b16 %v3485
  %v3526 = vunpack.c.l.b16 %v3486
  %v3527 = vunpack.c.l.b16 %v3487
  %v3528 = vunpack.c.l.b16 %v3488
  %v3529 = vunpack.c.l.b16 %v3489
  %v3530 = vunpack.c.l.b16 %v3490
  %v3531 = vunpack.c.l.b16 %v3491
  %v3532 = vunpack.c.l.b16 %v3492
  %v3533 = vunpack.c.l.b16 %v3493
  %v3534 = vunpack.c.l.b16 %v3494
  %v3535 = vunpack.c.l.b16 %v3495
  %v3536 = vunpack.c.l.b16 %v3496
  %v3537 = vpack.c.b16 %v3518, %v3517
  %v3538 = vpack.c.b16 %v3520, %v3519
  %v3539 = vpack.c.b16 %v3522, %v3521
  %v3540 = vpack.c.b16 %v3524, %v3523
  %v3541 = vpack.c.b16 %v3526, %v3525
  %v3542 = vpack.c.b16 %v3528, %v3527
  %v3543 = vpack.c.b16 %v3530, %v3529
  %v3544 = vpack.c.b16 %v3532, %v3531
  %v3545 = vpack.c.b16 %v3534, %v3533
  %v3546 = vpack.c.b16 %v3536, %v3535
  %v3558 = vsel %vm26, %v3462, 0
  %v3561 = vsel %vm26, %v3464, 0
  %v3564 = vsel %vm26, %v3466, 0
  %v3567 = vsel %vm26, %v3468, 0
  %v3570 = vsel %vm26, %v3470, 0
  %v3573 = vsel %vm26, %v3472, 0
  %v3576 = vsel %vm26, %v3474, 0
  %v3579 = vsel %vm26, %v3476, 0
  %3581 = vmatprep.subr.bf16.mxu0 0
  %3582 = vmatpush1.bf16.msra.mxu0 %v3537
  %3583 = vmatprep.subr.bf16.mxu0 0
  %3584 = vmatpush1.bf16.msra.mxu0 %v3538
  %3585 = vmatprep.subr.bf16.mxu0 0
  %3586 = vmatpush1.bf16.msra.mxu0 %v3539
  %3587 = vmatprep.subr.bf16.mxu0 0
  %3588 = vmatpush1.bf16.msra.mxu0 %v3540
  %3589 = vmatprep.subr.bf16.mxu0 0
  %3590 = vmatpush1.bf16.msra.mxu0 %v3541
  %3591 = vmatprep.subr.bf16.mxu0 0
  %3592 = vmatpush1.bf16.msra.mxu0 %v3542
  %3593 = vmatprep.subr.bf16.mxu0 0
  %3594 = vmatpush1.bf16.msra.mxu0 %v3543
  %3595 = vmatprep.subr.bf16.mxu0 0
  %3596 = vmatpush1.bf16.msra.mxu0 %v3544
  %3597 = vmatprep.subr.bf16.mxu0 0
  %3598 = vmatpush1.bf16.msra.mxu0 %v3545
  %3599 = vmatprep.subr.bf16.mxu0 0
  %3600 = vmatpush1.bf16.msra.mxu0 %v3546
  %3601 = vmatprep.subr.bf16.mxu0 0
  %3602 = vmatpush1.bf16.msra.mxu0 0
  %3603 = vmatprep.subr.bf16.mxu0 0
  %3604 = vmatpush1.bf16.msra.mxu0 0
  %3605 = vmatprep.subr.bf16.mxu0 0
  %3606 = vmatpush1.bf16.msra.mxu0 0
  %3607 = vmatprep.subr.bf16.mxu0 0
  %3608 = vmatpush1.bf16.msra.mxu0 0
  %3609 = vmatprep.subr.bf16.mxu0 0
  %3610 = vmatpush1.bf16.msra.mxu0 0
  %3611 = vmatprep.subr.bf16.mxu0 0
  %3612 = vmatpush1.bf16.msra.mxu0 0
  %3613 = vmatprep.mubr.bf16.mxu0 %v3558
  %3614 = vmatmul.mubr.bf16.gmra.mrb[0].mxu0 %v3461
  %v3615 = vpop.f32.mrb[0].mxu0
  %v3616 = vadd.f32 0.0, %v3615
  %v3617 = vpop.f32.mrb[0].mxu0
  %v3618 = vpop.f32.mrb[0].mxu0
  %v3619 = vadd.f32 0.0, %v3618
  %v3620 = vpop.f32.mrb[0].mxu0
  %3621 = vmatprep.mubr.bf16.mxu0 %v3561
  %3622 = vmatmul.mubr.bf16.gmra.mrb[0].mxu0 %v3463
  %v3623 = vpop.f32.mrb[0].mxu0
  %v3624 = vadd.f32 0.0, %v3623
  %v3625 = vpop.f32.mrb[0].mxu0
  %v3626 = vpop.f32.mrb[0].mxu0
  %v3627 = vadd.f32 0.0, %v3626
  %v3628 = vpop.f32.mrb[0].mxu0
  %3629 = vmatprep.mubr.bf16.mxu0 %v3564
  %3630 = vmatmul.mubr.bf16.gmra.mrb[0].mxu0 %v3465
  %v3631 = vpop.f32.mrb[0].mxu0
  %v3632 = vadd.f32 0.0, %v3631
  %v3633 = vpop.f32.mrb[0].mxu0
  %v3634 = vpop.f32.mrb[0].mxu0
  %v3635 = vadd.f32 0.0, %v3634
  %v3636 = vpop.f32.mrb[0].mxu0
  %3637 = vmatprep.mubr.bf16.mxu0 %v3567
  %3638 = vmatmul.mubr.bf16.gmra.mrb[0].mxu0 %v3467
  %v3639 = vpop.f32.mrb[0].mxu0
  %v3640 = vadd.f32 0.0, %v3639
  %v3641 = vpop.f32.mrb[0].mxu0
  %v3642 = vpop.f32.mrb[0].mxu0
  %v3643 = vadd.f32 0.0, %v3642
  %v3644 = vpop.f32.mrb[0].mxu0
  %3645 = vmatprep.mubr.bf16.mxu0 %v3570
  %3646 = vmatmul.mubr.bf16.gmra.mrb[0].mxu0 %v3469
  %v3647 = vpop.f32.mrb[0].mxu0
  %v3648 = vadd.f32 0.0, %v3647
  %v3649 = vpop.f32.mrb[0].mxu0
  %v3650 = vpop.f32.mrb[0].mxu0
  %v3651 = vadd.f32 0.0, %v3650
  %v3652 = vpop.f32.mrb[0].mxu0
  %3653 = vmatprep.mubr.bf16.mxu0 %v3573
  %3654 = vmatmul.mubr.bf16.gmra.mrb[0].mxu0 %v3471
  %v3655 = vpop.f32.mrb[0].mxu0
  %v3656 = vadd.f32 0.0, %v3655
  %v3657 = vpop.f32.mrb[0].mxu0
  %v3658 = vpop.f32.mrb[0].mxu0
  %v3659 = vadd.f32 0.0, %v3658
  %v3660 = vpop.f32.mrb[0].mxu0
  %3661 = vmatprep.mubr.bf16.mxu0 %v3576
  %3662 = vmatmul.mubr.bf16.gmra.mrb[0].mxu0 %v3473
  %v3663 = vpop.f32.mrb[0].mxu0
  %v3664 = vadd.f32 0.0, %v3663
  %v3665 = vpop.f32.mrb[0].mxu0
  %v3666 = vpop.f32.mrb[0].mxu0
  %v3667 = vadd.f32 0.0, %v3666
  %v3668 = vpop.f32.mrb[0].mxu0
  %3669 = vmatprep.mubr.bf16.mxu0 %v3579
  %3670 = vmatmul.mubr.bf16.gmra.mrb[0].mxu0 %v3475
  %v3671 = vpop.f32.mrb[0].mxu0
  %v3672 = vadd.f32 0.0, %v3671
  %v3673 = vpop.f32.mrb[0].mxu0
  %v3674 = vpop.f32.mrb[0].mxu0
  %v3675 = vadd.f32 0.0, %v3674
  %v3676 = vpop.f32.mrb[0].mxu0
  %3677 = vdwg.mxu0
  %v3698 = vunpack.c.l.b16 %v3441
  %v3699 = vunpack.c.l.b16 %v3442
  %v3700 = vunpack.c.l.b16 %v3443
  %v3701 = vunpack.c.l.b16 %v3444
  %v3702 = vunpack.c.l.b16 %v3445
  %v3703 = vunpack.c.l.b16 %v3446
  %v3704 = vunpack.c.l.b16 %v3447
  %v3705 = vunpack.c.l.b16 %v3448
  %v3706 = vunpack.c.l.b16 %v3449
  %v3707 = vunpack.c.l.b16 %v3450
  %v3708 = vunpack.c.l.b16 %v3451
  %v3709 = vunpack.c.l.b16 %v3452
  %v3710 = vunpack.c.l.b16 %v3453
  %v3711 = vunpack.c.l.b16 %v3454
  %v3712 = vunpack.c.l.b16 %v3455
  %v3713 = vunpack.c.l.b16 %v3456
  %v3714 = vunpack.c.l.b16 %v3457
  %v3715 = vunpack.c.l.b16 %v3458
  %v3716 = vunpack.c.l.b16 %v3459
  %v3717 = vunpack.c.l.b16 %v3460
  %v3718 = vpack.c.b16 %v3699, %v3698
  %v3719 = vpack.c.b16 %v3701, %v3700
  %v3720 = vpack.c.b16 %v3703, %v3702
  %v3721 = vpack.c.b16 %v3705, %v3704
  %v3722 = vpack.c.b16 %v3707, %v3706
  %v3723 = vpack.c.b16 %v3709, %v3708
  %v3724 = vpack.c.b16 %v3711, %v3710
  %v3725 = vpack.c.b16 %v3713, %v3712
  %v3726 = vpack.c.b16 %v3715, %v3714
  %v3727 = vpack.c.b16 %v3717, %v3716
  %v3739 = vsel %vm26, %v3426, 0
  %v3742 = vsel %vm26, %v3428, 0
  %v3745 = vsel %vm26, %v3430, 0
  %v3748 = vsel %vm26, %v3432, 0
  %v3751 = vsel %vm26, %v3434, 0
  %v3754 = vsel %vm26, %v3436, 0
  %v3757 = vsel %vm26, %v3438, 0
  %v3760 = vsel %vm26, %v3440, 0
  %3762 = vmatprep.subr.bf16.mxu0 0
  %3763 = vmatpush1.bf16.msra.mxu0 %v3718
  %3764 = vmatprep.subr.bf16.mxu0 0
  %3765 = vmatpush1.bf16.msra.mxu0 %v3719
  %3766 = vmatprep.subr.bf16.mxu0 0
  %3767 = vmatpush1.bf16.msra.mxu0 %v3720
  %3768 = vmatprep.subr.bf16.mxu0 0
  %3769 = vmatpush1.bf16.msra.mxu0 %v3721
  %3770 = vmatprep.subr.bf16.mxu0 0
  %3771 = vmatpush1.bf16.msra.mxu0 %v3722
  %3772 = vmatprep.subr.bf16.mxu0 0
  %3773 = vmatpush1.bf16.msra.mxu0 %v3723
  %3774 = vmatprep.subr.bf16.mxu0 0
  %3775 = vmatpush1.bf16.msra.mxu0 %v3724
  %3776 = vmatprep.subr.bf16.mxu0 0
  %3777 = vmatpush1.bf16.msra.mxu0 %v3725
  %3778 = vmatprep.subr.bf16.mxu0 0
  %3779 = vmatpush1.bf16.msra.mxu0 %v3726
  %3780 = vmatprep.subr.bf16.mxu0 0
  %3781 = vmatpush1.bf16.msra.mxu0 %v3727
  %3782 = vmatprep.subr.bf16.mxu0 0
  %3783 = vmatpush1.bf16.msra.mxu0 0
  %3784 = vmatprep.subr.bf16.mxu0 0
  %3785 = vmatpush1.bf16.msra.mxu0 0
  %3786 = vmatprep.subr.bf16.mxu0 0
  %3787 = vmatpush1.bf16.msra.mxu0 0
  %3788 = vmatprep.subr.bf16.mxu0 0
  %3789 = vmatpush1.bf16.msra.mxu0 0
  %3790 = vmatprep.subr.bf16.mxu0 0
  %3791 = vmatpush1.bf16.msra.mxu0 0
  %3792 = vmatprep.subr.bf16.mxu0 0
  %3793 = vmatpush1.bf16.msra.mxu0 0
  %3794 = vmatprep.mubr.bf16.mxu0 %v3739
  %3795 = vmatmul.mubr.bf16.gmra.mrb[0].mxu0 %v3425
  %v3796 = vpop.f32.mrb[0].mxu0
  %v3797 = vadd.f32 %v3616, %v3796
  %v3798 = vpop.f32.mrb[0].mxu0
  %v3799 = vpop.f32.mrb[0].mxu0
  %v3800 = vadd.f32 %v3619, %v3799
  %v3801 = vpop.f32.mrb[0].mxu0
  %3802 = vmatprep.mubr.bf16.mxu0 %v3742
  %3803 = vmatmul.mubr.bf16.gmra.mrb[0].mxu0 %v3427
  %v3804 = vpop.f32.mrb[0].mxu0
  %v3805 = vadd.f32 %v3624, %v3804
  %v3806 = vpop.f32.mrb[0].mxu0
  %v3807 = vpop.f32.mrb[0].mxu0
  %v3808 = vadd.f32 %v3627, %v3807
  %v3809 = vpop.f32.mrb[0].mxu0
  %3810 = vmatprep.mubr.bf16.mxu0 %v3745
  %3811 = vmatmul.mubr.bf16.gmra.mrb[0].mxu0 %v3429
  %v3812 = vpop.f32.mrb[0].mxu0
  %v3813 = vadd.f32 %v3632, %v3812
  %v3814 = vpop.f32.mrb[0].mxu0
  %v3815 = vpop.f32.mrb[0].mxu0
  %v3816 = vadd.f32 %v3635, %v3815
  %v3817 = vpop.f32.mrb[0].mxu0
  %3818 = vmatprep.mubr.bf16.mxu0 %v3748
  %3819 = vmatmul.mubr.bf16.gmra.mrb[0].mxu0 %v3431
  %v3820 = vpop.f32.mrb[0].mxu0
  %v3821 = vadd.f32 %v3640, %v3820
  %v3822 = vpop.f32.mrb[0].mxu0
  %v3823 = vpop.f32.mrb[0].mxu0
  %v3824 = vadd.f32 %v3643, %v3823
  %v3825 = vpop.f32.mrb[0].mxu0
  %3826 = vmatprep.mubr.bf16.mxu0 %v3751
  %3827 = vmatmul.mubr.bf16.gmra.mrb[0].mxu0 %v3433
  %v3828 = vpop.f32.mrb[0].mxu0
  %v3829 = vadd.f32 %v3648, %v3828
  %v3830 = vpop.f32.mrb[0].mxu0
  %v3831 = vpop.f32.mrb[0].mxu0
  %v3832 = vadd.f32 %v3651, %v3831
  %v3833 = vpop.f32.mrb[0].mxu0
  %3834 = vmatprep.mubr.bf16.mxu0 %v3754
  %3835 = vmatmul.mubr.bf16.gmra.mrb[0].mxu0 %v3435
  %v3836 = vpop.f32.mrb[0].mxu0
  %v3837 = vadd.f32 %v3656, %v3836
  %v3838 = vpop.f32.mrb[0].mxu0
  %v3839 = vpop.f32.mrb[0].mxu0
  %v3840 = vadd.f32 %v3659, %v3839
  %v3841 = vpop.f32.mrb[0].mxu0
  %3842 = vmatprep.mubr.bf16.mxu0 %v3757
  %3843 = vmatmul.mubr.bf16.gmra.mrb[0].mxu0 %v3437
  %v3844 = vpop.f32.mrb[0].mxu0
  %v3845 = vadd.f32 %v3664, %v3844
  %v3846 = vpop.f32.mrb[0].mxu0
  %v3847 = vpop.f32.mrb[0].mxu0
  %v3848 = vadd.f32 %v3667, %v3847
  %v3849 = vpop.f32.mrb[0].mxu0
  %3850 = vmatprep.mubr.bf16.mxu0 %v3760
  %3851 = vmatmul.mubr.bf16.gmra.mrb[0].mxu0 %v3439
  %v3852 = vpop.f32.mrb[0].mxu0
  %v3853 = vadd.f32 %v3672, %v3852
  %v3854 = vpop.f32.mrb[0].mxu0
  %v3855 = vpop.f32.mrb[0].mxu0
  %v3856 = vadd.f32 %v3675, %v3855
  %v3857 = vpop.f32.mrb[0].mxu0
  %3858 = vdwg.mxu0
  %v3859 = vld [vmem:[%s579] sm:$0xff]
  %v3860 = vld [vmem:[%s579 + $0x8] sm:$0xff]
  %v3861 = vld [vmem:[%s579 + $0x10] sm:$0xff]
  %v3862 = vld [vmem:[%s579 + $0x18] sm:$0xff]
  %v3863 = vld [vmem:[%s579 + $0x20] sm:$0xff]
  %v3864 = vld [vmem:[%s579 + $0x28] sm:$0xff]
  %v3865 = vld [vmem:[%s579 + $0x30] sm:$0xff]
  %v3866 = vld [vmem:[%s579 + $0x38] sm:$0xff]
  %v3867 = vld [vmem:[%s579 + $0x40] sm:$0xff]
  %v3868 = vld [vmem:[%s579 + $0x48] sm:$0xff]
  %v3869 = vld [vmem:[%s579 + $0x50] sm:$0xff]
  %v3870 = vld [vmem:[%s579 + $0x58] sm:$0xff]
  %v3871 = vld [vmem:[%s579 + $0x60] sm:$0xff]
  %v3872 = vld [vmem:[%s579 + $0x68] sm:$0xff]
  %v3873 = vld [vmem:[%s579 + $0x70] sm:$0xff]
  %v3874 = vld [vmem:[%s579 + $0x78] sm:$0xff]
  %v3875 = vld [vmem:[%s1 + $0x3d4] sm:$0xf]
  %v3876 = vld [vmem:[%s1 + $0x3ec] sm:$0xf]
  %v3877 = vld [vmem:[%s1 + $0x404] sm:$0xf]
  %v3878 = vld [vmem:[%s1 + $0x41c] sm:$0xf]
  %v3879 = vld [vmem:[%s1 + $0x434] sm:$0xf]
  %v3880 = vld [vmem:[%s1 + $0x44c] sm:$0xf]
  %v3881 = vld [vmem:[%s1 + $0x464] sm:$0xf]
  %v3882 = vld [vmem:[%s1 + $0x47c] sm:$0xf]
  %v3883 = vld [vmem:[%s1 + $0x494] sm:$0xf]
  %v3884 = vld [vmem:[%s1 + $0x4ac] sm:$0xf]
  %v3885 = vld [vmem:[%s1 + $0x4c4] sm:$0xf]
  %v3886 = vld [vmem:[%s1 + $0x4dc] sm:$0xf]
  %v3887 = vld [vmem:[%s1 + $0x4f4] sm:$0xf]
  %v3888 = vld [vmem:[%s1 + $0x50c] sm:$0xf]
  %v3889 = vld [vmem:[%s1 + $0x524] sm:$0xf]
  %v3890 = vld [vmem:[%s1 + $0x53c] sm:$0xf]
  %v3891 = vld [vmem:[%s1 + $0x554] sm:$0xf]
  %v3892 = vld [vmem:[%s1 + $0x56c] sm:$0xf]
  %v3893 = vld [vmem:[%s1 + $0x584] sm:$0xf]
  %v3894 = vld [vmem:[%s1 + $0x59c] sm:$0xf]
  %v3915 = vunpack.c.l.b16 %v3875
  %v3916 = vunpack.c.l.b16 %v3876
  %v3917 = vunpack.c.l.b16 %v3877
  %v3918 = vunpack.c.l.b16 %v3878
  %v3919 = vunpack.c.l.b16 %v3879
  %v3920 = vunpack.c.l.b16 %v3880
  %v3921 = vunpack.c.l.b16 %v3881
  %v3922 = vunpack.c.l.b16 %v3882
  %v3923 = vunpack.c.l.b16 %v3883
  %v3924 = vunpack.c.l.b16 %v3884
  %v3925 = vunpack.c.l.b16 %v3885
  %v3926 = vunpack.c.l.b16 %v3886
  %v3927 = vunpack.c.l.b16 %v3887
  %v3928 = vunpack.c.l.b16 %v3888
  %v3929 = vunpack.c.l.b16 %v3889
  %v3930 = vunpack.c.l.b16 %v3890
  %v3931 = vunpack.c.l.b16 %v3891
  %v3932 = vunpack.c.l.b16 %v3892
  %v3933 = vunpack.c.l.b16 %v3893
  %v3934 = vunpack.c.l.b16 %v3894
  %v3935 = vpack.c.b16 %v3916, %v3915
  %v3936 = vpack.c.b16 %v3918, %v3917
  %v3937 = vpack.c.b16 %v3920, %v3919
  %v3938 = vpack.c.b16 %v3922, %v3921
  %v3939 = vpack.c.b16 %v3924, %v3923
  %v3940 = vpack.c.b16 %v3926, %v3925
  %v3941 = vpack.c.b16 %v3928, %v3927
  %v3942 = vpack.c.b16 %v3930, %v3929
  %v3943 = vpack.c.b16 %v3932, %v3931
  %v3944 = vpack.c.b16 %v3934, %v3933
  %v3956 = vsel %vm26, %v3860, 0
  %v3959 = vsel %vm26, %v3862, 0
  %v3962 = vsel %vm26, %v3864, 0
  %v3965 = vsel %vm26, %v3866, 0
  %v3968 = vsel %vm26, %v3868, 0
  %v3971 = vsel %vm26, %v3870, 0
  %v3974 = vsel %vm26, %v3872, 0
  %v3977 = vsel %vm26, %v3874, 0
  %3979 = vmatprep.subr.bf16.mxu0 0
  %3980 = vmatpush1.bf16.msra.mxu0 %v3935
  %3981 = vmatprep.subr.bf16.mxu0 0
  %3982 = vmatpush1.bf16.msra.mxu0 %v3936
  %3983 = vmatprep.subr.bf16.mxu0 0
  %3984 = vmatpush1.bf16.msra.mxu0 %v3937
  %3985 = vmatprep.subr.bf16.mxu0 0
  %3986 = vmatpush1.bf16.msra.mxu0 %v3938
  %3987 = vmatprep.subr.bf16.mxu0 0
  %3988 = vmatpush1.bf16.msra.mxu0 %v3939
  %3989 = vmatprep.subr.bf16.mxu0 0
  %3990 = vmatpush1.bf16.msra.mxu0 %v3940
  %3991 = vmatprep.subr.bf16.mxu0 0
  %3992 = vmatpush1.bf16.msra.mxu0 %v3941
  %3993 = vmatprep.subr.bf16.mxu0 0
  %3994 = vmatpush1.bf16.msra.mxu0 %v3942
  %3995 = vmatprep.subr.bf16.mxu0 0
  %3996 = vmatpush1.bf16.msra.mxu0 %v3943
  %3997 = vmatprep.subr.bf16.mxu0 0
  %3998 = vmatpush1.bf16.msra.mxu0 %v3944
  %3999 = vmatprep.subr.bf16.mxu0 0
  %4000 = vmatpush1.bf16.msra.mxu0 0
  %4001 = vmatprep.subr.bf16.mxu0 0
  %4002 = vmatpush1.bf16.msra.mxu0 0
  %4003 = vmatprep.subr.bf16.mxu0 0
  %4004 = vmatpush1.bf16.msra.mxu0 0
  %4005 = vmatprep.subr.bf16.mxu0 0
  %4006 = vmatpush1.bf16.msra.mxu0 0
  %4007 = vmatprep.subr.bf16.mxu0 0
  %4008 = vmatpush1.bf16.msra.mxu0 0
  %4009 = vmatprep.subr.bf16.mxu0 0
  %4010 = vmatpush1.bf16.msra.mxu0 0
  %4011 = vmatprep.mubr.bf16.mxu0 %v3956
  %4012 = vmatmul.mubr.bf16.gmra.mrb[0].mxu0 %v3859
  %v4013 = vpop.f32.mrb[0].mxu0
  %v4014 = vadd.f32 0.0, %v4013
  %v4015 = vpop.f32.mrb[0].mxu0
  %v4016 = vpop.f32.mrb[0].mxu0
  %v4017 = vadd.f32 0.0, %v4016
  %v4018 = vpop.f32.mrb[0].mxu0
  %4019 = vmatprep.mubr.bf16.mxu0 %v3959
  %4020 = vmatmul.mubr.bf16.gmra.mrb[0].mxu0 %v3861
  %v4021 = vpop.f32.mrb[0].mxu0
  %v4022 = vadd.f32 0.0, %v4021
  %v4023 = vpop.f32.mrb[0].mxu0
  %v4024 = vpop.f32.mrb[0].mxu0
  %v4025 = vadd.f32 0.0, %v4024
  %v4026 = vpop.f32.mrb[0].mxu0
  %4027 = vmatprep.mubr.bf16.mxu0 %v3962
  %4028 = vmatmul.mubr.bf16.gmra.mrb[0].mxu0 %v3863
  %v4029 = vpop.f32.mrb[0].mxu0
  %v4030 = vadd.f32 0.0, %v4029
  %v4031 = vpop.f32.mrb[0].mxu0
  %v4032 = vpop.f32.mrb[0].mxu0
  %v4033 = vadd.f32 0.0, %v4032
  %v4034 = vpop.f32.mrb[0].mxu0
  %4035 = vmatprep.mubr.bf16.mxu0 %v3965
  %4036 = vmatmul.mubr.bf16.gmra.mrb[0].mxu0 %v3865
  %v4037 = vpop.f32.mrb[0].mxu0
  %v4038 = vadd.f32 0.0, %v4037
  %v4039 = vpop.f32.mrb[0].mxu0
  %v4040 = vpop.f32.mrb[0].mxu0
  %v4041 = vadd.f32 0.0, %v4040
  %v4042 = vpop.f32.mrb[0].mxu0
  %4043 = vmatprep.mubr.bf16.mxu0 %v3968
  %4044 = vmatmul.mubr.bf16.gmra.mrb[0].mxu0 %v3867
  %v4045 = vpop.f32.mrb[0].mxu0
  %v4046 = vadd.f32 0.0, %v4045
  %v4047 = vpop.f32.mrb[0].mxu0
  %v4048 = vpop.f32.mrb[0].mxu0
  %v4049 = vadd.f32 0.0, %v4048
  %v4050 = vpop.f32.mrb[0].mxu0
  %4051 = vmatprep.mubr.bf16.mxu0 %v3971
  %4052 = vmatmul.mubr.bf16.gmra.mrb[0].mxu0 %v3869
  %v4053 = vpop.f32.mrb[0].mxu0
  %v4054 = vadd.f32 0.0, %v4053
  %v4055 = vpop.f32.mrb[0].mxu0
  %v4056 = vpop.f32.mrb[0].mxu0
  %v4057 = vadd.f32 0.0, %v4056
  %v4058 = vpop.f32.mrb[0].mxu0
  %4059 = vmatprep.mubr.bf16.mxu0 %v3974
  %4060 = vmatmul.mubr.bf16.gmra.mrb[0].mxu0 %v3871
  %v4061 = vpop.f32.mrb[0].mxu0
  %v4062 = vadd.f32 0.0, %v4061
  %v4063 = vpop.f32.mrb[0].mxu0
  %v4064 = vpop.f32.mrb[0].mxu0
  %v4065 = vadd.f32 0.0, %v4064
  %v4066 = vpop.f32.mrb[0].mxu0
  %4067 = vmatprep.mubr.bf16.mxu0 %v3977
  %4068 = vmatmul.mubr.bf16.gmra.mrb[0].mxu0 %v3873
  %v4069 = vpop.f32.mrb[0].mxu0
  %v4070 = vadd.f32 0.0, %v4069
  %v4071 = vpop.f32.mrb[0].mxu0
  %v4072 = vpop.f32.mrb[0].mxu0
  %v4073 = vadd.f32 0.0, %v4072
  %v4074 = vpop.f32.mrb[0].mxu0
  %4075 = vdwg.mxu0
  %v4076 = vadd.f32 %v3797, %v4014
  %v4077 = vadd.f32 %v3800, %v4017
  %v4078 = vadd.f32 %v3805, %v4022
  %v4079 = vadd.f32 %v3808, %v4025
  %v4080 = vadd.f32 %v3813, %v4030
  %v4081 = vadd.f32 %v3816, %v4033
  %v4082 = vadd.f32 %v3821, %v4038
  %v4083 = vadd.f32 %v3824, %v4041
  %v4084 = vadd.f32 %v3829, %v4046
  %v4085 = vadd.f32 %v3832, %v4049
  %v4086 = vadd.f32 %v3837, %v4054
  %v4087 = vadd.f32 %v3840, %v4057
  %v4088 = vadd.f32 %v3845, %v4062
  %v4089 = vadd.f32 %v3848, %v4065
  %v4090 = vadd.f32 %v3853, %v4070
  %v4091 = vadd.f32 %v3856, %v4073
  %v4092 = vld [vmem:[%s4 + $0x5] sm:$0x1]
  %v4094 = vlaneseq
  %v4095 = vshrl.u32 %v4094, 7
  %v4096 = vsub.s32 0, %v4095
  %v4097 = vrot.slane %v4092, %v4096
  %v4099 = vadd.f32 %v4076, %v4097
  %v4100 = vadd.f32 %v4077, %v4097
  %v4101 = vadd.f32 %v4078, %v4097
  %v4102 = vadd.f32 %v4079, %v4097
  %v4103 = vadd.f32 %v4080, %v4097
  %v4104 = vadd.f32 %v4081, %v4097
  %v4105 = vadd.f32 %v4082, %v4097
  %v4106 = vadd.f32 %v4083, %v4097
  %v4107 = vadd.f32 %v4084, %v4097
  %v4108 = vadd.f32 %v4085, %v4097
  %v4109 = vadd.f32 %v4086, %v4097
  %v4110 = vadd.f32 %v4087, %v4097
  %v4111 = vadd.f32 %v4088, %v4097
  %v4112 = vadd.f32 %v4089, %v4097
  %v4113 = vadd.f32 %v4090, %v4097
  %v4114 = vadd.f32 %v4091, %v4097
  %v4115 = vmax.f32 %v4099, 0.0
  %v4116 = vmax.f32 %v4100, 0.0
  %v4117 = vmax.f32 %v4101, 0.0
  %v4118 = vmax.f32 %v4102, 0.0
  %v4119 = vmax.f32 %v4103, 0.0
  %v4120 = vmax.f32 %v4104, 0.0
  %v4121 = vmax.f32 %v4105, 0.0
  %v4122 = vmax.f32 %v4106, 0.0
  %v4123 = vmax.f32 %v4107, 0.0
  %v4124 = vmax.f32 %v4108, 0.0
  %v4125 = vmax.f32 %v4109, 0.0
  %v4126 = vmax.f32 %v4110, 0.0
  %v4127 = vmax.f32 %v4111, 0.0
  %v4128 = vmax.f32 %v4112, 0.0
  %v4129 = vmax.f32 %v4113, 0.0
  %v4130 = vmax.f32 %v4114, 0.0
  %v4131 = vpack.c.bf16 %v4116, %v4115
  %v4132 = vpack.c.bf16 %v4118, %v4117
  %v4133 = vpack.c.bf16 %v4120, %v4119
  %v4134 = vpack.c.bf16 %v4122, %v4121
  %v4135 = vpack.c.bf16 %v4124, %v4123
  %v4136 = vpack.c.bf16 %v4126, %v4125
  %v4137 = vpack.c.bf16 %v4128, %v4127
  %v4138 = vpack.c.bf16 %v4130, %v4129
  %vm4139 = vcmask 523264
  %4140 = vst.msk [vmem:[#allocation3] sm:$0xff] %vm4139, %v4131
  %4142 = vrot.lane.b32.xlu0 %v4132, 64
  %v4143 = vpop.permute.xlu0 %4142
  %vm4145 = vcmask 1048064
  %4146 = vst.msk [vmem:[#allocation3] sm:$0xff] %vm4145, %v4143
  %4147 = vst.msk [vmem:[#allocation3 + $0x8] sm:$0xff] %vm4139, %v4133
  %4149 = vrot.lane.b32.xlu0 %v4134, 64
  %v4150 = vpop.permute.xlu0 %4149
  %4152 = vst.msk [vmem:[#allocation3 + $0x8] sm:$0xff] %vm4145, %v4150
  %4153 = vst.msk [vmem:[#allocation3 + $0x10] sm:$0xff] %vm4139, %v4135
  %4155 = vrot.lane.b32.xlu0 %v4136, 64
  %v4156 = vpop.permute.xlu0 %4155
  %4158 = vst.msk [vmem:[#allocation3 + $0x10] sm:$0xff] %vm4145, %v4156
  %4159 = vst.msk [vmem:[#allocation3 + $0x18] sm:$0xff] %vm4139, %v4137
  %4161 = vrot.lane.b32.xlu0 %v4138, 64
  %v4162 = vpop.permute.xlu0 %4161
  %4164 = vst.msk [vmem:[#allocation3 + $0x18] sm:$0xff] %vm4145, %v4162
  %v4165 = vld [vmem:[#allocation3] sm:$0xff]
  %v4166 = vld [vmem:[#allocation3 + $0x8] sm:$0xff]
  %v4167 = vld [vmem:[#allocation3 + $0x10] sm:$0xff]
  %v4168 = vld [vmem:[#allocation3 + $0x18] sm:$0xff]
  %v4169 = vld [vmem:[%s3 + $0x8] sm:$0xff]
  %v4170 = vld [vmem:[%s3 + $0x18] sm:$0xff]
  %v4171 = vld [vmem:[%s3 + $0x28] sm:$0xff]
  %v4172 = vld [vmem:[%s3 + $0x38] sm:$0xff]
  %v4173 = vld [vmem:[%s3 + $0x48] sm:$0xff]
  %v4174 = vld [vmem:[%s3 + $0x58] sm:$0xff]
  %v4175 = vld [vmem:[%s3 + $0x68] sm:$0xff]
  %v4176 = vld [vmem:[%s3 + $0x78] sm:$0xff]
  %v4177 = vld [vmem:[%s3 + $0x88] sm:$0xff]
  %v4178 = vld [vmem:[%s3 + $0x98] sm:$0xff]
  %v4179 = vld [vmem:[%s3 + $0xa8] sm:$0xff]
  %v4180 = vld [vmem:[%s3 + $0xb8] sm:$0xff]
  %v4181 = vld [vmem:[%s3 + $0xc8] sm:$0xff]
  %v4182 = vld [vmem:[%s3 + $0xd8] sm:$0xff]
  %v4183 = vld [vmem:[%s3 + $0xe8] sm:$0xff]
  %v4184 = vld [vmem:[%s3 + $0xf8] sm:$0xff]
  %v4185 = vld [vmem:[%s3 + $0x108] sm:$0xff]
  %v4186 = vld [vmem:[%s3 + $0x118] sm:$0xff]
  %v4187 = vld [vmem:[%s3 + $0x128] sm:$0xff]
  %v4188 = vld [vmem:[%s3 + $0x138] sm:$0xff]
  %v4189 = vld [vmem:[%s3 + $0x148] sm:$0xff]
  %v4190 = vld [vmem:[%s3 + $0x158] sm:$0xff]
  %v4191 = vld [vmem:[%s3 + $0x168] sm:$0xff]
  %v4192 = vld [vmem:[%s3 + $0x178] sm:$0xff]
  %v4193 = vld [vmem:[%s3 + $0x188] sm:$0xff]
  %v4194 = vld [vmem:[%s3 + $0x198] sm:$0xff]
  %v4195 = vld [vmem:[%s3 + $0x1a8] sm:$0xff]
  %v4196 = vld [vmem:[%s3 + $0x1b8] sm:$0xff]
  %v4197 = vld [vmem:[%s3 + $0x1c8] sm:$0xff]
  %v4198 = vld [vmem:[%s3 + $0x1d8] sm:$0xff]
  %v4199 = vld [vmem:[%s3 + $0x1e8] sm:$0xff]
  %v4200 = vld [vmem:[%s3 + $0x1f8] sm:$0xff]
  %v4201 = vld [vmem:[%s3 + $0x208] sm:$0xff]
  %v4202 = vld [vmem:[%s3 + $0x218] sm:$0xff]
  %v4203 = vld [vmem:[%s3 + $0x228] sm:$0xff]
  %v4204 = vld [vmem:[%s3 + $0x238] sm:$0xff]
  %v4205 = vld [vmem:[%s3 + $0x248] sm:$0xff]
  %v4206 = vld [vmem:[%s3 + $0x258] sm:$0xff]
  %v4207 = vld [vmem:[%s3 + $0x268] sm:$0xff]
  %v4208 = vld [vmem:[%s3 + $0x278] sm:$0xff]
  %v4209 = vld [vmem:[%s3 + $0x288] sm:$0xff]
  %v4210 = vld [vmem:[%s3 + $0x298] sm:$0xff]
  %v4211 = vld [vmem:[%s3 + $0x2a8] sm:$0xff]
  %v4212 = vld [vmem:[%s3 + $0x2b8] sm:$0xff]
  %v4213 = vld [vmem:[%s3 + $0x2c8] sm:$0xff]
  %v4214 = vld [vmem:[%s3 + $0x2d8] sm:$0xff]
  %v4215 = vld [vmem:[%s3 + $0x2e8] sm:$0xff]
  %v4216 = vld [vmem:[%s3 + $0x2f8] sm:$0xff]
  %v4217 = vld [vmem:[%s3 + $0x308] sm:$0xff]
  %v4218 = vld [vmem:[%s3 + $0x318] sm:$0xff]
  %v4219 = vld [vmem:[%s3 + $0x328] sm:$0xff]
  %v4220 = vld [vmem:[%s3 + $0x338] sm:$0xff]
  %v4221 = vld [vmem:[%s3 + $0x348] sm:$0xff]
  %v4222 = vld [vmem:[%s3 + $0x358] sm:$0xff]
  %v4223 = vld [vmem:[%s3 + $0x368] sm:$0xff]
  %v4224 = vld [vmem:[%s3 + $0x378] sm:$0xff]
  %v4225 = vld [vmem:[%s3 + $0x388] sm:$0xff]
  %v4226 = vld [vmem:[%s3 + $0x398] sm:$0xff]
  %v4227 = vld [vmem:[%s3 + $0x3a8] sm:$0xff]
  %v4228 = vld [vmem:[%s3 + $0x3b8] sm:$0xff]
  %v4229 = vld [vmem:[%s3 + $0x3c8] sm:$0xff]
  %v4230 = vld [vmem:[%s3 + $0x3d8] sm:$0xff]
  %v4231 = vld [vmem:[%s3 + $0x3e8] sm:$0xff]
  %v4232 = vld [vmem:[%s3 + $0x3f8] sm:$0xff]
  %v4233 = vld [vmem:[%s4 + $0xc] sm:$0x7]
  %v4235 = vlaneseq
  %v4236 = vshrl.u32 %v4235, 7
  %v4237 = vsub.s32 0, %v4236
  %v4238 = vrot.slane %v4233, %v4237
  %v4239 = vlaneseq
  %v4240 = vshrl.u32 %v4239, 7
  %v4241 = vsub.s32 1, %v4240
  %v4242 = vrot.slane %v4233, %v4241
  %v4243 = vlaneseq
  %v4244 = vshrl.u32 %v4243, 7
  %v4245 = vsub.s32 2, %v4244
  %v4246 = vrot.slane %v4233, %v4245
  %v4311 = vunpack.c.l.b16 %v4169
  %v4312 = vunpack.c.h.b16 %v4169
  %v4313 = vunpack.c.l.b16 %v4170
  %v4314 = vunpack.c.h.b16 %v4170
  %v4315 = vunpack.c.l.b16 %v4171
  %v4316 = vunpack.c.h.b16 %v4171
  %v4317 = vunpack.c.l.b16 %v4172
  %v4318 = vunpack.c.h.b16 %v4172
  %v4319 = vunpack.c.l.b16 %v4173
  %v4320 = vunpack.c.h.b16 %v4173
  %v4321 = vunpack.c.l.b16 %v4174
  %v4322 = vunpack.c.h.b16 %v4174
  %v4323 = vunpack.c.l.b16 %v4175
  %v4324 = vunpack.c.h.b16 %v4175
  %v4325 = vunpack.c.l.b16 %v4176
  %v4326 = vunpack.c.h.b16 %v4176
  %v4327 = vunpack.c.l.b16 %v4177
  %v4328 = vunpack.c.h.b16 %v4177
  %v4329 = vunpack.c.l.b16 %v4178
  %v4330 = vunpack.c.h.b16 %v4178
  %v4331 = vunpack.c.l.b16 %v4179
  %v4332 = vunpack.c.h.b16 %v4179
  %v4333 = vunpack.c.l.b16 %v4180
  %v4334 = vunpack.c.h.b16 %v4180
  %v4335 = vunpack.c.l.b16 %v4181
  %v4336 = vunpack.c.h.b16 %v4181
  %v4337 = vunpack.c.l.b16 %v4182
  %v4338 = vunpack.c.h.b16 %v4182
  %v4339 = vunpack.c.l.b16 %v4183
  %v4340 = vunpack.c.h.b16 %v4183
  %v4341 = vunpack.c.l.b16 %v4184
  %v4342 = vunpack.c.h.b16 %v4184
  %v4343 = vunpack.c.l.b16 %v4185
  %v4344 = vunpack.c.h.b16 %v4185
  %v4345 = vunpack.c.l.b16 %v4186
  %v4346 = vunpack.c.h.b16 %v4186
  %v4347 = vunpack.c.l.b16 %v4187
  %v4348 = vunpack.c.h.b16 %v4187
  %v4349 = vunpack.c.l.b16 %v4188
  %v4350 = vunpack.c.h.b16 %v4188
  %v4351 = vunpack.c.l.b16 %v4189
  %v4352 = vunpack.c.h.b16 %v4189
  %v4353 = vunpack.c.l.b16 %v4190
  %v4354 = vunpack.c.h.b16 %v4190
  %v4355 = vunpack.c.l.b16 %v4191
  %v4356 = vunpack.c.h.b16 %v4191
  %v4357 = vunpack.c.l.b16 %v4192
  %v4358 = vunpack.c.h.b16 %v4192
  %v4359 = vunpack.c.l.b16 %v4193
  %v4360 = vunpack.c.h.b16 %v4193
  %v4361 = vunpack.c.l.b16 %v4194
  %v4362 = vunpack.c.h.b16 %v4194
  %v4363 = vunpack.c.l.b16 %v4195
  %v4364 = vunpack.c.h.b16 %v4195
  %v4365 = vunpack.c.l.b16 %v4196
  %v4366 = vunpack.c.h.b16 %v4196
  %v4367 = vunpack.c.l.b16 %v4197
  %v4368 = vunpack.c.h.b16 %v4197
  %v4369 = vunpack.c.l.b16 %v4198
  %v4370 = vunpack.c.h.b16 %v4198
  %v4371 = vunpack.c.l.b16 %v4199
  %v4372 = vunpack.c.h.b16 %v4199
  %v4373 = vunpack.c.l.b16 %v4200
  %v4374 = vunpack.c.h.b16 %v4200
  %v4375 = vunpack.c.l.b16 %v4201
  %v4376 = vunpack.c.h.b16 %v4201
  %v4377 = vunpack.c.l.b16 %v4202
  %v4378 = vunpack.c.h.b16 %v4202
  %v4379 = vunpack.c.l.b16 %v4203
  %v4380 = vunpack.c.h.b16 %v4203
  %v4381 = vunpack.c.l.b16 %v4204
  %v4382 = vunpack.c.h.b16 %v4204
  %v4383 = vunpack.c.l.b16 %v4205
  %v4384 = vunpack.c.h.b16 %v4205
  %v4385 = vunpack.c.l.b16 %v4206
  %v4386 = vunpack.c.h.b16 %v4206
  %v4387 = vunpack.c.l.b16 %v4207
  %v4388 = vunpack.c.h.b16 %v4207
  %v4389 = vunpack.c.l.b16 %v4208
  %v4390 = vunpack.c.h.b16 %v4208
  %v4391 = vunpack.c.l.b16 %v4209
  %v4392 = vunpack.c.h.b16 %v4209
  %v4393 = vunpack.c.l.b16 %v4210
  %v4394 = vunpack.c.h.b16 %v4210
  %v4395 = vunpack.c.l.b16 %v4211
  %v4396 = vunpack.c.h.b16 %v4211
  %v4397 = vunpack.c.l.b16 %v4212
  %v4398 = vunpack.c.h.b16 %v4212
  %v4399 = vunpack.c.l.b16 %v4213
  %v4400 = vunpack.c.h.b16 %v4213
  %v4401 = vunpack.c.l.b16 %v4214
  %v4402 = vunpack.c.h.b16 %v4214
  %v4403 = vunpack.c.l.b16 %v4215
  %v4404 = vunpack.c.h.b16 %v4215
  %v4405 = vunpack.c.l.b16 %v4216
  %v4406 = vunpack.c.h.b16 %v4216
  %v4407 = vunpack.c.l.b16 %v4217
  %v4408 = vunpack.c.h.b16 %v4217
  %v4409 = vunpack.c.l.b16 %v4218
  %v4410 = vunpack.c.h.b16 %v4218
  %v4411 = vunpack.c.l.b16 %v4219
  %v4412 = vunpack.c.h.b16 %v4219
  %v4413 = vunpack.c.l.b16 %v4220
  %v4414 = vunpack.c.h.b16 %v4220
  %v4415 = vunpack.c.l.b16 %v4221
  %v4416 = vunpack.c.h.b16 %v4221
  %v4417 = vunpack.c.l.b16 %v4222
  %v4418 = vunpack.c.h.b16 %v4222
  %v4419 = vunpack.c.l.b16 %v4223
  %v4420 = vunpack.c.h.b16 %v4223
  %v4421 = vunpack.c.l.b16 %v4224
  %v4422 = vunpack.c.h.b16 %v4224
  %v4423 = vunpack.c.l.b16 %v4225
  %v4424 = vunpack.c.h.b16 %v4225
  %v4425 = vunpack.c.l.b16 %v4226
  %v4426 = vunpack.c.h.b16 %v4226
  %v4427 = vunpack.c.l.b16 %v4227
  %v4428 = vunpack.c.h.b16 %v4227
  %v4429 = vunpack.c.l.b16 %v4228
  %v4430 = vunpack.c.h.b16 %v4228
  %v4431 = vunpack.c.l.b16 %v4229
  %v4432 = vunpack.c.h.b16 %v4229
  %v4433 = vunpack.c.l.b16 %v4230
  %v4434 = vunpack.c.h.b16 %v4230
  %v4435 = vunpack.c.l.b16 %v4231
  %v4436 = vunpack.c.h.b16 %v4231
  %v4437 = vunpack.c.l.b16 %v4232
  %v4438 = vunpack.c.h.b16 %v4232
  %v4439 = vpack.c.b16 %v4313, %v4311
  %v4440 = vpack.c.b16 %v4314, %v4312
  %v4441 = vpack.c.b16 %v4317, %v4315
  %v4442 = vpack.c.b16 %v4318, %v4316
  %v4443 = vpack.c.b16 %v4321, %v4319
  %v4444 = vpack.c.b16 %v4322, %v4320
  %v4445 = vpack.c.b16 %v4325, %v4323
  %v4446 = vpack.c.b16 %v4326, %v4324
  %v4447 = vpack.c.b16 %v4329, %v4327
  %v4448 = vpack.c.b16 %v4330, %v4328
  %v4449 = vpack.c.b16 %v4333, %v4331
  %v4450 = vpack.c.b16 %v4334, %v4332
  %v4451 = vpack.c.b16 %v4337, %v4335
  %v4452 = vpack.c.b16 %v4338, %v4336
  %v4453 = vpack.c.b16 %v4341, %v4339
  %v4454 = vpack.c.b16 %v4342, %v4340
  %v4455 = vpack.c.b16 %v4345, %v4343
  %v4456 = vpack.c.b16 %v4346, %v4344
  %v4457 = vpack.c.b16 %v4349, %v4347
  %v4458 = vpack.c.b16 %v4350, %v4348
  %v4459 = vpack.c.b16 %v4353, %v4351
  %v4460 = vpack.c.b16 %v4354, %v4352
  %v4461 = vpack.c.b16 %v4357, %v4355
  %v4462 = vpack.c.b16 %v4358, %v4356
  %v4463 = vpack.c.b16 %v4361, %v4359
  %v4464 = vpack.c.b16 %v4362, %v4360
  %v4465 = vpack.c.b16 %v4365, %v4363
  %v4466 = vpack.c.b16 %v4366, %v4364
  %v4467 = vpack.c.b16 %v4369, %v4367
  %v4468 = vpack.c.b16 %v4370, %v4368
  %v4469 = vpack.c.b16 %v4373, %v4371
  %v4470 = vpack.c.b16 %v4374, %v4372
  %v4471 = vpack.c.b16 %v4377, %v4375
  %v4472 = vpack.c.b16 %v4378, %v4376
  %v4473 = vpack.c.b16 %v4381, %v4379
  %v4474 = vpack.c.b16 %v4382, %v4380
  %v4475 = vpack.c.b16 %v4385, %v4383
  %v4476 = vpack.c.b16 %v4386, %v4384
  %v4477 = vpack.c.b16 %v4389, %v4387
  %v4478 = vpack.c.b16 %v4390, %v4388
  %v4479 = vpack.c.b16 %v4393, %v4391
  %v4480 = vpack.c.b16 %v4394, %v4392
  %v4481 = vpack.c.b16 %v4397, %v4395
  %v4482 = vpack.c.b16 %v4398, %v4396
  %v4483 = vpack.c.b16 %v4401, %v4399
  %v4484 = vpack.c.b16 %v4402, %v4400
  %v4485 = vpack.c.b16 %v4405, %v4403
  %v4486 = vpack.c.b16 %v4406, %v4404
  %v4487 = vpack.c.b16 %v4409, %v4407
  %v4488 = vpack.c.b16 %v4410, %v4408
  %v4489 = vpack.c.b16 %v4413, %v4411
  %v4490 = vpack.c.b16 %v4414, %v4412
  %v4491 = vpack.c.b16 %v4417, %v4415
  %v4492 = vpack.c.b16 %v4418, %v4416
  %v4493 = vpack.c.b16 %v4421, %v4419
  %v4494 = vpack.c.b16 %v4422, %v4420
  %v4495 = vpack.c.b16 %v4425, %v4423
  %v4496 = vpack.c.b16 %v4426, %v4424
  %v4497 = vpack.c.b16 %v4429, %v4427
  %v4498 = vpack.c.b16 %v4430, %v4428
  %v4499 = vpack.c.b16 %v4433, %v4431
  %v4500 = vpack.c.b16 %v4434, %v4432
  %v4501 = vpack.c.b16 %v4437, %v4435
  %v4502 = vpack.c.b16 %v4438, %v4436
  %4567 = vrot.lane.b32.xlu0 %v4238, 96
  %v4568 = vpop.permute.xlu0 %4567
  %4569 = vrot.lane.b32.xlu0 %v4242, 96
  %v4570 = vpop.permute.xlu0 %4569
  %4571 = vrot.lane.b32.xlu0 %v4246, 96
  %v4572 = vpop.permute.xlu0 %4571
  %vm4573 = vcmask 785408
  %v4574 = vsel %vm4573, %v4568, %v4570
  %v4575 = vsel %vm4573, %v4570, %v4572
  %4578 = vmatprep.subr.bf16.mxu0 %v4440
  %4579 = vmatpush1.bf16.msra.mxu0 %v4439
  %4580 = vmatprep.subr.bf16.mxu0 %v4442
  %4581 = vmatpush1.bf16.msra.mxu0 %v4441
  %4582 = vmatprep.subr.bf16.mxu0 %v4444
  %4583 = vmatpush1.bf16.msra.mxu0 %v4443
  %4584 = vmatprep.subr.bf16.mxu0 %v4446
  %4585 = vmatpush1.bf16.msra.mxu0 %v4445
  %4586 = vmatprep.subr.bf16.mxu0 %v4448
  %4587 = vmatpush1.bf16.msra.mxu0 %v4447
  %4588 = vmatprep.subr.bf16.mxu0 %v4450
  %4589 = vmatpush1.bf16.msra.mxu0 %v4449
  %4590 = vmatprep.subr.bf16.mxu0 %v4452
  %4591 = vmatpush1.bf16.msra.mxu0 %v4451
  %4592 = vmatprep.subr.bf16.mxu0 %v4454
  %4593 = vmatpush1.bf16.msra.mxu0 %v4453
  %4594 = vmatprep.subr.bf16.mxu0 %v4456
  %4595 = vmatpush1.bf16.msra.mxu0 %v4455
  %4596 = vmatprep.subr.bf16.mxu0 %v4458
  %4597 = vmatpush1.bf16.msra.mxu0 %v4457
  %4598 = vmatprep.subr.bf16.mxu0 %v4460
  %4599 = vmatpush1.bf16.msra.mxu0 %v4459
  %4600 = vmatprep.subr.bf16.mxu0 %v4462
  %4601 = vmatpush1.bf16.msra.mxu0 %v4461
  %4602 = vmatprep.subr.bf16.mxu0 %v4464
  %4603 = vmatpush1.bf16.msra.mxu0 %v4463
  %4604 = vmatprep.subr.bf16.mxu0 %v4466
  %4605 = vmatpush1.bf16.msra.mxu0 %v4465
  %4606 = vmatprep.subr.bf16.mxu0 %v4468
  %4607 = vmatpush1.bf16.msra.mxu0 %v4467
  %4608 = vmatprep.subr.bf16.mxu0 %v4470
  %4609 = vmatpush1.bf16.msra.mxu0 %v4469
  %4610 = vmatprep.mubr.bf16.mxu0 %v4166
  %4611 = vmatmul.mubr.bf16.gmra.mrb[0].mxu0 %v4165
  %v4612 = vpop.f32.mrb[0].mxu0
  %v4613 = vadd.f32 %v4574, %v4612
  %v4614 = vpop.f32.mrb[0].mxu0
  %v4615 = vadd.f32 %v4575, %v4614
  %v4616 = vpop.f32.mrb[0].mxu0
  %v4617 = vadd.f32 %v4574, %v4616
  %v4618 = vpop.f32.mrb[0].mxu0
  %v4619 = vadd.f32 %v4575, %v4618
  %4620 = vdwg.mxu0
  %4621 = vmatprep.subr.bf16.mxu0 %v4472
  %4622 = vmatpush1.bf16.msra.mxu0 %v4471
  %4623 = vmatprep.subr.bf16.mxu0 %v4474
  %4624 = vmatpush1.bf16.msra.mxu0 %v4473
  %4625 = vmatprep.subr.bf16.mxu0 %v4476
  %4626 = vmatpush1.bf16.msra.mxu0 %v4475
  %4627 = vmatprep.subr.bf16.mxu0 %v4478
  %4628 = vmatpush1.bf16.msra.mxu0 %v4477
  %4629 = vmatprep.subr.bf16.mxu0 %v4480
  %4630 = vmatpush1.bf16.msra.mxu0 %v4479
  %4631 = vmatprep.subr.bf16.mxu0 %v4482
  %4632 = vmatpush1.bf16.msra.mxu0 %v4481
  %4633 = vmatprep.subr.bf16.mxu0 %v4484
  %4634 = vmatpush1.bf16.msra.mxu0 %v4483
  %4635 = vmatprep.subr.bf16.mxu0 %v4486
  %4636 = vmatpush1.bf16.msra.mxu0 %v4485
  %4637 = vmatprep.subr.bf16.mxu0 %v4488
  %4638 = vmatpush1.bf16.msra.mxu0 %v4487
  %4639 = vmatprep.subr.bf16.mxu0 %v4490
  %4640 = vmatpush1.bf16.msra.mxu0 %v4489
  %4641 = vmatprep.subr.bf16.mxu0 %v4492
  %4642 = vmatpush1.bf16.msra.mxu0 %v4491
  %4643 = vmatprep.subr.bf16.mxu0 %v4494
  %4644 = vmatpush1.bf16.msra.mxu0 %v4493
  %4645 = vmatprep.subr.bf16.mxu0 %v4496
  %4646 = vmatpush1.bf16.msra.mxu0 %v4495
  %4647 = vmatprep.subr.bf16.mxu0 %v4498
  %4648 = vmatpush1.bf16.msra.mxu0 %v4497
  %4649 = vmatprep.subr.bf16.mxu0 %v4500
  %4650 = vmatpush1.bf16.msra.mxu0 %v4499
  %4651 = vmatprep.subr.bf16.mxu0 %v4502
  %4652 = vmatpush1.bf16.msra.mxu0 %v4501
  %4653 = vmatprep.mubr.bf16.mxu0 %v4168
  %4654 = vmatmul.mubr.bf16.gmra.mrb[0].mxu0 %v4167
  %v4655 = vpop.f32.mrb[0].mxu0
  %v4656 = vadd.f32 %v4613, %v4655
  %v4657 = vpop.f32.mrb[0].mxu0
  %v4658 = vadd.f32 %v4615, %v4657
  %v4659 = vpop.f32.mrb[0].mxu0
  %v4660 = vadd.f32 %v4617, %v4659
  %v4661 = vpop.f32.mrb[0].mxu0
  %v4662 = vadd.f32 %v4619, %v4661
  %4663 = vdwg.mxu0
  %v4664 = vmax.f32 %v4656, 0.0
  %v4665 = vmax.f32 %v4658, 0.0
  %v4666 = vmax.f32 %v4660, 0.0
  %v4667 = vmax.f32 %v4662, 0.0
  %4668 = vst [vmem:[%s8] sm:$0xff] %v4664
  %4669 = vst [vmem:[%s8 + $0x8] sm:$0xff] %v4665
  %4670 = vst [vmem:[%s8 + $0x10] sm:$0xff] %v4666
  %4671 = vst [vmem:[%s8 + $0x18] sm:$0xff] %v4667
  %v4672 = vld [vmem:[%s2] sm:$0xff]
  %v4673 = vld [vmem:[%s2 + $0x8] sm:$0xff]
  %v4674 = vld [vmem:[%s2 + $0x10] sm:$0xf]
  %v4675 = vld [vmem:[%s2 + $0x14] sm:$0xff]
  %v4676 = vld [vmem:[%s2 + $0x1c] sm:$0xff]
  %v4677 = vld [vmem:[%s2 + $0x24] sm:$0xf]
  %v4678 = vld [vmem:[%s2 + $0x28] sm:$0xff]
  %v4679 = vld [vmem:[%s2 + $0x30] sm:$0xff]
  %v4680 = vld [vmem:[%s2 + $0x38] sm:$0xf]
  %v4681 = vld [vmem:[%s2 + $0x3c] sm:$0xff]
  %v4682 = vld [vmem:[%s2 + $0x44] sm:$0xff]
  %v4683 = vld [vmem:[%s2 + $0x4c] sm:$0xf]
  %v4684 = vld [vmem:[%s2 + $0x50] sm:$0xff]
  %v4685 = vld [vmem:[%s2 + $0x58] sm:$0xff]
  %v4686 = vld [vmem:[%s2 + $0x60] sm:$0xf]
  %v4687 = vld [vmem:[%s2 + $0x64] sm:$0xff]
  %v4688 = vld [vmem:[%s2 + $0x6c] sm:$0xff]
  %v4689 = vld [vmem:[%s2 + $0x74] sm:$0xf]
  %v4690 = vld [vmem:[%s2 + $0x78] sm:$0xff]
  %v4691 = vld [vmem:[%s2 + $0x80] sm:$0xff]
  %v4692 = vld [vmem:[%s2 + $0x88] sm:$0xf]
  %v4693 = vld [vmem:[%s2 + $0x8c] sm:$0xff]
  %v4694 = vld [vmem:[%s2 + $0x94] sm:$0xff]
  %v4695 = vld [vmem:[%s2 + $0x9c] sm:$0xf]
  %v4696 = vld [vmem:[%s2 + $0xa0] sm:$0xff]
  %v4697 = vld [vmem:[%s2 + $0xa8] sm:$0xff]
  %v4698 = vld [vmem:[%s2 + $0xb0] sm:$0xf]
  %v4699 = vld [vmem:[%s2 + $0xb4] sm:$0xff]
  %v4700 = vld [vmem:[%s2 + $0xbc] sm:$0xff]
  %v4701 = vld [vmem:[%s2 + $0xc4] sm:$0xf]
  %v4702 = vld [vmem:[%s2 + $0xc8] sm:$0xff]
  %v4703 = vld [vmem:[%s2 + $0xd0] sm:$0xff]
  %v4704 = vld [vmem:[%s2 + $0xd8] sm:$0xf]
  %v4705 = vld [vmem:[%s2 + $0xdc] sm:$0xff]
  %v4706 = vld [vmem:[%s2 + $0xe4] sm:$0xff]
  %v4707 = vld [vmem:[%s2 + $0xec] sm:$0xf]
  %v4708 = vld [vmem:[%s2 + $0xf0] sm:$0xff]
  %v4709 = vld [vmem:[%s2 + $0xf8] sm:$0xff]
  %v4710 = vld [vmem:[%s2 + $0x100] sm:$0xf]
  %v4711 = vld [vmem:[%s2 + $0x104] sm:$0xff]
  %v4712 = vld [vmem:[%s2 + $0x10c] sm:$0xff]
  %v4713 = vld [vmem:[%s2 + $0x114] sm:$0xf]
  %v4714 = vld [vmem:[%s2 + $0x118] sm:$0xff]
  %v4715 = vld [vmem:[%s2 + $0x120] sm:$0xff]
  %v4716 = vld [vmem:[%s2 + $0x128] sm:$0xf]
  %v4717 = vld [vmem:[%s2 + $0x12c] sm:$0xff]
  %v4718 = vld [vmem:[%s2 + $0x134] sm:$0xff]
  %v4719 = vld [vmem:[%s2 + $0x13c] sm:$0xf]
  %v4768 = vunpack.c.l.b16 %v4672
  %v4769 = vunpack.c.h.b16 %v4672
  %v4770 = vunpack.c.l.b16 %v4673
  %v4771 = vunpack.c.h.b16 %v4673
  %v4772 = vunpack.c.l.b16 %v4674
  %v4773 = vunpack.c.l.b16 %v4675
  %v4774 = vunpack.c.h.b16 %v4675
  %v4775 = vunpack.c.l.b16 %v4676
  %v4776 = vunpack.c.h.b16 %v4676
  %v4777 = vunpack.c.l.b16 %v4677
  %v4778 = vunpack.c.l.b16 %v4678
  %v4779 = vunpack.c.h.b16 %v4678
  %v4780 = vunpack.c.l.b16 %v4679
  %v4781 = vunpack.c.h.b16 %v4679
  %v4782 = vunpack.c.l.b16 %v4680
  %v4783 = vunpack.c.l.b16 %v4681
  %v4784 = vunpack.c.h.b16 %v4681
  %v4785 = vunpack.c.l.b16 %v4682
  %v4786 = vunpack.c.h.b16 %v4682
  %v4787 = vunpack.c.l.b16 %v4683
  %v4788 = vunpack.c.l.b16 %v4684
  %v4789 = vunpack.c.h.b16 %v4684
  %v4790 = vunpack.c.l.b16 %v4685
  %v4791 = vunpack.c.h.b16 %v4685
  %v4792 = vunpack.c.l.b16 %v4686
  %v4793 = vunpack.c.l.b16 %v4687
  %v4794 = vunpack.c.h.b16 %v4687
  %v4795 = vunpack.c.l.b16 %v4688
  %v4796 = vunpack.c.h.b16 %v4688
  %v4797 = vunpack.c.l.b16 %v4689
  %v4798 = vunpack.c.l.b16 %v4690
  %v4799 = vunpack.c.h.b16 %v4690
  %v4800 = vunpack.c.l.b16 %v4691
  %v4801 = vunpack.c.h.b16 %v4691
  %v4802 = vunpack.c.l.b16 %v4692
  %v4803 = vunpack.c.l.b16 %v4693
  %v4804 = vunpack.c.h.b16 %v4693
  %v4805 = vunpack.c.l.b16 %v4694
  %v4806 = vunpack.c.h.b16 %v4694
  %v4807 = vunpack.c.l.b16 %v4695
  %v4808 = vunpack.c.l.b16 %v4696
  %v4809 = vunpack.c.h.b16 %v4696
  %v4810 = vunpack.c.l.b16 %v4697
  %v4811 = vunpack.c.h.b16 %v4697
  %v4812 = vunpack.c.l.b16 %v4698
  %v4813 = vunpack.c.l.b16 %v4699
  %v4814 = vunpack.c.h.b16 %v4699
  %v4815 = vunpack.c.l.b16 %v4700
  %v4816 = vunpack.c.h.b16 %v4700
  %v4817 = vunpack.c.l.b16 %v4701
  %v4818 = vunpack.c.l.b16 %v4702
  %v4819 = vunpack.c.h.b16 %v4702
  %v4820 = vunpack.c.l.b16 %v4703
  %v4821 = vunpack.c.h.b16 %v4703
  %v4822 = vunpack.c.l.b16 %v4704
  %v4823 = vunpack.c.l.b16 %v4705
  %v4824 = vunpack.c.h.b16 %v4705
  %v4825 = vunpack.c.l.b16 %v4706
  %v4826 = vunpack.c.h.b16 %v4706
  %v4827 = vunpack.c.l.b16 %v4707
  %v4828 = vunpack.c.l.b16 %v4708
  %v4829 = vunpack.c.h.b16 %v4708
  %v4830 = vunpack.c.l.b16 %v4709
  %v4831 = vunpack.c.h.b16 %v4709
  %v4832 = vunpack.c.l.b16 %v4710
  %v4833 = vunpack.c.l.b16 %v4711
  %v4834 = vunpack.c.h.b16 %v4711
  %v4835 = vunpack.c.l.b16 %v4712
  %v4836 = vunpack.c.h.b16 %v4712
  %v4837 = vunpack.c.l.b16 %v4713
  %v4838 = vunpack.c.l.b16 %v4714
  %v4839 = vunpack.c.h.b16 %v4714
  %v4840 = vunpack.c.l.b16 %v4715
  %v4841 = vunpack.c.h.b16 %v4715
  %v4842 = vunpack.c.l.b16 %v4716
  %v4843 = vunpack.c.l.b16 %v4717
  %v4844 = vunpack.c.h.b16 %v4717
  %v4845 = vunpack.c.l.b16 %v4718
  %v4846 = vunpack.c.h.b16 %v4718
  %v4847 = vunpack.c.l.b16 %v4719
  %v4848 = vpack.c.b16 %v4773, %v4768
  %v4849 = vpack.c.b16 %v4774, %v4769
  %v4850 = vpack.c.b16 %v4775, %v4770
  %v4851 = vpack.c.b16 %v4776, %v4771
  %v4852 = vpack.c.b16 %v4777, %v4772
  %v4853 = vpack.c.b16 %v4783, %v4778
  %v4854 = vpack.c.b16 %v4784, %v4779
  %v4855 = vpack.c.b16 %v4785, %v4780
  %v4856 = vpack.c.b16 %v4786, %v4781
  %v4857 = vpack.c.b16 %v4787, %v4782
  %v4858 = vpack.c.b16 %v4793, %v4788
  %v4859 = vpack.c.b16 %v4794, %v4789
  %v4860 = vpack.c.b16 %v4795, %v4790
  %v4861 = vpack.c.b16 %v4796, %v4791
  %v4862 = vpack.c.b16 %v4797, %v4792
  %v4863 = vpack.c.b16 %v4803, %v4798
  %v4864 = vpack.c.b16 %v4804, %v4799
  %v4865 = vpack.c.b16 %v4805, %v4800
  %v4866 = vpack.c.b16 %v4806, %v4801
  %v4867 = vpack.c.b16 %v4807, %v4802
  %v4868 = vpack.c.b16 %v4813, %v4808
  %v4869 = vpack.c.b16 %v4814, %v4809
  %v4870 = vpack.c.b16 %v4815, %v4810
  %v4871 = vpack.c.b16 %v4816, %v4811
  %v4872 = vpack.c.b16 %v4817, %v4812
  %v4873 = vpack.c.b16 %v4823, %v4818
  %v4874 = vpack.c.b16 %v4824, %v4819
  %v4875 = vpack.c.b16 %v4825, %v4820
  %v4876 = vpack.c.b16 %v4826, %v4821
  %v4877 = vpack.c.b16 %v4827, %v4822
  %v4878 = vpack.c.b16 %v4833, %v4828
  %v4879 = vpack.c.b16 %v4834, %v4829
  %v4880 = vpack.c.b16 %v4835, %v4830
  %v4881 = vpack.c.b16 %v4836, %v4831
  %v4882 = vpack.c.b16 %v4837, %v4832
  %v4883 = vpack.c.b16 %v4843, %v4838
  %v4884 = vpack.c.b16 %v4844, %v4839
  %v4885 = vpack.c.b16 %v4845, %v4840
  %v4886 = vpack.c.b16 %v4846, %v4841
  %v4887 = vpack.c.b16 %v4847, %v4842
  %4928 = vmatprep.subr.bf16.mxu0 %v4849
  %4929 = vmatpush1.bf16.msra.mxu0 %v4848
  %4930 = vmatprep.subr.bf16.mxu0 %v4854
  %4931 = vmatpush1.bf16.msra.mxu0 %v4853
  %4932 = vmatprep.subr.bf16.mxu0 %v4859
  %4933 = vmatpush1.bf16.msra.mxu0 %v4858
  %4934 = vmatprep.subr.bf16.mxu0 %v4864
  %4935 = vmatpush1.bf16.msra.mxu0 %v4863
  %4936 = vmatprep.subr.bf16.mxu0 %v4869
  %4937 = vmatpush1.bf16.msra.mxu0 %v4868
  %4938 = vmatprep.subr.bf16.mxu0 %v4874
  %4939 = vmatpush1.bf16.msra.mxu0 %v4873
  %4940 = vmatprep.subr.bf16.mxu0 %v4879
  %4941 = vmatpush1.bf16.msra.mxu0 %v4878
  %4942 = vmatprep.subr.bf16.mxu0 %v4884
  %4943 = vmatpush1.bf16.msra.mxu0 %v4883
  %4944 = vmatprep.subr.bf16.mxu0 0
  %4945 = vmatpush1.bf16.msra.mxu0 0
  %4946 = vmatprep.subr.bf16.mxu0 0
  %4947 = vmatpush1.bf16.msra.mxu0 0
  %4948 = vmatprep.subr.bf16.mxu0 0
  %4949 = vmatpush1.bf16.msra.mxu0 0
  %4950 = vmatprep.subr.bf16.mxu0 0
  %4951 = vmatpush1.bf16.msra.mxu0 0
  %4952 = vmatprep.subr.bf16.mxu0 0
  %4953 = vmatpush1.bf16.msra.mxu0 0
  %4954 = vmatprep.subr.bf16.mxu0 0
  %4955 = vmatpush1.bf16.msra.mxu0 0
  %4956 = vmatprep.subr.bf16.mxu0 0
  %4957 = vmatpush1.bf16.msra.mxu0 0
  %4958 = vmatprep.subr.bf16.mxu0 0
  %4959 = vmatpush1.bf16.msra.mxu0 0
  %4960 = vmatprep.mubr.bf16.mxu0 0
  %4961 = vmatmul.mubr.bf16.gmra.mrb[0].mxu0 %v3369
  %v4962 = vpop.f32.mrb[0].mxu0
  %v4963 = vadd.f32 0.0, %v4962
  %v4964 = vpop.f32.mrb[0].mxu0
  %v4965 = vadd.f32 0.0, %v4964
  %v4966 = vpop.f32.mrb[0].mxu0
  %v4967 = vadd.f32 0.0, %v4966
  %v4968 = vpop.f32.mrb[0].mxu0
  %v4969 = vadd.f32 0.0, %v4968
  %4970 = vmatprep.mubr.bf16.mxu0 0
  %4971 = vmatmul.mubr.bf16.gmra.mrb[0].mxu0 %v3370
  %v4972 = vpop.f32.mrb[0].mxu0
  %v4973 = vadd.f32 0.0, %v4972
  %v4974 = vpop.f32.mrb[0].mxu0
  %v4975 = vadd.f32 0.0, %v4974
  %v4976 = vpop.f32.mrb[0].mxu0
  %v4977 = vadd.f32 0.0, %v4976
  %v4978 = vpop.f32.mrb[0].mxu0
  %v4979 = vadd.f32 0.0, %v4978
  %4980 = vmatprep.mubr.bf16.mxu0 0
  %4981 = vmatmul.mubr.bf16.gmra.mrb[0].mxu0 %v3371
  %v4982 = vpop.f32.mrb[0].mxu0
  %v4983 = vadd.f32 0.0, %v4982
  %v4984 = vpop.f32.mrb[0].mxu0
  %v4985 = vadd.f32 0.0, %v4984
  %v4986 = vpop.f32.mrb[0].mxu0
  %v4987 = vadd.f32 0.0, %v4986
  %v4988 = vpop.f32.mrb[0].mxu0
  %v4989 = vadd.f32 0.0, %v4988
  %4990 = vmatprep.mubr.bf16.mxu0 0
  %4991 = vmatmul.mubr.bf16.gmra.mrb[0].mxu0 %v3372
  %v4992 = vpop.f32.mrb[0].mxu0
  %v4993 = vadd.f32 0.0, %v4992
  %v4994 = vpop.f32.mrb[0].mxu0
  %v4995 = vadd.f32 0.0, %v4994
  %v4996 = vpop.f32.mrb[0].mxu0
  %v4997 = vadd.f32 0.0, %v4996
  %v4998 = vpop.f32.mrb[0].mxu0
  %v4999 = vadd.f32 0.0, %v4998
  %5000 = vmatprep.mubr.bf16.mxu0 0
  %5001 = vmatmul.mubr.bf16.gmra.mrb[0].mxu0 %v3373
  %v5002 = vpop.f32.mrb[0].mxu0
  %v5003 = vadd.f32 0.0, %v5002
  %v5004 = vpop.f32.mrb[0].mxu0
  %v5005 = vadd.f32 0.0, %v5004
  %v5006 = vpop.f32.mrb[0].mxu0
  %v5007 = vadd.f32 0.0, %v5006
  %v5008 = vpop.f32.mrb[0].mxu0
  %v5009 = vadd.f32 0.0, %v5008
  %5010 = vmatprep.mubr.bf16.mxu0 0
  %5011 = vmatmul.mubr.bf16.gmra.mrb[0].mxu0 %v3374
  %v5012 = vpop.f32.mrb[0].mxu0
  %v5013 = vadd.f32 0.0, %v5012
  %v5014 = vpop.f32.mrb[0].mxu0
  %v5015 = vadd.f32 0.0, %v5014
  %v5016 = vpop.f32.mrb[0].mxu0
  %v5017 = vadd.f32 0.0, %v5016
  %v5018 = vpop.f32.mrb[0].mxu0
  %v5019 = vadd.f32 0.0, %v5018
  %5020 = vmatprep.mubr.bf16.mxu0 0
  %5021 = vmatmul.mubr.bf16.gmra.mrb[0].mxu0 %v3375
  %v5022 = vpop.f32.mrb[0].mxu0
  %v5023 = vadd.f32 0.0, %v5022
  %v5024 = vpop.f32.mrb[0].mxu0
  %v5025 = vadd.f32 0.0, %v5024
  %v5026 = vpop.f32.mrb[0].mxu0
  %v5027 = vadd.f32 0.0, %v5026
  %v5028 = vpop.f32.mrb[0].mxu0
  %v5029 = vadd.f32 0.0, %v5028
  %5030 = vmatprep.mubr.bf16.mxu0 0
  %5031 = vmatmul.mubr.bf16.gmra.mrb[0].mxu0 %v3376
  %v5032 = vpop.f32.mrb[0].mxu0
  %v5033 = vadd.f32 0.0, %v5032
  %v5034 = vpop.f32.mrb[0].mxu0
  %v5035 = vadd.f32 0.0, %v5034
  %v5036 = vpop.f32.mrb[0].mxu0
  %v5037 = vadd.f32 0.0, %v5036
  %v5038 = vpop.f32.mrb[0].mxu0
  %v5039 = vadd.f32 0.0, %v5038
  %5040 = vdwg.mxu0
  %5041 = vmatprep.subr.bf16.mxu0 %v4851
  %5042 = vmatpush1.bf16.msra.mxu0 %v4850
  %5043 = vmatprep.subr.bf16.mxu0 %v4856
  %5044 = vmatpush1.bf16.msra.mxu0 %v4855
  %5045 = vmatprep.subr.bf16.mxu0 %v4861
  %5046 = vmatpush1.bf16.msra.mxu0 %v4860
  %5047 = vmatprep.subr.bf16.mxu0 %v4866
  %5048 = vmatpush1.bf16.msra.mxu0 %v4865
  %5049 = vmatprep.subr.bf16.mxu0 %v4871
  %5050 = vmatpush1.bf16.msra.mxu0 %v4870
  %5051 = vmatprep.subr.bf16.mxu0 %v4876
  %5052 = vmatpush1.bf16.msra.mxu0 %v4875
  %5053 = vmatprep.subr.bf16.mxu0 %v4881
  %5054 = vmatpush1.bf16.msra.mxu0 %v4880
  %5055 = vmatprep.subr.bf16.mxu0 %v4886
  %5056 = vmatpush1.bf16.msra.mxu0 %v4885
  %5057 = vmatprep.subr.bf16.mxu0 0
  %5058 = vmatpush1.bf16.msra.mxu0 0
  %5059 = vmatprep.subr.bf16.mxu0 0
  %5060 = vmatpush1.bf16.msra.mxu0 0
  %5061 = vmatprep.subr.bf16.mxu0 0
  %5062 = vmatpush1.bf16.msra.mxu0 0
  %5063 = vmatprep.subr.bf16.mxu0 0
  %5064 = vmatpush1.bf16.msra.mxu0 0
  %5065 = vmatprep.subr.bf16.mxu0 0
  %5066 = vmatpush1.bf16.msra.mxu0 0
  %5067 = vmatprep.subr.bf16.mxu0 0
  %5068 = vmatpush1.bf16.msra.mxu0 0
  %5069 = vmatprep.subr.bf16.mxu0 0
  %5070 = vmatpush1.bf16.msra.mxu0 0
  %5071 = vmatprep.subr.bf16.mxu0 0
  %5072 = vmatpush1.bf16.msra.mxu0 0
  %5073 = vmatprep.mubr.bf16.mxu0 0
  %5074 = vmatmul.mubr.bf16.gmra.mrb[0].mxu0 %v3369
  %v5075 = vpop.f32.mrb[0].mxu0
  %v5076 = vadd.f32 0.0, %v5075
  %v5077 = vpop.f32.mrb[0].mxu0
  %v5078 = vadd.f32 0.0, %v5077
  %v5079 = vpop.f32.mrb[0].mxu0
  %v5080 = vadd.f32 0.0, %v5079
  %v5081 = vpop.f32.mrb[0].mxu0
  %v5082 = vadd.f32 0.0, %v5081
  %5083 = vmatprep.mubr.bf16.mxu0 0
  %5084 = vmatmul.mubr.bf16.gmra.mrb[0].mxu0 %v3370
  %v5085 = vpop.f32.mrb[0].mxu0
  %v5086 = vadd.f32 0.0, %v5085
  %v5087 = vpop.f32.mrb[0].mxu0
  %v5088 = vadd.f32 0.0, %v5087
  %v5089 = vpop.f32.mrb[0].mxu0
  %v5090 = vadd.f32 0.0, %v5089
  %v5091 = vpop.f32.mrb[0].mxu0
  %v5092 = vadd.f32 0.0, %v5091
  %5093 = vmatprep.mubr.bf16.mxu0 0
  %5094 = vmatmul.mubr.bf16.gmra.mrb[0].mxu0 %v3371
  %v5095 = vpop.f32.mrb[0].mxu0
  %v5096 = vadd.f32 0.0, %v5095
  %v5097 = vpop.f32.mrb[0].mxu0
  %v5098 = vadd.f32 0.0, %v5097
  %v5099 = vpop.f32.mrb[0].mxu0
  %v5100 = vadd.f32 0.0, %v5099
  %v5101 = vpop.f32.mrb[0].mxu0
  %v5102 = vadd.f32 0.0, %v5101
  %5103 = vmatprep.mubr.bf16.mxu0 0
  %5104 = vmatmul.mubr.bf16.gmra.mrb[0].mxu0 %v3372
  %v5105 = vpop.f32.mrb[0].mxu0
  %v5106 = vadd.f32 0.0, %v5105
  %v5107 = vpop.f32.mrb[0].mxu0
  %v5108 = vadd.f32 0.0, %v5107
  %v5109 = vpop.f32.mrb[0].mxu0
  %v5110 = vadd.f32 0.0, %v5109
  %v5111 = vpop.f32.mrb[0].mxu0
  %v5112 = vadd.f32 0.0, %v5111
  %5113 = vmatprep.mubr.bf16.mxu0 0
  %5114 = vmatmul.mubr.bf16.gmra.mrb[0].mxu0 %v3373
  %v5115 = vpop.f32.mrb[0].mxu0
  %v5116 = vadd.f32 0.0, %v5115
  %v5117 = vpop.f32.mrb[0].mxu0
  %v5118 = vadd.f32 0.0, %v5117
  %v5119 = vpop.f32.mrb[0].mxu0
  %v5120 = vadd.f32 0.0, %v5119
  %v5121 = vpop.f32.mrb[0].mxu0
  %v5122 = vadd.f32 0.0, %v5121
  %5123 = vmatprep.mubr.bf16.mxu0 0
  %5124 = vmatmul.mubr.bf16.gmra.mrb[0].mxu0 %v3374
  %v5125 = vpop.f32.mrb[0].mxu0
  %v5126 = vadd.f32 0.0, %v5125
  %v5127 = vpop.f32.mrb[0].mxu0
  %v5128 = vadd.f32 0.0, %v5127
  %v5129 = vpop.f32.mrb[0].mxu0
  %v5130 = vadd.f32 0.0, %v5129
  %v5131 = vpop.f32.mrb[0].mxu0
  %v5132 = vadd.f32 0.0, %v5131
  %5133 = vmatprep.mubr.bf16.mxu0 0
  %5134 = vmatmul.mubr.bf16.gmra.mrb[0].mxu0 %v3375
  %v5135 = vpop.f32.mrb[0].mxu0
  %v5136 = vadd.f32 0.0, %v5135
  %v5137 = vpop.f32.mrb[0].mxu0
  %v5138 = vadd.f32 0.0, %v5137
  %v5139 = vpop.f32.mrb[0].mxu0
  %v5140 = vadd.f32 0.0, %v5139
  %v5141 = vpop.f32.mrb[0].mxu0
  %v5142 = vadd.f32 0.0, %v5141
  %5143 = vmatprep.mubr.bf16.mxu0 0
  %5144 = vmatmul.mubr.bf16.gmra.mrb[0].mxu0 %v3376
  %v5145 = vpop.f32.mrb[0].mxu0
  %v5146 = vadd.f32 0.0, %v5145
  %v5147 = vpop.f32.mrb[0].mxu0
  %v5148 = vadd.f32 0.0, %v5147
  %v5149 = vpop.f32.mrb[0].mxu0
  %v5150 = vadd.f32 0.0, %v5149
  %v5151 = vpop.f32.mrb[0].mxu0
  %v5152 = vadd.f32 0.0, %v5151
  %5153 = vdwg.mxu0
  %5154 = vmatprep.subr.bf16.mxu0 0
  %5155 = vmatpush1.bf16.msra.mxu0 %v4852
  %5156 = vmatprep.subr.bf16.mxu0 0
  %5157 = vmatpush1.bf16.msra.mxu0 %v4857
  %5158 = vmatprep.subr.bf16.mxu0 0
  %5159 = vmatpush1.bf16.msra.mxu0 %v4862
  %5160 = vmatprep.subr.bf16.mxu0 0
  %5161 = vmatpush1.bf16.msra.mxu0 %v4867
  %5162 = vmatprep.subr.bf16.mxu0 0
  %5163 = vmatpush1.bf16.msra.mxu0 %v4872
  %5164 = vmatprep.subr.bf16.mxu0 0
  %5165 = vmatpush1.bf16.msra.mxu0 %v4877
  %5166 = vmatprep.subr.bf16.mxu0 0
  %5167 = vmatpush1.bf16.msra.mxu0 %v4882
  %5168 = vmatprep.subr.bf16.mxu0 0
  %5169 = vmatpush1.bf16.msra.mxu0 %v4887
  %5170 = vmatprep.subr.bf16.mxu0 0
  %5171 = vmatpush1.bf16.msra.mxu0 0
  %5172 = vmatprep.subr.bf16.mxu0 0
  %5173 = vmatpush1.bf16.msra.mxu0 0
  %5174 = vmatprep.subr.bf16.mxu0 0
  %5175 = vmatpush1.bf16.msra.mxu0 0
  %5176 = vmatprep.subr.bf16.mxu0 0
  %5177 = vmatpush1.bf16.msra.mxu0 0
  %5178 = vmatprep.subr.bf16.mxu0 0
  %5179 = vmatpush1.bf16.msra.mxu0 0
  %5180 = vmatprep.subr.bf16.mxu0 0
  %5181 = vmatpush1.bf16.msra.mxu0 0
  %5182 = vmatprep.subr.bf16.mxu0 0
  %5183 = vmatpush1.bf16.msra.mxu0 0
  %5184 = vmatprep.subr.bf16.mxu0 0
  %5185 = vmatpush1.bf16.msra.mxu0 0
  %5186 = vmatprep.mubr.bf16.mxu0 0
  %5187 = vmatmul.mubr.bf16.gmra.mrb[0].mxu0 %v3369
  %v5188 = vpop.f32.mrb[0].mxu0
  %v5189 = vadd.f32 0.0, %v5188
  %v5190 = vpop.f32.mrb[0].mxu0
  %v5191 = vpop.f32.mrb[0].mxu0
  %v5192 = vadd.f32 0.0, %v5191
  %v5193 = vpop.f32.mrb[0].mxu0
  %5194 = vmatprep.mubr.bf16.mxu0 0
  %5195 = vmatmul.mubr.bf16.gmra.mrb[0].mxu0 %v3370
  %v5196 = vpop.f32.mrb[0].mxu0
  %v5197 = vadd.f32 0.0, %v5196
  %v5198 = vpop.f32.mrb[0].mxu0
  %v5199 = vpop.f32.mrb[0].mxu0
  %v5200 = vadd.f32 0.0, %v5199
  %v5201 = vpop.f32.mrb[0].mxu0
  %5202 = vmatprep.mubr.bf16.mxu0 0
  %5203 = vmatmul.mubr.bf16.gmra.mrb[0].mxu0 %v3371
  %v5204 = vpop.f32.mrb[0].mxu0
  %v5205 = vadd.f32 0.0, %v5204
  %v5206 = vpop.f32.mrb[0].mxu0
  %v5207 = vpop.f32.mrb[0].mxu0
  %v5208 = vadd.f32 0.0, %v5207
  %v5209 = vpop.f32.mrb[0].mxu0
  %5210 = vmatprep.mubr.bf16.mxu0 0
  %5211 = vmatmul.mubr.bf16.gmra.mrb[0].mxu0 %v3372
  %v5212 = vpop.f32.mrb[0].mxu0
  %v5213 = vadd.f32 0.0, %v5212
  %v5214 = vpop.f32.mrb[0].mxu0
  %v5215 = vpop.f32.mrb[0].mxu0
  %v5216 = vadd.f32 0.0, %v5215
  %v5217 = vpop.f32.mrb[0].mxu0
  %5218 = vmatprep.mubr.bf16.mxu0 0
  %5219 = vmatmul.mubr.bf16.gmra.mrb[0].mxu0 %v3373
  %v5220 = vpop.f32.mrb[0].mxu0
  %v5221 = vadd.f32 0.0, %v5220
  %v5222 = vpop.f32.mrb[0].mxu0
  %v5223 = vpop.f32.mrb[0].mxu0
  %v5224 = vadd.f32 0.0, %v5223
  %v5225 = vpop.f32.mrb[0].mxu0
  %5226 = vmatprep.mubr.bf16.mxu0 0
  %5227 = vmatmul.mubr.bf16.gmra.mrb[0].mxu0 %v3374
  %v5228 = vpop.f32.mrb[0].mxu0
  %v5229 = vadd.f32 0.0, %v5228
  %v5230 = vpop.f32.mrb[0].mxu0
  %v5231 = vpop.f32.mrb[0].mxu0
  %v5232 = vadd.f32 0.0, %v5231
  %v5233 = vpop.f32.mrb[0].mxu0
  %5234 = vmatprep.mubr.bf16.mxu0 0
  %5235 = vmatmul.mubr.bf16.gmra.mrb[0].mxu0 %v3375
  %v5236 = vpop.f32.mrb[0].mxu0
  %v5237 = vadd.f32 0.0, %v5236
  %v5238 = vpop.f32.mrb[0].mxu0
  %v5239 = vpop.f32.mrb[0].mxu0
  %v5240 = vadd.f32 0.0, %v5239
  %v5241 = vpop.f32.mrb[0].mxu0
  %5242 = vmatprep.mubr.bf16.mxu0 0
  %5243 = vmatmul.mubr.bf16.gmra.mrb[0].mxu0 %v3376
  %v5244 = vpop.f32.mrb[0].mxu0
  %v5245 = vadd.f32 0.0, %v5244
  %v5246 = vpop.f32.mrb[0].mxu0
  %v5247 = vpop.f32.mrb[0].mxu0
  %v5248 = vadd.f32 0.0, %v5247
  %v5249 = vpop.f32.mrb[0].mxu0
  %5250 = vdwg.mxu0
  %v5251 = vld [vmem:[%s4 + $0x5] sm:$0x1f]
  %v5253 = vlaneseq
  %v5254 = vshrl.u32 %v5253, 7
  %v5255 = vsub.s32 0, %v5254
  %v5256 = vrot.slane %v5251, %v5255
  %v5257 = vlaneseq
  %v5258 = vshrl.u32 %v5257, 7
  %v5259 = vsub.s32 1, %v5258
  %v5260 = vrot.slane %v5251, %v5259
  %v5261 = vlaneseq
  %v5262 = vshrl.u32 %v5261, 7
  %v5263 = vsub.s32 2, %v5262
  %v5264 = vrot.slane %v5251, %v5263
  %v5265 = vlaneseq
  %v5266 = vshrl.u32 %v5265, 7
  %v5267 = vsub.s32 3, %v5266
  %v5268 = vrot.slane %v5251, %v5267
  %v5269 = vlaneseq
  %v5270 = vshrl.u32 %v5269, 7
  %v5271 = vsub.s32 4, %v5270
  %v5272 = vrot.slane %v5251, %v5271
  %5273 = vrot.lane.b32.xlu0 %v5256, 64
  %v5274 = vpop.permute.xlu0 %5273
  %5275 = vrot.lane.b32.xlu0 %v5260, 64
  %v5276 = vpop.permute.xlu0 %5275
  %5277 = vrot.lane.b32.xlu0 %v5264, 64
  %v5278 = vpop.permute.xlu0 %5277
  %5279 = vrot.lane.b32.xlu0 %v5268, 64
  %v5280 = vpop.permute.xlu0 %5279
  %5281 = vrot.lane.b32.xlu0 %v5272, 64
  %v5282 = vpop.permute.xlu0 %5281
  %v5283 = vsel %vm4139, %v5274, %v5276
  %v5284 = vsel %vm4139, %v5276, %v5278
  %v5285 = vsel %vm4139, %v5278, %v5280
  %v5286 = vsel %vm4139, %v5280, %v5282
  %v5291 = vadd.f32 %v4963, %v5283
  %v5292 = vadd.f32 %v4965, %v5284
  %v5293 = vadd.f32 %v5076, %v5285
  %v5294 = vadd.f32 %v5078, %v5286
  %v5295 = vadd.f32 %v4967, %v5283
  %v5296 = vadd.f32 %v4969, %v5284
  %v5297 = vadd.f32 %v5080, %v5285
  %v5298 = vadd.f32 %v5082, %v5286
  %v5299 = vadd.f32 %v4973, %v5283
  %v5300 = vadd.f32 %v4975, %v5284
  %v5301 = vadd.f32 %v5086, %v5285
  %v5302 = vadd.f32 %v5088, %v5286
  %v5303 = vadd.f32 %v4977, %v5283
  %v5304 = vadd.f32 %v4979, %v5284
  %v5305 = vadd.f32 %v5090, %v5285
  %v5306 = vadd.f32 %v5092, %v5286
  %v5307 = vadd.f32 %v4983, %v5283
  %v5308 = vadd.f32 %v4985, %v5284
  %v5309 = vadd.f32 %v5096, %v5285
  %v5310 = vadd.f32 %v5098, %v5286
  %v5311 = vadd.f32 %v4987, %v5283
  %v5312 = vadd.f32 %v4989, %v5284
  %v5313 = vadd.f32 %v5100, %v5285
  %v5314 = vadd.f32 %v5102, %v5286
  %v5315 = vadd.f32 %v4993, %v5283
  %v5316 = vadd.f32 %v4995, %v5284
  %v5317 = vadd.f32 %v5106, %v5285
  %v5318 = vadd.f32 %v5108, %v5286
  %v5319 = vadd.f32 %v4997, %v5283
  %v5320 = vadd.f32 %v4999, %v5284
  %v5321 = vadd.f32 %v5110, %v5285
  %v5322 = vadd.f32 %v5112, %v5286
  %v5323 = vadd.f32 %v5003, %v5283
  %v5324 = vadd.f32 %v5005, %v5284
  %v5325 = vadd.f32 %v5116, %v5285
  %v5326 = vadd.f32 %v5118, %v5286
  %v5327 = vadd.f32 %v5007, %v5283
  %v5328 = vadd.f32 %v5009, %v5284
  %v5329 = vadd.f32 %v5120, %v5285
  %v5330 = vadd.f32 %v5122, %v5286
  %v5331 = vadd.f32 %v5013, %v5283
  %v5332 = vadd.f32 %v5015, %v5284
  %v5333 = vadd.f32 %v5126, %v5285
  %v5334 = vadd.f32 %v5128, %v5286
  %v5335 = vadd.f32 %v5017, %v5283
  %v5336 = vadd.f32 %v5019, %v5284
  %v5337 = vadd.f32 %v5130, %v5285
  %v5338 = vadd.f32 %v5132, %v5286
  %v5339 = vadd.f32 %v5023, %v5283
  %v5340 = vadd.f32 %v5025, %v5284
  %v5341 = vadd.f32 %v5136, %v5285
  %v5342 = vadd.f32 %v5138, %v5286
  %v5343 = vadd.f32 %v5027, %v5283
  %v5344 = vadd.f32 %v5029, %v5284
  %v5345 = vadd.f32 %v5140, %v5285
  %v5346 = vadd.f32 %v5142, %v5286
  %v5347 = vadd.f32 %v5033, %v5283
  %v5348 = vadd.f32 %v5035, %v5284
  %v5349 = vadd.f32 %v5146, %v5285
  %v5350 = vadd.f32 %v5148, %v5286
  %v5351 = vadd.f32 %v5037, %v5283
  %v5352 = vadd.f32 %v5039, %v5284
  %v5353 = vadd.f32 %v5150, %v5285
  %v5354 = vadd.f32 %v5152, %v5286
  %v5355 = vmax.f32 %v5291, 0.0
  %v5356 = vmax.f32 %v5292, 0.0
  %v5357 = vmax.f32 %v5293, 0.0
  %v5358 = vmax.f32 %v5294, 0.0
  %v5359 = vmax.f32 %v5295, 0.0
  %v5360 = vmax.f32 %v5296, 0.0
  %v5361 = vmax.f32 %v5297, 0.0
  %v5362 = vmax.f32 %v5298, 0.0
  %v5363 = vmax.f32 %v5299, 0.0
  %v5364 = vmax.f32 %v5300, 0.0
  %v5365 = vmax.f32 %v5301, 0.0
  %v5366 = vmax.f32 %v5302, 0.0
  %v5367 = vmax.f32 %v5303, 0.0
  %v5368 = vmax.f32 %v5304, 0.0
  %v5369 = vmax.f32 %v5305, 0.0
  %v5370 = vmax.f32 %v5306, 0.0
  %v5371 = vmax.f32 %v5307, 0.0
  %v5372 = vmax.f32 %v5308, 0.0
  %v5373 = vmax.f32 %v5309, 0.0
  %v5374 = vmax.f32 %v5310, 0.0
  %v5375 = vmax.f32 %v5311, 0.0
  %v5376 = vmax.f32 %v5312, 0.0
  %v5377 = vmax.f32 %v5313, 0.0
  %v5378 = vmax.f32 %v5314, 0.0
  %v5379 = vmax.f32 %v5315, 0.0
  %v5380 = vmax.f32 %v5316, 0.0
  %v5381 = vmax.f32 %v5317, 0.0
  %v5382 = vmax.f32 %v5318, 0.0
  %v5383 = vmax.f32 %v5319, 0.0
  %v5384 = vmax.f32 %v5320, 0.0
  %v5385 = vmax.f32 %v5321, 0.0
  %v5386 = vmax.f32 %v5322, 0.0
  %v5387 = vmax.f32 %v5323, 0.0
  %v5388 = vmax.f32 %v5324, 0.0
  %v5389 = vmax.f32 %v5325, 0.0
  %v5390 = vmax.f32 %v5326, 0.0
  %v5391 = vmax.f32 %v5327, 0.0
  %v5392 = vmax.f32 %v5328, 0.0
  %v5393 = vmax.f32 %v5329, 0.0
  %v5394 = vmax.f32 %v5330, 0.0
  %v5395 = vmax.f32 %v5331, 0.0
  %v5396 = vmax.f32 %v5332, 0.0
  %v5397 = vmax.f32 %v5333, 0.0
  %v5398 = vmax.f32 %v5334, 0.0
  %v5399 = vmax.f32 %v5335, 0.0
  %v5400 = vmax.f32 %v5336, 0.0
  %v5401 = vmax.f32 %v5337, 0.0
  %v5402 = vmax.f32 %v5338, 0.0
  %v5403 = vmax.f32 %v5339, 0.0
  %v5404 = vmax.f32 %v5340, 0.0
  %v5405 = vmax.f32 %v5341, 0.0
  %v5406 = vmax.f32 %v5342, 0.0
  %v5407 = vmax.f32 %v5343, 0.0
  %v5408 = vmax.f32 %v5344, 0.0
  %v5409 = vmax.f32 %v5345, 0.0
  %v5410 = vmax.f32 %v5346, 0.0
  %v5411 = vmax.f32 %v5347, 0.0
  %v5412 = vmax.f32 %v5348, 0.0
  %v5413 = vmax.f32 %v5349, 0.0
  %v5414 = vmax.f32 %v5350, 0.0
  %v5415 = vmax.f32 %v5351, 0.0
  %v5416 = vmax.f32 %v5352, 0.0
  %v5417 = vmax.f32 %v5353, 0.0
  %v5418 = vmax.f32 %v5354, 0.0
  %v5419 = vpack.c.bf16 %v5359, %v5355
  %v5420 = vpack.c.bf16 %v5360, %v5356
  %v5421 = vpack.c.bf16 %v5361, %v5357
  %v5422 = vpack.c.bf16 %v5362, %v5358
  %v5423 = vpack.c.bf16 %v5367, %v5363
  %v5424 = vpack.c.bf16 %v5368, %v5364
  %v5425 = vpack.c.bf16 %v5369, %v5365
  %v5426 = vpack.c.bf16 %v5370, %v5366
  %v5427 = vpack.c.bf16 %v5375, %v5371
  %v5428 = vpack.c.bf16 %v5376, %v5372
  %v5429 = vpack.c.bf16 %v5377, %v5373
  %v5430 = vpack.c.bf16 %v5378, %v5374
  %v5431 = vpack.c.bf16 %v5383, %v5379
  %v5432 = vpack.c.bf16 %v5384, %v5380
  %v5433 = vpack.c.bf16 %v5385, %v5381
  %v5434 = vpack.c.bf16 %v5386, %v5382
  %v5435 = vpack.c.bf16 %v5391, %v5387
  %v5436 = vpack.c.bf16 %v5392, %v5388
  %v5437 = vpack.c.bf16 %v5393, %v5389
  %v5438 = vpack.c.bf16 %v5394, %v5390
  %v5439 = vpack.c.bf16 %v5399, %v5395
  %v5440 = vpack.c.bf16 %v5400, %v5396
  %v5441 = vpack.c.bf16 %v5401, %v5397
  %v5442 = vpack.c.bf16 %v5402, %v5398
  %v5443 = vpack.c.bf16 %v5407, %v5403
  %v5444 = vpack.c.bf16 %v5408, %v5404
  %v5445 = vpack.c.bf16 %v5409, %v5405
  %v5446 = vpack.c.bf16 %v5410, %v5406
  %v5447 = vpack.c.bf16 %v5415, %v5411
  %v5448 = vpack.c.bf16 %v5416, %v5412
  %v5449 = vpack.c.bf16 %v5417, %v5413
  %v5450 = vpack.c.bf16 %v5418, %v5414
  %v5451 = vld [vmem:[%s4 + $0x9] sm:$0x1]
  %v5453 = vlaneseq
  %v5454 = vshrl.u32 %v5453, 7
  %v5455 = vsub.s32 0, %v5454
  %v5456 = vrot.slane %v5451, %v5455
  %5457 = vrot.lane.b32.xlu0 %v5456, 64
  %v5458 = vpop.permute.xlu0 %5457
  %v5460 = vadd.f32 %v5189, %v5458
  %v5461 = vadd.f32 %v5192, %v5458
  %v5462 = vadd.f32 %v5197, %v5458
  %v5463 = vadd.f32 %v5200, %v5458
  %v5464 = vadd.f32 %v5205, %v5458
  %v5465 = vadd.f32 %v5208, %v5458
  %v5466 = vadd.f32 %v5213, %v5458
  %v5467 = vadd.f32 %v5216, %v5458
  %v5468 = vadd.f32 %v5221, %v5458
  %v5469 = vadd.f32 %v5224, %v5458
  %v5470 = vadd.f32 %v5229, %v5458
  %v5471 = vadd.f32 %v5232, %v5458
  %v5472 = vadd.f32 %v5237, %v5458
  %v5473 = vadd.f32 %v5240, %v5458
  %v5474 = vadd.f32 %v5245, %v5458
  %v5475 = vadd.f32 %v5248, %v5458
  %v5476 = vld [vmem:[%s3] sm:$0xff]
  %v5477 = vld [vmem:[%s3 + $0x10] sm:$0xff]
  %v5478 = vld [vmem:[%s3 + $0x20] sm:$0xff]
  %v5479 = vld [vmem:[%s3 + $0x30] sm:$0xff]
  %v5480 = vld [vmem:[%s3 + $0x40] sm:$0xff]
  %v5481 = vld [vmem:[%s3 + $0x50] sm:$0xff]
  %v5482 = vld [vmem:[%s3 + $0x60] sm:$0xff]
  %v5483 = vld [vmem:[%s3 + $0x70] sm:$0xff]
  %v5484 = vld [vmem:[%s3 + $0x80] sm:$0xff]
  %v5485 = vld [vmem:[%s3 + $0x90] sm:$0xff]
  %v5486 = vld [vmem:[%s3 + $0xa0] sm:$0xff]
  %v5487 = vld [vmem:[%s3 + $0xb0] sm:$0xff]
  %v5488 = vld [vmem:[%s3 + $0xc0] sm:$0xff]
  %v5489 = vld [vmem:[%s3 + $0xd0] sm:$0xff]
  %v5490 = vld [vmem:[%s3 + $0xe0] sm:$0xff]
  %v5491 = vld [vmem:[%s3 + $0xf0] sm:$0xff]
  %v5492 = vld [vmem:[%s3 + $0x100] sm:$0xff]
  %v5493 = vld [vmem:[%s3 + $0x110] sm:$0xff]
  %v5494 = vld [vmem:[%s3 + $0x120] sm:$0xff]
  %v5495 = vld [vmem:[%s3 + $0x130] sm:$0xff]
  %v5496 = vld [vmem:[%s3 + $0x140] sm:$0xff]
  %v5497 = vld [vmem:[%s3 + $0x150] sm:$0xff]
  %v5498 = vld [vmem:[%s3 + $0x160] sm:$0xff]
  %v5499 = vld [vmem:[%s3 + $0x170] sm:$0xff]
  %v5500 = vld [vmem:[%s3 + $0x180] sm:$0xff]
  %v5501 = vld [vmem:[%s3 + $0x190] sm:$0xff]
  %v5502 = vld [vmem:[%s3 + $0x1a0] sm:$0xff]
  %v5503 = vld [vmem:[%s3 + $0x1b0] sm:$0xff]
  %v5504 = vld [vmem:[%s3 + $0x1c0] sm:$0xff]
  %v5505 = vld [vmem:[%s3 + $0x1d0] sm:$0xff]
  %v5506 = vld [vmem:[%s3 + $0x1e0] sm:$0xff]
  %v5507 = vld [vmem:[%s3 + $0x1f0] sm:$0xff]
  %v5508 = vld [vmem:[%s3 + $0x200] sm:$0xff]
  %v5509 = vld [vmem:[%s3 + $0x210] sm:$0xff]
  %v5510 = vld [vmem:[%s3 + $0x220] sm:$0xff]
  %v5511 = vld [vmem:[%s3 + $0x230] sm:$0xff]
  %v5512 = vld [vmem:[%s3 + $0x240] sm:$0xff]
  %v5513 = vld [vmem:[%s3 + $0x250] sm:$0xff]
  %v5514 = vld [vmem:[%s3 + $0x260] sm:$0xff]
  %v5515 = vld [vmem:[%s3 + $0x270] sm:$0xff]
  %v5516 = vld [vmem:[%s3 + $0x280] sm:$0xff]
  %v5517 = vld [vmem:[%s3 + $0x290] sm:$0xff]
  %v5518 = vld [vmem:[%s3 + $0x2a0] sm:$0xff]
  %v5519 = vld [vmem:[%s3 + $0x2b0] sm:$0xff]
  %v5520 = vld [vmem:[%s3 + $0x2c0] sm:$0xff]
  %v5521 = vld [vmem:[%s3 + $0x2d0] sm:$0xff]
  %v5522 = vld [vmem:[%s3 + $0x2e0] sm:$0xff]
  %v5523 = vld [vmem:[%s3 + $0x2f0] sm:$0xff]
  %v5524 = vld [vmem:[%s3 + $0x300] sm:$0xff]
  %v5525 = vld [vmem:[%s3 + $0x310] sm:$0xff]
  %v5526 = vld [vmem:[%s3 + $0x320] sm:$0xff]
  %v5527 = vld [vmem:[%s3 + $0x330] sm:$0xff]
  %v5528 = vld [vmem:[%s3 + $0x340] sm:$0xff]
  %v5529 = vld [vmem:[%s3 + $0x350] sm:$0xff]
  %v5530 = vld [vmem:[%s3 + $0x360] sm:$0xff]
  %v5531 = vld [vmem:[%s3 + $0x370] sm:$0xff]
  %v5532 = vld [vmem:[%s3 + $0x380] sm:$0xff]
  %v5533 = vld [vmem:[%s3 + $0x390] sm:$0xff]
  %v5534 = vld [vmem:[%s3 + $0x3a0] sm:$0xff]
  %v5535 = vld [vmem:[%s3 + $0x3b0] sm:$0xff]
  %v5536 = vld [vmem:[%s3 + $0x3c0] sm:$0xff]
  %v5537 = vld [vmem:[%s3 + $0x3d0] sm:$0xff]
  %v5538 = vld [vmem:[%s3 + $0x3e0] sm:$0xff]
  %v5539 = vld [vmem:[%s3 + $0x3f0] sm:$0xff]
  %v5540 = vld [vmem:[%s4 + $0xa] sm:$0x3]
  %v5542 = vlaneseq
  %v5543 = vshrl.u32 %v5542, 7
  %v5544 = vsub.s32 0, %v5543
  %v5545 = vrot.slane %v5540, %v5544
  %v5546 = vlaneseq
  %v5547 = vshrl.u32 %v5546, 7
  %v5548 = vsub.s32 1, %v5547
  %v5549 = vrot.slane %v5540, %v5548
  %v5616 = vunpack.c.l.b16 %v5476
  %v5617 = vunpack.c.h.b16 %v5476
  %v5618 = vunpack.c.l.b16 %v5477
  %v5619 = vunpack.c.h.b16 %v5477
  %v5620 = vunpack.c.l.b16 %v5478
  %v5621 = vunpack.c.h.b16 %v5478
  %v5622 = vunpack.c.l.b16 %v5479
  %v5623 = vunpack.c.h.b16 %v5479
  %v5624 = vunpack.c.l.b16 %v5480
  %v5625 = vunpack.c.h.b16 %v5480
  %v5626 = vunpack.c.l.b16 %v5481
  %v5627 = vunpack.c.h.b16 %v5481
  %v5628 = vunpack.c.l.b16 %v5482
  %v5629 = vunpack.c.h.b16 %v5482
  %v5630 = vunpack.c.l.b16 %v5483
  %v5631 = vunpack.c.h.b16 %v5483
  %v5632 = vunpack.c.l.b16 %v5484
  %v5633 = vunpack.c.h.b16 %v5484
  %v5634 = vunpack.c.l.b16 %v5485
  %v5635 = vunpack.c.h.b16 %v5485
  %v5636 = vunpack.c.l.b16 %v5486
  %v5637 = vunpack.c.h.b16 %v5486
  %v5638 = vunpack.c.l.b16 %v5487
  %v5639 = vunpack.c.h.b16 %v5487
  %v5640 = vunpack.c.l.b16 %v5488
  %v5641 = vunpack.c.h.b16 %v5488
  %v5642 = vunpack.c.l.b16 %v5489
  %v5643 = vunpack.c.h.b16 %v5489
  %v5644 = vunpack.c.l.b16 %v5490
  %v5645 = vunpack.c.h.b16 %v5490
  %v5646 = vunpack.c.l.b16 %v5491
  %v5647 = vunpack.c.h.b16 %v5491
  %v5648 = vunpack.c.l.b16 %v5492
  %v5649 = vunpack.c.h.b16 %v5492
  %v5650 = vunpack.c.l.b16 %v5493
  %v5651 = vunpack.c.h.b16 %v5493
  %v5652 = vunpack.c.l.b16 %v5494
  %v5653 = vunpack.c.h.b16 %v5494
  %v5654 = vunpack.c.l.b16 %v5495
  %v5655 = vunpack.c.h.b16 %v5495
  %v5656 = vunpack.c.l.b16 %v5496
  %v5657 = vunpack.c.h.b16 %v5496
  %v5658 = vunpack.c.l.b16 %v5497
  %v5659 = vunpack.c.h.b16 %v5497
  %v5660 = vunpack.c.l.b16 %v5498
  %v5661 = vunpack.c.h.b16 %v5498
  %v5662 = vunpack.c.l.b16 %v5499
  %v5663 = vunpack.c.h.b16 %v5499
  %v5664 = vunpack.c.l.b16 %v5500
  %v5665 = vunpack.c.h.b16 %v5500
  %v5666 = vunpack.c.l.b16 %v5501
  %v5667 = vunpack.c.h.b16 %v5501
  %v5668 = vunpack.c.l.b16 %v5502
  %v5669 = vunpack.c.h.b16 %v5502
  %v5670 = vunpack.c.l.b16 %v5503
  %v5671 = vunpack.c.h.b16 %v5503
  %v5672 = vunpack.c.l.b16 %v5504
  %v5673 = vunpack.c.h.b16 %v5504
  %v5674 = vunpack.c.l.b16 %v5505
  %v5675 = vunpack.c.h.b16 %v5505
  %v5676 = vunpack.c.l.b16 %v5506
  %v5677 = vunpack.c.h.b16 %v5506
  %v5678 = vunpack.c.l.b16 %v5507
  %v5679 = vunpack.c.h.b16 %v5507
  %v5680 = vunpack.c.l.b16 %v5508
  %v5681 = vunpack.c.h.b16 %v5508
  %v5682 = vunpack.c.l.b16 %v5509
  %v5683 = vunpack.c.h.b16 %v5509
  %v5684 = vunpack.c.l.b16 %v5510
  %v5685 = vunpack.c.h.b16 %v5510
  %v5686 = vunpack.c.l.b16 %v5511
  %v5687 = vunpack.c.h.b16 %v5511
  %v5688 = vunpack.c.l.b16 %v5512
  %v5689 = vunpack.c.h.b16 %v5512
  %v5690 = vunpack.c.l.b16 %v5513
  %v5691 = vunpack.c.h.b16 %v5513
  %v5692 = vunpack.c.l.b16 %v5514
  %v5693 = vunpack.c.h.b16 %v5514
  %v5694 = vunpack.c.l.b16 %v5515
  %v5695 = vunpack.c.h.b16 %v5515
  %v5696 = vunpack.c.l.b16 %v5516
  %v5697 = vunpack.c.h.b16 %v5516
  %v5698 = vunpack.c.l.b16 %v5517
  %v5699 = vunpack.c.h.b16 %v5517
  %v5700 = vunpack.c.l.b16 %v5518
  %v5701 = vunpack.c.h.b16 %v5518
  %v5702 = vunpack.c.l.b16 %v5519
  %v5703 = vunpack.c.h.b16 %v5519
  %v5704 = vunpack.c.l.b16 %v5520
  %v5705 = vunpack.c.h.b16 %v5520
  %v5706 = vunpack.c.l.b16 %v5521
  %v5707 = vunpack.c.h.b16 %v5521
  %v5708 = vunpack.c.l.b16 %v5522
  %v5709 = vunpack.c.h.b16 %v5522
  %v5710 = vunpack.c.l.b16 %v5523
  %v5711 = vunpack.c.h.b16 %v5523
  %v5712 = vunpack.c.l.b16 %v5524
  %v5713 = vunpack.c.h.b16 %v5524
  %v5714 = vunpack.c.l.b16 %v5525
  %v5715 = vunpack.c.h.b16 %v5525
  %v5716 = vunpack.c.l.b16 %v5526
  %v5717 = vunpack.c.h.b16 %v5526
  %v5718 = vunpack.c.l.b16 %v5527
  %v5719 = vunpack.c.h.b16 %v5527
  %v5720 = vunpack.c.l.b16 %v5528
  %v5721 = vunpack.c.h.b16 %v5528
  %v5722 = vunpack.c.l.b16 %v5529
  %v5723 = vunpack.c.h.b16 %v5529
  %v5724 = vunpack.c.l.b16 %v5530
  %v5725 = vunpack.c.h.b16 %v5530
  %v5726 = vunpack.c.l.b16 %v5531
  %v5727 = vunpack.c.h.b16 %v5531
  %v5728 = vunpack.c.l.b16 %v5532
  %v5729 = vunpack.c.h.b16 %v5532
  %v5730 = vunpack.c.l.b16 %v5533
  %v5731 = vunpack.c.h.b16 %v5533
  %v5732 = vunpack.c.l.b16 %v5534
  %v5733 = vunpack.c.h.b16 %v5534
  %v5734 = vunpack.c.l.b16 %v5535
  %v5735 = vunpack.c.h.b16 %v5535
  %v5736 = vunpack.c.l.b16 %v5536
  %v5737 = vunpack.c.h.b16 %v5536
  %v5738 = vunpack.c.l.b16 %v5537
  %v5739 = vunpack.c.h.b16 %v5537
  %v5740 = vunpack.c.l.b16 %v5538
  %v5741 = vunpack.c.h.b16 %v5538
  %v5742 = vunpack.c.l.b16 %v5539
  %v5743 = vunpack.c.h.b16 %v5539
  %v5744 = vpack.c.b16 %v5618, %v5616
  %v5745 = vpack.c.b16 %v5619, %v5617
  %v5746 = vpack.c.b16 %v5622, %v5620
  %v5747 = vpack.c.b16 %v5623, %v5621
  %v5748 = vpack.c.b16 %v5626, %v5624
  %v5749 = vpack.c.b16 %v5627, %v5625
  %v5750 = vpack.c.b16 %v5630, %v5628
  %v5751 = vpack.c.b16 %v5631, %v5629
  %v5752 = vpack.c.b16 %v5634, %v5632
  %v5753 = vpack.c.b16 %v5635, %v5633
  %v5754 = vpack.c.b16 %v5638, %v5636
  %v5755 = vpack.c.b16 %v5639, %v5637
  %v5756 = vpack.c.b16 %v5642, %v5640
  %v5757 = vpack.c.b16 %v5643, %v5641
  %v5758 = vpack.c.b16 %v5646, %v5644
  %v5759 = vpack.c.b16 %v5647, %v5645
  %v5760 = vpack.c.b16 %v5650, %v5648
  %v5761 = vpack.c.b16 %v5651, %v5649
  %v5762 = vpack.c.b16 %v5654, %v5652
  %v5763 = vpack.c.b16 %v5655, %v5653
  %v5764 = vpack.c.b16 %v5658, %v5656
  %v5765 = vpack.c.b16 %v5659, %v5657
  %v5766 = vpack.c.b16 %v5662, %v5660
  %v5767 = vpack.c.b16 %v5663, %v5661
  %v5768 = vpack.c.b16 %v5666, %v5664
  %v5769 = vpack.c.b16 %v5667, %v5665
  %v5770 = vpack.c.b16 %v5670, %v5668
  %v5771 = vpack.c.b16 %v5671, %v5669
  %v5772 = vpack.c.b16 %v5674, %v5672
  %v5773 = vpack.c.b16 %v5675, %v5673
  %v5774 = vpack.c.b16 %v5678, %v5676
  %v5775 = vpack.c.b16 %v5679, %v5677
  %v5776 = vpack.c.b16 %v5682, %v5680
  %v5777 = vpack.c.b16 %v5683, %v5681
  %v5778 = vpack.c.b16 %v5686, %v5684
  %v5779 = vpack.c.b16 %v5687, %v5685
  %v5780 = vpack.c.b16 %v5690, %v5688
  %v5781 = vpack.c.b16 %v5691, %v5689
  %v5782 = vpack.c.b16 %v5694, %v5692
  %v5783 = vpack.c.b16 %v5695, %v5693
  %v5784 = vpack.c.b16 %v5698, %v5696
  %v5785 = vpack.c.b16 %v5699, %v5697
  %v5786 = vpack.c.b16 %v5702, %v5700
  %v5787 = vpack.c.b16 %v5703, %v5701
  %v5788 = vpack.c.b16 %v5706, %v5704
  %v5789 = vpack.c.b16 %v5707, %v5705
  %v5790 = vpack.c.b16 %v5710, %v5708
  %v5791 = vpack.c.b16 %v5711, %v5709
  %v5792 = vpack.c.b16 %v5714, %v5712
  %v5793 = vpack.c.b16 %v5715, %v5713
  %v5794 = vpack.c.b16 %v5718, %v5716
  %v5795 = vpack.c.b16 %v5719, %v5717
  %v5796 = vpack.c.b16 %v5722, %v5720
  %v5797 = vpack.c.b16 %v5723, %v5721
  %v5798 = vpack.c.b16 %v5726, %v5724
  %v5799 = vpack.c.b16 %v5727, %v5725
  %v5800 = vpack.c.b16 %v5730, %v5728
  %v5801 = vpack.c.b16 %v5731, %v5729
  %v5802 = vpack.c.b16 %v5734, %v5732
  %v5803 = vpack.c.b16 %v5735, %v5733
  %v5804 = vpack.c.b16 %v5738, %v5736
  %v5805 = vpack.c.b16 %v5739, %v5737
  %v5806 = vpack.c.b16 %v5742, %v5740
  %v5807 = vpack.c.b16 %v5743, %v5741
  %5872 = vmatprep.subr.bf16.mxu0 %v5745
  %5873 = vmatpush1.bf16.msra.mxu0 %v5744
  %5874 = vmatprep.subr.bf16.mxu0 %v5747
  %5875 = vmatpush1.bf16.msra.mxu0 %v5746
  %5876 = vmatprep.subr.bf16.mxu0 %v5749
  %5877 = vmatpush1.bf16.msra.mxu0 %v5748
  %5878 = vmatprep.subr.bf16.mxu0 %v5751
  %5879 = vmatpush1.bf16.msra.mxu0 %v5750
  %5880 = vmatprep.subr.bf16.mxu0 %v5753
  %5881 = vmatpush1.bf16.msra.mxu0 %v5752
  %5882 = vmatprep.subr.bf16.mxu0 %v5755
  %5883 = vmatpush1.bf16.msra.mxu0 %v5754
  %5884 = vmatprep.subr.bf16.mxu0 %v5757
  %5885 = vmatpush1.bf16.msra.mxu0 %v5756
  %5886 = vmatprep.subr.bf16.mxu0 %v5759
  %5887 = vmatpush1.bf16.msra.mxu0 %v5758
  %5888 = vmatprep.subr.bf16.mxu0 %v5761
  %5889 = vmatpush1.bf16.msra.mxu0 %v5760
  %5890 = vmatprep.subr.bf16.mxu0 %v5763
  %5891 = vmatpush1.bf16.msra.mxu0 %v5762
  %5892 = vmatprep.subr.bf16.mxu0 %v5765
  %5893 = vmatpush1.bf16.msra.mxu0 %v5764
  %5894 = vmatprep.subr.bf16.mxu0 %v5767
  %5895 = vmatpush1.bf16.msra.mxu0 %v5766
  %5896 = vmatprep.subr.bf16.mxu0 %v5769
  %5897 = vmatpush1.bf16.msra.mxu0 %v5768
  %5898 = vmatprep.subr.bf16.mxu0 %v5771
  %5899 = vmatpush1.bf16.msra.mxu0 %v5770
  %5900 = vmatprep.subr.bf16.mxu0 %v5773
  %5901 = vmatpush1.bf16.msra.mxu0 %v5772
  %5902 = vmatprep.subr.bf16.mxu0 %v5775
  %5903 = vmatpush1.bf16.msra.mxu0 %v5774
  %5904 = vmatprep.mubr.bf16.mxu0 %v5420
  %5905 = vmatmul.mubr.bf16.gmra.mrb[0].mxu0 %v5419
  %v5906 = vpop.f32.mrb[0].mxu0
  %v5907 = vadd.f32 %v5545, %v5906
  %v5908 = vpop.f32.mrb[0].mxu0
  %v5909 = vadd.f32 %v5549, %v5908
  %v5910 = vpop.f32.mrb[0].mxu0
  %v5911 = vadd.f32 %v5545, %v5910
  %v5912 = vpop.f32.mrb[0].mxu0
  %v5913 = vadd.f32 %v5549, %v5912
  %5914 = vmatprep.mubr.bf16.mxu0 %v5424
  %5915 = vmatmul.mubr.bf16.gmra.mrb[0].mxu0 %v5423
  %v5916 = vpop.f32.mrb[0].mxu0
  %v5917 = vadd.f32 %v5545, %v5916
  %v5918 = vpop.f32.mrb[0].mxu0
  %v5919 = vadd.f32 %v5549, %v5918
  %v5920 = vpop.f32.mrb[0].mxu0
  %v5921 = vadd.f32 %v5545, %v5920
  %v5922 = vpop.f32.mrb[0].mxu0
  %v5923 = vadd.f32 %v5549, %v5922
  %5924 = vmatprep.mubr.bf16.mxu0 %v5428
  %5925 = vmatmul.mubr.bf16.gmra.mrb[0].mxu0 %v5427
  %v5926 = vpop.f32.mrb[0].mxu0
  %v5927 = vadd.f32 %v5545, %v5926
  %v5928 = vpop.f32.mrb[0].mxu0
  %v5929 = vadd.f32 %v5549, %v5928
  %v5930 = vpop.f32.mrb[0].mxu0
  %v5931 = vadd.f32 %v5545, %v5930
  %v5932 = vpop.f32.mrb[0].mxu0
  %v5933 = vadd.f32 %v5549, %v5932
  %5934 = vmatprep.mubr.bf16.mxu0 %v5432
  %5935 = vmatmul.mubr.bf16.gmra.mrb[0].mxu0 %v5431
  %v5936 = vpop.f32.mrb[0].mxu0
  %v5937 = vadd.f32 %v5545, %v5936
  %v5938 = vpop.f32.mrb[0].mxu0
  %v5939 = vadd.f32 %v5549, %v5938
  %v5940 = vpop.f32.mrb[0].mxu0
  %v5941 = vadd.f32 %v5545, %v5940
  %v5942 = vpop.f32.mrb[0].mxu0
  %v5943 = vadd.f32 %v5549, %v5942
  %5944 = vmatprep.mubr.bf16.mxu0 %v5436
  %5945 = vmatmul.mubr.bf16.gmra.mrb[0].mxu0 %v5435
  %v5946 = vpop.f32.mrb[0].mxu0
  %v5947 = vadd.f32 %v5545, %v5946
  %v5948 = vpop.f32.mrb[0].mxu0
  %v5949 = vadd.f32 %v5549, %v5948
  %v5950 = vpop.f32.mrb[0].mxu0
  %v5951 = vadd.f32 %v5545, %v5950
  %v5952 = vpop.f32.mrb[0].mxu0
  %v5953 = vadd.f32 %v5549, %v5952
  %5954 = vmatprep.mubr.bf16.mxu0 %v5440
  %5955 = vmatmul.mubr.bf16.gmra.mrb[0].mxu0 %v5439
  %v5956 = vpop.f32.mrb[0].mxu0
  %v5957 = vadd.f32 %v5545, %v5956
  %v5958 = vpop.f32.mrb[0].mxu0
  %v5959 = vadd.f32 %v5549, %v5958
  %v5960 = vpop.f32.mrb[0].mxu0
  %v5961 = vadd.f32 %v5545, %v5960
  %v5962 = vpop.f32.mrb[0].mxu0
  %v5963 = vadd.f32 %v5549, %v5962
  %5964 = vmatprep.mubr.bf16.mxu0 %v5444
  %5965 = vmatmul.mubr.bf16.gmra.mrb[0].mxu0 %v5443
  %v5966 = vpop.f32.mrb[0].mxu0
  %v5967 = vadd.f32 %v5545, %v5966
  %v5968 = vpop.f32.mrb[0].mxu0
  %v5969 = vadd.f32 %v5549, %v5968
  %v5970 = vpop.f32.mrb[0].mxu0
  %v5971 = vadd.f32 %v5545, %v5970
  %v5972 = vpop.f32.mrb[0].mxu0
  %v5973 = vadd.f32 %v5549, %v5972
  %5974 = vmatprep.mubr.bf16.mxu0 %v5448
  %5975 = vmatmul.mubr.bf16.gmra.mrb[0].mxu0 %v5447
  %v5976 = vpop.f32.mrb[0].mxu0
  %v5977 = vadd.f32 %v5545, %v5976
  %v5978 = vpop.f32.mrb[0].mxu0
  %v5979 = vadd.f32 %v5549, %v5978
  %v5980 = vpop.f32.mrb[0].mxu0
  %v5981 = vadd.f32 %v5545, %v5980
  %v5982 = vpop.f32.mrb[0].mxu0
  %v5983 = vadd.f32 %v5549, %v5982
  %5984 = vdwg.mxu0
  %5985 = vmatprep.subr.bf16.mxu0 %v5777
  %5986 = vmatpush1.bf16.msra.mxu0 %v5776
  %5987 = vmatprep.subr.bf16.mxu0 %v5779
  %5988 = vmatpush1.bf16.msra.mxu0 %v5778
  %5989 = vmatprep.subr.bf16.mxu0 %v5781
  %5990 = vmatpush1.bf16.msra.mxu0 %v5780
  %5991 = vmatprep.subr.bf16.mxu0 %v5783
  %5992 = vmatpush1.bf16.msra.mxu0 %v5782
  %5993 = vmatprep.subr.bf16.mxu0 %v5785
  %5994 = vmatpush1.bf16.msra.mxu0 %v5784
  %5995 = vmatprep.subr.bf16.mxu0 %v5787
  %5996 = vmatpush1.bf16.msra.mxu0 %v5786
  %5997 = vmatprep.subr.bf16.mxu0 %v5789
  %5998 = vmatpush1.bf16.msra.mxu0 %v5788
  %5999 = vmatprep.subr.bf16.mxu0 %v5791
  %6000 = vmatpush1.bf16.msra.mxu0 %v5790
  %6001 = vmatprep.subr.bf16.mxu0 %v5793
  %6002 = vmatpush1.bf16.msra.mxu0 %v5792
  %6003 = vmatprep.subr.bf16.mxu0 %v5795
  %6004 = vmatpush1.bf16.msra.mxu0 %v5794
  %6005 = vmatprep.subr.bf16.mxu0 %v5797
  %6006 = vmatpush1.bf16.msra.mxu0 %v5796
  %6007 = vmatprep.subr.bf16.mxu0 %v5799
  %6008 = vmatpush1.bf16.msra.mxu0 %v5798
  %6009 = vmatprep.subr.bf16.mxu0 %v5801
  %6010 = vmatpush1.bf16.msra.mxu0 %v5800
  %6011 = vmatprep.subr.bf16.mxu0 %v5803
  %6012 = vmatpush1.bf16.msra.mxu0 %v5802
  %6013 = vmatprep.subr.bf16.mxu0 %v5805
  %6014 = vmatpush1.bf16.msra.mxu0 %v5804
  %6015 = vmatprep.subr.bf16.mxu0 %v5807
  %6016 = vmatpush1.bf16.msra.mxu0 %v5806
  %6017 = vmatprep.mubr.bf16.mxu0 %v5422
  %6018 = vmatmul.mubr.bf16.gmra.mrb[0].mxu0 %v5421
  %v6019 = vpop.f32.mrb[0].mxu0
  %v6020 = vadd.f32 %v5907, %v6019
  %v6021 = vpop.f32.mrb[0].mxu0
  %v6022 = vadd.f32 %v5909, %v6021
  %v6023 = vpop.f32.mrb[0].mxu0
  %v6024 = vadd.f32 %v5911, %v6023
  %v6025 = vpop.f32.mrb[0].mxu0
  %v6026 = vadd.f32 %v5913, %v6025
  %6027 = vmatprep.mubr.bf16.mxu0 %v5426
  %6028 = vmatmul.mubr.bf16.gmra.mrb[0].mxu0 %v5425
  %v6029 = vpop.f32.mrb[0].mxu0
  %v6030 = vadd.f32 %v5917, %v6029
  %v6031 = vpop.f32.mrb[0].mxu0
  %v6032 = vadd.f32 %v5919, %v6031
  %v6033 = vpop.f32.mrb[0].mxu0
  %v6034 = vadd.f32 %v5921, %v6033
  %v6035 = vpop.f32.mrb[0].mxu0
  %v6036 = vadd.f32 %v5923, %v6035
  %6037 = vmatprep.mubr.bf16.mxu0 %v5430
  %6038 = vmatmul.mubr.bf16.gmra.mrb[0].mxu0 %v5429
  %v6039 = vpop.f32.mrb[0].mxu0
  %v6040 = vadd.f32 %v5927, %v6039
  %v6041 = vpop.f32.mrb[0].mxu0
  %v6042 = vadd.f32 %v5929, %v6041
  %v6043 = vpop.f32.mrb[0].mxu0
  %v6044 = vadd.f32 %v5931, %v6043
  %v6045 = vpop.f32.mrb[0].mxu0
  %v6046 = vadd.f32 %v5933, %v6045
  %6047 = vmatprep.mubr.bf16.mxu0 %v5434
  %6048 = vmatmul.mubr.bf16.gmra.mrb[0].mxu0 %v5433
  %v6049 = vpop.f32.mrb[0].mxu0
  %v6050 = vadd.f32 %v5937, %v6049
  %v6051 = vpop.f32.mrb[0].mxu0
  %v6052 = vadd.f32 %v5939, %v6051
  %v6053 = vpop.f32.mrb[0].mxu0
  %v6054 = vadd.f32 %v5941, %v6053
  %v6055 = vpop.f32.mrb[0].mxu0
  %v6056 = vadd.f32 %v5943, %v6055
  %6057 = vmatprep.mubr.bf16.mxu0 %v5438
  %6058 = vmatmul.mubr.bf16.gmra.mrb[0].mxu0 %v5437
  %v6059 = vpop.f32.mrb[0].mxu0
  %v6060 = vadd.f32 %v5947, %v6059
  %v6061 = vpop.f32.mrb[0].mxu0
  %v6062 = vadd.f32 %v5949, %v6061
  %v6063 = vpop.f32.mrb[0].mxu0
  %v6064 = vadd.f32 %v5951, %v6063
  %v6065 = vpop.f32.mrb[0].mxu0
  %v6066 = vadd.f32 %v5953, %v6065
  %6067 = vmatprep.mubr.bf16.mxu0 %v5442
  %6068 = vmatmul.mubr.bf16.gmra.mrb[0].mxu0 %v5441
  %v6069 = vpop.f32.mrb[0].mxu0
  %v6070 = vadd.f32 %v5957, %v6069
  %v6071 = vpop.f32.mrb[0].mxu0
  %v6072 = vadd.f32 %v5959, %v6071
  %v6073 = vpop.f32.mrb[0].mxu0
  %v6074 = vadd.f32 %v5961, %v6073
  %v6075 = vpop.f32.mrb[0].mxu0
  %v6076 = vadd.f32 %v5963, %v6075
  %6077 = vmatprep.mubr.bf16.mxu0 %v5446
  %6078 = vmatmul.mubr.bf16.gmra.mrb[0].mxu0 %v5445
  %v6079 = vpop.f32.mrb[0].mxu0
  %v6080 = vadd.f32 %v5967, %v6079
  %v6081 = vpop.f32.mrb[0].mxu0
  %v6082 = vadd.f32 %v5969, %v6081
  %v6083 = vpop.f32.mrb[0].mxu0
  %v6084 = vadd.f32 %v5971, %v6083
  %v6085 = vpop.f32.mrb[0].mxu0
  %v6086 = vadd.f32 %v5973, %v6085
  %6087 = vmatprep.mubr.bf16.mxu0 %v5450
  %6088 = vmatmul.mubr.bf16.gmra.mrb[0].mxu0 %v5449
  %v6089 = vpop.f32.mrb[0].mxu0
  %v6090 = vadd.f32 %v5977, %v6089
  %v6091 = vpop.f32.mrb[0].mxu0
  %v6092 = vadd.f32 %v5979, %v6091
  %v6093 = vpop.f32.mrb[0].mxu0
  %v6094 = vadd.f32 %v5981, %v6093
  %v6095 = vpop.f32.mrb[0].mxu0
  %v6096 = vadd.f32 %v5983, %v6095
  %6097 = vdwg.mxu0
  %6098 = vst.msk [vmem:[%s5] sm:$0xff] %vm4139, %v5460
  %6099 = vst.msk [vmem:[%s5 + $0x20] sm:$0xff] %vm4139, %v5461
  %6100 = vst [vmem:[%s7] sm:$0xff] %v6020
  %6101 = vst [vmem:[%s7 + $0x8] sm:$0xff] %v6022
  %6102 = vst [vmem:[%s7 + $0x80] sm:$0xff] %v6024
  %6103 = vst [vmem:[%s7 + $0x88] sm:$0xff] %v6026
  %6106 = vrot.lane.b32.xlu0 %v5462, 64
  %v6107 = vpop.permute.xlu0 %6106
  %6108 = vrot.lane.b32.xlu0 %v5463, 64
  %v6109 = vpop.permute.xlu0 %6108
  %6112 = vst.msk [vmem:[%s5] sm:$0xff] %vm4145, %v6107
  %6113 = vst.msk [vmem:[%s5 + $0x20] sm:$0xff] %vm4145, %v6109
  %6114 = vst [vmem:[%s7 + $0x10] sm:$0xff] %v6030
  %6115 = vst [vmem:[%s7 + $0x18] sm:$0xff] %v6032
  %6116 = vst [vmem:[%s7 + $0x90] sm:$0xff] %v6034
  %6117 = vst [vmem:[%s7 + $0x98] sm:$0xff] %v6036
  %6118 = vst.msk [vmem:[%s5 + $0x8] sm:$0xff] %vm4139, %v5464
  %6119 = vst.msk [vmem:[%s5 + $0x28] sm:$0xff] %vm4139, %v5465
  %6120 = vst [vmem:[%s7 + $0x20] sm:$0xff] %v6040
  %6121 = vst [vmem:[%s7 + $0x28] sm:$0xff] %v6042
  %6122 = vst [vmem:[%s7 + $0xa0] sm:$0xff] %v6044
  %6123 = vst [vmem:[%s7 + $0xa8] sm:$0xff] %v6046
  %6126 = vrot.lane.b32.xlu0 %v5466, 64
  %v6127 = vpop.permute.xlu0 %6126
  %6128 = vrot.lane.b32.xlu0 %v5467, 64
  %v6129 = vpop.permute.xlu0 %6128
  %6132 = vst.msk [vmem:[%s5 + $0x8] sm:$0xff] %vm4145, %v6127
  %6133 = vst.msk [vmem:[%s5 + $0x28] sm:$0xff] %vm4145, %v6129
  %6134 = vst [vmem:[%s7 + $0x30] sm:$0xff] %v6050
  %6135 = vst [vmem:[%s7 + $0x38] sm:$0xff] %v6052
  %6136 = vst [vmem:[%s7 + $0xb0] sm:$0xff] %v6054
  %6137 = vst [vmem:[%s7 + $0xb8] sm:$0xff] %v6056
  %6138 = vst.msk [vmem:[%s5 + $0x10] sm:$0xff] %vm4139, %v5468
  %6139 = vst.msk [vmem:[%s5 + $0x30] sm:$0xff] %vm4139, %v5469
  %6140 = vst [vmem:[%s7 + $0x40] sm:$0xff] %v6060
  %6141 = vst [vmem:[%s7 + $0x48] sm:$0xff] %v6062
  %6142 = vst [vmem:[%s7 + $0xc0] sm:$0xff] %v6064
  %6143 = vst [vmem:[%s7 + $0xc8] sm:$0xff] %v6066
  %6146 = vrot.lane.b32.xlu0 %v5470, 64
  %v6147 = vpop.permute.xlu0 %6146
  %6148 = vrot.lane.b32.xlu0 %v5471, 64
  %v6149 = vpop.permute.xlu0 %6148
  %6152 = vst.msk [vmem:[%s5 + $0x10] sm:$0xff] %vm4145, %v6147
  %6153 = vst.msk [vmem:[%s5 + $0x30] sm:$0xff] %vm4145, %v6149
  %6154 = vst [vmem:[%s7 + $0x50] sm:$0xff] %v6070
  %6155 = vst [vmem:[%s7 + $0x58] sm:$0xff] %v6072
  %6156 = vst [vmem:[%s7 + $0xd0] sm:$0xff] %v6074
  %6157 = vst [vmem:[%s7 + $0xd8] sm:$0xff] %v6076
  %6158 = vst.msk [vmem:[%s5 + $0x18] sm:$0xff] %vm4139, %v5472
  %6159 = vst.msk [vmem:[%s5 + $0x38] sm:$0xff] %vm4139, %v5473
  %6160 = vst [vmem:[%s7 + $0x60] sm:$0xff] %v6080
  %6161 = vst [vmem:[%s7 + $0x68] sm:$0xff] %v6082
  %6162 = vst [vmem:[%s7 + $0xe0] sm:$0xff] %v6084
  %6163 = vst [vmem:[%s7 + $0xe8] sm:$0xff] %v6086
  %6166 = vrot.lane.b32.xlu0 %v5474, 64
  %v6167 = vpop.permute.xlu0 %6166
  %6168 = vrot.lane.b32.xlu0 %v5475, 64
  %v6169 = vpop.permute.xlu0 %6168
  %6172 = vst.msk [vmem:[%s5 + $0x18] sm:$0xff] %vm4145, %v6167
  %6173 = vst.msk [vmem:[%s5 + $0x38] sm:$0xff] %vm4145, %v6169
  %6174 = vst [vmem:[%s7 + $0x70] sm:$0xff] %v6090
  %6175 = vst [vmem:[%s7 + $0x78] sm:$0xff] %v6092
  %6176 = vst [vmem:[%s7 + $0xf0] sm:$0xff] %v6094
  %6177 = vst [vmem:[%s7 + $0xf8] sm:$0xff] %v6096
  %v6178 = vadd.f32 %v3306, %v3308
  %v6179 = vadd.f32 %v3307, %v3309
  %v6180 = vadd.f32 %v3310, %v3312
  %v6181 = vadd.f32 %v3311, %v3313
  %v6182 = vadd.f32 %v3314, %v3316
  %v6183 = vadd.f32 %v3315, %v3317
  %v6184 = vadd.f32 %v3318, %v3320
  %v6185 = vadd.f32 %v3319, %v3321
  %v6186 = vpack.c.bf16 %v6179, %v6178
  %v6187 = vpack.c.bf16 %v6181, %v6180
  %v6188 = vpack.c.bf16 %v6183, %v6182
  %v6189 = vpack.c.bf16 %v6185, %v6184
  %v6190 = vld [vmem:[%s2 + $0x10] sm:$0xf]
  %v6191 = vld [vmem:[%s2 + $0x24] sm:$0xf]
  %v6192 = vld [vmem:[%s2 + $0x38] sm:$0xf]
  %v6193 = vld [vmem:[%s2 + $0x4c] sm:$0xf]
  %v6194 = vld [vmem:[%s2 + $0x60] sm:$0xf]
  %v6195 = vld [vmem:[%s2 + $0x74] sm:$0xf]
  %v6196 = vld [vmem:[%s2 + $0x88] sm:$0xf]
  %v6197 = vld [vmem:[%s2 + $0x9c] sm:$0xf]
  %v6198 = vld [vmem:[%s2 + $0xb0] sm:$0xf]
  %v6199 = vld [vmem:[%s2 + $0xc4] sm:$0xf]
  %v6200 = vld [vmem:[%s2 + $0xd8] sm:$0xf]
  %v6201 = vld [vmem:[%s2 + $0xec] sm:$0xf]
  %v6202 = vld [vmem:[%s2 + $0x100] sm:$0xf]
  %v6203 = vld [vmem:[%s2 + $0x114] sm:$0xf]
  %v6204 = vld [vmem:[%s2 + $0x128] sm:$0xf]
  %v6205 = vld [vmem:[%s2 + $0x13c] sm:$0xf]
  %v6206 = vld [vmem:[%s4 + $0xc] sm:$0x1]
  %v6208 = vlaneseq
  %v6209 = vshrl.u32 %v6208, 7
  %v6210 = vsub.s32 0, %v6209
  %v6211 = vrot.slane %v6206, %v6210
  %v6229 = vunpack.c.l.b16 %v6190
  %v6230 = vunpack.c.l.b16 %v6191
  %v6231 = vunpack.c.l.b16 %v6192
  %v6232 = vunpack.c.l.b16 %v6193
  %v6233 = vunpack.c.l.b16 %v6194
  %v6234 = vunpack.c.l.b16 %v6195
  %v6235 = vunpack.c.l.b16 %v6196
  %v6236 = vunpack.c.l.b16 %v6197
  %v6237 = vunpack.c.l.b16 %v6198
  %v6238 = vunpack.c.l.b16 %v6199
  %v6239 = vunpack.c.l.b16 %v6200
  %v6240 = vunpack.c.l.b16 %v6201
  %v6241 = vunpack.c.l.b16 %v6202
  %v6242 = vunpack.c.l.b16 %v6203
  %v6243 = vunpack.c.l.b16 %v6204
  %v6244 = vunpack.c.l.b16 %v6205
  %v6245 = vpack.c.b16 %v6230, %v6229
  %v6246 = vpack.c.b16 %v6232, %v6231
  %v6247 = vpack.c.b16 %v6234, %v6233
  %v6248 = vpack.c.b16 %v6236, %v6235
  %v6249 = vpack.c.b16 %v6238, %v6237
  %v6250 = vpack.c.b16 %v6240, %v6239
  %v6251 = vpack.c.b16 %v6242, %v6241
  %v6252 = vpack.c.b16 %v6244, %v6243
  %6253 = vrot.lane.b32.xlu0 %v6245, 64
  %v6254 = vpop.permute.xlu0 %6253
  %6255 = vrot.lane.b32.xlu0 %v6246, 64
  %v6256 = vpop.permute.xlu0 %6255
  %6257 = vrot.lane.b32.xlu0 %v6247, 64
  %v6258 = vpop.permute.xlu0 %6257
  %6259 = vrot.lane.b32.xlu0 %v6248, 64
  %v6260 = vpop.permute.xlu0 %6259
  %6261 = vrot.lane.b32.xlu0 %v6249, 64
  %v6262 = vpop.permute.xlu0 %6261
  %6263 = vrot.lane.b32.xlu0 %v6250, 64
  %v6264 = vpop.permute.xlu0 %6263
  %6265 = vrot.lane.b32.xlu0 %v6251, 64
  %v6266 = vpop.permute.xlu0 %6265
  %6267 = vrot.lane.b32.xlu0 %v6252, 64
  %v6268 = vpop.permute.xlu0 %6267
  %6277 = vmatprep.subr.bf16.mxu0 0
  %6278 = vmatpush1.bf16.msra.mxu0 %v6254
  %6279 = vmatprep.subr.bf16.mxu0 0
  %6280 = vmatpush1.bf16.msra.mxu0 %v6256
  %6281 = vmatprep.subr.bf16.mxu0 0
  %6282 = vmatpush1.bf16.msra.mxu0 %v6258
  %6283 = vmatprep.subr.bf16.mxu0 0
  %6284 = vmatpush1.bf16.msra.mxu0 %v6260
  %6285 = vmatprep.subr.bf16.mxu0 0
  %6286 = vmatpush1.bf16.msra.mxu0 %v6262
  %6287 = vmatprep.subr.bf16.mxu0 0
  %6288 = vmatpush1.bf16.msra.mxu0 %v6264
  %6289 = vmatprep.subr.bf16.mxu0 0
  %6290 = vmatpush1.bf16.msra.mxu0 %v6266
  %6291 = vmatprep.subr.bf16.mxu0 0
  %6292 = vmatpush1.bf16.msra.mxu0 %v6268
  %6293 = vmatprep.subr.bf16.mxu0 0
  %6294 = vmatpush1.bf16.msra.mxu0 0
  %6295 = vmatprep.subr.bf16.mxu0 0
  %6296 = vmatpush1.bf16.msra.mxu0 0
  %6297 = vmatprep.subr.bf16.mxu0 0
  %6298 = vmatpush1.bf16.msra.mxu0 0
  %6299 = vmatprep.subr.bf16.mxu0 0
  %6300 = vmatpush1.bf16.msra.mxu0 0
  %6301 = vmatprep.subr.bf16.mxu0 0
  %6302 = vmatpush1.bf16.msra.mxu0 0
  %6303 = vmatprep.subr.bf16.mxu0 0
  %6304 = vmatpush1.bf16.msra.mxu0 0
  %6305 = vmatprep.subr.bf16.mxu0 0
  %6306 = vmatpush1.bf16.msra.mxu0 0
  %6307 = vmatprep.subr.bf16.mxu0 0
  %6308 = vmatpush1.bf16.msra.mxu0 0
  %6309 = vmatprep.mubr.bf16.mxu0 0
  %6310 = vmatmul.mubr.bf16.gmra.mrb[0].mxu0 %v6186
  %v6311 = vpop.f32.mrb[0].mxu0
  %v6312 = vadd.f32 %v6211, %v6311
  %v6313 = vpop.f32.mrb[0].mxu0
  %v6314 = vpop.f32.mrb[0].mxu0
  %v6315 = vadd.f32 %v6211, %v6314
  %v6316 = vpop.f32.mrb[0].mxu0
  %6317 = vmatprep.mubr.bf16.mxu0 0
  %6318 = vmatmul.mubr.bf16.gmra.mrb[0].mxu0 %v6187
  %v6319 = vpop.f32.mrb[0].mxu0
  %v6320 = vadd.f32 %v6211, %v6319
  %v6321 = vpop.f32.mrb[0].mxu0
  %v6322 = vpop.f32.mrb[0].mxu0
  %v6323 = vadd.f32 %v6211, %v6322
  %v6324 = vpop.f32.mrb[0].mxu0
  %6325 = vmatprep.mubr.bf16.mxu0 0
  %6326 = vmatmul.mubr.bf16.gmra.mrb[0].mxu0 %v6188
  %v6327 = vpop.f32.mrb[0].mxu0
  %v6328 = vadd.f32 %v6211, %v6327
  %v6329 = vpop.f32.mrb[0].mxu0
  %v6330 = vpop.f32.mrb[0].mxu0
  %v6331 = vadd.f32 %v6211, %v6330
  %v6332 = vpop.f32.mrb[0].mxu0
  %6333 = vmatprep.mubr.bf16.mxu0 0
  %6334 = vmatmul.mubr.bf16.gmra.mrb[0].mxu0 %v6189
  %v6335 = vpop.f32.mrb[0].mxu0
  %v6336 = vadd.f32 %v6211, %v6335
  %v6337 = vpop.f32.mrb[0].mxu0
  %v6338 = vpop.f32.mrb[0].mxu0
  %v6339 = vadd.f32 %v6211, %v6338
  %v6340 = vpop.f32.mrb[0].mxu0
  %6341 = vdwg.mxu0
  %6342 = vst.msk [vmem:[%s6] sm:$0xff] %vm26, %v6312
  %6343 = vst.msk [vmem:[%s6 + $0x8] sm:$0xff] %vm26, %v6315
  %6346 = vrot.lane.b32.xlu0 %v6320, 32
  %v6347 = vpop.permute.xlu0 %6346
  %6348 = vrot.lane.b32.xlu0 %v6323, 32
  %v6349 = vpop.permute.xlu0 %6348
  %vm6352 = vcmask 523520
  %6353 = vst.msk [vmem:[%s6] sm:$0xff] %vm6352, %v6347
  %6354 = vst.msk [vmem:[%s6 + $0x8] sm:$0xff] %vm6352, %v6349
  %6357 = vrot.lane.b32.xlu0 %v6328, 64
  %v6358 = vpop.permute.xlu0 %6357
  %6359 = vrot.lane.b32.xlu0 %v6331, 64
  %v6360 = vpop.permute.xlu0 %6359
  %vm6363 = vcmask 785920
  %6364 = vst.msk [vmem:[%s6] sm:$0xff] %vm6363, %v6358
  %6365 = vst.msk [vmem:[%s6 + $0x8] sm:$0xff] %vm6363, %v6360
  %6368 = vrot.lane.b32.xlu0 %v6336, 96
  %v6369 = vpop.permute.xlu0 %6368
  %6370 = vrot.lane.b32.xlu0 %v6339, 96
  %v6371 = vpop.permute.xlu0 %6370
  %vm6374 = vcmask 1048320
  %6375 = vst.msk [vmem:[%s6] sm:$0xff] %vm6374, %v6369
  %6376 = vst.msk [vmem:[%s6 + $0x8] sm:$0xff] %vm6374, %v6371
  // Predicated region
  $region22: #{a_call__.1} parent=0 // pred_check
    _
  $region23: #{a_call__.1} parent=0 // pred_check_branch
    %6378 = sbr.rel (0) target = $region25
  $region24: #{a_call__.1} parent=0 // pred_region
    _
  $region25: #{a_call__.1} parent=0 // pred_fallthru
    _
  // Predicated region
  $region26: #{a_call__.1} parent=0 // pred_check
    _
  $region27: #{a_call__.1} parent=0 // pred_check_branch
    %6380 = sbr.rel (0) target = $region29
  $region28: #{a_call__.1} parent=0 // pred_region
    _
  $region29: #{a_call__.1} parent=0 // pred_fallthru
    _
  // Predicated region
  $region30: #{a_call__.1} parent=0 // pred_check
    _
  $region31: #{a_call__.1} parent=0 // pred_check_branch
    %6382 = sbr.rel (0) target = $region33
  $region32: #{a_call__.1} parent=0 // pred_region
    _
  $region33: #{a_call__.1} parent=0 // pred_fallthru
    _
  // Predicated region
  $region34: #{a_call__.1} parent=0 // pred_check
    _
  $region35: #{a_call__.1} parent=0 // pred_check_branch
    %6384 = sbr.rel (0) target = $region37
  $region36: #{a_call__.1} parent=0 // pred_region
    _
  $region37: #{a_call__.1} parent=0 // pred_fallthru
    _
  // Predicated region
  $region38: #{a_call__.1} parent=0 // pred_check
    _
  $region39: #{a_call__.1} parent=0 // pred_check_branch
    %6386 = sbr.rel (0) target = $region41
  $region40: #{a_call__.1} parent=0 // pred_region
    _
  $region41: #{a_call__.1} parent=0 // pred_fallthru
    _
  // Predicated region
  $region42: #{a_call__.1} parent=0 // pred_check
    _
  $region43: #{a_call__.1} parent=0 // pred_check_branch
    %6388 = sbr.rel (0) target = $region45
  $region44: #{a_call__.1} parent=0 // pred_region
    _
  $region45: #{a_call__.1} parent=0 // pred_fallthru
    _
  // Predicated region
  $region46: #{a_call__.1} parent=0 // pred_check
    _
  $region47: #{a_call__.1} parent=0 // pred_check_branch
    %6390 = sbr.rel (0) target = $region49
  $region48: #{a_call__.1} parent=0 // pred_region
    _
  $region49: #{a_call__.1} parent=0 // pred_fallthru
    _
  // Predicated region
  $region50: #{a_call__.1} parent=0 // pred_check
    _
  $region51: #{a_call__.1} parent=0 // pred_check_branch
    %6392 = sbr.rel (0) target = $region53
  $region52: #{a_call__.1} parent=0 // pred_region
    _
  $region53: #{a_call__.1} parent=0 // pred_fallthru
    _

</llo_original>
